<compile_context>
chip_gen: v5e
topology: v5e:2x2
jax: 0.10.0
libtpu: 0.0.40
codegen_flags: <defaults>
</compile_context>

<pallas_src>
import jax
import jax.numpy as jnp
from jax.experimental import pallas as pl
from jax.experimental.pallas import tpu as pltpu

HIDDEN = 64     # module default hidden_layers
HP = 128        # hidden padded so each gate fills a full 128-lane vreg
T = 8           # sequence length (number of batch_size=1 chunks)

# Rows of the small-parameter slab (8, 4*HP):
_ROW_WIH0 = 0
_ROW_B0 = 1
_ROW_B1 = 2
_ROW_WLIN = 3


def _lstm_kernel(xs_ref, slab_ref, whh0_ref, w1_ref, y_ref, h1_scr):
    """Whole T-step recurrence in one invocation; h/c live in vregs.

    xs_ref   : SMEM (T+1,) f32     -- x[0..T-1], then blin at index T
    slab_ref : VMEM (8, 4*HP) f32  -- rows: wih0, b0, b1, wlin(+zero pad), 0...
    whh0_ref : VMEM (HP, 4*HP) bf16
    w1_ref   : VMEM (2*HP, 4*HP) bf16  -- [wih1 ; whh1]
    y_ref    : VMEM (T, 1) f32
    h1_scr   : VMEM (T, HP) f32 scratch
    """
    hp = whh0_ref.shape[0]                  # padded hidden (128)
    n_steps = xs_ref.shape[0] - 1           # last SMEM entry is blin

    zeros = jnp.zeros((1, hp), jnp.float32)
    h0, c0, h1, c1 = zeros, zeros, zeros, zeros

    def split_gates(g):
        # PyTorch LSTMCell gate order (i, f, g, o); each slice is a full vreg.
        i = jax.nn.sigmoid(g[:, 0 * hp:1 * hp])
        f = jax.nn.sigmoid(g[:, 1 * hp:2 * hp])
        gg = jnp.tanh(g[:, 2 * hp:3 * hp])
        o = jax.nn.sigmoid(g[:, 3 * hp:4 * hp])
        return i, f, gg, o

    for t in range(n_steps):                # static unroll (T = 8)
        x_t = xs_ref[t]                     # scalar read from SMEM

        # ---- layer 0: scalar-broadcast input term + bf16 recurrent matmul ----
        # (weight / bias reads kept at use-site; do NOT hoist above the unroll)
        g0 = (x_t * slab_ref[_ROW_WIH0:_ROW_WIH0 + 1, :]
              + jnp.dot(h0.astype(jnp.bfloat16), whh0_ref[...],
                        preferred_element_type=jnp.float32)
              + slab_ref[_ROW_B0:_ROW_B0 + 1, :])
        i0, f0, gg0, o0 = split_gates(g0)
        c0 = f0 * c0 + i0 * gg0
        h0 = o0 * jnp.tanh(c0)

        # ---- layer 1: fused [h0 | h1] @ W1, single K=2*HP=256 bf16 matmul ----
        z1 = jnp.concatenate([h0, h1], axis=1).astype(jnp.bfloat16)   # (1, 2*HP)
        g1 = (jnp.dot(z1, w1_ref[...], preferred_element_type=jnp.float32)
              + slab_ref[_ROW_B1:_ROW_B1 + 1, :])
        i1, f1, gg1, o1 = split_gates(g1)
        c1 = f1 * c1 + i1 * gg1
        h1 = o1 * jnp.tanh(c1)

        # cheap per-step sublane store, off the recurrence chain
        h1_scr[pl.ds(t, 1), :] = h1

    # ---- final Linear(H -> 1) for all steps at once: VPU mul + lane reduce ----
    wlin = slab_ref[_ROW_WLIN:_ROW_WLIN + 1, 0:hp]                 # (1, HP)
    blin = xs_ref[n_steps]                                         # scalar
    out = jnp.sum(h1_scr[...] * wlin, axis=1, keepdims=True) + blin  # (T, 1)
    y_ref[...] = out                                               # single store


# ---------------------------------------------------------------------------
# Host-side packing: natural (PyTorch-transposed) params -> padded/fused layout
# ---------------------------------------------------------------------------
def _pad_gate_cols(w, H=HIDDEN, HPv=HP):
    """(K, 4H) -> (K, 4*HP): each gate's H columns padded to HP with zeros."""
    parts = [w[:, k * H:(k + 1) * H] for k in range(4)]
    return jnp.concatenate(
        [jnp.pad(p, ((0, 0), (0, HPv - H))) for p in parts], axis=1)


def _pack_params(params, H=HIDDEN, HPv=HP):
    wih0, whh0, b0, wih1, whh1, b1, wlin, blin = params
    pad_rows = lambda w: jnp.pad(w, ((0, HPv - H), (0, 0)))

    wih0p = _pad_gate_cols(wih0, H, HPv)                       # (1, 4HP)
    whh0p = pad_rows(_pad_gate_cols(whh0, H, HPv))             # (HP, 4HP)
    b0p = _pad_gate_cols(b0, H, HPv)                           # (1, 4HP)
    wih1p = pad_rows(_pad_gate_cols(wih1, H, HPv))             # (HP, 4HP)
    whh1p = pad_rows(_pad_gate_cols(whh1, H, HPv))             # (HP, 4HP)
    w1p = jnp.concatenate([wih1p, whh1p], axis=0)              # (2HP, 4HP)
    b1p = _pad_gate_cols(b1, H, HPv)                           # (1, 4HP)
    wlin_row = jnp.pad(pad_rows(wlin).T, ((0, 0), (0, 3 * HPv)))  # (1, 4HP)

    # one (8, 4*HP) f32 slab for all small parameters (single VMEM DMA)
    slab = jnp.concatenate(
        [wih0p, b0p, b1p, wlin_row,
         jnp.zeros((4, 4 * HPv), jnp.float32)], axis=0).astype(jnp.float32)

    return (slab,
            whh0p.astype(jnp.bfloat16),   # bf16 MXU operands
            w1p.astype(jnp.bfloat16),
            blin.astype(jnp.float32))


def lstm_forward(input_vals, params):
    """input_vals: (T, 1) float32 -> predictions (T, 1) float32."""
    Tn = input_vals.shape[0]
    slab, whh0p, w1p, blin = _pack_params(params)
    # x and blin share one SMEM array: [x_0 .. x_{T-1}, blin]
    xs = jnp.concatenate(
        [input_vals.reshape(Tn).astype(jnp.float32), blin.reshape(1)])

    smem = pl.BlockSpec(memory_space=pltpu.MemorySpace.SMEM)
    vmem = pl.BlockSpec(memory_space=pltpu.MemorySpace.VMEM)

    out = pl.pallas_call(
        _lstm_kernel,
        out_shape=jax.ShapeDtypeStruct((Tn, 1), jnp.float32),
        in_specs=[smem, vmem, vmem, vmem],
        out_specs=vmem,
        scratch_shapes=[pltpu.VMEM((Tn, HP), jnp.float32)],
    )(xs, slab, whh0p, w1p)
    return out


# ---------------------------------------------------------------------------
# Params + pure-JAX reference (natural, unpadded layout)
# ---------------------------------------------------------------------------
def make_params(key, H=HIDDEN):
    """Deterministic init mimicking PyTorch LSTMCell/Linear uniform(-1/sqrt(H), 1/sqrt(H))."""
    ks = jax.random.split(key, 12)
    s = 1.0 / jnp.sqrt(jnp.float32(H))
    u = lambda k, shape: jax.random.uniform(k, shape, jnp.float32, -s, s)
    # stored transposed relative to PyTorch: gates = x @ W_ih^T + h @ W_hh^T + b
    wih0 = u(ks[0], (1, 4 * H))
    whh0 = u(ks[1], (H, 4 * H))
    b0 = (u(ks[2], (1, 4 * H)) + u(ks[3], (1, 4 * H)))   # b_ih + b_hh
    wih1 = u(ks[4], (H, 4 * H))
    whh1 = u(ks[5], (H, 4 * H))
    b1 = (u(ks[6], (1, 4 * H)) + u(ks[7], (1, 4 * H)))
    wlin = u(ks[8], (H, 1))
    blin = u(ks[9], (1, 1))
    return (wih0, whh0, b0, wih1, whh1, b1, wlin, blin)


def lstm_forward_ref(input_vals, params, H=HIDDEN, bf16_matmul=False):
    """Pure-JAX reference reproducing the PyTorch loop (batch_size=1, future_preds=0).

    bf16_matmul=True mimics the kernel's rounding: recurrent/layer-1 matmul
    operands in bf16, accumulation and elementwise math in f32.
    """
    (wih0, whh0, b0, wih1, whh1, b1, wlin, blin) = params
    h0 = c0 = h1 = c1 = jnp.zeros((1, H), jnp.float32)

    def mm(a, w):
        if bf16_matmul:
            return jnp.dot(a.astype(jnp.bfloat16), w.astype(jnp.bfloat16),
                           preferred_element_type=jnp.float32)
        return a @ w

    def gates_to_hc(g, c):
        i, f, gg, o = jnp.split(g, 4, axis=1)
        c_new = jax.nn.sigmoid(f) * c + jax.nn.sigmoid(i) * jnp.tanh(gg)
        h_new = jax.nn.sigmoid(o) * jnp.tanh(c_new)
        return h_new, c_new

    outs = []
    for t in range(input_vals.shape[0]):
        x = input_vals[t:t + 1, :]
        # layer 0: x-term is a scalar multiply (kept f32 in the kernel too)
        g0 = x @ wih0 + mm(h0, whh0) + b0
        h0, c0 = gates_to_hc(g0, c0)
        g1 = mm(h0, wih1) + mm(h1, whh1) + b1
        h1, c1 = gates_to_hc(g1, c1)
        outs.append(h1 @ wlin + blin)
    return jnp.concatenate(outs, axis=0)


if __name__ == "__main__":
    key = jax.random.PRNGKey(0)
    kx, kp = jax.random.split(key)
    input_vals = jax.random.normal(kx, (T, 1), jnp.float32)   # (seq, 1)
    params = make_params(kp)

    out = lstm_forward(input_vals, params)
    out = jax.block_until_ready(out)

    ref_bf16 = lstm_forward_ref(input_vals, params, bf16_matmul=True)
    ref_f32 = lstm_forward_ref(input_vals, params, bf16_matmul=False)

    assert out.shape == (T, 1)
    # tight check vs. a reference with identical bf16-operand matmul rounding
    assert jnp.allclose(out, ref_bf16, atol=5e-3, rtol=5e-3), (out, ref_bf16)
    # loose check vs. the exact f32 PyTorch-equivalent reference
    assert jnp.allclose(out, ref_f32, atol=5e-2, rtol=5e-2), (out, ref_f32)
    print("KERNEL_OK")
</pallas_src>

<mosaic_0001>
module attributes {stable_mosaic.version = 11 : i64} {
  func.func @_lstm_kernel(%arg0: memref<9xf32, #tpu.memory_space<smem>>, %arg1: memref<8x512xf32, #tpu.memory_space<vmem>>, %arg2: memref<128x512xbf16, #tpu.memory_space<vmem>>, %arg3: memref<256x512xbf16, #tpu.memory_space<vmem>>, %arg4: memref<8x1xf32, #tpu.memory_space<vmem>>, %arg5: memref<8x128xf32, #tpu.memory_space<vmem>>) attributes {dimension_semantics = [], scalar_prefetch = 0 : i64, scratch_operands = 1 : i64, tpu.core_type = #tpu.core_type<tc>} {
    %cst = arith.constant 0.000000e+00 : f32
    %0 = vector.broadcast %cst : f32 to vector<1x128xf32>
    %c0 = arith.constant 0 : index
    %1 = memref.load %arg0[%c0] : memref<9xf32, #tpu.memory_space<smem>>
    %c0_0 = arith.constant 0 : index
    %c0_1 = arith.constant 0 : index
    %2 = vector.load %arg1[%c0_0, %c0_1] : memref<8x512xf32, #tpu.memory_space<vmem>>, vector<1x512xf32>
    %3 = vector.broadcast %1 : f32 to vector<1x512xf32>
    %4 = arith.mulf %3, %2 : vector<1x512xf32>
    %5 = arith.truncf %0 : vector<1x128xf32> to vector<1x128xbf16>
    %c0_2 = arith.constant 0 : index
    %c0_3 = arith.constant 0 : index
    %6 = vector.load %arg2[%c0_2, %c0_3] : memref<128x512xbf16, #tpu.memory_space<vmem>>, vector<128x512xbf16>
    %cst_4 = arith.constant dense<0.000000e+00> : vector<1x512xf32>
    %7 = tpu.matmul %5, %6, %cst_4 {dimension_numbers = #tpu.dot_dimension_numbers<[1], [0], [0], [1], [0, 0, 1, 1], [], []>} : vector<1x128xbf16>, vector<128x512xbf16>, vector<1x512xf32> -> vector<1x512xf32>
    %8 = arith.addf %4, %7 : vector<1x512xf32>
    %c1 = arith.constant 1 : index
    %c0_5 = arith.constant 0 : index
    %9 = vector.load %arg1[%c1, %c0_5] : memref<8x512xf32, #tpu.memory_space<vmem>>, vector<1x512xf32>
    %10 = arith.addf %8, %9 : vector<1x512xf32>
    %11 = vector.extract_strided_slice %10 {offsets = [0, 0], sizes = [1, 128], strides = [1, 1]} : vector<1x512xf32> to vector<1x128xf32>
    %12 = arith.negf %11 : vector<1x128xf32>
    %13 = math.exp %12 : vector<1x128xf32>
    %cst_6 = arith.constant 1.000000e+00 : f32
    %14 = vector.broadcast %cst_6 : f32 to vector<1x128xf32>
    %15 = arith.addf %14, %13 : vector<1x128xf32>
    %16 = arith.divf %14, %15 : vector<1x128xf32>
    %17 = vector.extract_strided_slice %10 {offsets = [0, 128], sizes = [1, 128], strides = [1, 1]} : vector<1x512xf32> to vector<1x128xf32>
    %18 = arith.negf %17 : vector<1x128xf32>
    %19 = math.exp %18 : vector<1x128xf32>
    %cst_7 = arith.constant 1.000000e+00 : f32
    %20 = vector.broadcast %cst_7 : f32 to vector<1x128xf32>
    %21 = arith.addf %20, %19 : vector<1x128xf32>
    %22 = arith.divf %20, %21 : vector<1x128xf32>
    %23 = vector.extract_strided_slice %10 {offsets = [0, 256], sizes = [1, 128], strides = [1, 1]} : vector<1x512xf32> to vector<1x128xf32>
    %24 = math.tanh %23 : vector<1x128xf32>
    %25 = vector.extract_strided_slice %10 {offsets = [0, 384], sizes = [1, 128], strides = [1, 1]} : vector<1x512xf32> to vector<1x128xf32>
    %26 = arith.negf %25 : vector<1x128xf32>
    %27 = math.exp %26 : vector<1x128xf32>
    %cst_8 = arith.constant 1.000000e+00 : f32
    %28 = vector.broadcast %cst_8 : f32 to vector<1x128xf32>
    %29 = arith.addf %28, %27 : vector<1x128xf32>
    %30 = arith.divf %28, %29 : vector<1x128xf32>
    %31 = arith.mulf %22, %0 : vector<1x128xf32>
    %32 = arith.mulf %16, %24 : vector<1x128xf32>
    %33 = arith.addf %31, %32 : vector<1x128xf32>
    %34 = math.tanh %33 : vector<1x128xf32>
    %35 = arith.mulf %30, %34 : vector<1x128xf32>
    %36 = tpu.concatenate %35, %0 in 1 : vector<1x128xf32>, vector<1x128xf32> -> vector<1x256xf32>
    %37 = arith.truncf %36 : vector<1x256xf32> to vector<1x256xbf16>
    %c0_9 = arith.constant 0 : index
    %c0_10 = arith.constant 0 : index
    %38 = vector.load %arg3[%c0_9, %c0_10] : memref<256x512xbf16, #tpu.memory_space<vmem>>, vector<256x512xbf16>
    %cst_11 = arith.constant dense<0.000000e+00> : vector<1x512xf32>
    %39 = tpu.matmul %37, %38, %cst_11 {dimension_numbers = #tpu.dot_dimension_numbers<[1], [0], [0], [1], [0, 0, 1, 1], [], []>} : vector<1x256xbf16>, vector<256x512xbf16>, vector<1x512xf32> -> vector<1x512xf32>
    %c2 = arith.constant 2 : index
    %c0_12 = arith.constant 0 : index
    %40 = vector.load %arg1[%c2, %c0_12] : memref<8x512xf32, #tpu.memory_space<vmem>>, vector<1x512xf32>
    %41 = arith.addf %39, %40 : vector<1x512xf32>
    %42 = vector.extract_strided_slice %41 {offsets = [0, 0], sizes = [1, 128], strides = [1, 1]} : vector<1x512xf32> to vector<1x128xf32>
    %43 = arith.negf %42 : vector<1x128xf32>
    %44 = math.exp %43 : vector<1x128xf32>
    %cst_13 = arith.constant 1.000000e+00 : f32
    %45 = vector.broadcast %cst_13 : f32 to vector<1x128xf32>
    %46 = arith.addf %45, %44 : vector<1x128xf32>
    %47 = arith.divf %45, %46 : vector<1x128xf32>
    %48 = vector.extract_strided_slice %41 {offsets = [0, 128], sizes = [1, 128], strides = [1, 1]} : vector<1x512xf32> to vector<1x128xf32>
    %49 = arith.negf %48 : vector<1x128xf32>
    %50 = math.exp %49 : vector<1x128xf32>
    %cst_14 = arith.constant 1.000000e+00 : f32
    %51 = vector.broadcast %cst_14 : f32 to vector<1x128xf32>
    %52 = arith.addf %51, %50 : vector<1x128xf32>
    %53 = arith.divf %51, %52 : vector<1x128xf32>
    %54 = vector.extract_strided_slice %41 {offsets = [0, 256], sizes = [1, 128], strides = [1, 1]} : vector<1x512xf32> to vector<1x128xf32>
    %55 = math.tanh %54 : vector<1x128xf32>
    %56 = vector.extract_strided_slice %41 {offsets = [0, 384], sizes = [1, 128], strides = [1, 1]} : vector<1x512xf32> to vector<1x128xf32>
    %57 = arith.negf %56 : vector<1x128xf32>
    %58 = math.exp %57 : vector<1x128xf32>
    %cst_15 = arith.constant 1.000000e+00 : f32
    %59 = vector.broadcast %cst_15 : f32 to vector<1x128xf32>
    %60 = arith.addf %59, %58 : vector<1x128xf32>
    %61 = arith.divf %59, %60 : vector<1x128xf32>
    %62 = arith.mulf %53, %0 : vector<1x128xf32>
    %63 = arith.mulf %47, %55 : vector<1x128xf32>
    %64 = arith.addf %62, %63 : vector<1x128xf32>
    %65 = math.tanh %64 : vector<1x128xf32>
    %66 = arith.mulf %61, %65 : vector<1x128xf32>
    %c0_16 = arith.constant 0 : index
    %c0_17 = arith.constant 0 : index
    %67 = vector.load %arg5[%c0_16, %c0_17] : memref<8x128xf32, #tpu.memory_space<vmem>>, vector<1x128xf32>
    tpu.vector_store %arg5[%c0_16, %c0_17], %66 {strides = array<i32>} : memref<8x128xf32, #tpu.memory_space<vmem>>, vector<1x128xf32>,
    %c1_18 = arith.constant 1 : index
    %68 = memref.load %arg0[%c1_18] : memref<9xf32, #tpu.memory_space<smem>>
    %c0_19 = arith.constant 0 : index
    %c0_20 = arith.constant 0 : index
    %69 = vector.load %arg1[%c0_19, %c0_20] : memref<8x512xf32, #tpu.memory_space<vmem>>, vector<1x512xf32>
    %70 = vector.broadcast %68 : f32 to vector<1x512xf32>
    %71 = arith.mulf %70, %69 : vector<1x512xf32>
    %72 = arith.truncf %35 : vector<1x128xf32> to vector<1x128xbf16>
    %c0_21 = arith.constant 0 : index
    %c0_22 = arith.constant 0 : index
    %73 = vector.load %arg2[%c0_21, %c0_22] : memref<128x512xbf16, #tpu.memory_space<vmem>>, vector<128x512xbf16>
    %cst_23 = arith.constant dense<0.000000e+00> : vector<1x512xf32>
    %74 = tpu.matmul %72, %73, %cst_23 {dimension_numbers = #tpu.dot_dimension_numbers<[1], [0], [0], [1], [0, 0, 1, 1], [], []>} : vector<1x128xbf16>, vector<128x512xbf16>, vector<1x512xf32> -> vector<1x512xf32>
    %75 = arith.addf %71, %74 : vector<1x512xf32>
    %c1_24 = arith.constant 1 : index
    %c0_25 = arith.constant 0 : index
    %76 = vector.load %arg1[%c1_24, %c0_25] : memref<8x512xf32, #tpu.memory_space<vmem>>, vector<1x512xf32>
    %77 = arith.addf %75, %76 : vector<1x512xf32>
    %78 = vector.extract_strided_slice %77 {offsets = [0, 0], sizes = [1, 128], strides = [1, 1]} : vector<1x512xf32> to vector<1x128xf32>
    %79 = arith.negf %78 : vector<1x128xf32>
    %80 = math.exp %79 : vector<1x128xf32>
    %cst_26 = arith.constant 1.000000e+00 : f32
    %81 = vector.broadcast %cst_26 : f32 to vector<1x128xf32>
    %82 = arith.addf %81, %80 : vector<1x128xf32>
    %83 = arith.divf %81, %82 : vector<1x128xf32>
    %84 = vector.extract_strided_slice %77 {offsets = [0, 128], sizes = [1, 128], strides = [1, 1]} : vector<1x512xf32> to vector<1x128xf32>
    %85 = arith.negf %84 : vector<1x128xf32>
    %86 = math.exp %85 : vector<1x128xf32>
    %cst_27 = arith.constant 1.000000e+00 : f32
    %87 = vector.broadcast %cst_27 : f32 to vector<1x128xf32>
    %88 = arith.addf %87, %86 : vector<1x128xf32>
    %89 = arith.divf %87, %88 : vector<1x128xf32>
    %90 = vector.extract_strided_slice %77 {offsets = [0, 256], sizes = [1, 128], strides = [1, 1]} : vector<1x512xf32> to vector<1x128xf32>
    %91 = math.tanh %90 : vector<1x128xf32>
    %92 = vector.extract_strided_slice %77 {offsets = [0, 384], sizes = [1, 128], strides = [1, 1]} : vector<1x512xf32> to vector<1x128xf32>
    %93 = arith.negf %92 : vector<1x128xf32>
    %94 = math.exp %93 : vector<1x128xf32>
    %cst_28 = arith.constant 1.000000e+00 : f32
    %95 = vector.broadcast %cst_28 : f32 to vector<1x128xf32>
    %96 = arith.addf %95, %94 : vector<1x128xf32>
    %97 = arith.divf %95, %96 : vector<1x128xf32>
    %98 = arith.mulf %89, %33 : vector<1x128xf32>
    %99 = arith.mulf %83, %91 : vector<1x128xf32>
    %100 = arith.addf %98, %99 : vector<1x128xf32>
    %101 = math.tanh %100 : vector<1x128xf32>
    %102 = arith.mulf %97, %101 : vector<1x128xf32>
    %103 = tpu.concatenate %102, %66 in 1 : vector<1x128xf32>, vector<1x128xf32> -> vector<1x256xf32>
    %104 = arith.truncf %103 : vector<1x256xf32> to vector<1x256xbf16>
    %c0_29 = arith.constant 0 : index
    %c0_30 = arith.constant 0 : index
    %105 = vector.load %arg3[%c0_29, %c0_30] : memref<256x512xbf16, #tpu.memory_space<vmem>>, vector<256x512xbf16>
    %cst_31 = arith.constant dense<0.000000e+00> : vector<1x512xf32>
    %106 = tpu.matmul %104, %105, %cst_31 {dimension_numbers = #tpu.dot_dimension_numbers<[1], [0], [0], [1], [0, 0, 1, 1], [], []>} : vector<1x256xbf16>, vector<256x512xbf16>, vector<1x512xf32> -> vector<1x512xf32>
    %c2_32 = arith.constant 2 : index
    %c0_33 = arith.constant 0 : index
    %107 = vector.load %arg1[%c2_32, %c0_33] : memref<8x512xf32, #tpu.memory_space<vmem>>, vector<1x512xf32>
    %108 = arith.addf %106, %107 : vector<1x512xf32>
    %109 = vector.extract_strided_slice %108 {offsets = [0, 0], sizes = [1, 128], strides = [1, 1]} : vector<1x512xf32> to vector<1x128xf32>
    %110 = arith.negf %109 : vector<1x128xf32>
    %111 = math.exp %110 : vector<1x128xf32>
    %cst_34 = arith.constant 1.000000e+00 : f32
    %112 = vector.broadcast %cst_34 : f32 to vector<1x128xf32>
    %113 = arith.addf %112, %111 : vector<1x128xf32>
    %114 = arith.divf %112, %113 : vector<1x128xf32>
    %115 = vector.extract_strided_slice %108 {offsets = [0, 128], sizes = [1, 128], strides = [1, 1]} : vector<1x512xf32> to vector<1x128xf32>
    %116 = arith.negf %115 : vector<1x128xf32>
    %117 = math.exp %116 : vector<1x128xf32>
    %cst_35 = arith.constant 1.000000e+00 : f32
    %118 = vector.broadcast %cst_35 : f32 to vector<1x128xf32>
    %119 = arith.addf %118, %117 : vector<1x128xf32>
    %120 = arith.divf %118, %119 : vector<1x128xf32>
    %121 = vector.extract_strided_slice %108 {offsets = [0, 256], sizes = [1, 128], strides = [1, 1]} : vector<1x512xf32> to vector<1x128xf32>
    %122 = math.tanh %121 : vector<1x128xf32>
    %123 = vector.extract_strided_slice %108 {offsets = [0, 384], sizes = [1, 128], strides = [1, 1]} : vector<1x512xf32> to vector<1x128xf32>
    %124 = arith.negf %123 : vector<1x128xf32>
    %125 = math.exp %124 : vector<1x128xf32>
    %cst_36 = arith.constant 1.000000e+00 : f32
    %126 = vector.broadcast %cst_36 : f32 to vector<1x128xf32>
    %127 = arith.addf %126, %125 : vector<1x128xf32>
    %128 = arith.divf %126, %127 : vector<1x128xf32>
    %129 = arith.mulf %120, %64 : vector<1x128xf32>
    %130 = arith.mulf %114, %122 : vector<1x128xf32>
    %131 = arith.addf %129, %130 : vector<1x128xf32>
    %132 = math.tanh %131 : vector<1x128xf32>
    %133 = arith.mulf %128, %132 : vector<1x128xf32>
    %c1_37 = arith.constant 1 : index
    %c0_38 = arith.constant 0 : index
    %134 = vector.load %arg5[%c1_37, %c0_38] : memref<8x128xf32, #tpu.memory_space<vmem>>, vector<1x128xf32>
    tpu.vector_store %arg5[%c1_37, %c0_38], %133 {strides = array<i32>} : memref<8x128xf32, #tpu.memory_space<vmem>>, vector<1x128xf32>,
    %c2_39 = arith.constant 2 : index
    %135 = memref.load %arg0[%c2_39] : memref<9xf32, #tpu.memory_space<smem>>
    %c0_40 = arith.constant 0 : index
    %c0_41 = arith.constant 0 : index
    %136 = vector.load %arg1[%c0_40, %c0_41] : memref<8x512xf32, #tpu.memory_space<vmem>>, vector<1x512xf32>
    %137 = vector.broadcast %135 : f32 to vector<1x512xf32>
    %138 = arith.mulf %137, %136 : vector<1x512xf32>
    %139 = arith.truncf %102 : vector<1x128xf32> to vector<1x128xbf16>
    %c0_42 = arith.constant 0 : index
    %c0_43 = arith.constant 0 : index
    %140 = vector.load %arg2[%c0_42, %c0_43] : memref<128x512xbf16, #tpu.memory_space<vmem>>, vector<128x512xbf16>
    %cst_44 = arith.constant dense<0.000000e+00> : vector<1x512xf32>
    %141 = tpu.matmul %139, %140, %cst_44 {dimension_numbers = #tpu.dot_dimension_numbers<[1], [0], [0], [1], [0, 0, 1, 1], [], []>} : vector<1x128xbf16>, vector<128x512xbf16>, vector<1x512xf32> -> vector<1x512xf32>
    %142 = arith.addf %138, %141 : vector<1x512xf32>
    %c1_45 = arith.constant 1 : index
    %c0_46 = arith.constant 0 : index
    %143 = vector.load %arg1[%c1_45, %c0_46] : memref<8x512xf32, #tpu.memory_space<vmem>>, vector<1x512xf32>
    %144 = arith.addf %142, %143 : vector<1x512xf32>
    %145 = vector.extract_strided_slice %144 {offsets = [0, 0], sizes = [1, 128], strides = [1, 1]} : vector<1x512xf32> to vector<1x128xf32>
    %146 = arith.negf %145 : vector<1x128xf32>
    %147 = math.exp %146 : vector<1x128xf32>
    %cst_47 = arith.constant 1.000000e+00 : f32
    %148 = vector.broadcast %cst_47 : f32 to vector<1x128xf32>
    %149 = arith.addf %148, %147 : vector<1x128xf32>
    %150 = arith.divf %148, %149 : vector<1x128xf32>
    %151 = vector.extract_strided_slice %144 {offsets = [0, 128], sizes = [1, 128], strides = [1, 1]} : vector<1x512xf32> to vector<1x128xf32>
    %152 = arith.negf %151 : vector<1x128xf32>
    %153 = math.exp %152 : vector<1x128xf32>
    %cst_48 = arith.constant 1.000000e+00 : f32
    %154 = vector.broadcast %cst_48 : f32 to vector<1x128xf32>
    %155 = arith.addf %154, %153 : vector<1x128xf32>
    %156 = arith.divf %154, %155 : vector<1x128xf32>
    %157 = vector.extract_strided_slice %144 {offsets = [0, 256], sizes = [1, 128], strides = [1, 1]} : vector<1x512xf32> to vector<1x128xf32>
    %158 = math.tanh %157 : vector<1x128xf32>
    %159 = vector.extract_strided_slice %144 {offsets = [0, 384], sizes = [1, 128], strides = [1, 1]} : vector<1x512xf32> to vector<1x128xf32>
    %160 = arith.negf %159 : vector<1x128xf32>
    %161 = math.exp %160 : vector<1x128xf32>
    %cst_49 = arith.constant 1.000000e+00 : f32
    %162 = vector.broadcast %cst_49 : f32 to vector<1x128xf32>
    %163 = arith.addf %162, %161 : vector<1x128xf32>
    %164 = arith.divf %162, %163 : vector<1x128xf32>
    %165 = arith.mulf %156, %100 : vector<1x128xf32>
    %166 = arith.mulf %150, %158 : vector<1x128xf32>
    %167 = arith.addf %165, %166 : vector<1x128xf32>
    %168 = math.tanh %167 : vector<1x128xf32>
    %169 = arith.mulf %164, %168 : vector<1x128xf32>
    %170 = tpu.concatenate %169, %133 in 1 : vector<1x128xf32>, vector<1x128xf32> -> vector<1x256xf32>
    %171 = arith.truncf %170 : vector<1x256xf32> to vector<1x256xbf16>
    %c0_50 = arith.constant 0 : index
    %c0_51 = arith.constant 0 : index
    %172 = vector.load %arg3[%c0_50, %c0_51] : memref<256x512xbf16, #tpu.memory_space<vmem>>, vector<256x512xbf16>
    %cst_52 = arith.constant dense<0.000000e+00> : vector<1x512xf32>
    %173 = tpu.matmul %171, %172, %cst_52 {dimension_numbers = #tpu.dot_dimension_numbers<[1], [0], [0], [1], [0, 0, 1, 1], [], []>} : vector<1x256xbf16>, vector<256x512xbf16>, vector<1x512xf32> -> vector<1x512xf32>
    %c2_53 = arith.constant 2 : index
    %c0_54 = arith.constant 0 : index
    %174 = vector.load %arg1[%c2_53, %c0_54] : memref<8x512xf32, #tpu.memory_space<vmem>>, vector<1x512xf32>
    %175 = arith.addf %173, %174 : vector<1x512xf32>
    %176 = vector.extract_strided_slice %175 {offsets = [0, 0], sizes = [1, 128], strides = [1, 1]} : vector<1x512xf32> to vector<1x128xf32>
    %177 = arith.negf %176 : vector<1x128xf32>
    %178 = math.exp %177 : vector<1x128xf32>
    %cst_55 = arith.constant 1.000000e+00 : f32
    %179 = vector.broadcast %cst_55 : f32 to vector<1x128xf32>
    %180 = arith.addf %179, %178 : vector<1x128xf32>
    %181 = arith.divf %179, %180 : vector<1x128xf32>
    %182 = vector.extract_strided_slice %175 {offsets = [0, 128], sizes = [1, 128], strides = [1, 1]} : vector<1x512xf32> to vector<1x128xf32>
    %183 = arith.negf %182 : vector<1x128xf32>
    %184 = math.exp %183 : vector<1x128xf32>
    %cst_56 = arith.constant 1.000000e+00 : f32
    %185 = vector.broadcast %cst_56 : f32 to vector<1x128xf32>
    %186 = arith.addf %185, %184 : vector<1x128xf32>
    %187 = arith.divf %185, %186 : vector<1x128xf32>
    %188 = vector.extract_strided_slice %175 {offsets = [0, 256], sizes = [1, 128], strides = [1, 1]} : vector<1x512xf32> to vector<1x128xf32>
    %189 = math.tanh %188 : vector<1x128xf32>
    %190 = vector.extract_strided_slice %175 {offsets = [0, 384], sizes = [1, 128], strides = [1, 1]} : vector<1x512xf32> to vector<1x128xf32>
    %191 = arith.negf %190 : vector<1x128xf32>
    %192 = math.exp %191 : vector<1x128xf32>
    %cst_57 = arith.constant 1.000000e+00 : f32
    %193 = vector.broadcast %cst_57 : f32 to vector<1x128xf32>
    %194 = arith.addf %193, %192 : vector<1x128xf32>
    %195 = arith.divf %193, %194 : vector<1x128xf32>
    %196 = arith.mulf %187, %131 : vector<1x128xf32>
    %197 = arith.mulf %181, %189 : vector<1x128xf32>
    %198 = arith.addf %196, %197 : vector<1x128xf32>
    %199 = math.tanh %198 : vector<1x128xf32>
    %200 = arith.mulf %195, %199 : vector<1x128xf32>
    %c2_58 = arith.constant 2 : index
    %c0_59 = arith.constant 0 : index
    %201 = vector.load %arg5[%c2_58, %c0_59] : memref<8x128xf32, #tpu.memory_space<vmem>>, vector<1x128xf32>
    tpu.vector_store %arg5[%c2_58, %c0_59], %200 {strides = array<i32>} : memref<8x128xf32, #tpu.memory_space<vmem>>, vector<1x128xf32>,
    %c3 = arith.constant 3 : index
    %202 = memref.load %arg0[%c3] : memref<9xf32, #tpu.memory_space<smem>>
    %c0_60 = arith.constant 0 : index
    %c0_61 = arith.constant 0 : index
    %203 = vector.load %arg1[%c0_60, %c0_61] : memref<8x512xf32, #tpu.memory_space<vmem>>, vector<1x512xf32>
    %204 = vector.broadcast %202 : f32 to vector<1x512xf32>
    %205 = arith.mulf %204, %203 : vector<1x512xf32>
    %206 = arith.truncf %169 : vector<1x128xf32> to vector<1x128xbf16>
    %c0_62 = arith.constant 0 : index
    %c0_63 = arith.constant 0 : index
    %207 = vector.load %arg2[%c0_62, %c0_63] : memref<128x512xbf16, #tpu.memory_space<vmem>>, vector<128x512xbf16>
    %cst_64 = arith.constant dense<0.000000e+00> : vector<1x512xf32>
    %208 = tpu.matmul %206, %207, %cst_64 {dimension_numbers = #tpu.dot_dimension_numbers<[1], [0], [0], [1], [0, 0, 1, 1], [], []>} : vector<1x128xbf16>, vector<128x512xbf16>, vector<1x512xf32> -> vector<1x512xf32>
    %209 = arith.addf %205, %208 : vector<1x512xf32>
    %c1_65 = arith.constant 1 : index
    %c0_66 = arith.constant 0 : index
    %210 = vector.load %arg1[%c1_65, %c0_66] : memref<8x512xf32, #tpu.memory_space<vmem>>, vector<1x512xf32>
    %211 = arith.addf %209, %210 : vector<1x512xf32>
    %212 = vector.extract_strided_slice %211 {offsets = [0, 0], sizes = [1, 128], strides = [1, 1]} : vector<1x512xf32> to vector<1x128xf32>
    %213 = arith.negf %212 : vector<1x128xf32>
    %214 = math.exp %213 : vector<1x128xf32>
    %cst_67 = arith.constant 1.000000e+00 : f32
    %215 = vector.broadcast %cst_67 : f32 to vector<1x128xf32>
    %216 = arith.addf %215, %214 : vector<1x128xf32>
    %217 = arith.divf %215, %216 : vector<1x128xf32>
    %218 = vector.extract_strided_slice %211 {offsets = [0, 128], sizes = [1, 128], strides = [1, 1]} : vector<1x512xf32> to vector<1x128xf32>
    %219 = arith.negf %218 : vector<1x128xf32>
    %220 = math.exp %219 : vector<1x128xf32>
    %cst_68 = arith.constant 1.000000e+00 : f32
    %221 = vector.broadcast %cst_68 : f32 to vector<1x128xf32>
    %222 = arith.addf %221, %220 : vector<1x128xf32>
    %223 = arith.divf %221, %222 : vector<1x128xf32>
    %224 = vector.extract_strided_slice %211 {offsets = [0, 256], sizes = [1, 128], strides = [1, 1]} : vector<1x512xf32> to vector<1x128xf32>
    %225 = math.tanh %224 : vector<1x128xf32>
    %226 = vector.extract_strided_slice %211 {offsets = [0, 384], sizes = [1, 128], strides = [1, 1]} : vector<1x512xf32> to vector<1x128xf32>
    %227 = arith.negf %226 : vector<1x128xf32>
    %228 = math.exp %227 : vector<1x128xf32>
    %cst_69 = arith.constant 1.000000e+00 : f32
    %229 = vector.broadcast %cst_69 : f32 to vector<1x128xf32>
    %230 = arith.addf %229, %228 : vector<1x128xf32>
    %231 = arith.divf %229, %230 : vector<1x128xf32>
    %232 = arith.mulf %223, %167 : vector<1x128xf32>
    %233 = arith.mulf %217, %225 : vector<1x128xf32>
    %234 = arith.addf %232, %233 : vector<1x128xf32>
    %235 = math.tanh %234 : vector<1x128xf32>
    %236 = arith.mulf %231, %235 : vector<1x128xf32>
    %237 = tpu.concatenate %236, %200 in 1 : vector<1x128xf32>, vector<1x128xf32> -> vector<1x256xf32>
    %238 = arith.truncf %237 : vector<1x256xf32> to vector<1x256xbf16>
    %c0_70 = arith.constant 0 : index
    %c0_71 = arith.constant 0 : index
    %239 = vector.load %arg3[%c0_70, %c0_71] : memref<256x512xbf16, #tpu.memory_space<vmem>>, vector<256x512xbf16>
    %cst_72 = arith.constant dense<0.000000e+00> : vector<1x512xf32>
    %240 = tpu.matmul %238, %239, %cst_72 {dimension_numbers = #tpu.dot_dimension_numbers<[1], [0], [0], [1], [0, 0, 1, 1], [], []>} : vector<1x256xbf16>, vector<256x512xbf16>, vector<1x512xf32> -> vector<1x512xf32>
    %c2_73 = arith.constant 2 : index
    %c0_74 = arith.constant 0 : index
    %241 = vector.load %arg1[%c2_73, %c0_74] : memref<8x512xf32, #tpu.memory_space<vmem>>, vector<1x512xf32>
    %242 = arith.addf %240, %241 : vector<1x512xf32>
    %243 = vector.extract_strided_slice %242 {offsets = [0, 0], sizes = [1, 128], strides = [1, 1]} : vector<1x512xf32> to vector<1x128xf32>
    %244 = arith.negf %243 : vector<1x128xf32>
    %245 = math.exp %244 : vector<1x128xf32>
    %cst_75 = arith.constant 1.000000e+00 : f32
    %246 = vector.broadcast %cst_75 : f32 to vector<1x128xf32>
    %247 = arith.addf %246, %245 : vector<1x128xf32>
    %248 = arith.divf %246, %247 : vector<1x128xf32>
    %249 = vector.extract_strided_slice %242 {offsets = [0, 128], sizes = [1, 128], strides = [1, 1]} : vector<1x512xf32> to vector<1x128xf32>
    %250 = arith.negf %249 : vector<1x128xf32>
    %251 = math.exp %250 : vector<1x128xf32>
    %cst_76 = arith.constant 1.000000e+00 : f32
    %252 = vector.broadcast %cst_76 : f32 to vector<1x128xf32>
    %253 = arith.addf %252, %251 : vector<1x128xf32>
    %254 = arith.divf %252, %253 : vector<1x128xf32>
    %255 = vector.extract_strided_slice %242 {offsets = [0, 256], sizes = [1, 128], strides = [1, 1]} : vector<1x512xf32> to vector<1x128xf32>
    %256 = math.tanh %255 : vector<1x128xf32>
    %257 = vector.extract_strided_slice %242 {offsets = [0, 384], sizes = [1, 128], strides = [1, 1]} : vector<1x512xf32> to vector<1x128xf32>
    %258 = arith.negf %257 : vector<1x128xf32>
    %259 = math.exp %258 : vector<1x128xf32>
    %cst_77 = arith.constant 1.000000e+00 : f32
    %260 = vector.broadcast %cst_77 : f32 to vector<1x128xf32>
    %261 = arith.addf %260, %259 : vector<1x128xf32>
    %262 = arith.divf %260, %261 : vector<1x128xf32>
    %263 = arith.mulf %254, %198 : vector<1x128xf32>
    %264 = arith.mulf %248, %256 : vector<1x128xf32>
    %265 = arith.addf %263, %264 : vector<1x128xf32>
    %266 = math.tanh %265 : vector<1x128xf32>
    %267 = arith.mulf %262, %266 : vector<1x128xf32>
    %c3_78 = arith.constant 3 : index
    %c0_79 = arith.constant 0 : index
    %268 = vector.load %arg5[%c3_78, %c0_79] : memref<8x128xf32, #tpu.memory_space<vmem>>, vector<1x128xf32>
    tpu.vector_store %arg5[%c3_78, %c0_79], %267 {strides = array<i32>} : memref<8x128xf32, #tpu.memory_space<vmem>>, vector<1x128xf32>,
    %c4 = arith.constant 4 : index
    %269 = memref.load %arg0[%c4] : memref<9xf32, #tpu.memory_space<smem>>
    %c0_80 = arith.constant 0 : index
    %c0_81 = arith.constant 0 : index
    %270 = vector.load %arg1[%c0_80, %c0_81] : memref<8x512xf32, #tpu.memory_space<vmem>>, vector<1x512xf32>
    %271 = vector.broadcast %269 : f32 to vector<1x512xf32>
    %272 = arith.mulf %271, %270 : vector<1x512xf32>
    %273 = arith.truncf %236 : vector<1x128xf32> to vector<1x128xbf16>
    %c0_82 = arith.constant 0 : index
    %c0_83 = arith.constant 0 : index
    %274 = vector.load %arg2[%c0_82, %c0_83] : memref<128x512xbf16, #tpu.memory_space<vmem>>, vector<128x512xbf16>
    %cst_84 = arith.constant dense<0.000000e+00> : vector<1x512xf32>
    %275 = tpu.matmul %273, %274, %cst_84 {dimension_numbers = #tpu.dot_dimension_numbers<[1], [0], [0], [1], [0, 0, 1, 1], [], []>} : vector<1x128xbf16>, vector<128x512xbf16>, vector<1x512xf32> -> vector<1x512xf32>
    %276 = arith.addf %272, %275 : vector<1x512xf32>
    %c1_85 = arith.constant 1 : index
    %c0_86 = arith.constant 0 : index
    %277 = vector.load %arg1[%c1_85, %c0_86] : memref<8x512xf32, #tpu.memory_space<vmem>>, vector<1x512xf32>
    %278 = arith.addf %276, %277 : vector<1x512xf32>
    %279 = vector.extract_strided_slice %278 {offsets = [0, 0], sizes = [1, 128], strides = [1, 1]} : vector<1x512xf32> to vector<1x128xf32>
    %280 = arith.negf %279 : vector<1x128xf32>
    %281 = math.exp %280 : vector<1x128xf32>
    %cst_87 = arith.constant 1.000000e+00 : f32
    %282 = vector.broadcast %cst_87 : f32 to vector<1x128xf32>
    %283 = arith.addf %282, %281 : vector<1x128xf32>
    %284 = arith.divf %282, %283 : vector<1x128xf32>
    %285 = vector.extract_strided_slice %278 {offsets = [0, 128], sizes = [1, 128], strides = [1, 1]} : vector<1x512xf32> to vector<1x128xf32>
    %286 = arith.negf %285 : vector<1x128xf32>
    %287 = math.exp %286 : vector<1x128xf32>
    %cst_88 = arith.constant 1.000000e+00 : f32
    %288 = vector.broadcast %cst_88 : f32 to vector<1x128xf32>
    %289 = arith.addf %288, %287 : vector<1x128xf32>
    %290 = arith.divf %288, %289 : vector<1x128xf32>
    %291 = vector.extract_strided_slice %278 {offsets = [0, 256], sizes = [1, 128], strides = [1, 1]} : vector<1x512xf32> to vector<1x128xf32>
    %292 = math.tanh %291 : vector<1x128xf32>
    %293 = vector.extract_strided_slice %278 {offsets = [0, 384], sizes = [1, 128], strides = [1, 1]} : vector<1x512xf32> to vector<1x128xf32>
    %294 = arith.negf %293 : vector<1x128xf32>
    %295 = math.exp %294 : vector<1x128xf32>
    %cst_89 = arith.constant 1.000000e+00 : f32
    %296 = vector.broadcast %cst_89 : f32 to vector<1x128xf32>
    %297 = arith.addf %296, %295 : vector<1x128xf32>
    %298 = arith.divf %296, %297 : vector<1x128xf32>
    %299 = arith.mulf %290, %234 : vector<1x128xf32>
    %300 = arith.mulf %284, %292 : vector<1x128xf32>
    %301 = arith.addf %299, %300 : vector<1x128xf32>
    %302 = math.tanh %301 : vector<1x128xf32>
    %303 = arith.mulf %298, %302 : vector<1x128xf32>
    %304 = tpu.concatenate %303, %267 in 1 : vector<1x128xf32>, vector<1x128xf32> -> vector<1x256xf32>
    %305 = arith.truncf %304 : vector<1x256xf32> to vector<1x256xbf16>
    %c0_90 = arith.constant 0 : index
    %c0_91 = arith.constant 0 : index
    %306 = vector.load %arg3[%c0_90, %c0_91] : memref<256x512xbf16, #tpu.memory_space<vmem>>, vector<256x512xbf16>
    %cst_92 = arith.constant dense<0.000000e+00> : vector<1x512xf32>
    %307 = tpu.matmul %305, %306, %cst_92 {dimension_numbers = #tpu.dot_dimension_numbers<[1], [0], [0], [1], [0, 0, 1, 1], [], []>} : vector<1x256xbf16>, vector<256x512xbf16>, vector<1x512xf32> -> vector<1x512xf32>
    %c2_93 = arith.constant 2 : index
    %c0_94 = arith.constant 0 : index
    %308 = vector.load %arg1[%c2_93, %c0_94] : memref<8x512xf32, #tpu.memory_space<vmem>>, vector<1x512xf32>
    %309 = arith.addf %307, %308 : vector<1x512xf32>
    %310 = vector.extract_strided_slice %309 {offsets = [0, 0], sizes = [1, 128], strides = [1, 1]} : vector<1x512xf32> to vector<1x128xf32>
    %311 = arith.negf %310 : vector<1x128xf32>
    %312 = math.exp %311 : vector<1x128xf32>
    %cst_95 = arith.constant 1.000000e+00 : f32
    %313 = vector.broadcast %cst_95 : f32 to vector<1x128xf32>
    %314 = arith.addf %313, %312 : vector<1x128xf32>
    %315 = arith.divf %313, %314 : vector<1x128xf32>
    %316 = vector.extract_strided_slice %309 {offsets = [0, 128], sizes = [1, 128], strides = [1, 1]} : vector<1x512xf32> to vector<1x128xf32>
    %317 = arith.negf %316 : vector<1x128xf32>
    %318 = math.exp %317 : vector<1x128xf32>
    %cst_96 = arith.constant 1.000000e+00 : f32
    %319 = vector.broadcast %cst_96 : f32 to vector<1x128xf32>
    %320 = arith.addf %319, %318 : vector<1x128xf32>
    %321 = arith.divf %319, %320 : vector<1x128xf32>
    %322 = vector.extract_strided_slice %309 {offsets = [0, 256], sizes = [1, 128], strides = [1, 1]} : vector<1x512xf32> to vector<1x128xf32>
    %323 = math.tanh %322 : vector<1x128xf32>
    %324 = vector.extract_strided_slice %309 {offsets = [0, 384], sizes = [1, 128], strides = [1, 1]} : vector<1x512xf32> to vector<1x128xf32>
    %325 = arith.negf %324 : vector<1x128xf32>
    %326 = math.exp %325 : vector<1x128xf32>
    %cst_97 = arith.constant 1.000000e+00 : f32
    %327 = vector.broadcast %cst_97 : f32 to vector<1x128xf32>
    %328 = arith.addf %327, %326 : vector<1x128xf32>
    %329 = arith.divf %327, %328 : vector<1x128xf32>
    %330 = arith.mulf %321, %265 : vector<1x128xf32>
    %331 = arith.mulf %315, %323 : vector<1x128xf32>
    %332 = arith.addf %330, %331 : vector<1x128xf32>
    %333 = math.tanh %332 : vector<1x128xf32>
    %334 = arith.mulf %329, %333 : vector<1x128xf32>
    %c4_98 = arith.constant 4 : index
    %c0_99 = arith.constant 0 : index
    %335 = vector.load %arg5[%c4_98, %c0_99] : memref<8x128xf32, #tpu.memory_space<vmem>>, vector<1x128xf32>
    tpu.vector_store %arg5[%c4_98, %c0_99], %334 {strides = array<i32>} : memref<8x128xf32, #tpu.memory_space<vmem>>, vector<1x128xf32>,
    %c5 = arith.constant 5 : index
    %336 = memref.load %arg0[%c5] : memref<9xf32, #tpu.memory_space<smem>>
    %c0_100 = arith.constant 0 : index
    %c0_101 = arith.constant 0 : index
    %337 = vector.load %arg1[%c0_100, %c0_101] : memref<8x512xf32, #tpu.memory_space<vmem>>, vector<1x512xf32>
    %338 = vector.broadcast %336 : f32 to vector<1x512xf32>
    %339 = arith.mulf %338, %337 : vector<1x512xf32>
    %340 = arith.truncf %303 : vector<1x128xf32> to vector<1x128xbf16>
    %c0_102 = arith.constant 0 : index
    %c0_103 = arith.constant 0 : index
    %341 = vector.load %arg2[%c0_102, %c0_103] : memref<128x512xbf16, #tpu.memory_space<vmem>>, vector<128x512xbf16>
    %cst_104 = arith.constant dense<0.000000e+00> : vector<1x512xf32>
    %342 = tpu.matmul %340, %341, %cst_104 {dimension_numbers = #tpu.dot_dimension_numbers<[1], [0], [0], [1], [0, 0, 1, 1], [], []>} : vector<1x128xbf16>, vector<128x512xbf16>, vector<1x512xf32> -> vector<1x512xf32>
    %343 = arith.addf %339, %342 : vector<1x512xf32>
    %c1_105 = arith.constant 1 : index
    %c0_106 = arith.constant 0 : index
    %344 = vector.load %arg1[%c1_105, %c0_106] : memref<8x512xf32, #tpu.memory_space<vmem>>, vector<1x512xf32>
    %345 = arith.addf %343, %344 : vector<1x512xf32>
    %346 = vector.extract_strided_slice %345 {offsets = [0, 0], sizes = [1, 128], strides = [1, 1]} : vector<1x512xf32> to vector<1x128xf32>
    %347 = arith.negf %346 : vector<1x128xf32>
    %348 = math.exp %347 : vector<1x128xf32>
    %cst_107 = arith.constant 1.000000e+00 : f32
    %349 = vector.broadcast %cst_107 : f32 to vector<1x128xf32>
    %350 = arith.addf %349, %348 : vector<1x128xf32>
    %351 = arith.divf %349, %350 : vector<1x128xf32>
    %352 = vector.extract_strided_slice %345 {offsets = [0, 128], sizes = [1, 128], strides = [1, 1]} : vector<1x512xf32> to vector<1x128xf32>
    %353 = arith.negf %352 : vector<1x128xf32>
    %354 = math.exp %353 : vector<1x128xf32>
    %cst_108 = arith.constant 1.000000e+00 : f32
    %355 = vector.broadcast %cst_108 : f32 to vector<1x128xf32>
    %356 = arith.addf %355, %354 : vector<1x128xf32>
    %357 = arith.divf %355, %356 : vector<1x128xf32>
    %358 = vector.extract_strided_slice %345 {offsets = [0, 256], sizes = [1, 128], strides = [1, 1]} : vector<1x512xf32> to vector<1x128xf32>
    %359 = math.tanh %358 : vector<1x128xf32>
    %360 = vector.extract_strided_slice %345 {offsets = [0, 384], sizes = [1, 128], strides = [1, 1]} : vector<1x512xf32> to vector<1x128xf32>
    %361 = arith.negf %360 : vector<1x128xf32>
    %362 = math.exp %361 : vector<1x128xf32>
    %cst_109 = arith.constant 1.000000e+00 : f32
    %363 = vector.broadcast %cst_109 : f32 to vector<1x128xf32>
    %364 = arith.addf %363, %362 : vector<1x128xf32>
    %365 = arith.divf %363, %364 : vector<1x128xf32>
    %366 = arith.mulf %357, %301 : vector<1x128xf32>
    %367 = arith.mulf %351, %359 : vector<1x128xf32>
    %368 = arith.addf %366, %367 : vector<1x128xf32>
    %369 = math.tanh %368 : vector<1x128xf32>
    %370 = arith.mulf %365, %369 : vector<1x128xf32>
    %371 = tpu.concatenate %370, %334 in 1 : vector<1x128xf32>, vector<1x128xf32> -> vector<1x256xf32>
    %372 = arith.truncf %371 : vector<1x256xf32> to vector<1x256xbf16>
    %c0_110 = arith.constant 0 : index
    %c0_111 = arith.constant 0 : index
    %373 = vector.load %arg3[%c0_110, %c0_111] : memref<256x512xbf16, #tpu.memory_space<vmem>>, vector<256x512xbf16>
    %cst_112 = arith.constant dense<0.000000e+00> : vector<1x512xf32>
    %374 = tpu.matmul %372, %373, %cst_112 {dimension_numbers = #tpu.dot_dimension_numbers<[1], [0], [0], [1], [0, 0, 1, 1], [], []>} : vector<1x256xbf16>, vector<256x512xbf16>, vector<1x512xf32> -> vector<1x512xf32>
    %c2_113 = arith.constant 2 : index
    %c0_114 = arith.constant 0 : index
    %375 = vector.load %arg1[%c2_113, %c0_114] : memref<8x512xf32, #tpu.memory_space<vmem>>, vector<1x512xf32>
    %376 = arith.addf %374, %375 : vector<1x512xf32>
    %377 = vector.extract_strided_slice %376 {offsets = [0, 0], sizes = [1, 128], strides = [1, 1]} : vector<1x512xf32> to vector<1x128xf32>
    %378 = arith.negf %377 : vector<1x128xf32>
    %379 = math.exp %378 : vector<1x128xf32>
    %cst_115 = arith.constant 1.000000e+00 : f32
    %380 = vector.broadcast %cst_115 : f32 to vector<1x128xf32>
    %381 = arith.addf %380, %379 : vector<1x128xf32>
    %382 = arith.divf %380, %381 : vector<1x128xf32>
    %383 = vector.extract_strided_slice %376 {offsets = [0, 128], sizes = [1, 128], strides = [1, 1]} : vector<1x512xf32> to vector<1x128xf32>
    %384 = arith.negf %383 : vector<1x128xf32>
    %385 = math.exp %384 : vector<1x128xf32>
    %cst_116 = arith.constant 1.000000e+00 : f32
    %386 = vector.broadcast %cst_116 : f32 to vector<1x128xf32>
    %387 = arith.addf %386, %385 : vector<1x128xf32>
    %388 = arith.divf %386, %387 : vector<1x128xf32>
    %389 = vector.extract_strided_slice %376 {offsets = [0, 256], sizes = [1, 128], strides = [1, 1]} : vector<1x512xf32> to vector<1x128xf32>
    %390 = math.tanh %389 : vector<1x128xf32>
    %391 = vector.extract_strided_slice %376 {offsets = [0, 384], sizes = [1, 128], strides = [1, 1]} : vector<1x512xf32> to vector<1x128xf32>
    %392 = arith.negf %391 : vector<1x128xf32>
    %393 = math.exp %392 : vector<1x128xf32>
    %cst_117 = arith.constant 1.000000e+00 : f32
    %394 = vector.broadcast %cst_117 : f32 to vector<1x128xf32>
    %395 = arith.addf %394, %393 : vector<1x128xf32>
    %396 = arith.divf %394, %395 : vector<1x128xf32>
    %397 = arith.mulf %388, %332 : vector<1x128xf32>
    %398 = arith.mulf %382, %390 : vector<1x128xf32>
    %399 = arith.addf %397, %398 : vector<1x128xf32>
    %400 = math.tanh %399 : vector<1x128xf32>
    %401 = arith.mulf %396, %400 : vector<1x128xf32>
    %c5_118 = arith.constant 5 : index
    %c0_119 = arith.constant 0 : index
    %402 = vector.load %arg5[%c5_118, %c0_119] : memref<8x128xf32, #tpu.memory_space<vmem>>, vector<1x128xf32>
    tpu.vector_store %arg5[%c5_118, %c0_119], %401 {strides = array<i32>} : memref<8x128xf32, #tpu.memory_space<vmem>>, vector<1x128xf32>,
    %c6 = arith.constant 6 : index
    %403 = memref.load %arg0[%c6] : memref<9xf32, #tpu.memory_space<smem>>
    %c0_120 = arith.constant 0 : index
    %c0_121 = arith.constant 0 : index
    %404 = vector.load %arg1[%c0_120, %c0_121] : memref<8x512xf32, #tpu.memory_space<vmem>>, vector<1x512xf32>
    %405 = vector.broadcast %403 : f32 to vector<1x512xf32>
    %406 = arith.mulf %405, %404 : vector<1x512xf32>
    %407 = arith.truncf %370 : vector<1x128xf32> to vector<1x128xbf16>
    %c0_122 = arith.constant 0 : index
    %c0_123 = arith.constant 0 : index
    %408 = vector.load %arg2[%c0_122, %c0_123] : memref<128x512xbf16, #tpu.memory_space<vmem>>, vector<128x512xbf16>
    %cst_124 = arith.constant dense<0.000000e+00> : vector<1x512xf32>
    %409 = tpu.matmul %407, %408, %cst_124 {dimension_numbers = #tpu.dot_dimension_numbers<[1], [0], [0], [1], [0, 0, 1, 1], [], []>} : vector<1x128xbf16>, vector<128x512xbf16>, vector<1x512xf32> -> vector<1x512xf32>
    %410 = arith.addf %406, %409 : vector<1x512xf32>
    %c1_125 = arith.constant 1 : index
    %c0_126 = arith.constant 0 : index
    %411 = vector.load %arg1[%c1_125, %c0_126] : memref<8x512xf32, #tpu.memory_space<vmem>>, vector<1x512xf32>
    %412 = arith.addf %410, %411 : vector<1x512xf32>
    %413 = vector.extract_strided_slice %412 {offsets = [0, 0], sizes = [1, 128], strides = [1, 1]} : vector<1x512xf32> to vector<1x128xf32>
    %414 = arith.negf %413 : vector<1x128xf32>
    %415 = math.exp %414 : vector<1x128xf32>
    %cst_127 = arith.constant 1.000000e+00 : f32
    %416 = vector.broadcast %cst_127 : f32 to vector<1x128xf32>
    %417 = arith.addf %416, %415 : vector<1x128xf32>
    %418 = arith.divf %416, %417 : vector<1x128xf32>
    %419 = vector.extract_strided_slice %412 {offsets = [0, 128], sizes = [1, 128], strides = [1, 1]} : vector<1x512xf32> to vector<1x128xf32>
    %420 = arith.negf %419 : vector<1x128xf32>
    %421 = math.exp %420 : vector<1x128xf32>
    %cst_128 = arith.constant 1.000000e+00 : f32
    %422 = vector.broadcast %cst_128 : f32 to vector<1x128xf32>
    %423 = arith.addf %422, %421 : vector<1x128xf32>
    %424 = arith.divf %422, %423 : vector<1x128xf32>
    %425 = vector.extract_strided_slice %412 {offsets = [0, 256], sizes = [1, 128], strides = [1, 1]} : vector<1x512xf32> to vector<1x128xf32>
    %426 = math.tanh %425 : vector<1x128xf32>
    %427 = vector.extract_strided_slice %412 {offsets = [0, 384], sizes = [1, 128], strides = [1, 1]} : vector<1x512xf32> to vector<1x128xf32>
    %428 = arith.negf %427 : vector<1x128xf32>
    %429 = math.exp %428 : vector<1x128xf32>
    %cst_129 = arith.constant 1.000000e+00 : f32
    %430 = vector.broadcast %cst_129 : f32 to vector<1x128xf32>
    %431 = arith.addf %430, %429 : vector<1x128xf32>
    %432 = arith.divf %430, %431 : vector<1x128xf32>
    %433 = arith.mulf %424, %368 : vector<1x128xf32>
    %434 = arith.mulf %418, %426 : vector<1x128xf32>
    %435 = arith.addf %433, %434 : vector<1x128xf32>
    %436 = math.tanh %435 : vector<1x128xf32>
    %437 = arith.mulf %432, %436 : vector<1x128xf32>
    %438 = tpu.concatenate %437, %401 in 1 : vector<1x128xf32>, vector<1x128xf32> -> vector<1x256xf32>
    %439 = arith.truncf %438 : vector<1x256xf32> to vector<1x256xbf16>
    %c0_130 = arith.constant 0 : index
    %c0_131 = arith.constant 0 : index
    %440 = vector.load %arg3[%c0_130, %c0_131] : memref<256x512xbf16, #tpu.memory_space<vmem>>, vector<256x512xbf16>
    %cst_132 = arith.constant dense<0.000000e+00> : vector<1x512xf32>
    %441 = tpu.matmul %439, %440, %cst_132 {dimension_numbers = #tpu.dot_dimension_numbers<[1], [0], [0], [1], [0, 0, 1, 1], [], []>} : vector<1x256xbf16>, vector<256x512xbf16>, vector<1x512xf32> -> vector<1x512xf32>
    %c2_133 = arith.constant 2 : index
    %c0_134 = arith.constant 0 : index
    %442 = vector.load %arg1[%c2_133, %c0_134] : memref<8x512xf32, #tpu.memory_space<vmem>>, vector<1x512xf32>
    %443 = arith.addf %441, %442 : vector<1x512xf32>
    %444 = vector.extract_strided_slice %443 {offsets = [0, 0], sizes = [1, 128], strides = [1, 1]} : vector<1x512xf32> to vector<1x128xf32>
    %445 = arith.negf %444 : vector<1x128xf32>
    %446 = math.exp %445 : vector<1x128xf32>
    %cst_135 = arith.constant 1.000000e+00 : f32
    %447 = vector.broadcast %cst_135 : f32 to vector<1x128xf32>
    %448 = arith.addf %447, %446 : vector<1x128xf32>
    %449 = arith.divf %447, %448 : vector<1x128xf32>
    %450 = vector.extract_strided_slice %443 {offsets = [0, 128], sizes = [1, 128], strides = [1, 1]} : vector<1x512xf32> to vector<1x128xf32>
    %451 = arith.negf %450 : vector<1x128xf32>
    %452 = math.exp %451 : vector<1x128xf32>
    %cst_136 = arith.constant 1.000000e+00 : f32
    %453 = vector.broadcast %cst_136 : f32 to vector<1x128xf32>
    %454 = arith.addf %453, %452 : vector<1x128xf32>
    %455 = arith.divf %453, %454 : vector<1x128xf32>
    %456 = vector.extract_strided_slice %443 {offsets = [0, 256], sizes = [1, 128], strides = [1, 1]} : vector<1x512xf32> to vector<1x128xf32>
    %457 = math.tanh %456 : vector<1x128xf32>
    %458 = vector.extract_strided_slice %443 {offsets = [0, 384], sizes = [1, 128], strides = [1, 1]} : vector<1x512xf32> to vector<1x128xf32>
    %459 = arith.negf %458 : vector<1x128xf32>
    %460 = math.exp %459 : vector<1x128xf32>
    %cst_137 = arith.constant 1.000000e+00 : f32
    %461 = vector.broadcast %cst_137 : f32 to vector<1x128xf32>
    %462 = arith.addf %461, %460 : vector<1x128xf32>
    %463 = arith.divf %461, %462 : vector<1x128xf32>
    %464 = arith.mulf %455, %399 : vector<1x128xf32>
    %465 = arith.mulf %449, %457 : vector<1x128xf32>
    %466 = arith.addf %464, %465 : vector<1x128xf32>
    %467 = math.tanh %466 : vector<1x128xf32>
    %468 = arith.mulf %463, %467 : vector<1x128xf32>
    %c6_138 = arith.constant 6 : index
    %c0_139 = arith.constant 0 : index
    %469 = vector.load %arg5[%c6_138, %c0_139] : memref<8x128xf32, #tpu.memory_space<vmem>>, vector<1x128xf32>
    tpu.vector_store %arg5[%c6_138, %c0_139], %468 {strides = array<i32>} : memref<8x128xf32, #tpu.memory_space<vmem>>, vector<1x128xf32>,
    %c7 = arith.constant 7 : index
    %470 = memref.load %arg0[%c7] : memref<9xf32, #tpu.memory_space<smem>>
    %c0_140 = arith.constant 0 : index
    %c0_141 = arith.constant 0 : index
    %471 = vector.load %arg1[%c0_140, %c0_141] : memref<8x512xf32, #tpu.memory_space<vmem>>, vector<1x512xf32>
    %472 = vector.broadcast %470 : f32 to vector<1x512xf32>
    %473 = arith.mulf %472, %471 : vector<1x512xf32>
    %474 = arith.truncf %437 : vector<1x128xf32> to vector<1x128xbf16>
    %c0_142 = arith.constant 0 : index
    %c0_143 = arith.constant 0 : index
    %475 = vector.load %arg2[%c0_142, %c0_143] : memref<128x512xbf16, #tpu.memory_space<vmem>>, vector<128x512xbf16>
    %cst_144 = arith.constant dense<0.000000e+00> : vector<1x512xf32>
    %476 = tpu.matmul %474, %475, %cst_144 {dimension_numbers = #tpu.dot_dimension_numbers<[1], [0], [0], [1], [0, 0, 1, 1], [], []>} : vector<1x128xbf16>, vector<128x512xbf16>, vector<1x512xf32> -> vector<1x512xf32>
    %477 = arith.addf %473, %476 : vector<1x512xf32>
    %c1_145 = arith.constant 1 : index
    %c0_146 = arith.constant 0 : index
    %478 = vector.load %arg1[%c1_145, %c0_146] : memref<8x512xf32, #tpu.memory_space<vmem>>, vector<1x512xf32>
    %479 = arith.addf %477, %478 : vector<1x512xf32>
    %480 = vector.extract_strided_slice %479 {offsets = [0, 0], sizes = [1, 128], strides = [1, 1]} : vector<1x512xf32> to vector<1x128xf32>
    %481 = arith.negf %480 : vector<1x128xf32>
    %482 = math.exp %481 : vector<1x128xf32>
    %cst_147 = arith.constant 1.000000e+00 : f32
    %483 = vector.broadcast %cst_147 : f32 to vector<1x128xf32>
    %484 = arith.addf %483, %482 : vector<1x128xf32>
    %485 = arith.divf %483, %484 : vector<1x128xf32>
    %486 = vector.extract_strided_slice %479 {offsets = [0, 128], sizes = [1, 128], strides = [1, 1]} : vector<1x512xf32> to vector<1x128xf32>
    %487 = arith.negf %486 : vector<1x128xf32>
    %488 = math.exp %487 : vector<1x128xf32>
    %cst_148 = arith.constant 1.000000e+00 : f32
    %489 = vector.broadcast %cst_148 : f32 to vector<1x128xf32>
    %490 = arith.addf %489, %488 : vector<1x128xf32>
    %491 = arith.divf %489, %490 : vector<1x128xf32>
    %492 = vector.extract_strided_slice %479 {offsets = [0, 256], sizes = [1, 128], strides = [1, 1]} : vector<1x512xf32> to vector<1x128xf32>
    %493 = math.tanh %492 : vector<1x128xf32>
    %494 = vector.extract_strided_slice %479 {offsets = [0, 384], sizes = [1, 128], strides = [1, 1]} : vector<1x512xf32> to vector<1x128xf32>
    %495 = arith.negf %494 : vector<1x128xf32>
    %496 = math.exp %495 : vector<1x128xf32>
    %cst_149 = arith.constant 1.000000e+00 : f32
    %497 = vector.broadcast %cst_149 : f32 to vector<1x128xf32>
    %498 = arith.addf %497, %496 : vector<1x128xf32>
    %499 = arith.divf %497, %498 : vector<1x128xf32>
    %500 = arith.mulf %491, %435 : vector<1x128xf32>
    %501 = arith.mulf %485, %493 : vector<1x128xf32>
    %502 = arith.addf %500, %501 : vector<1x128xf32>
    %503 = math.tanh %502 : vector<1x128xf32>
    %504 = arith.mulf %499, %503 : vector<1x128xf32>
    %505 = tpu.concatenate %504, %468 in 1 : vector<1x128xf32>, vector<1x128xf32> -> vector<1x256xf32>
    %506 = arith.truncf %505 : vector<1x256xf32> to vector<1x256xbf16>
    %c0_150 = arith.constant 0 : index
    %c0_151 = arith.constant 0 : index
    %507 = vector.load %arg3[%c0_150, %c0_151] : memref<256x512xbf16, #tpu.memory_space<vmem>>, vector<256x512xbf16>
    %cst_152 = arith.constant dense<0.000000e+00> : vector<1x512xf32>
    %508 = tpu.matmul %506, %507, %cst_152 {dimension_numbers = #tpu.dot_dimension_numbers<[1], [0], [0], [1], [0, 0, 1, 1], [], []>} : vector<1x256xbf16>, vector<256x512xbf16>, vector<1x512xf32> -> vector<1x512xf32>
    %c2_153 = arith.constant 2 : index
    %c0_154 = arith.constant 0 : index
    %509 = vector.load %arg1[%c2_153, %c0_154] : memref<8x512xf32, #tpu.memory_space<vmem>>, vector<1x512xf32>
    %510 = arith.addf %508, %509 : vector<1x512xf32>
    %511 = vector.extract_strided_slice %510 {offsets = [0, 0], sizes = [1, 128], strides = [1, 1]} : vector<1x512xf32> to vector<1x128xf32>
    %512 = arith.negf %511 : vector<1x128xf32>
    %513 = math.exp %512 : vector<1x128xf32>
    %cst_155 = arith.constant 1.000000e+00 : f32
    %514 = vector.broadcast %cst_155 : f32 to vector<1x128xf32>
    %515 = arith.addf %514, %513 : vector<1x128xf32>
    %516 = arith.divf %514, %515 : vector<1x128xf32>
    %517 = vector.extract_strided_slice %510 {offsets = [0, 128], sizes = [1, 128], strides = [1, 1]} : vector<1x512xf32> to vector<1x128xf32>
    %518 = arith.negf %517 : vector<1x128xf32>
    %519 = math.exp %518 : vector<1x128xf32>
    %cst_156 = arith.constant 1.000000e+00 : f32
    %520 = vector.broadcast %cst_156 : f32 to vector<1x128xf32>
    %521 = arith.addf %520, %519 : vector<1x128xf32>
    %522 = arith.divf %520, %521 : vector<1x128xf32>
    %523 = vector.extract_strided_slice %510 {offsets = [0, 256], sizes = [1, 128], strides = [1, 1]} : vector<1x512xf32> to vector<1x128xf32>
    %524 = math.tanh %523 : vector<1x128xf32>
    %525 = vector.extract_strided_slice %510 {offsets = [0, 384], sizes = [1, 128], strides = [1, 1]} : vector<1x512xf32> to vector<1x128xf32>
    %526 = arith.negf %525 : vector<1x128xf32>
    %527 = math.exp %526 : vector<1x128xf32>
    %cst_157 = arith.constant 1.000000e+00 : f32
    %528 = vector.broadcast %cst_157 : f32 to vector<1x128xf32>
    %529 = arith.addf %528, %527 : vector<1x128xf32>
    %530 = arith.divf %528, %529 : vector<1x128xf32>
    %531 = arith.mulf %522, %466 : vector<1x128xf32>
    %532 = arith.mulf %516, %524 : vector<1x128xf32>
    %533 = arith.addf %531, %532 : vector<1x128xf32>
    %534 = math.tanh %533 : vector<1x128xf32>
    %535 = arith.mulf %530, %534 : vector<1x128xf32>
    %c7_158 = arith.constant 7 : index
    %c0_159 = arith.constant 0 : index
    %536 = vector.load %arg5[%c7_158, %c0_159] : memref<8x128xf32, #tpu.memory_space<vmem>>, vector<1x128xf32>
    tpu.vector_store %arg5[%c7_158, %c0_159], %535 {strides = array<i32>} : memref<8x128xf32, #tpu.memory_space<vmem>>, vector<1x128xf32>,
    %c3_160 = arith.constant 3 : index
    %c0_161 = arith.constant 0 : index
    %537 = vector.load %arg1[%c3_160, %c0_161] : memref<8x512xf32, #tpu.memory_space<vmem>>, vector<1x128xf32>
    %c8 = arith.constant 8 : index
    %538 = memref.load %arg0[%c8] : memref<9xf32, #tpu.memory_space<smem>>
    %c0_162 = arith.constant 0 : index
    %c0_163 = arith.constant 0 : index
    %539 = vector.load %arg5[%c0_162, %c0_163] : memref<8x128xf32, #tpu.memory_space<vmem>>, vector<8x128xf32>
    %540 = vector.broadcast %537 : vector<1x128xf32> to vector<8x128xf32>
    %541 = arith.mulf %539, %540 : vector<8x128xf32>
    %cst_164 = arith.constant dense<0.000000e+00> : vector<8xf32>
    %542 = vector.multi_reduction <add>, %541, %cst_164 [1] : vector<8x128xf32> to vector<8xf32>
    %543 = vector.shape_cast %542 : vector<8xf32> to vector<8x1xf32>
    %544 = vector.broadcast %538 : f32 to vector<8x1xf32>
    %545 = arith.addf %543, %544 : vector<8x1xf32>
    %c0_165 = arith.constant 0 : index
    %c0_166 = arith.constant 0 : index
    %546 = vector.load %arg4[%c0_165, %c0_166] : memref<8x1xf32, #tpu.memory_space<vmem>>, vector<8x1xf32>
    tpu.vector_store %arg4[%c0_165, %c0_166], %545 {strides = array<i32>} : memref<8x1xf32, #tpu.memory_space<vmem>>, vector<8x1xf32>,
    return
  }
}

</mosaic_0001>

<llo_original>
// kernel: tpu_custom_call.1
$region0: #{tpu_custom_call.1}
  #allocation0 [shape = 'u32[]', space=smem, size = 0x4, offset = 0x4, fixed_abs, tag = 'smem constant byte address 0x4 - core index']
  #allocation1 [shape = 'u32[72,128]{1,0:T(1,128)}', space=vmem, size = 0x9000, scoped, tag = 'internal scratch']
  #allocation2 [shape = 'f32[8,128]{1,0:T(8,128)}', space=vmem, size = 0x1000, scoped, tag = 'scratch operand']
  %s0 = inlined_call_operand.hbm [shape: f32[9], index: 0, kind: input, shape index: {}]
  %s1 = inlined_call_operand.hbm [shape: f32[8,512], index: 1, kind: input, shape index: {}]
  %s2 = inlined_call_operand.hbm [shape: bf16[128,512], index: 2, kind: input, shape index: {}]
  %s3 = inlined_call_operand.hbm [shape: bf16[256,512], index: 3, kind: input, shape index: {}]
  %s4 = inlined_call_operand.vmem [shape: f32[8,1], index: 4, kind: output, shape index: {}]
  %s5 = sld [smem:[#allocation0]]
  $region42: #{tpu_custom_call.1} parent=0
    _
  %s7 = ssub.s32 1, %s5
  %s8 = scalar_select 0, %s7, %s5
  $region1: #{tpu_custom_call.1} parent=0
    #allocation3 [shape = 'u8[512]{0}', space=smem, size = 0x200, scoped, tag = 'input window, operand 0, single buffered']
    #allocation4 [shape = 's32[1]{0}', space=sflag, size = 0x4, scoped, tag = 'scoped memory for tpu_custom_call.1']
    #allocation5 [shape = 's32[1]{0}', space=sflag, size = 0x4, scoped, tag = 'scoped memory for tpu_custom_call.1']
    #allocation6 [shape = 'u8[16384]{0}', space=vmem, size = 0x4000, scoped, tag = 'input window, operand 1, single buffered']
    #allocation7 [shape = 'u8[131072]{0}', space=vmem, size = 0x20000, scoped, tag = 'input window, operand 2, single buffered']
    #allocation8 [shape = 's32[1]{0}', space=sflag, size = 0x4, scoped, tag = 'scoped memory for tpu_custom_call.1']
    #allocation9 [shape = 'u8[262144]{0}', space=vmem, size = 0x40000, scoped, tag = 'input window, operand 3, single buffered']
    %9 = vsyncpa [#allocation5], 0
    %10 = vsyncpa [#allocation4], 0
    %11 = vsyncpa [#allocation8], 0
    // Predicated region
    $region2: #{tpu_custom_call.1} parent=1 // pred_check
      _
    $region3: #{tpu_custom_call.1} parent=1 // pred_check_branch
      %13 = sbr.rel (0) target = $region5
    $region4: #{tpu_custom_call.1} parent=1 // pred_region
      %15 = vsyncadd [#allocation5], 0
      %s17 = sshll.u32 %s0, 4
      %s18 = int_to_ptr.hbm [resolvable:$true] %s17
      %20 = dma.hbm_to_smem %s18, 16, [#allocation3], [#allocation5]
    $region5: #{tpu_custom_call.1} parent=1 // pred_fallthru
      _
    // Predicated region
    $region6: #{tpu_custom_call.1} parent=1 // pred_check
      _
    $region7: #{tpu_custom_call.1} parent=1 // pred_check_branch
      %22 = sbr.rel (0) target = $region9
    $region8: #{tpu_custom_call.1} parent=1 // pred_region
      %24 = vsyncadd [#allocation4], 0
      %s26 = sshll.u32 %s1, 4
      %s27 = int_to_ptr.hbm [resolvable:$true] %s26
      %s28 = sshll.u32 [#allocation6], 4
      %s29 = int_to_ptr.vmem [resolvable:$true] %s28
      %31 = dma.hbm_to_vmem [thread:$0]  %s27, 512, %s29, [#allocation4]
    $region9: #{tpu_custom_call.1} parent=1 // pred_fallthru
      _
    // Predicated region
    $region10: #{tpu_custom_call.1} parent=1 // pred_check
      _
    $region11: #{tpu_custom_call.1} parent=1 // pred_check_branch
      %33 = sbr.rel (0) target = $region13
    $region12: #{tpu_custom_call.1} parent=1 // pred_region
      %35 = vsyncadd [#allocation8], 0
      %s36 = sshll.u32 %s2, 4
      %s37 = int_to_ptr.hbm [resolvable:$true] %s36
      %s38 = sshll.u32 [#allocation7], 4
      %s39 = int_to_ptr.vmem [resolvable:$true] %s38
      %44 = dma.hbm_to_vmem [thread:$0]  %s37, 4096, %s39, [#allocation8], 256, 256, 16
    $region13: #{tpu_custom_call.1} parent=1 // pred_fallthru
      _
    // Predicated region
    $region14: #{tpu_custom_call.1} parent=1 // pred_check
      _
    $region15: #{tpu_custom_call.1} parent=1 // pred_check_branch
      %46 = sbr.rel (0) target = $region17
    $region16: #{tpu_custom_call.1} parent=1 // pred_region
      %48 = vsyncadd [#allocation8], 0
      %s49 = sshll.u32 %s3, 4
      %s50 = int_to_ptr.hbm [resolvable:$true] %s49
      %s51 = sshll.u32 [#allocation9], 4
      %s52 = int_to_ptr.vmem [resolvable:$true] %s51
      %57 = dma.hbm_to_vmem [thread:$0]  %s50, 8192, %s52, [#allocation8], 256, 256, 16
    $region17: #{tpu_custom_call.1} parent=1 // pred_fallthru
      _
    // Predicated region
    $region18: #{tpu_custom_call.1} parent=1 // pred_check
      _
    $region19: #{tpu_custom_call.1} parent=1 // pred_check_branch
      %59 = sbr.rel (0) target = $region21
    $region20: #{tpu_custom_call.1} parent=1 // pred_region
      %61 = dma.done [#allocation5], 16
    $region21: #{tpu_custom_call.1} parent=1 // pred_fallthru
      _
    // Predicated region
    $region22: #{tpu_custom_call.1} parent=1 // pred_check
      _
    $region23: #{tpu_custom_call.1} parent=1 // pred_check_branch
      %63 = sbr.rel (0) target = $region25
    $region24: #{tpu_custom_call.1} parent=1 // pred_region
      %65 = dma.done [#allocation4], 512
    $region25: #{tpu_custom_call.1} parent=1 // pred_fallthru
      _
    // Predicated region
    $region26: #{tpu_custom_call.1} parent=1 // pred_check
      _
    $region27: #{tpu_custom_call.1} parent=1 // pred_check_branch
      %67 = sbr.rel (0) target = $region29
    $region28: #{tpu_custom_call.1} parent=1 // pred_region
      %69 = dma.done [#allocation8], 4096
    $region29: #{tpu_custom_call.1} parent=1 // pred_fallthru
      _
    // Predicated region
    $region30: #{tpu_custom_call.1} parent=1 // pred_check
      _
    $region31: #{tpu_custom_call.1} parent=1 // pred_check_branch
      %71 = sbr.rel (0) target = $region33
    $region32: #{tpu_custom_call.1} parent=1 // pred_region
      %73 = dma.done [#allocation8], 8192
    $region33: #{tpu_custom_call.1} parent=1 // pred_fallthru
      _
    %74 = sfence
    %s76 = sld [smem:[#allocation3]]
    %v77 = vld [vmem:[#allocation6] ss:$8 sm:$0xf]
    %v78 = vstv %s76
    %v79 = vmul.f32 %v78, %v77
    %v80 = vld [vmem:[#allocation7] sm:$0xff]
    %v81 = vld [vmem:[#allocation7 + $0x8] sm:$0xff]
    %v82 = vld [vmem:[#allocation7 + $0x10] sm:$0xff]
    %v83 = vld [vmem:[#allocation7 + $0x18] sm:$0xff]
    %v84 = vld [vmem:[#allocation7 + $0x20] sm:$0xff]
    %v85 = vld [vmem:[#allocation7 + $0x28] sm:$0xff]
    %v86 = vld [vmem:[#allocation7 + $0x30] sm:$0xff]
    %v87 = vld [vmem:[#allocation7 + $0x38] sm:$0xff]
    %v88 = vld [vmem:[#allocation7 + $0x40] sm:$0xff]
    %v89 = vld [vmem:[#allocation7 + $0x48] sm:$0xff]
    %v90 = vld [vmem:[#allocation7 + $0x50] sm:$0xff]
    %v91 = vld [vmem:[#allocation7 + $0x58] sm:$0xff]
    %v92 = vld [vmem:[#allocation7 + $0x60] sm:$0xff]
    %v93 = vld [vmem:[#allocation7 + $0x68] sm:$0xff]
    %v94 = vld [vmem:[#allocation7 + $0x70] sm:$0xff]
    %v95 = vld [vmem:[#allocation7 + $0x78] sm:$0xff]
    %v96 = vld [vmem:[#allocation7 + $0x80] sm:$0xff]
    %v97 = vld [vmem:[#allocation7 + $0x88] sm:$0xff]
    %v98 = vld [vmem:[#allocation7 + $0x90] sm:$0xff]
    %v99 = vld [vmem:[#allocation7 + $0x98] sm:$0xff]
    %v100 = vld [vmem:[#allocation7 + $0xa0] sm:$0xff]
    %v101 = vld [vmem:[#allocation7 + $0xa8] sm:$0xff]
    %v102 = vld [vmem:[#allocation7 + $0xb0] sm:$0xff]
    %v103 = vld [vmem:[#allocation7 + $0xb8] sm:$0xff]
    %v104 = vld [vmem:[#allocation7 + $0xc0] sm:$0xff]
    %v105 = vld [vmem:[#allocation7 + $0xc8] sm:$0xff]
    %v106 = vld [vmem:[#allocation7 + $0xd0] sm:$0xff]
    %v107 = vld [vmem:[#allocation7 + $0xd8] sm:$0xff]
    %v108 = vld [vmem:[#allocation7 + $0xe0] sm:$0xff]
    %v109 = vld [vmem:[#allocation7 + $0xe8] sm:$0xff]
    %v110 = vld [vmem:[#allocation7 + $0xf0] sm:$0xff]
    %v111 = vld [vmem:[#allocation7 + $0xf8] sm:$0xff]
    %v144 = vunpack.c.l.b16 %v80
    %v145 = vunpack.c.h.b16 %v80
    %v146 = vunpack.c.l.b16 %v81
    %v147 = vunpack.c.h.b16 %v81
    %v148 = vunpack.c.l.b16 %v82
    %v149 = vunpack.c.h.b16 %v82
    %v150 = vunpack.c.l.b16 %v83
    %v151 = vunpack.c.h.b16 %v83
    %v152 = vunpack.c.l.b16 %v84
    %v153 = vunpack.c.h.b16 %v84
    %v154 = vunpack.c.l.b16 %v85
    %v155 = vunpack.c.h.b16 %v85
    %v156 = vunpack.c.l.b16 %v86
    %v157 = vunpack.c.h.b16 %v86
    %v158 = vunpack.c.l.b16 %v87
    %v159 = vunpack.c.h.b16 %v87
    %v160 = vunpack.c.l.b16 %v88
    %v161 = vunpack.c.h.b16 %v88
    %v162 = vunpack.c.l.b16 %v89
    %v163 = vunpack.c.h.b16 %v89
    %v164 = vunpack.c.l.b16 %v90
    %v165 = vunpack.c.h.b16 %v90
    %v166 = vunpack.c.l.b16 %v91
    %v167 = vunpack.c.h.b16 %v91
    %v168 = vunpack.c.l.b16 %v92
    %v169 = vunpack.c.h.b16 %v92
    %v170 = vunpack.c.l.b16 %v93
    %v171 = vunpack.c.h.b16 %v93
    %v172 = vunpack.c.l.b16 %v94
    %v173 = vunpack.c.h.b16 %v94
    %v174 = vunpack.c.l.b16 %v95
    %v175 = vunpack.c.h.b16 %v95
    %v176 = vunpack.c.l.b16 %v96
    %v177 = vunpack.c.h.b16 %v96
    %v178 = vunpack.c.l.b16 %v97
    %v179 = vunpack.c.h.b16 %v97
    %v180 = vunpack.c.l.b16 %v98
    %v181 = vunpack.c.h.b16 %v98
    %v182 = vunpack.c.l.b16 %v99
    %v183 = vunpack.c.h.b16 %v99
    %v184 = vunpack.c.l.b16 %v100
    %v185 = vunpack.c.h.b16 %v100
    %v186 = vunpack.c.l.b16 %v101
    %v187 = vunpack.c.h.b16 %v101
    %v188 = vunpack.c.l.b16 %v102
    %v189 = vunpack.c.h.b16 %v102
    %v190 = vunpack.c.l.b16 %v103
    %v191 = vunpack.c.h.b16 %v103
    %v192 = vunpack.c.l.b16 %v104
    %v193 = vunpack.c.h.b16 %v104
    %v194 = vunpack.c.l.b16 %v105
    %v195 = vunpack.c.h.b16 %v105
    %v196 = vunpack.c.l.b16 %v106
    %v197 = vunpack.c.h.b16 %v106
    %v198 = vunpack.c.l.b16 %v107
    %v199 = vunpack.c.h.b16 %v107
    %v200 = vunpack.c.l.b16 %v108
    %v201 = vunpack.c.h.b16 %v108
    %v202 = vunpack.c.l.b16 %v109
    %v203 = vunpack.c.h.b16 %v109
    %v204 = vunpack.c.l.b16 %v110
    %v205 = vunpack.c.h.b16 %v110
    %v206 = vunpack.c.l.b16 %v111
    %v207 = vunpack.c.h.b16 %v111
    %v208 = vpack.c.b16 %v148, %v144
    %v209 = vpack.c.b16 %v149, %v145
    %v210 = vpack.c.b16 %v150, %v146
    %v211 = vpack.c.b16 %v151, %v147
    %v212 = vpack.c.b16 %v156, %v152
    %v213 = vpack.c.b16 %v157, %v153
    %v214 = vpack.c.b16 %v158, %v154
    %v215 = vpack.c.b16 %v159, %v155
    %v216 = vpack.c.b16 %v164, %v160
    %v217 = vpack.c.b16 %v165, %v161
    %v218 = vpack.c.b16 %v166, %v162
    %v219 = vpack.c.b16 %v167, %v163
    %v220 = vpack.c.b16 %v172, %v168
    %v221 = vpack.c.b16 %v173, %v169
    %v222 = vpack.c.b16 %v174, %v170
    %v223 = vpack.c.b16 %v175, %v171
    %v224 = vpack.c.b16 %v180, %v176
    %v225 = vpack.c.b16 %v181, %v177
    %v226 = vpack.c.b16 %v182, %v178
    %v227 = vpack.c.b16 %v183, %v179
    %v228 = vpack.c.b16 %v188, %v184
    %v229 = vpack.c.b16 %v189, %v185
    %v230 = vpack.c.b16 %v190, %v186
    %v231 = vpack.c.b16 %v191, %v187
    %v232 = vpack.c.b16 %v196, %v192
    %v233 = vpack.c.b16 %v197, %v193
    %v234 = vpack.c.b16 %v198, %v194
    %v235 = vpack.c.b16 %v199, %v195
    %v236 = vpack.c.b16 %v204, %v200
    %v237 = vpack.c.b16 %v205, %v201
    %v238 = vpack.c.b16 %v206, %v202
    %v239 = vpack.c.b16 %v207, %v203
    %272 = vmatpush.bf16.msra.mxu0 %v236
    %273 = vmatpush.bf16.msra.mxu0 %v232
    %274 = vmatpush.bf16.msra.mxu0 %v228
    %275 = vmatpush.bf16.msra.mxu0 %v224
    %276 = vmatpush.bf16.msra.mxu0 %v220
    %277 = vmatpush.bf16.msra.mxu0 %v216
    %278 = vmatpush.bf16.msra.mxu0 %v212
    %279 = vmatpush.bf16.msra.mxu0 %v208
    %280 = vmatmul.bf16.gmra.mxu0 0
    %v281 = vpop.f32.mrf.mxu0
    %v282 = vadd.f32 0.0, %v281
    %v283 = vpop.f32.mrf.mxu0
    %284 = vdwg.mxu0
    %285 = vmatpush.bf16.msra.mxu0 %v237
    %286 = vmatpush.bf16.msra.mxu0 %v233
    %287 = vmatpush.bf16.msra.mxu0 %v229
    %288 = vmatpush.bf16.msra.mxu0 %v225
    %289 = vmatpush.bf16.msra.mxu0 %v221
    %290 = vmatpush.bf16.msra.mxu0 %v217
    %291 = vmatpush.bf16.msra.mxu0 %v213
    %292 = vmatpush.bf16.msra.mxu0 %v209
    %293 = vmatmul.bf16.gmra.mxu0 0
    %v294 = vpop.f32.mrf.mxu0
    %v295 = vadd.f32 0.0, %v294
    %v296 = vpop.f32.mrf.mxu0
    %297 = vdwg.mxu0
    %298 = vmatpush.bf16.msra.mxu0 %v238
    %299 = vmatpush.bf16.msra.mxu0 %v234
    %300 = vmatpush.bf16.msra.mxu0 %v230
    %301 = vmatpush.bf16.msra.mxu0 %v226
    %302 = vmatpush.bf16.msra.mxu0 %v222
    %303 = vmatpush.bf16.msra.mxu0 %v218
    %304 = vmatpush.bf16.msra.mxu0 %v214
    %305 = vmatpush.bf16.msra.mxu0 %v210
    %306 = vmatmul.bf16.gmra.mxu0 0
    %v307 = vpop.f32.mrf.mxu0
    %v308 = vadd.f32 0.0, %v307
    %v309 = vpop.f32.mrf.mxu0
    %310 = vdwg.mxu0
    %311 = vmatpush.bf16.msra.mxu0 %v239
    %312 = vmatpush.bf16.msra.mxu0 %v235
    %313 = vmatpush.bf16.msra.mxu0 %v231
    %314 = vmatpush.bf16.msra.mxu0 %v227
    %315 = vmatpush.bf16.msra.mxu0 %v223
    %316 = vmatpush.bf16.msra.mxu0 %v219
    %317 = vmatpush.bf16.msra.mxu0 %v215
    %318 = vmatpush.bf16.msra.mxu0 %v211
    %319 = vmatmul.bf16.gmra.mxu0 0
    %v320 = vpop.f32.mrf.mxu0
    %v321 = vadd.f32 0.0, %v320
    %v322 = vpop.f32.mrf.mxu0
    %323 = vdwg.mxu0
    %v328 = vrot.slane %v295, 7
    %v329 = vrot.slane %v308, 6
    %v330 = vrot.slane %v321, 5
    %vm331 = vcmask 1040384
    %v332 = vsel %vm331, %v282, %v328
    %vm333 = vcmask 1042434
    %v334 = vsel %vm333, %v329, %v330
    %vm335 = vcmask 1041408
    %v336 = vsel %vm335, %v332, %v334
    %v338 = vadd.f32 %v79, %v336
    %s339 = scalar_lea.vmem [#allocation6], 1
    %v340 = vld [vmem:[%s339] ss:$8 sm:$0xf]
    %v341 = vadd.f32 %v338, %v340
    %v342 = vxor.u32 %v341, 2147483648
    %v343 = vmul.f32 %v342, 1.442695
    %v344 = vpow.pop %v343
    %v345 = vadd.f32 %v344, 1.0
    %v346 = vrcp.pop %v345
    %v347 = vmul.f32 %v345, %v346
    %v348 = vsub.f32 1.0, %v347
    %v349 = vmul.f32 %v346, %v348
    %v350 = vadd.f32 %v346, %v349
    %vm351 = vweird.f32 %v345
    %vm352 = vweird.f32 %v346
    %vm353 = vmor %vm351, %vm352
    %v354 = vsel %vm353, %v346, %v350
    %v355 = vand.u32 2147483647, %v345
    %vm356 = vcmp.eq.f32.partialorder %v355, 8.507059e+37
    %v357 = vand.u32 %v345, 2147483648
    %v358 = vor.u32 1.1754944e-38, %v357
    %v359 = vsel %vm356, %v358, %v354
    %v360 = vmul.f32 1.0, %v359
    %v362 = vrot.slane %v341, 1
    %v364 = vxor.u32 %v362, 2147483648
    %v365 = vmul.f32 %v364, 1.442695
    %v366 = vpow.pop %v365
    %v367 = vadd.f32 %v366, 1.0
    %v368 = vrcp.pop %v367
    %v369 = vmul.f32 %v367, %v368
    %v370 = vsub.f32 1.0, %v369
    %v371 = vmul.f32 %v368, %v370
    %v372 = vadd.f32 %v368, %v371
    %vm373 = vweird.f32 %v367
    %vm374 = vweird.f32 %v368
    %vm375 = vmor %vm373, %vm374
    %v376 = vsel %vm375, %v368, %v372
    %v377 = vand.u32 2147483647, %v367
    %vm378 = vcmp.eq.f32.partialorder %v377, 8.507059e+37
    %v379 = vand.u32 %v367, 2147483648
    %v380 = vor.u32 1.1754944e-38, %v379
    %v381 = vsel %vm378, %v380, %v376
    %v382 = vmul.f32 1.0, %v381
    %v383 = vrot.slane %v341, 2
    %v385 = vtanh.pop %v383
    %v386 = vrot.slane %v341, 3
    %v388 = vxor.u32 %v386, 2147483648
    %v389 = vmul.f32 %v388, 1.442695
    %v390 = vpow.pop %v389
    %v391 = vadd.f32 %v390, 1.0
    %v392 = vrcp.pop %v391
    %v393 = vmul.f32 %v391, %v392
    %v394 = vsub.f32 1.0, %v393
    %v395 = vmul.f32 %v392, %v394
    %v396 = vadd.f32 %v392, %v395
    %vm397 = vweird.f32 %v391
    %vm398 = vweird.f32 %v392
    %vm399 = vmor %vm397, %vm398
    %v400 = vsel %vm399, %v392, %v396
    %v401 = vand.u32 2147483647, %v391
    %vm402 = vcmp.eq.f32.partialorder %v401, 8.507059e+37
    %v403 = vand.u32 %v391, 2147483648
    %v404 = vor.u32 1.1754944e-38, %v403
    %v405 = vsel %vm402, %v404, %v400
    %v406 = vmul.f32 1.0, %v405
    %v407 = vmul.f32 %v382, 0.0
    %v408 = vmul.f32 %v360, %v385
    %v409 = vadd.f32 %v407, %v408
    %v410 = vtanh.pop %v409
    %v411 = vmul.f32 %v406, %v410
    %v412 = vpack.c.bf16 %v411, %v411
    %v413 = vpack.c.bf16 0.0, 0.0
    %v414 = vld [vmem:[#allocation9] sm:$0xff]
    %v415 = vld [vmem:[#allocation9 + $0x8] sm:$0xff]
    %v416 = vld [vmem:[#allocation9 + $0x10] sm:$0xff]
    %v417 = vld [vmem:[#allocation9 + $0x18] sm:$0xff]
    %v418 = vld [vmem:[#allocation9 + $0x20] sm:$0xff]
    %v419 = vld [vmem:[#allocation9 + $0x28] sm:$0xff]
    %v420 = vld [vmem:[#allocation9 + $0x30] sm:$0xff]
    %v421 = vld [vmem:[#allocation9 + $0x38] sm:$0xff]
    %v422 = vld [vmem:[#allocation9 + $0x40] sm:$0xff]
    %v423 = vld [vmem:[#allocation9 + $0x48] sm:$0xff]
    %v424 = vld [vmem:[#allocation9 + $0x50] sm:$0xff]
    %v425 = vld [vmem:[#allocation9 + $0x58] sm:$0xff]
    %v426 = vld [vmem:[#allocation9 + $0x60] sm:$0xff]
    %v427 = vld [vmem:[#allocation9 + $0x68] sm:$0xff]
    %v428 = vld [vmem:[#allocation9 + $0x70] sm:$0xff]
    %v429 = vld [vmem:[#allocation9 + $0x78] sm:$0xff]
    %v430 = vld [vmem:[#allocation9 + $0x80] sm:$0xff]
    %v431 = vld [vmem:[#allocation9 + $0x88] sm:$0xff]
    %v432 = vld [vmem:[#allocation9 + $0x90] sm:$0xff]
    %v433 = vld [vmem:[#allocation9 + $0x98] sm:$0xff]
    %v434 = vld [vmem:[#allocation9 + $0xa0] sm:$0xff]
    %v435 = vld [vmem:[#allocation9 + $0xa8] sm:$0xff]
    %v436 = vld [vmem:[#allocation9 + $0xb0] sm:$0xff]
    %v437 = vld [vmem:[#allocation9 + $0xb8] sm:$0xff]
    %v438 = vld [vmem:[#allocation9 + $0xc0] sm:$0xff]
    %v439 = vld [vmem:[#allocation9 + $0xc8] sm:$0xff]
    %v440 = vld [vmem:[#allocation9 + $0xd0] sm:$0xff]
    %v441 = vld [vmem:[#allocation9 + $0xd8] sm:$0xff]
    %v442 = vld [vmem:[#allocation9 + $0xe0] sm:$0xff]
    %v443 = vld [vmem:[#allocation9 + $0xe8] sm:$0xff]
    %v444 = vld [vmem:[#allocation9 + $0xf0] sm:$0xff]
    %v445 = vld [vmem:[#allocation9 + $0xf8] sm:$0xff]
    %v446 = vld [vmem:[#allocation9 + $0x100] sm:$0xff]
    %v447 = vld [vmem:[#allocation9 + $0x108] sm:$0xff]
    %v448 = vld [vmem:[#allocation9 + $0x110] sm:$0xff]
    %v449 = vld [vmem:[#allocation9 + $0x118] sm:$0xff]
    %v450 = vld [vmem:[#allocation9 + $0x120] sm:$0xff]
    %v451 = vld [vmem:[#allocation9 + $0x128] sm:$0xff]
    %v452 = vld [vmem:[#allocation9 + $0x130] sm:$0xff]
    %v453 = vld [vmem:[#allocation9 + $0x138] sm:$0xff]
    %v454 = vld [vmem:[#allocation9 + $0x140] sm:$0xff]
    %v455 = vld [vmem:[#allocation9 + $0x148] sm:$0xff]
    %v456 = vld [vmem:[#allocation9 + $0x150] sm:$0xff]
    %v457 = vld [vmem:[#allocation9 + $0x158] sm:$0xff]
    %v458 = vld [vmem:[#allocation9 + $0x160] sm:$0xff]
    %v459 = vld [vmem:[#allocation9 + $0x168] sm:$0xff]
    %v460 = vld [vmem:[#allocation9 + $0x170] sm:$0xff]
    %v461 = vld [vmem:[#allocation9 + $0x178] sm:$0xff]
    %v462 = vld [vmem:[#allocation9 + $0x180] sm:$0xff]
    %v463 = vld [vmem:[#allocation9 + $0x188] sm:$0xff]
    %v464 = vld [vmem:[#allocation9 + $0x190] sm:$0xff]
    %v465 = vld [vmem:[#allocation9 + $0x198] sm:$0xff]
    %v466 = vld [vmem:[#allocation9 + $0x1a0] sm:$0xff]
    %v467 = vld [vmem:[#allocation9 + $0x1a8] sm:$0xff]
    %v468 = vld [vmem:[#allocation9 + $0x1b0] sm:$0xff]
    %v469 = vld [vmem:[#allocation9 + $0x1b8] sm:$0xff]
    %v470 = vld [vmem:[#allocation9 + $0x1c0] sm:$0xff]
    %v471 = vld [vmem:[#allocation9 + $0x1c8] sm:$0xff]
    %v472 = vld [vmem:[#allocation9 + $0x1d0] sm:$0xff]
    %v473 = vld [vmem:[#allocation9 + $0x1d8] sm:$0xff]
    %v474 = vld [vmem:[#allocation9 + $0x1e0] sm:$0xff]
    %v475 = vld [vmem:[#allocation9 + $0x1e8] sm:$0xff]
    %v476 = vld [vmem:[#allocation9 + $0x1f0] sm:$0xff]
    %v477 = vld [vmem:[#allocation9 + $0x1f8] sm:$0xff]
    %s478 = scalar_lea.vmem [#allocation6], 2
    %v479 = vld [vmem:[%s478] ss:$8 sm:$0xf]
    %v544 = vunpack.c.l.b16 %v414
    %v545 = vunpack.c.h.b16 %v414
    %v546 = vunpack.c.l.b16 %v415
    %v547 = vunpack.c.h.b16 %v415
    %v548 = vunpack.c.l.b16 %v416
    %v549 = vunpack.c.h.b16 %v416
    %v550 = vunpack.c.l.b16 %v417
    %v551 = vunpack.c.h.b16 %v417
    %v552 = vunpack.c.l.b16 %v418
    %v553 = vunpack.c.h.b16 %v418
    %v554 = vunpack.c.l.b16 %v419
    %v555 = vunpack.c.h.b16 %v419
    %v556 = vunpack.c.l.b16 %v420
    %v557 = vunpack.c.h.b16 %v420
    %v558 = vunpack.c.l.b16 %v421
    %v559 = vunpack.c.h.b16 %v421
    %v560 = vunpack.c.l.b16 %v422
    %v561 = vunpack.c.h.b16 %v422
    %v562 = vunpack.c.l.b16 %v423
    %v563 = vunpack.c.h.b16 %v423
    %v564 = vunpack.c.l.b16 %v424
    %v565 = vunpack.c.h.b16 %v424
    %v566 = vunpack.c.l.b16 %v425
    %v567 = vunpack.c.h.b16 %v425
    %v568 = vunpack.c.l.b16 %v426
    %v569 = vunpack.c.h.b16 %v426
    %v570 = vunpack.c.l.b16 %v427
    %v571 = vunpack.c.h.b16 %v427
    %v572 = vunpack.c.l.b16 %v428
    %v573 = vunpack.c.h.b16 %v428
    %v574 = vunpack.c.l.b16 %v429
    %v575 = vunpack.c.h.b16 %v429
    %v576 = vunpack.c.l.b16 %v430
    %v577 = vunpack.c.h.b16 %v430
    %v578 = vunpack.c.l.b16 %v431
    %v579 = vunpack.c.h.b16 %v431
    %v580 = vunpack.c.l.b16 %v432
    %v581 = vunpack.c.h.b16 %v432
    %v582 = vunpack.c.l.b16 %v433
    %v583 = vunpack.c.h.b16 %v433
    %v584 = vunpack.c.l.b16 %v434
    %v585 = vunpack.c.h.b16 %v434
    %v586 = vunpack.c.l.b16 %v435
    %v587 = vunpack.c.h.b16 %v435
    %v588 = vunpack.c.l.b16 %v436
    %v589 = vunpack.c.h.b16 %v436
    %v590 = vunpack.c.l.b16 %v437
    %v591 = vunpack.c.h.b16 %v437
    %v592 = vunpack.c.l.b16 %v438
    %v593 = vunpack.c.h.b16 %v438
    %v594 = vunpack.c.l.b16 %v439
    %v595 = vunpack.c.h.b16 %v439
    %v596 = vunpack.c.l.b16 %v440
    %v597 = vunpack.c.h.b16 %v440
    %v598 = vunpack.c.l.b16 %v441
    %v599 = vunpack.c.h.b16 %v441
    %v600 = vunpack.c.l.b16 %v442
    %v601 = vunpack.c.h.b16 %v442
    %v602 = vunpack.c.l.b16 %v443
    %v603 = vunpack.c.h.b16 %v443
    %v604 = vunpack.c.l.b16 %v444
    %v605 = vunpack.c.h.b16 %v444
    %v606 = vunpack.c.l.b16 %v445
    %v607 = vunpack.c.h.b16 %v445
    %v608 = vunpack.c.l.b16 %v446
    %v609 = vunpack.c.h.b16 %v446
    %v610 = vunpack.c.l.b16 %v447
    %v611 = vunpack.c.h.b16 %v447
    %v612 = vunpack.c.l.b16 %v448
    %v613 = vunpack.c.h.b16 %v448
    %v614 = vunpack.c.l.b16 %v449
    %v615 = vunpack.c.h.b16 %v449
    %v616 = vunpack.c.l.b16 %v450
    %v617 = vunpack.c.h.b16 %v450
    %v618 = vunpack.c.l.b16 %v451
    %v619 = vunpack.c.h.b16 %v451
    %v620 = vunpack.c.l.b16 %v452
    %v621 = vunpack.c.h.b16 %v452
    %v622 = vunpack.c.l.b16 %v453
    %v623 = vunpack.c.h.b16 %v453
    %v624 = vunpack.c.l.b16 %v454
    %v625 = vunpack.c.h.b16 %v454
    %v626 = vunpack.c.l.b16 %v455
    %v627 = vunpack.c.h.b16 %v455
    %v628 = vunpack.c.l.b16 %v456
    %v629 = vunpack.c.h.b16 %v456
    %v630 = vunpack.c.l.b16 %v457
    %v631 = vunpack.c.h.b16 %v457
    %v632 = vunpack.c.l.b16 %v458
    %v633 = vunpack.c.h.b16 %v458
    %v634 = vunpack.c.l.b16 %v459
    %v635 = vunpack.c.h.b16 %v459
    %v636 = vunpack.c.l.b16 %v460
    %v637 = vunpack.c.h.b16 %v460
    %v638 = vunpack.c.l.b16 %v461
    %v639 = vunpack.c.h.b16 %v461
    %v640 = vunpack.c.l.b16 %v462
    %v641 = vunpack.c.h.b16 %v462
    %v642 = vunpack.c.l.b16 %v463
    %v643 = vunpack.c.h.b16 %v463
    %v644 = vunpack.c.l.b16 %v464
    %v645 = vunpack.c.h.b16 %v464
    %v646 = vunpack.c.l.b16 %v465
    %v647 = vunpack.c.h.b16 %v465
    %v648 = vunpack.c.l.b16 %v466
    %v649 = vunpack.c.h.b16 %v466
    %v650 = vunpack.c.l.b16 %v467
    %v651 = vunpack.c.h.b16 %v467
    %v652 = vunpack.c.l.b16 %v468
    %v653 = vunpack.c.h.b16 %v468
    %v654 = vunpack.c.l.b16 %v469
    %v655 = vunpack.c.h.b16 %v469
    %v656 = vunpack.c.l.b16 %v470
    %v657 = vunpack.c.h.b16 %v470
    %v658 = vunpack.c.l.b16 %v471
    %v659 = vunpack.c.h.b16 %v471
    %v660 = vunpack.c.l.b16 %v472
    %v661 = vunpack.c.h.b16 %v472
    %v662 = vunpack.c.l.b16 %v473
    %v663 = vunpack.c.h.b16 %v473
    %v664 = vunpack.c.l.b16 %v474
    %v665 = vunpack.c.h.b16 %v474
    %v666 = vunpack.c.l.b16 %v475
    %v667 = vunpack.c.h.b16 %v475
    %v668 = vunpack.c.l.b16 %v476
    %v669 = vunpack.c.h.b16 %v476
    %v670 = vunpack.c.l.b16 %v477
    %v671 = vunpack.c.h.b16 %v477
    %v672 = vpack.c.b16 %v548, %v544
    %v673 = vpack.c.b16 %v549, %v545
    %v674 = vpack.c.b16 %v550, %v546
    %v675 = vpack.c.b16 %v551, %v547
    %v676 = vpack.c.b16 %v556, %v552
    %v677 = vpack.c.b16 %v557, %v553
    %v678 = vpack.c.b16 %v558, %v554
    %v679 = vpack.c.b16 %v559, %v555
    %v680 = vpack.c.b16 %v564, %v560
    %v681 = vpack.c.b16 %v565, %v561
    %v682 = vpack.c.b16 %v566, %v562
    %v683 = vpack.c.b16 %v567, %v563
    %v684 = vpack.c.b16 %v572, %v568
    %v685 = vpack.c.b16 %v573, %v569
    %v686 = vpack.c.b16 %v574, %v570
    %v687 = vpack.c.b16 %v575, %v571
    %v688 = vpack.c.b16 %v580, %v576
    %v689 = vpack.c.b16 %v581, %v577
    %v690 = vpack.c.b16 %v582, %v578
    %v691 = vpack.c.b16 %v583, %v579
    %v692 = vpack.c.b16 %v588, %v584
    %v693 = vpack.c.b16 %v589, %v585
    %v694 = vpack.c.b16 %v590, %v586
    %v695 = vpack.c.b16 %v591, %v587
    %v696 = vpack.c.b16 %v596, %v592
    %v697 = vpack.c.b16 %v597, %v593
    %v698 = vpack.c.b16 %v598, %v594
    %v699 = vpack.c.b16 %v599, %v595
    %v700 = vpack.c.b16 %v604, %v600
    %v701 = vpack.c.b16 %v605, %v601
    %v702 = vpack.c.b16 %v606, %v602
    %v703 = vpack.c.b16 %v607, %v603
    %v704 = vpack.c.b16 %v612, %v608
    %v705 = vpack.c.b16 %v613, %v609
    %v706 = vpack.c.b16 %v614, %v610
    %v707 = vpack.c.b16 %v615, %v611
    %v708 = vpack.c.b16 %v620, %v616
    %v709 = vpack.c.b16 %v621, %v617
    %v710 = vpack.c.b16 %v622, %v618
    %v711 = vpack.c.b16 %v623, %v619
    %v712 = vpack.c.b16 %v628, %v624
    %v713 = vpack.c.b16 %v629, %v625
    %v714 = vpack.c.b16 %v630, %v626
    %v715 = vpack.c.b16 %v631, %v627
    %v716 = vpack.c.b16 %v636, %v632
    %v717 = vpack.c.b16 %v637, %v633
    %v718 = vpack.c.b16 %v638, %v634
    %v719 = vpack.c.b16 %v639, %v635
    %v720 = vpack.c.b16 %v644, %v640
    %v721 = vpack.c.b16 %v645, %v641
    %v722 = vpack.c.b16 %v646, %v642
    %v723 = vpack.c.b16 %v647, %v643
    %v724 = vpack.c.b16 %v652, %v648
    %v725 = vpack.c.b16 %v653, %v649
    %v726 = vpack.c.b16 %v654, %v650
    %v727 = vpack.c.b16 %v655, %v651
    %v728 = vpack.c.b16 %v660, %v656
    %v729 = vpack.c.b16 %v661, %v657
    %v730 = vpack.c.b16 %v662, %v658
    %v731 = vpack.c.b16 %v663, %v659
    %v732 = vpack.c.b16 %v668, %v664
    %v733 = vpack.c.b16 %v669, %v665
    %v734 = vpack.c.b16 %v670, %v666
    %v735 = vpack.c.b16 %v671, %v667
    %v801 = vperm.slane %v479, 0
    %v802 = vperm.slane %v479, 1
    %v803 = vperm.slane %v479, 2
    %v804 = vperm.slane %v479, 3
    %809 = vmatpush.bf16.msra.mxu0 %v700
    %810 = vmatpush.bf16.msra.mxu0 %v696
    %811 = vmatpush.bf16.msra.mxu0 %v692
    %812 = vmatpush.bf16.msra.mxu0 %v688
    %813 = vmatpush.bf16.msra.mxu0 %v684
    %814 = vmatpush.bf16.msra.mxu0 %v680
    %815 = vmatpush.bf16.msra.mxu0 %v676
    %816 = vmatpush.bf16.msra.mxu0 %v672
    %817 = vmatmul.bf16.gmra.mxu0 %v412
    %v818 = vpop.f32.mrf.mxu0
    %v819 = vadd.f32 %v801, %v818
    %v820 = vpop.f32.mrf.mxu0
    %821 = vdwg.mxu0
    %822 = vmatpush.bf16.msra.mxu0 %v732
    %823 = vmatpush.bf16.msra.mxu0 %v728
    %824 = vmatpush.bf16.msra.mxu0 %v724
    %825 = vmatpush.bf16.msra.mxu0 %v720
    %826 = vmatpush.bf16.msra.mxu0 %v716
    %827 = vmatpush.bf16.msra.mxu0 %v712
    %828 = vmatpush.bf16.msra.mxu0 %v708
    %829 = vmatpush.bf16.msra.mxu0 %v704
    %830 = vmatmul.bf16.gmra.mxu0 %v413
    %v831 = vpop.f32.mrf.mxu0
    %v832 = vadd.f32 %v819, %v831
    %v833 = vpop.f32.mrf.mxu0
    %834 = vdwg.mxu0
    %835 = vmatpush.bf16.msra.mxu0 %v701
    %836 = vmatpush.bf16.msra.mxu0 %v697
    %837 = vmatpush.bf16.msra.mxu0 %v693
    %838 = vmatpush.bf16.msra.mxu0 %v689
    %839 = vmatpush.bf16.msra.mxu0 %v685
    %840 = vmatpush.bf16.msra.mxu0 %v681
    %841 = vmatpush.bf16.msra.mxu0 %v677
    %842 = vmatpush.bf16.msra.mxu0 %v673
    %843 = vmatmul.bf16.gmra.mxu0 %v412
    %v844 = vpop.f32.mrf.mxu0
    %v845 = vadd.f32 %v802, %v844
    %v846 = vpop.f32.mrf.mxu0
    %847 = vdwg.mxu0
    %848 = vmatpush.bf16.msra.mxu0 %v733
    %849 = vmatpush.bf16.msra.mxu0 %v729
    %850 = vmatpush.bf16.msra.mxu0 %v725
    %851 = vmatpush.bf16.msra.mxu0 %v721
    %852 = vmatpush.bf16.msra.mxu0 %v717
    %853 = vmatpush.bf16.msra.mxu0 %v713
    %854 = vmatpush.bf16.msra.mxu0 %v709
    %855 = vmatpush.bf16.msra.mxu0 %v705
    %856 = vmatmul.bf16.gmra.mxu0 %v413
    %v857 = vpop.f32.mrf.mxu0
    %v858 = vadd.f32 %v845, %v857
    %v859 = vpop.f32.mrf.mxu0
    %860 = vdwg.mxu0
    %861 = vmatpush.bf16.msra.mxu0 %v702
    %862 = vmatpush.bf16.msra.mxu0 %v698
    %863 = vmatpush.bf16.msra.mxu0 %v694
    %864 = vmatpush.bf16.msra.mxu0 %v690
    %865 = vmatpush.bf16.msra.mxu0 %v686
    %866 = vmatpush.bf16.msra.mxu0 %v682
    %867 = vmatpush.bf16.msra.mxu0 %v678
    %868 = vmatpush.bf16.msra.mxu0 %v674
    %869 = vmatmul.bf16.gmra.mxu0 %v412
    %v870 = vpop.f32.mrf.mxu0
    %v871 = vadd.f32 %v803, %v870
    %v872 = vpop.f32.mrf.mxu0
    %873 = vdwg.mxu0
    %874 = vmatpush.bf16.msra.mxu0 %v734
    %875 = vmatpush.bf16.msra.mxu0 %v730
    %876 = vmatpush.bf16.msra.mxu0 %v726
    %877 = vmatpush.bf16.msra.mxu0 %v722
    %878 = vmatpush.bf16.msra.mxu0 %v718
    %879 = vmatpush.bf16.msra.mxu0 %v714
    %880 = vmatpush.bf16.msra.mxu0 %v710
    %881 = vmatpush.bf16.msra.mxu0 %v706
    %882 = vmatmul.bf16.gmra.mxu0 %v413
    %v883 = vpop.f32.mrf.mxu0
    %v884 = vadd.f32 %v871, %v883
    %v885 = vpop.f32.mrf.mxu0
    %886 = vdwg.mxu0
    %887 = vmatpush.bf16.msra.mxu0 %v703
    %888 = vmatpush.bf16.msra.mxu0 %v699
    %889 = vmatpush.bf16.msra.mxu0 %v695
    %890 = vmatpush.bf16.msra.mxu0 %v691
    %891 = vmatpush.bf16.msra.mxu0 %v687
    %892 = vmatpush.bf16.msra.mxu0 %v683
    %893 = vmatpush.bf16.msra.mxu0 %v679
    %894 = vmatpush.bf16.msra.mxu0 %v675
    %895 = vmatmul.bf16.gmra.mxu0 %v412
    %v896 = vpop.f32.mrf.mxu0
    %v897 = vadd.f32 %v804, %v896
    %v898 = vpop.f32.mrf.mxu0
    %899 = vdwg.mxu0
    %900 = vmatpush.bf16.msra.mxu0 %v735
    %901 = vmatpush.bf16.msra.mxu0 %v731
    %902 = vmatpush.bf16.msra.mxu0 %v727
    %903 = vmatpush.bf16.msra.mxu0 %v723
    %904 = vmatpush.bf16.msra.mxu0 %v719
    %905 = vmatpush.bf16.msra.mxu0 %v715
    %906 = vmatpush.bf16.msra.mxu0 %v711
    %907 = vmatpush.bf16.msra.mxu0 %v707
    %908 = vmatmul.bf16.gmra.mxu0 %v413
    %v909 = vpop.f32.mrf.mxu0
    %v910 = vadd.f32 %v897, %v909
    %v911 = vpop.f32.mrf.mxu0
    %912 = vdwg.mxu0
    %v913 = vxor.u32 %v832, 2147483648
    %v914 = vmul.f32 %v913, 1.442695
    %v915 = vpow.pop %v914
    %v916 = vadd.f32 %v915, 1.0
    %v917 = vrcp.pop %v916
    %v918 = vmul.f32 %v916, %v917
    %v919 = vsub.f32 1.0, %v918
    %v920 = vmul.f32 %v917, %v919
    %v921 = vadd.f32 %v917, %v920
    %vm922 = vweird.f32 %v916
    %vm923 = vweird.f32 %v917
    %vm924 = vmor %vm922, %vm923
    %v925 = vsel %vm924, %v917, %v921
    %v926 = vand.u32 2147483647, %v916
    %vm927 = vcmp.eq.f32.partialorder %v926, 8.507059e+37
    %v928 = vand.u32 %v916, 2147483648
    %v929 = vor.u32 1.1754944e-38, %v928
    %v930 = vsel %vm927, %v929, %v925
    %v931 = vmul.f32 1.0, %v930
    %v932 = vxor.u32 %v858, 2147483648
    %v933 = vmul.f32 %v932, 1.442695
    %v934 = vpow.pop %v933
    %v935 = vadd.f32 %v934, 1.0
    %v936 = vrcp.pop %v935
    %v937 = vmul.f32 %v935, %v936
    %v938 = vsub.f32 1.0, %v937
    %v939 = vmul.f32 %v936, %v938
    %v940 = vadd.f32 %v936, %v939
    %vm941 = vweird.f32 %v935
    %vm942 = vweird.f32 %v936
    %vm943 = vmor %vm941, %vm942
    %v944 = vsel %vm943, %v936, %v940
    %v945 = vand.u32 2147483647, %v935
    %vm946 = vcmp.eq.f32.partialorder %v945, 8.507059e+37
    %v947 = vand.u32 %v935, 2147483648
    %v948 = vor.u32 1.1754944e-38, %v947
    %v949 = vsel %vm946, %v948, %v944
    %v950 = vmul.f32 1.0, %v949
    %v951 = vtanh.pop %v884
    %v952 = vxor.u32 %v910, 2147483648
    %v953 = vmul.f32 %v952, 1.442695
    %v954 = vpow.pop %v953
    %v955 = vadd.f32 %v954, 1.0
    %v956 = vrcp.pop %v955
    %v957 = vmul.f32 %v955, %v956
    %v958 = vsub.f32 1.0, %v957
    %v959 = vmul.f32 %v956, %v958
    %v960 = vadd.f32 %v956, %v959
    %vm961 = vweird.f32 %v955
    %vm962 = vweird.f32 %v956
    %vm963 = vmor %vm961, %vm962
    %v964 = vsel %vm963, %v956, %v960
    %v965 = vand.u32 2147483647, %v955
    %vm966 = vcmp.eq.f32.partialorder %v965, 8.507059e+37
    %v967 = vand.u32 %v955, 2147483648
    %v968 = vor.u32 1.1754944e-38, %v967
    %v969 = vsel %vm966, %v968, %v964
    %v970 = vmul.f32 1.0, %v969
    %v971 = vmul.f32 %v950, 0.0
    %v972 = vmul.f32 %v931, %v951
    %v973 = vadd.f32 %v971, %v972
    %v974 = vtanh.pop %v973
    %v975 = vmul.f32 %v970, %v974
    %976 = vst [vmem:[#allocation2] sm:$0x1] %v975
    %s977 = sld [smem:[#allocation3 + $0x1]]
    %v978 = vld [vmem:[#allocation6] ss:$8 sm:$0xf]
    %v979 = vstv %s977
    %v980 = vmul.f32 %v979, %v978
    %v981 = vld [vmem:[#allocation7] sm:$0xff]
    %v982 = vld [vmem:[#allocation7 + $0x8] sm:$0xff]
    %v983 = vld [vmem:[#allocation7 + $0x10] sm:$0xff]
    %v984 = vld [vmem:[#allocation7 + $0x18] sm:$0xff]
    %v985 = vld [vmem:[#allocation7 + $0x20] sm:$0xff]
    %v986 = vld [vmem:[#allocation7 + $0x28] sm:$0xff]
    %v987 = vld [vmem:[#allocation7 + $0x30] sm:$0xff]
    %v988 = vld [vmem:[#allocation7 + $0x38] sm:$0xff]
    %v989 = vld [vmem:[#allocation7 + $0x40] sm:$0xff]
    %v990 = vld [vmem:[#allocation7 + $0x48] sm:$0xff]
    %v991 = vld [vmem:[#allocation7 + $0x50] sm:$0xff]
    %v992 = vld [vmem:[#allocation7 + $0x58] sm:$0xff]
    %v993 = vld [vmem:[#allocation7 + $0x60] sm:$0xff]
    %v994 = vld [vmem:[#allocation7 + $0x68] sm:$0xff]
    %v995 = vld [vmem:[#allocation7 + $0x70] sm:$0xff]
    %v996 = vld [vmem:[#allocation7 + $0x78] sm:$0xff]
    %v997 = vld [vmem:[#allocation7 + $0x80] sm:$0xff]
    %v998 = vld [vmem:[#allocation7 + $0x88] sm:$0xff]
    %v999 = vld [vmem:[#allocation7 + $0x90] sm:$0xff]
    %v1000 = vld [vmem:[#allocation7 + $0x98] sm:$0xff]
    %v1001 = vld [vmem:[#allocation7 + $0xa0] sm:$0xff]
    %v1002 = vld [vmem:[#allocation7 + $0xa8] sm:$0xff]
    %v1003 = vld [vmem:[#allocation7 + $0xb0] sm:$0xff]
    %v1004 = vld [vmem:[#allocation7 + $0xb8] sm:$0xff]
    %v1005 = vld [vmem:[#allocation7 + $0xc0] sm:$0xff]
    %v1006 = vld [vmem:[#allocation7 + $0xc8] sm:$0xff]
    %v1007 = vld [vmem:[#allocation7 + $0xd0] sm:$0xff]
    %v1008 = vld [vmem:[#allocation7 + $0xd8] sm:$0xff]
    %v1009 = vld [vmem:[#allocation7 + $0xe0] sm:$0xff]
    %v1010 = vld [vmem:[#allocation7 + $0xe8] sm:$0xff]
    %v1011 = vld [vmem:[#allocation7 + $0xf0] sm:$0xff]
    %v1012 = vld [vmem:[#allocation7 + $0xf8] sm:$0xff]
    %v1045 = vunpack.c.l.b16 %v981
    %v1046 = vunpack.c.h.b16 %v981
    %v1047 = vunpack.c.l.b16 %v982
    %v1048 = vunpack.c.h.b16 %v982
    %v1049 = vunpack.c.l.b16 %v983
    %v1050 = vunpack.c.h.b16 %v983
    %v1051 = vunpack.c.l.b16 %v984
    %v1052 = vunpack.c.h.b16 %v984
    %v1053 = vunpack.c.l.b16 %v985
    %v1054 = vunpack.c.h.b16 %v985
    %v1055 = vunpack.c.l.b16 %v986
    %v1056 = vunpack.c.h.b16 %v986
    %v1057 = vunpack.c.l.b16 %v987
    %v1058 = vunpack.c.h.b16 %v987
    %v1059 = vunpack.c.l.b16 %v988
    %v1060 = vunpack.c.h.b16 %v988
    %v1061 = vunpack.c.l.b16 %v989
    %v1062 = vunpack.c.h.b16 %v989
    %v1063 = vunpack.c.l.b16 %v990
    %v1064 = vunpack.c.h.b16 %v990
    %v1065 = vunpack.c.l.b16 %v991
    %v1066 = vunpack.c.h.b16 %v991
    %v1067 = vunpack.c.l.b16 %v992
    %v1068 = vunpack.c.h.b16 %v992
    %v1069 = vunpack.c.l.b16 %v993
    %v1070 = vunpack.c.h.b16 %v993
    %v1071 = vunpack.c.l.b16 %v994
    %v1072 = vunpack.c.h.b16 %v994
    %v1073 = vunpack.c.l.b16 %v995
    %v1074 = vunpack.c.h.b16 %v995
    %v1075 = vunpack.c.l.b16 %v996
    %v1076 = vunpack.c.h.b16 %v996
    %v1077 = vunpack.c.l.b16 %v997
    %v1078 = vunpack.c.h.b16 %v997
    %v1079 = vunpack.c.l.b16 %v998
    %v1080 = vunpack.c.h.b16 %v998
    %v1081 = vunpack.c.l.b16 %v999
    %v1082 = vunpack.c.h.b16 %v999
    %v1083 = vunpack.c.l.b16 %v1000
    %v1084 = vunpack.c.h.b16 %v1000
    %v1085 = vunpack.c.l.b16 %v1001
    %v1086 = vunpack.c.h.b16 %v1001
    %v1087 = vunpack.c.l.b16 %v1002
    %v1088 = vunpack.c.h.b16 %v1002
    %v1089 = vunpack.c.l.b16 %v1003
    %v1090 = vunpack.c.h.b16 %v1003
    %v1091 = vunpack.c.l.b16 %v1004
    %v1092 = vunpack.c.h.b16 %v1004
    %v1093 = vunpack.c.l.b16 %v1005
    %v1094 = vunpack.c.h.b16 %v1005
    %v1095 = vunpack.c.l.b16 %v1006
    %v1096 = vunpack.c.h.b16 %v1006
    %v1097 = vunpack.c.l.b16 %v1007
    %v1098 = vunpack.c.h.b16 %v1007
    %v1099 = vunpack.c.l.b16 %v1008
    %v1100 = vunpack.c.h.b16 %v1008
    %v1101 = vunpack.c.l.b16 %v1009
    %v1102 = vunpack.c.h.b16 %v1009
    %v1103 = vunpack.c.l.b16 %v1010
    %v1104 = vunpack.c.h.b16 %v1010
    %v1105 = vunpack.c.l.b16 %v1011
    %v1106 = vunpack.c.h.b16 %v1011
    %v1107 = vunpack.c.l.b16 %v1012
    %v1108 = vunpack.c.h.b16 %v1012
    %v1109 = vpack.c.b16 %v1049, %v1045
    %v1110 = vpack.c.b16 %v1050, %v1046
    %v1111 = vpack.c.b16 %v1051, %v1047
    %v1112 = vpack.c.b16 %v1052, %v1048
    %v1113 = vpack.c.b16 %v1057, %v1053
    %v1114 = vpack.c.b16 %v1058, %v1054
    %v1115 = vpack.c.b16 %v1059, %v1055
    %v1116 = vpack.c.b16 %v1060, %v1056
    %v1117 = vpack.c.b16 %v1065, %v1061
    %v1118 = vpack.c.b16 %v1066, %v1062
    %v1119 = vpack.c.b16 %v1067, %v1063
    %v1120 = vpack.c.b16 %v1068, %v1064
    %v1121 = vpack.c.b16 %v1073, %v1069
    %v1122 = vpack.c.b16 %v1074, %v1070
    %v1123 = vpack.c.b16 %v1075, %v1071
    %v1124 = vpack.c.b16 %v1076, %v1072
    %v1125 = vpack.c.b16 %v1081, %v1077
    %v1126 = vpack.c.b16 %v1082, %v1078
    %v1127 = vpack.c.b16 %v1083, %v1079
    %v1128 = vpack.c.b16 %v1084, %v1080
    %v1129 = vpack.c.b16 %v1089, %v1085
    %v1130 = vpack.c.b16 %v1090, %v1086
    %v1131 = vpack.c.b16 %v1091, %v1087
    %v1132 = vpack.c.b16 %v1092, %v1088
    %v1133 = vpack.c.b16 %v1097, %v1093
    %v1134 = vpack.c.b16 %v1098, %v1094
    %v1135 = vpack.c.b16 %v1099, %v1095
    %v1136 = vpack.c.b16 %v1100, %v1096
    %v1137 = vpack.c.b16 %v1105, %v1101
    %v1138 = vpack.c.b16 %v1106, %v1102
    %v1139 = vpack.c.b16 %v1107, %v1103
    %v1140 = vpack.c.b16 %v1108, %v1104
    %1173 = vmatpush.bf16.msra.mxu0 %v1137
    %1174 = vmatpush.bf16.msra.mxu0 %v1133
    %1175 = vmatpush.bf16.msra.mxu0 %v1129
    %1176 = vmatpush.bf16.msra.mxu0 %v1125
    %1177 = vmatpush.bf16.msra.mxu0 %v1121
    %1178 = vmatpush.bf16.msra.mxu0 %v1117
    %1179 = vmatpush.bf16.msra.mxu0 %v1113
    %1180 = vmatpush.bf16.msra.mxu0 %v1109
    %1181 = vmatmul.bf16.gmra.mxu0 %v412
    %v1182 = vpop.f32.mrf.mxu0
    %v1183 = vadd.f32 0.0, %v1182
    %v1184 = vpop.f32.mrf.mxu0
    %1185 = vdwg.mxu0
    %1186 = vmatpush.bf16.msra.mxu0 %v1138
    %1187 = vmatpush.bf16.msra.mxu0 %v1134
    %1188 = vmatpush.bf16.msra.mxu0 %v1130
    %1189 = vmatpush.bf16.msra.mxu0 %v1126
    %1190 = vmatpush.bf16.msra.mxu0 %v1122
    %1191 = vmatpush.bf16.msra.mxu0 %v1118
    %1192 = vmatpush.bf16.msra.mxu0 %v1114
    %1193 = vmatpush.bf16.msra.mxu0 %v1110
    %1194 = vmatmul.bf16.gmra.mxu0 %v412
    %v1195 = vpop.f32.mrf.mxu0
    %v1196 = vadd.f32 0.0, %v1195
    %v1197 = vpop.f32.mrf.mxu0
    %1198 = vdwg.mxu0
    %1199 = vmatpush.bf16.msra.mxu0 %v1139
    %1200 = vmatpush.bf16.msra.mxu0 %v1135
    %1201 = vmatpush.bf16.msra.mxu0 %v1131
    %1202 = vmatpush.bf16.msra.mxu0 %v1127
    %1203 = vmatpush.bf16.msra.mxu0 %v1123
    %1204 = vmatpush.bf16.msra.mxu0 %v1119
    %1205 = vmatpush.bf16.msra.mxu0 %v1115
    %1206 = vmatpush.bf16.msra.mxu0 %v1111
    %1207 = vmatmul.bf16.gmra.mxu0 %v412
    %v1208 = vpop.f32.mrf.mxu0
    %v1209 = vadd.f32 0.0, %v1208
    %v1210 = vpop.f32.mrf.mxu0
    %1211 = vdwg.mxu0
    %1212 = vmatpush.bf16.msra.mxu0 %v1140
    %1213 = vmatpush.bf16.msra.mxu0 %v1136
    %1214 = vmatpush.bf16.msra.mxu0 %v1132
    %1215 = vmatpush.bf16.msra.mxu0 %v1128
    %1216 = vmatpush.bf16.msra.mxu0 %v1124
    %1217 = vmatpush.bf16.msra.mxu0 %v1120
    %1218 = vmatpush.bf16.msra.mxu0 %v1116
    %1219 = vmatpush.bf16.msra.mxu0 %v1112
    %1220 = vmatmul.bf16.gmra.mxu0 %v412
    %v1221 = vpop.f32.mrf.mxu0
    %v1222 = vadd.f32 0.0, %v1221
    %v1223 = vpop.f32.mrf.mxu0
    %1224 = vdwg.mxu0
    %v1229 = vrot.slane %v1196, 7
    %v1230 = vrot.slane %v1209, 6
    %v1231 = vrot.slane %v1222, 5
    %v1232 = vsel %vm331, %v1183, %v1229
    %v1233 = vsel %vm333, %v1230, %v1231
    %v1234 = vsel %vm335, %v1232, %v1233
    %v1236 = vadd.f32 %v980, %v1234
    %v1237 = vld [vmem:[%s339] ss:$8 sm:$0xf]
    %v1238 = vadd.f32 %v1236, %v1237
    %v1239 = vxor.u32 %v1238, 2147483648
    %v1240 = vmul.f32 %v1239, 1.442695
    %v1241 = vpow.pop %v1240
    %v1242 = vadd.f32 %v1241, 1.0
    %v1243 = vrcp.pop %v1242
    %v1244 = vmul.f32 %v1242, %v1243
    %v1245 = vsub.f32 1.0, %v1244
    %v1246 = vmul.f32 %v1243, %v1245
    %v1247 = vadd.f32 %v1243, %v1246
    %vm1248 = vweird.f32 %v1242
    %vm1249 = vweird.f32 %v1243
    %vm1250 = vmor %vm1248, %vm1249
    %v1251 = vsel %vm1250, %v1243, %v1247
    %v1252 = vand.u32 2147483647, %v1242
    %vm1253 = vcmp.eq.f32.partialorder %v1252, 8.507059e+37
    %v1254 = vand.u32 %v1242, 2147483648
    %v1255 = vor.u32 1.1754944e-38, %v1254
    %v1256 = vsel %vm1253, %v1255, %v1251
    %v1257 = vmul.f32 1.0, %v1256
    %v1259 = vrot.slane %v1238, 1
    %v1261 = vxor.u32 %v1259, 2147483648
    %v1262 = vmul.f32 %v1261, 1.442695
    %v1263 = vpow.pop %v1262
    %v1264 = vadd.f32 %v1263, 1.0
    %v1265 = vrcp.pop %v1264
    %v1266 = vmul.f32 %v1264, %v1265
    %v1267 = vsub.f32 1.0, %v1266
    %v1268 = vmul.f32 %v1265, %v1267
    %v1269 = vadd.f32 %v1265, %v1268
    %vm1270 = vweird.f32 %v1264
    %vm1271 = vweird.f32 %v1265
    %vm1272 = vmor %vm1270, %vm1271
    %v1273 = vsel %vm1272, %v1265, %v1269
    %v1274 = vand.u32 2147483647, %v1264
    %vm1275 = vcmp.eq.f32.partialorder %v1274, 8.507059e+37
    %v1276 = vand.u32 %v1264, 2147483648
    %v1277 = vor.u32 1.1754944e-38, %v1276
    %v1278 = vsel %vm1275, %v1277, %v1273
    %v1279 = vmul.f32 1.0, %v1278
    %v1280 = vrot.slane %v1238, 2
    %v1282 = vtanh.pop %v1280
    %v1283 = vrot.slane %v1238, 3
    %v1285 = vxor.u32 %v1283, 2147483648
    %v1286 = vmul.f32 %v1285, 1.442695
    %v1287 = vpow.pop %v1286
    %v1288 = vadd.f32 %v1287, 1.0
    %v1289 = vrcp.pop %v1288
    %v1290 = vmul.f32 %v1288, %v1289
    %v1291 = vsub.f32 1.0, %v1290
    %v1292 = vmul.f32 %v1289, %v1291
    %v1293 = vadd.f32 %v1289, %v1292
    %vm1294 = vweird.f32 %v1288
    %vm1295 = vweird.f32 %v1289
    %vm1296 = vmor %vm1294, %vm1295
    %v1297 = vsel %vm1296, %v1289, %v1293
    %v1298 = vand.u32 2147483647, %v1288
    %vm1299 = vcmp.eq.f32.partialorder %v1298, 8.507059e+37
    %v1300 = vand.u32 %v1288, 2147483648
    %v1301 = vor.u32 1.1754944e-38, %v1300
    %v1302 = vsel %vm1299, %v1301, %v1297
    %v1303 = vmul.f32 1.0, %v1302
    %v1304 = vmul.f32 %v1279, %v409
    %v1305 = vmul.f32 %v1257, %v1282
    %v1306 = vadd.f32 %v1304, %v1305
    %v1307 = vtanh.pop %v1306
    %v1308 = vmul.f32 %v1303, %v1307
    %v1309 = vpack.c.bf16 %v1308, %v1308
    %v1310 = vpack.c.bf16 %v975, %v975
    %v1311 = vld [vmem:[#allocation9] sm:$0xff]
    %v1312 = vld [vmem:[#allocation9 + $0x8] sm:$0xff]
    %v1313 = vld [vmem:[#allocation9 + $0x10] sm:$0xff]
    %v1314 = vld [vmem:[#allocation9 + $0x18] sm:$0xff]
    %v1315 = vld [vmem:[#allocation9 + $0x20] sm:$0xff]
    %v1316 = vld [vmem:[#allocation9 + $0x28] sm:$0xff]
    %v1317 = vld [vmem:[#allocation9 + $0x30] sm:$0xff]
    %v1318 = vld [vmem:[#allocation9 + $0x38] sm:$0xff]
    %v1319 = vld [vmem:[#allocation9 + $0x40] sm:$0xff]
    %v1320 = vld [vmem:[#allocation9 + $0x48] sm:$0xff]
    %v1321 = vld [vmem:[#allocation9 + $0x50] sm:$0xff]
    %v1322 = vld [vmem:[#allocation9 + $0x58] sm:$0xff]
    %v1323 = vld [vmem:[#allocation9 + $0x60] sm:$0xff]
    %v1324 = vld [vmem:[#allocation9 + $0x68] sm:$0xff]
    %v1325 = vld [vmem:[#allocation9 + $0x70] sm:$0xff]
    %v1326 = vld [vmem:[#allocation9 + $0x78] sm:$0xff]
    %v1327 = vld [vmem:[#allocation9 + $0x80] sm:$0xff]
    %v1328 = vld [vmem:[#allocation9 + $0x88] sm:$0xff]
    %v1329 = vld [vmem:[#allocation9 + $0x90] sm:$0xff]
    %v1330 = vld [vmem:[#allocation9 + $0x98] sm:$0xff]
    %v1331 = vld [vmem:[#allocation9 + $0xa0] sm:$0xff]
    %v1332 = vld [vmem:[#allocation9 + $0xa8] sm:$0xff]
    %v1333 = vld [vmem:[#allocation9 + $0xb0] sm:$0xff]
    %v1334 = vld [vmem:[#allocation9 + $0xb8] sm:$0xff]
    %v1335 = vld [vmem:[#allocation9 + $0xc0] sm:$0xff]
    %v1336 = vld [vmem:[#allocation9 + $0xc8] sm:$0xff]
    %v1337 = vld [vmem:[#allocation9 + $0xd0] sm:$0xff]
    %v1338 = vld [vmem:[#allocation9 + $0xd8] sm:$0xff]
    %v1339 = vld [vmem:[#allocation9 + $0xe0] sm:$0xff]
    %v1340 = vld [vmem:[#allocation9 + $0xe8] sm:$0xff]
    %v1341 = vld [vmem:[#allocation9 + $0xf0] sm:$0xff]
    %v1342 = vld [vmem:[#allocation9 + $0xf8] sm:$0xff]
    %v1343 = vld [vmem:[#allocation9 + $0x100] sm:$0xff]
    %v1344 = vld [vmem:[#allocation9 + $0x108] sm:$0xff]
    %v1345 = vld [vmem:[#allocation9 + $0x110] sm:$0xff]
    %v1346 = vld [vmem:[#allocation9 + $0x118] sm:$0xff]
    %v1347 = vld [vmem:[#allocation9 + $0x120] sm:$0xff]
    %v1348 = vld [vmem:[#allocation9 + $0x128] sm:$0xff]
    %v1349 = vld [vmem:[#allocation9 + $0x130] sm:$0xff]
    %v1350 = vld [vmem:[#allocation9 + $0x138] sm:$0xff]
    %v1351 = vld [vmem:[#allocation9 + $0x140] sm:$0xff]
    %v1352 = vld [vmem:[#allocation9 + $0x148] sm:$0xff]
    %v1353 = vld [vmem:[#allocation9 + $0x150] sm:$0xff]
    %v1354 = vld [vmem:[#allocation9 + $0x158] sm:$0xff]
    %v1355 = vld [vmem:[#allocation9 + $0x160] sm:$0xff]
    %v1356 = vld [vmem:[#allocation9 + $0x168] sm:$0xff]
    %v1357 = vld [vmem:[#allocation9 + $0x170] sm:$0xff]
    %v1358 = vld [vmem:[#allocation9 + $0x178] sm:$0xff]
    %v1359 = vld [vmem:[#allocation9 + $0x180] sm:$0xff]
    %v1360 = vld [vmem:[#allocation9 + $0x188] sm:$0xff]
    %v1361 = vld [vmem:[#allocation9 + $0x190] sm:$0xff]
    %v1362 = vld [vmem:[#allocation9 + $0x198] sm:$0xff]
    %v1363 = vld [vmem:[#allocation9 + $0x1a0] sm:$0xff]
    %v1364 = vld [vmem:[#allocation9 + $0x1a8] sm:$0xff]
    %v1365 = vld [vmem:[#allocation9 + $0x1b0] sm:$0xff]
    %v1366 = vld [vmem:[#allocation9 + $0x1b8] sm:$0xff]
    %v1367 = vld [vmem:[#allocation9 + $0x1c0] sm:$0xff]
    %v1368 = vld [vmem:[#allocation9 + $0x1c8] sm:$0xff]
    %v1369 = vld [vmem:[#allocation9 + $0x1d0] sm:$0xff]
    %v1370 = vld [vmem:[#allocation9 + $0x1d8] sm:$0xff]
    %v1371 = vld [vmem:[#allocation9 + $0x1e0] sm:$0xff]
    %v1372 = vld [vmem:[#allocation9 + $0x1e8] sm:$0xff]
    %v1373 = vld [vmem:[#allocation9 + $0x1f0] sm:$0xff]
    %v1374 = vld [vmem:[#allocation9 + $0x1f8] sm:$0xff]
    %v1375 = vld [vmem:[%s478] ss:$8 sm:$0xf]
    %v1440 = vunpack.c.l.b16 %v1311
    %v1441 = vunpack.c.h.b16 %v1311
    %v1442 = vunpack.c.l.b16 %v1312
    %v1443 = vunpack.c.h.b16 %v1312
    %v1444 = vunpack.c.l.b16 %v1313
    %v1445 = vunpack.c.h.b16 %v1313
    %v1446 = vunpack.c.l.b16 %v1314
    %v1447 = vunpack.c.h.b16 %v1314
    %v1448 = vunpack.c.l.b16 %v1315
    %v1449 = vunpack.c.h.b16 %v1315
    %v1450 = vunpack.c.l.b16 %v1316
    %v1451 = vunpack.c.h.b16 %v1316
    %v1452 = vunpack.c.l.b16 %v1317
    %v1453 = vunpack.c.h.b16 %v1317
    %v1454 = vunpack.c.l.b16 %v1318
    %v1455 = vunpack.c.h.b16 %v1318
    %v1456 = vunpack.c.l.b16 %v1319
    %v1457 = vunpack.c.h.b16 %v1319
    %v1458 = vunpack.c.l.b16 %v1320
    %v1459 = vunpack.c.h.b16 %v1320
    %v1460 = vunpack.c.l.b16 %v1321
    %v1461 = vunpack.c.h.b16 %v1321
    %v1462 = vunpack.c.l.b16 %v1322
    %v1463 = vunpack.c.h.b16 %v1322
    %v1464 = vunpack.c.l.b16 %v1323
    %v1465 = vunpack.c.h.b16 %v1323
    %v1466 = vunpack.c.l.b16 %v1324
    %v1467 = vunpack.c.h.b16 %v1324
    %v1468 = vunpack.c.l.b16 %v1325
    %v1469 = vunpack.c.h.b16 %v1325
    %v1470 = vunpack.c.l.b16 %v1326
    %v1471 = vunpack.c.h.b16 %v1326
    %v1472 = vunpack.c.l.b16 %v1327
    %v1473 = vunpack.c.h.b16 %v1327
    %v1474 = vunpack.c.l.b16 %v1328
    %v1475 = vunpack.c.h.b16 %v1328
    %v1476 = vunpack.c.l.b16 %v1329
    %v1477 = vunpack.c.h.b16 %v1329
    %v1478 = vunpack.c.l.b16 %v1330
    %v1479 = vunpack.c.h.b16 %v1330
    %v1480 = vunpack.c.l.b16 %v1331
    %v1481 = vunpack.c.h.b16 %v1331
    %v1482 = vunpack.c.l.b16 %v1332
    %v1483 = vunpack.c.h.b16 %v1332
    %v1484 = vunpack.c.l.b16 %v1333
    %v1485 = vunpack.c.h.b16 %v1333
    %v1486 = vunpack.c.l.b16 %v1334
    %v1487 = vunpack.c.h.b16 %v1334
    %v1488 = vunpack.c.l.b16 %v1335
    %v1489 = vunpack.c.h.b16 %v1335
    %v1490 = vunpack.c.l.b16 %v1336
    %v1491 = vunpack.c.h.b16 %v1336
    %v1492 = vunpack.c.l.b16 %v1337
    %v1493 = vunpack.c.h.b16 %v1337
    %v1494 = vunpack.c.l.b16 %v1338
    %v1495 = vunpack.c.h.b16 %v1338
    %v1496 = vunpack.c.l.b16 %v1339
    %v1497 = vunpack.c.h.b16 %v1339
    %v1498 = vunpack.c.l.b16 %v1340
    %v1499 = vunpack.c.h.b16 %v1340
    %v1500 = vunpack.c.l.b16 %v1341
    %v1501 = vunpack.c.h.b16 %v1341
    %v1502 = vunpack.c.l.b16 %v1342
    %v1503 = vunpack.c.h.b16 %v1342
    %v1504 = vunpack.c.l.b16 %v1343
    %v1505 = vunpack.c.h.b16 %v1343
    %v1506 = vunpack.c.l.b16 %v1344
    %v1507 = vunpack.c.h.b16 %v1344
    %v1508 = vunpack.c.l.b16 %v1345
    %v1509 = vunpack.c.h.b16 %v1345
    %v1510 = vunpack.c.l.b16 %v1346
    %v1511 = vunpack.c.h.b16 %v1346
    %v1512 = vunpack.c.l.b16 %v1347
    %v1513 = vunpack.c.h.b16 %v1347
    %v1514 = vunpack.c.l.b16 %v1348
    %v1515 = vunpack.c.h.b16 %v1348
    %v1516 = vunpack.c.l.b16 %v1349
    %v1517 = vunpack.c.h.b16 %v1349
    %v1518 = vunpack.c.l.b16 %v1350
    %v1519 = vunpack.c.h.b16 %v1350
    %v1520 = vunpack.c.l.b16 %v1351
    %v1521 = vunpack.c.h.b16 %v1351
    %v1522 = vunpack.c.l.b16 %v1352
    %v1523 = vunpack.c.h.b16 %v1352
    %v1524 = vunpack.c.l.b16 %v1353
    %v1525 = vunpack.c.h.b16 %v1353
    %v1526 = vunpack.c.l.b16 %v1354
    %v1527 = vunpack.c.h.b16 %v1354
    %v1528 = vunpack.c.l.b16 %v1355
    %v1529 = vunpack.c.h.b16 %v1355
    %v1530 = vunpack.c.l.b16 %v1356
    %v1531 = vunpack.c.h.b16 %v1356
    %v1532 = vunpack.c.l.b16 %v1357
    %v1533 = vunpack.c.h.b16 %v1357
    %v1534 = vunpack.c.l.b16 %v1358
    %v1535 = vunpack.c.h.b16 %v1358
    %v1536 = vunpack.c.l.b16 %v1359
    %v1537 = vunpack.c.h.b16 %v1359
    %v1538 = vunpack.c.l.b16 %v1360
    %v1539 = vunpack.c.h.b16 %v1360
    %v1540 = vunpack.c.l.b16 %v1361
    %v1541 = vunpack.c.h.b16 %v1361
    %v1542 = vunpack.c.l.b16 %v1362
    %v1543 = vunpack.c.h.b16 %v1362
    %v1544 = vunpack.c.l.b16 %v1363
    %v1545 = vunpack.c.h.b16 %v1363
    %v1546 = vunpack.c.l.b16 %v1364
    %v1547 = vunpack.c.h.b16 %v1364
    %v1548 = vunpack.c.l.b16 %v1365
    %v1549 = vunpack.c.h.b16 %v1365
    %v1550 = vunpack.c.l.b16 %v1366
    %v1551 = vunpack.c.h.b16 %v1366
    %v1552 = vunpack.c.l.b16 %v1367
    %v1553 = vunpack.c.h.b16 %v1367
    %v1554 = vunpack.c.l.b16 %v1368
    %v1555 = vunpack.c.h.b16 %v1368
    %v1556 = vunpack.c.l.b16 %v1369
    %v1557 = vunpack.c.h.b16 %v1369
    %v1558 = vunpack.c.l.b16 %v1370
    %v1559 = vunpack.c.h.b16 %v1370
    %v1560 = vunpack.c.l.b16 %v1371
    %v1561 = vunpack.c.h.b16 %v1371
    %v1562 = vunpack.c.l.b16 %v1372
    %v1563 = vunpack.c.h.b16 %v1372
    %v1564 = vunpack.c.l.b16 %v1373
    %v1565 = vunpack.c.h.b16 %v1373
    %v1566 = vunpack.c.l.b16 %v1374
    %v1567 = vunpack.c.h.b16 %v1374
    %v1568 = vpack.c.b16 %v1444, %v1440
    %v1569 = vpack.c.b16 %v1445, %v1441
    %v1570 = vpack.c.b16 %v1446, %v1442
    %v1571 = vpack.c.b16 %v1447, %v1443
    %v1572 = vpack.c.b16 %v1452, %v1448
    %v1573 = vpack.c.b16 %v1453, %v1449
    %v1574 = vpack.c.b16 %v1454, %v1450
    %v1575 = vpack.c.b16 %v1455, %v1451
    %v1576 = vpack.c.b16 %v1460, %v1456
    %v1577 = vpack.c.b16 %v1461, %v1457
    %v1578 = vpack.c.b16 %v1462, %v1458
    %v1579 = vpack.c.b16 %v1463, %v1459
    %v1580 = vpack.c.b16 %v1468, %v1464
    %v1581 = vpack.c.b16 %v1469, %v1465
    %v1582 = vpack.c.b16 %v1470, %v1466
    %v1583 = vpack.c.b16 %v1471, %v1467
    %v1584 = vpack.c.b16 %v1476, %v1472
    %v1585 = vpack.c.b16 %v1477, %v1473
    %v1586 = vpack.c.b16 %v1478, %v1474
    %v1587 = vpack.c.b16 %v1479, %v1475
    %v1588 = vpack.c.b16 %v1484, %v1480
    %v1589 = vpack.c.b16 %v1485, %v1481
    %v1590 = vpack.c.b16 %v1486, %v1482
    %v1591 = vpack.c.b16 %v1487, %v1483
    %v1592 = vpack.c.b16 %v1492, %v1488
    %v1593 = vpack.c.b16 %v1493, %v1489
    %v1594 = vpack.c.b16 %v1494, %v1490
    %v1595 = vpack.c.b16 %v1495, %v1491
    %v1596 = vpack.c.b16 %v1500, %v1496
    %v1597 = vpack.c.b16 %v1501, %v1497
    %v1598 = vpack.c.b16 %v1502, %v1498
    %v1599 = vpack.c.b16 %v1503, %v1499
    %v1600 = vpack.c.b16 %v1508, %v1504
    %v1601 = vpack.c.b16 %v1509, %v1505
    %v1602 = vpack.c.b16 %v1510, %v1506
    %v1603 = vpack.c.b16 %v1511, %v1507
    %v1604 = vpack.c.b16 %v1516, %v1512
    %v1605 = vpack.c.b16 %v1517, %v1513
    %v1606 = vpack.c.b16 %v1518, %v1514
    %v1607 = vpack.c.b16 %v1519, %v1515
    %v1608 = vpack.c.b16 %v1524, %v1520
    %v1609 = vpack.c.b16 %v1525, %v1521
    %v1610 = vpack.c.b16 %v1526, %v1522
    %v1611 = vpack.c.b16 %v1527, %v1523
    %v1612 = vpack.c.b16 %v1532, %v1528
    %v1613 = vpack.c.b16 %v1533, %v1529
    %v1614 = vpack.c.b16 %v1534, %v1530
    %v1615 = vpack.c.b16 %v1535, %v1531
    %v1616 = vpack.c.b16 %v1540, %v1536
    %v1617 = vpack.c.b16 %v1541, %v1537
    %v1618 = vpack.c.b16 %v1542, %v1538
    %v1619 = vpack.c.b16 %v1543, %v1539
    %v1620 = vpack.c.b16 %v1548, %v1544
    %v1621 = vpack.c.b16 %v1549, %v1545
    %v1622 = vpack.c.b16 %v1550, %v1546
    %v1623 = vpack.c.b16 %v1551, %v1547
    %v1624 = vpack.c.b16 %v1556, %v1552
    %v1625 = vpack.c.b16 %v1557, %v1553
    %v1626 = vpack.c.b16 %v1558, %v1554
    %v1627 = vpack.c.b16 %v1559, %v1555
    %v1628 = vpack.c.b16 %v1564, %v1560
    %v1629 = vpack.c.b16 %v1565, %v1561
    %v1630 = vpack.c.b16 %v1566, %v1562
    %v1631 = vpack.c.b16 %v1567, %v1563
    %v1697 = vperm.slane %v1375, 0
    %v1698 = vperm.slane %v1375, 1
    %v1699 = vperm.slane %v1375, 2
    %v1700 = vperm.slane %v1375, 3
    %1705 = vmatpush.bf16.msra.mxu0 %v1596
    %1706 = vmatpush.bf16.msra.mxu0 %v1592
    %1707 = vmatpush.bf16.msra.mxu0 %v1588
    %1708 = vmatpush.bf16.msra.mxu0 %v1584
    %1709 = vmatpush.bf16.msra.mxu0 %v1580
    %1710 = vmatpush.bf16.msra.mxu0 %v1576
    %1711 = vmatpush.bf16.msra.mxu0 %v1572
    %1712 = vmatpush.bf16.msra.mxu0 %v1568
    %1713 = vmatmul.bf16.gmra.mxu0 %v1309
    %v1714 = vpop.f32.mrf.mxu0
    %v1715 = vadd.f32 %v1697, %v1714
    %v1716 = vpop.f32.mrf.mxu0
    %1717 = vdwg.mxu0
    %1718 = vmatpush.bf16.msra.mxu0 %v1628
    %1719 = vmatpush.bf16.msra.mxu0 %v1624
    %1720 = vmatpush.bf16.msra.mxu0 %v1620
    %1721 = vmatpush.bf16.msra.mxu0 %v1616
    %1722 = vmatpush.bf16.msra.mxu0 %v1612
    %1723 = vmatpush.bf16.msra.mxu0 %v1608
    %1724 = vmatpush.bf16.msra.mxu0 %v1604
    %1725 = vmatpush.bf16.msra.mxu0 %v1600
    %1726 = vmatmul.bf16.gmra.mxu0 %v1310
    %v1727 = vpop.f32.mrf.mxu0
    %v1728 = vadd.f32 %v1715, %v1727
    %v1729 = vpop.f32.mrf.mxu0
    %1730 = vdwg.mxu0
    %1731 = vmatpush.bf16.msra.mxu0 %v1597
    %1732 = vmatpush.bf16.msra.mxu0 %v1593
    %1733 = vmatpush.bf16.msra.mxu0 %v1589
    %1734 = vmatpush.bf16.msra.mxu0 %v1585
    %1735 = vmatpush.bf16.msra.mxu0 %v1581
    %1736 = vmatpush.bf16.msra.mxu0 %v1577
    %1737 = vmatpush.bf16.msra.mxu0 %v1573
    %1738 = vmatpush.bf16.msra.mxu0 %v1569
    %1739 = vmatmul.bf16.gmra.mxu0 %v1309
    %v1740 = vpop.f32.mrf.mxu0
    %v1741 = vadd.f32 %v1698, %v1740
    %v1742 = vpop.f32.mrf.mxu0
    %1743 = vdwg.mxu0
    %1744 = vmatpush.bf16.msra.mxu0 %v1629
    %1745 = vmatpush.bf16.msra.mxu0 %v1625
    %1746 = vmatpush.bf16.msra.mxu0 %v1621
    %1747 = vmatpush.bf16.msra.mxu0 %v1617
    %1748 = vmatpush.bf16.msra.mxu0 %v1613
    %1749 = vmatpush.bf16.msra.mxu0 %v1609
    %1750 = vmatpush.bf16.msra.mxu0 %v1605
    %1751 = vmatpush.bf16.msra.mxu0 %v1601
    %1752 = vmatmul.bf16.gmra.mxu0 %v1310
    %v1753 = vpop.f32.mrf.mxu0
    %v1754 = vadd.f32 %v1741, %v1753
    %v1755 = vpop.f32.mrf.mxu0
    %1756 = vdwg.mxu0
    %1757 = vmatpush.bf16.msra.mxu0 %v1598
    %1758 = vmatpush.bf16.msra.mxu0 %v1594
    %1759 = vmatpush.bf16.msra.mxu0 %v1590
    %1760 = vmatpush.bf16.msra.mxu0 %v1586
    %1761 = vmatpush.bf16.msra.mxu0 %v1582
    %1762 = vmatpush.bf16.msra.mxu0 %v1578
    %1763 = vmatpush.bf16.msra.mxu0 %v1574
    %1764 = vmatpush.bf16.msra.mxu0 %v1570
    %1765 = vmatmul.bf16.gmra.mxu0 %v1309
    %v1766 = vpop.f32.mrf.mxu0
    %v1767 = vadd.f32 %v1699, %v1766
    %v1768 = vpop.f32.mrf.mxu0
    %1769 = vdwg.mxu0
    %1770 = vmatpush.bf16.msra.mxu0 %v1630
    %1771 = vmatpush.bf16.msra.mxu0 %v1626
    %1772 = vmatpush.bf16.msra.mxu0 %v1622
    %1773 = vmatpush.bf16.msra.mxu0 %v1618
    %1774 = vmatpush.bf16.msra.mxu0 %v1614
    %1775 = vmatpush.bf16.msra.mxu0 %v1610
    %1776 = vmatpush.bf16.msra.mxu0 %v1606
    %1777 = vmatpush.bf16.msra.mxu0 %v1602
    %1778 = vmatmul.bf16.gmra.mxu0 %v1310
    %v1779 = vpop.f32.mrf.mxu0
    %v1780 = vadd.f32 %v1767, %v1779
    %v1781 = vpop.f32.mrf.mxu0
    %1782 = vdwg.mxu0
    %1783 = vmatpush.bf16.msra.mxu0 %v1599
    %1784 = vmatpush.bf16.msra.mxu0 %v1595
    %1785 = vmatpush.bf16.msra.mxu0 %v1591
    %1786 = vmatpush.bf16.msra.mxu0 %v1587
    %1787 = vmatpush.bf16.msra.mxu0 %v1583
    %1788 = vmatpush.bf16.msra.mxu0 %v1579
    %1789 = vmatpush.bf16.msra.mxu0 %v1575
    %1790 = vmatpush.bf16.msra.mxu0 %v1571
    %1791 = vmatmul.bf16.gmra.mxu0 %v1309
    %v1792 = vpop.f32.mrf.mxu0
    %v1793 = vadd.f32 %v1700, %v1792
    %v1794 = vpop.f32.mrf.mxu0
    %1795 = vdwg.mxu0
    %1796 = vmatpush.bf16.msra.mxu0 %v1631
    %1797 = vmatpush.bf16.msra.mxu0 %v1627
    %1798 = vmatpush.bf16.msra.mxu0 %v1623
    %1799 = vmatpush.bf16.msra.mxu0 %v1619
    %1800 = vmatpush.bf16.msra.mxu0 %v1615
    %1801 = vmatpush.bf16.msra.mxu0 %v1611
    %1802 = vmatpush.bf16.msra.mxu0 %v1607
    %1803 = vmatpush.bf16.msra.mxu0 %v1603
    %1804 = vmatmul.bf16.gmra.mxu0 %v1310
    %v1805 = vpop.f32.mrf.mxu0
    %v1806 = vadd.f32 %v1793, %v1805
    %v1807 = vpop.f32.mrf.mxu0
    %1808 = vdwg.mxu0
    %v1809 = vxor.u32 %v1728, 2147483648
    %v1810 = vmul.f32 %v1809, 1.442695
    %v1811 = vpow.pop %v1810
    %v1812 = vadd.f32 %v1811, 1.0
    %v1813 = vrcp.pop %v1812
    %v1814 = vmul.f32 %v1812, %v1813
    %v1815 = vsub.f32 1.0, %v1814
    %v1816 = vmul.f32 %v1813, %v1815
    %v1817 = vadd.f32 %v1813, %v1816
    %vm1818 = vweird.f32 %v1812
    %vm1819 = vweird.f32 %v1813
    %vm1820 = vmor %vm1818, %vm1819
    %v1821 = vsel %vm1820, %v1813, %v1817
    %v1822 = vand.u32 2147483647, %v1812
    %vm1823 = vcmp.eq.f32.partialorder %v1822, 8.507059e+37
    %v1824 = vand.u32 %v1812, 2147483648
    %v1825 = vor.u32 1.1754944e-38, %v1824
    %v1826 = vsel %vm1823, %v1825, %v1821
    %v1827 = vmul.f32 1.0, %v1826
    %v1828 = vxor.u32 %v1754, 2147483648
    %v1829 = vmul.f32 %v1828, 1.442695
    %v1830 = vpow.pop %v1829
    %v1831 = vadd.f32 %v1830, 1.0
    %v1832 = vrcp.pop %v1831
    %v1833 = vmul.f32 %v1831, %v1832
    %v1834 = vsub.f32 1.0, %v1833
    %v1835 = vmul.f32 %v1832, %v1834
    %v1836 = vadd.f32 %v1832, %v1835
    %vm1837 = vweird.f32 %v1831
    %vm1838 = vweird.f32 %v1832
    %vm1839 = vmor %vm1837, %vm1838
    %v1840 = vsel %vm1839, %v1832, %v1836
    %v1841 = vand.u32 2147483647, %v1831
    %vm1842 = vcmp.eq.f32.partialorder %v1841, 8.507059e+37
    %v1843 = vand.u32 %v1831, 2147483648
    %v1844 = vor.u32 1.1754944e-38, %v1843
    %v1845 = vsel %vm1842, %v1844, %v1840
    %v1846 = vmul.f32 1.0, %v1845
    %v1847 = vtanh.pop %v1780
    %v1848 = vxor.u32 %v1806, 2147483648
    %v1849 = vmul.f32 %v1848, 1.442695
    %v1850 = vpow.pop %v1849
    %v1851 = vadd.f32 %v1850, 1.0
    %v1852 = vrcp.pop %v1851
    %v1853 = vmul.f32 %v1851, %v1852
    %v1854 = vsub.f32 1.0, %v1853
    %v1855 = vmul.f32 %v1852, %v1854
    %v1856 = vadd.f32 %v1852, %v1855
    %vm1857 = vweird.f32 %v1851
    %vm1858 = vweird.f32 %v1852
    %vm1859 = vmor %vm1857, %vm1858
    %v1860 = vsel %vm1859, %v1852, %v1856
    %v1861 = vand.u32 2147483647, %v1851
    %vm1862 = vcmp.eq.f32.partialorder %v1861, 8.507059e+37
    %v1863 = vand.u32 %v1851, 2147483648
    %v1864 = vor.u32 1.1754944e-38, %v1863
    %v1865 = vsel %vm1862, %v1864, %v1860
    %v1866 = vmul.f32 1.0, %v1865
    %v1867 = vmul.f32 %v1846, %v973
    %v1868 = vmul.f32 %v1827, %v1847
    %v1869 = vadd.f32 %v1867, %v1868
    %v1870 = vtanh.pop %v1869
    %v1871 = vmul.f32 %v1866, %v1870
    %1872 = vst [vmem:[#allocation2 + $0x1] sm:$0x1] %v1871
    %s1873 = sld [smem:[#allocation3 + $0x2]]
    %v1874 = vld [vmem:[#allocation6] ss:$8 sm:$0xf]
    %v1875 = vstv %s1873
    %v1876 = vmul.f32 %v1875, %v1874
    %v1877 = vld [vmem:[#allocation7] sm:$0xff]
    %v1878 = vld [vmem:[#allocation7 + $0x8] sm:$0xff]
    %v1879 = vld [vmem:[#allocation7 + $0x10] sm:$0xff]
    %v1880 = vld [vmem:[#allocation7 + $0x18] sm:$0xff]
    %v1881 = vld [vmem:[#allocation7 + $0x20] sm:$0xff]
    %v1882 = vld [vmem:[#allocation7 + $0x28] sm:$0xff]
    %v1883 = vld [vmem:[#allocation7 + $0x30] sm:$0xff]
    %v1884 = vld [vmem:[#allocation7 + $0x38] sm:$0xff]
    %v1885 = vld [vmem:[#allocation7 + $0x40] sm:$0xff]
    %v1886 = vld [vmem:[#allocation7 + $0x48] sm:$0xff]
    %v1887 = vld [vmem:[#allocation7 + $0x50] sm:$0xff]
    %v1888 = vld [vmem:[#allocation7 + $0x58] sm:$0xff]
    %v1889 = vld [vmem:[#allocation7 + $0x60] sm:$0xff]
    %v1890 = vld [vmem:[#allocation7 + $0x68] sm:$0xff]
    %v1891 = vld [vmem:[#allocation7 + $0x70] sm:$0xff]
    %v1892 = vld [vmem:[#allocation7 + $0x78] sm:$0xff]
    %v1893 = vld [vmem:[#allocation7 + $0x80] sm:$0xff]
    %v1894 = vld [vmem:[#allocation7 + $0x88] sm:$0xff]
    %v1895 = vld [vmem:[#allocation7 + $0x90] sm:$0xff]
    %v1896 = vld [vmem:[#allocation7 + $0x98] sm:$0xff]
    %v1897 = vld [vmem:[#allocation7 + $0xa0] sm:$0xff]
    %v1898 = vld [vmem:[#allocation7 + $0xa8] sm:$0xff]
    %v1899 = vld [vmem:[#allocation7 + $0xb0] sm:$0xff]
    %v1900 = vld [vmem:[#allocation7 + $0xb8] sm:$0xff]
    %v1901 = vld [vmem:[#allocation7 + $0xc0] sm:$0xff]
    %v1902 = vld [vmem:[#allocation7 + $0xc8] sm:$0xff]
    %v1903 = vld [vmem:[#allocation7 + $0xd0] sm:$0xff]
    %v1904 = vld [vmem:[#allocation7 + $0xd8] sm:$0xff]
    %v1905 = vld [vmem:[#allocation7 + $0xe0] sm:$0xff]
    %v1906 = vld [vmem:[#allocation7 + $0xe8] sm:$0xff]
    %v1907 = vld [vmem:[#allocation7 + $0xf0] sm:$0xff]
    %v1908 = vld [vmem:[#allocation7 + $0xf8] sm:$0xff]
    %v1941 = vunpack.c.l.b16 %v1877
    %v1942 = vunpack.c.h.b16 %v1877
    %v1943 = vunpack.c.l.b16 %v1878
    %v1944 = vunpack.c.h.b16 %v1878
    %v1945 = vunpack.c.l.b16 %v1879
    %v1946 = vunpack.c.h.b16 %v1879
    %v1947 = vunpack.c.l.b16 %v1880
    %v1948 = vunpack.c.h.b16 %v1880
    %v1949 = vunpack.c.l.b16 %v1881
    %v1950 = vunpack.c.h.b16 %v1881
    %v1951 = vunpack.c.l.b16 %v1882
    %v1952 = vunpack.c.h.b16 %v1882
    %v1953 = vunpack.c.l.b16 %v1883
    %v1954 = vunpack.c.h.b16 %v1883
    %v1955 = vunpack.c.l.b16 %v1884
    %v1956 = vunpack.c.h.b16 %v1884
    %v1957 = vunpack.c.l.b16 %v1885
    %v1958 = vunpack.c.h.b16 %v1885
    %v1959 = vunpack.c.l.b16 %v1886
    %v1960 = vunpack.c.h.b16 %v1886
    %v1961 = vunpack.c.l.b16 %v1887
    %v1962 = vunpack.c.h.b16 %v1887
    %v1963 = vunpack.c.l.b16 %v1888
    %v1964 = vunpack.c.h.b16 %v1888
    %v1965 = vunpack.c.l.b16 %v1889
    %v1966 = vunpack.c.h.b16 %v1889
    %v1967 = vunpack.c.l.b16 %v1890
    %v1968 = vunpack.c.h.b16 %v1890
    %v1969 = vunpack.c.l.b16 %v1891
    %v1970 = vunpack.c.h.b16 %v1891
    %v1971 = vunpack.c.l.b16 %v1892
    %v1972 = vunpack.c.h.b16 %v1892
    %v1973 = vunpack.c.l.b16 %v1893
    %v1974 = vunpack.c.h.b16 %v1893
    %v1975 = vunpack.c.l.b16 %v1894
    %v1976 = vunpack.c.h.b16 %v1894
    %v1977 = vunpack.c.l.b16 %v1895
    %v1978 = vunpack.c.h.b16 %v1895
    %v1979 = vunpack.c.l.b16 %v1896
    %v1980 = vunpack.c.h.b16 %v1896
    %v1981 = vunpack.c.l.b16 %v1897
    %v1982 = vunpack.c.h.b16 %v1897
    %v1983 = vunpack.c.l.b16 %v1898
    %v1984 = vunpack.c.h.b16 %v1898
    %v1985 = vunpack.c.l.b16 %v1899
    %v1986 = vunpack.c.h.b16 %v1899
    %v1987 = vunpack.c.l.b16 %v1900
    %v1988 = vunpack.c.h.b16 %v1900
    %v1989 = vunpack.c.l.b16 %v1901
    %v1990 = vunpack.c.h.b16 %v1901
    %v1991 = vunpack.c.l.b16 %v1902
    %v1992 = vunpack.c.h.b16 %v1902
    %v1993 = vunpack.c.l.b16 %v1903
    %v1994 = vunpack.c.h.b16 %v1903
    %v1995 = vunpack.c.l.b16 %v1904
    %v1996 = vunpack.c.h.b16 %v1904
    %v1997 = vunpack.c.l.b16 %v1905
    %v1998 = vunpack.c.h.b16 %v1905
    %v1999 = vunpack.c.l.b16 %v1906
    %v2000 = vunpack.c.h.b16 %v1906
    %v2001 = vunpack.c.l.b16 %v1907
    %v2002 = vunpack.c.h.b16 %v1907
    %v2003 = vunpack.c.l.b16 %v1908
    %v2004 = vunpack.c.h.b16 %v1908
    %v2005 = vpack.c.b16 %v1945, %v1941
    %v2006 = vpack.c.b16 %v1946, %v1942
    %v2007 = vpack.c.b16 %v1947, %v1943
    %v2008 = vpack.c.b16 %v1948, %v1944
    %v2009 = vpack.c.b16 %v1953, %v1949
    %v2010 = vpack.c.b16 %v1954, %v1950
    %v2011 = vpack.c.b16 %v1955, %v1951
    %v2012 = vpack.c.b16 %v1956, %v1952
    %v2013 = vpack.c.b16 %v1961, %v1957
    %v2014 = vpack.c.b16 %v1962, %v1958
    %v2015 = vpack.c.b16 %v1963, %v1959
    %v2016 = vpack.c.b16 %v1964, %v1960
    %v2017 = vpack.c.b16 %v1969, %v1965
    %v2018 = vpack.c.b16 %v1970, %v1966
    %v2019 = vpack.c.b16 %v1971, %v1967
    %v2020 = vpack.c.b16 %v1972, %v1968
    %v2021 = vpack.c.b16 %v1977, %v1973
    %v2022 = vpack.c.b16 %v1978, %v1974
    %v2023 = vpack.c.b16 %v1979, %v1975
    %v2024 = vpack.c.b16 %v1980, %v1976
    %v2025 = vpack.c.b16 %v1985, %v1981
    %v2026 = vpack.c.b16 %v1986, %v1982
    %v2027 = vpack.c.b16 %v1987, %v1983
    %v2028 = vpack.c.b16 %v1988, %v1984
    %v2029 = vpack.c.b16 %v1993, %v1989
    %v2030 = vpack.c.b16 %v1994, %v1990
    %v2031 = vpack.c.b16 %v1995, %v1991
    %v2032 = vpack.c.b16 %v1996, %v1992
    %v2033 = vpack.c.b16 %v2001, %v1997
    %v2034 = vpack.c.b16 %v2002, %v1998
    %v2035 = vpack.c.b16 %v2003, %v1999
    %v2036 = vpack.c.b16 %v2004, %v2000
    %2069 = vmatpush.bf16.msra.mxu0 %v2033
    %2070 = vmatpush.bf16.msra.mxu0 %v2029
    %2071 = vmatpush.bf16.msra.mxu0 %v2025
    %2072 = vmatpush.bf16.msra.mxu0 %v2021
    %2073 = vmatpush.bf16.msra.mxu0 %v2017
    %2074 = vmatpush.bf16.msra.mxu0 %v2013
    %2075 = vmatpush.bf16.msra.mxu0 %v2009
    %2076 = vmatpush.bf16.msra.mxu0 %v2005
    %2077 = vmatmul.bf16.gmra.mxu0 %v1309
    %v2078 = vpop.f32.mrf.mxu0
    %v2079 = vadd.f32 0.0, %v2078
    %v2080 = vpop.f32.mrf.mxu0
    %2081 = vdwg.mxu0
    %2082 = vmatpush.bf16.msra.mxu0 %v2034
    %2083 = vmatpush.bf16.msra.mxu0 %v2030
    %2084 = vmatpush.bf16.msra.mxu0 %v2026
    %2085 = vmatpush.bf16.msra.mxu0 %v2022
    %2086 = vmatpush.bf16.msra.mxu0 %v2018
    %2087 = vmatpush.bf16.msra.mxu0 %v2014
    %2088 = vmatpush.bf16.msra.mxu0 %v2010
    %2089 = vmatpush.bf16.msra.mxu0 %v2006
    %2090 = vmatmul.bf16.gmra.mxu0 %v1309
    %v2091 = vpop.f32.mrf.mxu0
    %v2092 = vadd.f32 0.0, %v2091
    %v2093 = vpop.f32.mrf.mxu0
    %2094 = vdwg.mxu0
    %2095 = vmatpush.bf16.msra.mxu0 %v2035
    %2096 = vmatpush.bf16.msra.mxu0 %v2031
    %2097 = vmatpush.bf16.msra.mxu0 %v2027
    %2098 = vmatpush.bf16.msra.mxu0 %v2023
    %2099 = vmatpush.bf16.msra.mxu0 %v2019
    %2100 = vmatpush.bf16.msra.mxu0 %v2015
    %2101 = vmatpush.bf16.msra.mxu0 %v2011
    %2102 = vmatpush.bf16.msra.mxu0 %v2007
    %2103 = vmatmul.bf16.gmra.mxu0 %v1309
    %v2104 = vpop.f32.mrf.mxu0
    %v2105 = vadd.f32 0.0, %v2104
    %v2106 = vpop.f32.mrf.mxu0
    %2107 = vdwg.mxu0
    %2108 = vmatpush.bf16.msra.mxu0 %v2036
    %2109 = vmatpush.bf16.msra.mxu0 %v2032
    %2110 = vmatpush.bf16.msra.mxu0 %v2028
    %2111 = vmatpush.bf16.msra.mxu0 %v2024
    %2112 = vmatpush.bf16.msra.mxu0 %v2020
    %2113 = vmatpush.bf16.msra.mxu0 %v2016
    %2114 = vmatpush.bf16.msra.mxu0 %v2012
    %2115 = vmatpush.bf16.msra.mxu0 %v2008
    %2116 = vmatmul.bf16.gmra.mxu0 %v1309
    %v2117 = vpop.f32.mrf.mxu0
    %v2118 = vadd.f32 0.0, %v2117
    %v2119 = vpop.f32.mrf.mxu0
    %2120 = vdwg.mxu0
    %v2125 = vrot.slane %v2092, 7
    %v2126 = vrot.slane %v2105, 6
    %v2127 = vrot.slane %v2118, 5
    %v2128 = vsel %vm331, %v2079, %v2125
    %v2129 = vsel %vm333, %v2126, %v2127
    %v2130 = vsel %vm335, %v2128, %v2129
    %v2132 = vadd.f32 %v1876, %v2130
    %v2133 = vld [vmem:[%s339] ss:$8 sm:$0xf]
    %v2134 = vadd.f32 %v2132, %v2133
    %v2135 = vxor.u32 %v2134, 2147483648
    %v2136 = vmul.f32 %v2135, 1.442695
    %v2137 = vpow.pop %v2136
    %v2138 = vadd.f32 %v2137, 1.0
    %v2139 = vrcp.pop %v2138
    %v2140 = vmul.f32 %v2138, %v2139
    %v2141 = vsub.f32 1.0, %v2140
    %v2142 = vmul.f32 %v2139, %v2141
    %v2143 = vadd.f32 %v2139, %v2142
    %vm2144 = vweird.f32 %v2138
    %vm2145 = vweird.f32 %v2139
    %vm2146 = vmor %vm2144, %vm2145
    %v2147 = vsel %vm2146, %v2139, %v2143
    %v2148 = vand.u32 2147483647, %v2138
    %vm2149 = vcmp.eq.f32.partialorder %v2148, 8.507059e+37
    %v2150 = vand.u32 %v2138, 2147483648
    %v2151 = vor.u32 1.1754944e-38, %v2150
    %v2152 = vsel %vm2149, %v2151, %v2147
    %v2153 = vmul.f32 1.0, %v2152
    %v2155 = vrot.slane %v2134, 1
    %v2157 = vxor.u32 %v2155, 2147483648
    %v2158 = vmul.f32 %v2157, 1.442695
    %v2159 = vpow.pop %v2158
    %v2160 = vadd.f32 %v2159, 1.0
    %v2161 = vrcp.pop %v2160
    %v2162 = vmul.f32 %v2160, %v2161
    %v2163 = vsub.f32 1.0, %v2162
    %v2164 = vmul.f32 %v2161, %v2163
    %v2165 = vadd.f32 %v2161, %v2164
    %vm2166 = vweird.f32 %v2160
    %vm2167 = vweird.f32 %v2161
    %vm2168 = vmor %vm2166, %vm2167
    %v2169 = vsel %vm2168, %v2161, %v2165
    %v2170 = vand.u32 2147483647, %v2160
    %vm2171 = vcmp.eq.f32.partialorder %v2170, 8.507059e+37
    %v2172 = vand.u32 %v2160, 2147483648
    %v2173 = vor.u32 1.1754944e-38, %v2172
    %v2174 = vsel %vm2171, %v2173, %v2169
    %v2175 = vmul.f32 1.0, %v2174
    %v2176 = vrot.slane %v2134, 2
    %v2178 = vtanh.pop %v2176
    %v2179 = vrot.slane %v2134, 3
    %v2181 = vxor.u32 %v2179, 2147483648
    %v2182 = vmul.f32 %v2181, 1.442695
    %v2183 = vpow.pop %v2182
    %v2184 = vadd.f32 %v2183, 1.0
    %v2185 = vrcp.pop %v2184
    %v2186 = vmul.f32 %v2184, %v2185
    %v2187 = vsub.f32 1.0, %v2186
    %v2188 = vmul.f32 %v2185, %v2187
    %v2189 = vadd.f32 %v2185, %v2188
    %vm2190 = vweird.f32 %v2184
    %vm2191 = vweird.f32 %v2185
    %vm2192 = vmor %vm2190, %vm2191
    %v2193 = vsel %vm2192, %v2185, %v2189
    %v2194 = vand.u32 2147483647, %v2184
    %vm2195 = vcmp.eq.f32.partialorder %v2194, 8.507059e+37
    %v2196 = vand.u32 %v2184, 2147483648
    %v2197 = vor.u32 1.1754944e-38, %v2196
    %v2198 = vsel %vm2195, %v2197, %v2193
    %v2199 = vmul.f32 1.0, %v2198
    %v2200 = vmul.f32 %v2175, %v1306
    %v2201 = vmul.f32 %v2153, %v2178
    %v2202 = vadd.f32 %v2200, %v2201
    %v2203 = vtanh.pop %v2202
    %v2204 = vmul.f32 %v2199, %v2203
    %v2205 = vpack.c.bf16 %v2204, %v2204
    %v2206 = vpack.c.bf16 %v1871, %v1871
    %v2207 = vld [vmem:[#allocation9] sm:$0xff]
    %v2208 = vld [vmem:[#allocation9 + $0x8] sm:$0xff]
    %v2209 = vld [vmem:[#allocation9 + $0x10] sm:$0xff]
    %v2210 = vld [vmem:[#allocation9 + $0x18] sm:$0xff]
    %v2211 = vld [vmem:[#allocation9 + $0x20] sm:$0xff]
    %v2212 = vld [vmem:[#allocation9 + $0x28] sm:$0xff]
    %v2213 = vld [vmem:[#allocation9 + $0x30] sm:$0xff]
    %v2214 = vld [vmem:[#allocation9 + $0x38] sm:$0xff]
    %v2215 = vld [vmem:[#allocation9 + $0x40] sm:$0xff]
    %v2216 = vld [vmem:[#allocation9 + $0x48] sm:$0xff]
    %v2217 = vld [vmem:[#allocation9 + $0x50] sm:$0xff]
    %v2218 = vld [vmem:[#allocation9 + $0x58] sm:$0xff]
    %v2219 = vld [vmem:[#allocation9 + $0x60] sm:$0xff]
    %v2220 = vld [vmem:[#allocation9 + $0x68] sm:$0xff]
    %v2221 = vld [vmem:[#allocation9 + $0x70] sm:$0xff]
    %v2222 = vld [vmem:[#allocation9 + $0x78] sm:$0xff]
    %v2223 = vld [vmem:[#allocation9 + $0x80] sm:$0xff]
    %v2224 = vld [vmem:[#allocation9 + $0x88] sm:$0xff]
    %v2225 = vld [vmem:[#allocation9 + $0x90] sm:$0xff]
    %v2226 = vld [vmem:[#allocation9 + $0x98] sm:$0xff]
    %v2227 = vld [vmem:[#allocation9 + $0xa0] sm:$0xff]
    %v2228 = vld [vmem:[#allocation9 + $0xa8] sm:$0xff]
    %v2229 = vld [vmem:[#allocation9 + $0xb0] sm:$0xff]
    %v2230 = vld [vmem:[#allocation9 + $0xb8] sm:$0xff]
    %v2231 = vld [vmem:[#allocation9 + $0xc0] sm:$0xff]
    %v2232 = vld [vmem:[#allocation9 + $0xc8] sm:$0xff]
    %v2233 = vld [vmem:[#allocation9 + $0xd0] sm:$0xff]
    %v2234 = vld [vmem:[#allocation9 + $0xd8] sm:$0xff]
    %v2235 = vld [vmem:[#allocation9 + $0xe0] sm:$0xff]
    %v2236 = vld [vmem:[#allocation9 + $0xe8] sm:$0xff]
    %v2237 = vld [vmem:[#allocation9 + $0xf0] sm:$0xff]
    %v2238 = vld [vmem:[#allocation9 + $0xf8] sm:$0xff]
    %v2239 = vld [vmem:[#allocation9 + $0x100] sm:$0xff]
    %v2240 = vld [vmem:[#allocation9 + $0x108] sm:$0xff]
    %v2241 = vld [vmem:[#allocation9 + $0x110] sm:$0xff]
    %v2242 = vld [vmem:[#allocation9 + $0x118] sm:$0xff]
    %v2243 = vld [vmem:[#allocation9 + $0x120] sm:$0xff]
    %v2244 = vld [vmem:[#allocation9 + $0x128] sm:$0xff]
    %v2245 = vld [vmem:[#allocation9 + $0x130] sm:$0xff]
    %v2246 = vld [vmem:[#allocation9 + $0x138] sm:$0xff]
    %v2247 = vld [vmem:[#allocation9 + $0x140] sm:$0xff]
    %v2248 = vld [vmem:[#allocation9 + $0x148] sm:$0xff]
    %v2249 = vld [vmem:[#allocation9 + $0x150] sm:$0xff]
    %v2250 = vld [vmem:[#allocation9 + $0x158] sm:$0xff]
    %v2251 = vld [vmem:[#allocation9 + $0x160] sm:$0xff]
    %v2252 = vld [vmem:[#allocation9 + $0x168] sm:$0xff]
    %v2253 = vld [vmem:[#allocation9 + $0x170] sm:$0xff]
    %v2254 = vld [vmem:[#allocation9 + $0x178] sm:$0xff]
    %v2255 = vld [vmem:[#allocation9 + $0x180] sm:$0xff]
    %v2256 = vld [vmem:[#allocation9 + $0x188] sm:$0xff]
    %v2257 = vld [vmem:[#allocation9 + $0x190] sm:$0xff]
    %v2258 = vld [vmem:[#allocation9 + $0x198] sm:$0xff]
    %v2259 = vld [vmem:[#allocation9 + $0x1a0] sm:$0xff]
    %v2260 = vld [vmem:[#allocation9 + $0x1a8] sm:$0xff]
    %v2261 = vld [vmem:[#allocation9 + $0x1b0] sm:$0xff]
    %v2262 = vld [vmem:[#allocation9 + $0x1b8] sm:$0xff]
    %v2263 = vld [vmem:[#allocation9 + $0x1c0] sm:$0xff]
    %v2264 = vld [vmem:[#allocation9 + $0x1c8] sm:$0xff]
    %v2265 = vld [vmem:[#allocation9 + $0x1d0] sm:$0xff]
    %v2266 = vld [vmem:[#allocation9 + $0x1d8] sm:$0xff]
    %v2267 = vld [vmem:[#allocation9 + $0x1e0] sm:$0xff]
    %v2268 = vld [vmem:[#allocation9 + $0x1e8] sm:$0xff]
    %v2269 = vld [vmem:[#allocation9 + $0x1f0] sm:$0xff]
    %v2270 = vld [vmem:[#allocation9 + $0x1f8] sm:$0xff]
    %v2271 = vld [vmem:[%s478] ss:$8 sm:$0xf]
    %v2336 = vunpack.c.l.b16 %v2207
    %v2337 = vunpack.c.h.b16 %v2207
    %v2338 = vunpack.c.l.b16 %v2208
    %v2339 = vunpack.c.h.b16 %v2208
    %v2340 = vunpack.c.l.b16 %v2209
    %v2341 = vunpack.c.h.b16 %v2209
    %v2342 = vunpack.c.l.b16 %v2210
    %v2343 = vunpack.c.h.b16 %v2210
    %v2344 = vunpack.c.l.b16 %v2211
    %v2345 = vunpack.c.h.b16 %v2211
    %v2346 = vunpack.c.l.b16 %v2212
    %v2347 = vunpack.c.h.b16 %v2212
    %v2348 = vunpack.c.l.b16 %v2213
    %v2349 = vunpack.c.h.b16 %v2213
    %v2350 = vunpack.c.l.b16 %v2214
    %v2351 = vunpack.c.h.b16 %v2214
    %v2352 = vunpack.c.l.b16 %v2215
    %v2353 = vunpack.c.h.b16 %v2215
    %v2354 = vunpack.c.l.b16 %v2216
    %v2355 = vunpack.c.h.b16 %v2216
    %v2356 = vunpack.c.l.b16 %v2217
    %v2357 = vunpack.c.h.b16 %v2217
    %v2358 = vunpack.c.l.b16 %v2218
    %v2359 = vunpack.c.h.b16 %v2218
    %v2360 = vunpack.c.l.b16 %v2219
    %v2361 = vunpack.c.h.b16 %v2219
    %v2362 = vunpack.c.l.b16 %v2220
    %v2363 = vunpack.c.h.b16 %v2220
    %v2364 = vunpack.c.l.b16 %v2221
    %v2365 = vunpack.c.h.b16 %v2221
    %v2366 = vunpack.c.l.b16 %v2222
    %v2367 = vunpack.c.h.b16 %v2222
    %v2368 = vunpack.c.l.b16 %v2223
    %v2369 = vunpack.c.h.b16 %v2223
    %v2370 = vunpack.c.l.b16 %v2224
    %v2371 = vunpack.c.h.b16 %v2224
    %v2372 = vunpack.c.l.b16 %v2225
    %v2373 = vunpack.c.h.b16 %v2225
    %v2374 = vunpack.c.l.b16 %v2226
    %v2375 = vunpack.c.h.b16 %v2226
    %v2376 = vunpack.c.l.b16 %v2227
    %v2377 = vunpack.c.h.b16 %v2227
    %v2378 = vunpack.c.l.b16 %v2228
    %v2379 = vunpack.c.h.b16 %v2228
    %v2380 = vunpack.c.l.b16 %v2229
    %v2381 = vunpack.c.h.b16 %v2229
    %v2382 = vunpack.c.l.b16 %v2230
    %v2383 = vunpack.c.h.b16 %v2230
    %v2384 = vunpack.c.l.b16 %v2231
    %v2385 = vunpack.c.h.b16 %v2231
    %v2386 = vunpack.c.l.b16 %v2232
    %v2387 = vunpack.c.h.b16 %v2232
    %v2388 = vunpack.c.l.b16 %v2233
    %v2389 = vunpack.c.h.b16 %v2233
    %v2390 = vunpack.c.l.b16 %v2234
    %v2391 = vunpack.c.h.b16 %v2234
    %v2392 = vunpack.c.l.b16 %v2235
    %v2393 = vunpack.c.h.b16 %v2235
    %v2394 = vunpack.c.l.b16 %v2236
    %v2395 = vunpack.c.h.b16 %v2236
    %v2396 = vunpack.c.l.b16 %v2237
    %v2397 = vunpack.c.h.b16 %v2237
    %v2398 = vunpack.c.l.b16 %v2238
    %v2399 = vunpack.c.h.b16 %v2238
    %v2400 = vunpack.c.l.b16 %v2239
    %v2401 = vunpack.c.h.b16 %v2239
    %v2402 = vunpack.c.l.b16 %v2240
    %v2403 = vunpack.c.h.b16 %v2240
    %v2404 = vunpack.c.l.b16 %v2241
    %v2405 = vunpack.c.h.b16 %v2241
    %v2406 = vunpack.c.l.b16 %v2242
    %v2407 = vunpack.c.h.b16 %v2242
    %v2408 = vunpack.c.l.b16 %v2243
    %v2409 = vunpack.c.h.b16 %v2243
    %v2410 = vunpack.c.l.b16 %v2244
    %v2411 = vunpack.c.h.b16 %v2244
    %v2412 = vunpack.c.l.b16 %v2245
    %v2413 = vunpack.c.h.b16 %v2245
    %v2414 = vunpack.c.l.b16 %v2246
    %v2415 = vunpack.c.h.b16 %v2246
    %v2416 = vunpack.c.l.b16 %v2247
    %v2417 = vunpack.c.h.b16 %v2247
    %v2418 = vunpack.c.l.b16 %v2248
    %v2419 = vunpack.c.h.b16 %v2248
    %v2420 = vunpack.c.l.b16 %v2249
    %v2421 = vunpack.c.h.b16 %v2249
    %v2422 = vunpack.c.l.b16 %v2250
    %v2423 = vunpack.c.h.b16 %v2250
    %v2424 = vunpack.c.l.b16 %v2251
    %v2425 = vunpack.c.h.b16 %v2251
    %v2426 = vunpack.c.l.b16 %v2252
    %v2427 = vunpack.c.h.b16 %v2252
    %v2428 = vunpack.c.l.b16 %v2253
    %v2429 = vunpack.c.h.b16 %v2253
    %v2430 = vunpack.c.l.b16 %v2254
    %v2431 = vunpack.c.h.b16 %v2254
    %v2432 = vunpack.c.l.b16 %v2255
    %v2433 = vunpack.c.h.b16 %v2255
    %v2434 = vunpack.c.l.b16 %v2256
    %v2435 = vunpack.c.h.b16 %v2256
    %v2436 = vunpack.c.l.b16 %v2257
    %v2437 = vunpack.c.h.b16 %v2257
    %v2438 = vunpack.c.l.b16 %v2258
    %v2439 = vunpack.c.h.b16 %v2258
    %v2440 = vunpack.c.l.b16 %v2259
    %v2441 = vunpack.c.h.b16 %v2259
    %v2442 = vunpack.c.l.b16 %v2260
    %v2443 = vunpack.c.h.b16 %v2260
    %v2444 = vunpack.c.l.b16 %v2261
    %v2445 = vunpack.c.h.b16 %v2261
    %v2446 = vunpack.c.l.b16 %v2262
    %v2447 = vunpack.c.h.b16 %v2262
    %v2448 = vunpack.c.l.b16 %v2263
    %v2449 = vunpack.c.h.b16 %v2263
    %v2450 = vunpack.c.l.b16 %v2264
    %v2451 = vunpack.c.h.b16 %v2264
    %v2452 = vunpack.c.l.b16 %v2265
    %v2453 = vunpack.c.h.b16 %v2265
    %v2454 = vunpack.c.l.b16 %v2266
    %v2455 = vunpack.c.h.b16 %v2266
    %v2456 = vunpack.c.l.b16 %v2267
    %v2457 = vunpack.c.h.b16 %v2267
    %v2458 = vunpack.c.l.b16 %v2268
    %v2459 = vunpack.c.h.b16 %v2268
    %v2460 = vunpack.c.l.b16 %v2269
    %v2461 = vunpack.c.h.b16 %v2269
    %v2462 = vunpack.c.l.b16 %v2270
    %v2463 = vunpack.c.h.b16 %v2270
    %v2464 = vpack.c.b16 %v2340, %v2336
    %v2465 = vpack.c.b16 %v2341, %v2337
    %v2466 = vpack.c.b16 %v2342, %v2338
    %v2467 = vpack.c.b16 %v2343, %v2339
    %v2468 = vpack.c.b16 %v2348, %v2344
    %v2469 = vpack.c.b16 %v2349, %v2345
    %v2470 = vpack.c.b16 %v2350, %v2346
    %v2471 = vpack.c.b16 %v2351, %v2347
    %v2472 = vpack.c.b16 %v2356, %v2352
    %v2473 = vpack.c.b16 %v2357, %v2353
    %v2474 = vpack.c.b16 %v2358, %v2354
    %v2475 = vpack.c.b16 %v2359, %v2355
    %v2476 = vpack.c.b16 %v2364, %v2360
    %v2477 = vpack.c.b16 %v2365, %v2361
    %v2478 = vpack.c.b16 %v2366, %v2362
    %v2479 = vpack.c.b16 %v2367, %v2363
    %v2480 = vpack.c.b16 %v2372, %v2368
    %v2481 = vpack.c.b16 %v2373, %v2369
    %v2482 = vpack.c.b16 %v2374, %v2370
    %v2483 = vpack.c.b16 %v2375, %v2371
    %v2484 = vpack.c.b16 %v2380, %v2376
    %v2485 = vpack.c.b16 %v2381, %v2377
    %v2486 = vpack.c.b16 %v2382, %v2378
    %v2487 = vpack.c.b16 %v2383, %v2379
    %v2488 = vpack.c.b16 %v2388, %v2384
    %v2489 = vpack.c.b16 %v2389, %v2385
    %v2490 = vpack.c.b16 %v2390, %v2386
    %v2491 = vpack.c.b16 %v2391, %v2387
    %v2492 = vpack.c.b16 %v2396, %v2392
    %v2493 = vpack.c.b16 %v2397, %v2393
    %v2494 = vpack.c.b16 %v2398, %v2394
    %v2495 = vpack.c.b16 %v2399, %v2395
    %v2496 = vpack.c.b16 %v2404, %v2400
    %v2497 = vpack.c.b16 %v2405, %v2401
    %v2498 = vpack.c.b16 %v2406, %v2402
    %v2499 = vpack.c.b16 %v2407, %v2403
    %v2500 = vpack.c.b16 %v2412, %v2408
    %v2501 = vpack.c.b16 %v2413, %v2409
    %v2502 = vpack.c.b16 %v2414, %v2410
    %v2503 = vpack.c.b16 %v2415, %v2411
    %v2504 = vpack.c.b16 %v2420, %v2416
    %v2505 = vpack.c.b16 %v2421, %v2417
    %v2506 = vpack.c.b16 %v2422, %v2418
    %v2507 = vpack.c.b16 %v2423, %v2419
    %v2508 = vpack.c.b16 %v2428, %v2424
    %v2509 = vpack.c.b16 %v2429, %v2425
    %v2510 = vpack.c.b16 %v2430, %v2426
    %v2511 = vpack.c.b16 %v2431, %v2427
    %v2512 = vpack.c.b16 %v2436, %v2432
    %v2513 = vpack.c.b16 %v2437, %v2433
    %v2514 = vpack.c.b16 %v2438, %v2434
    %v2515 = vpack.c.b16 %v2439, %v2435
    %v2516 = vpack.c.b16 %v2444, %v2440
    %v2517 = vpack.c.b16 %v2445, %v2441
    %v2518 = vpack.c.b16 %v2446, %v2442
    %v2519 = vpack.c.b16 %v2447, %v2443
    %v2520 = vpack.c.b16 %v2452, %v2448
    %v2521 = vpack.c.b16 %v2453, %v2449
    %v2522 = vpack.c.b16 %v2454, %v2450
    %v2523 = vpack.c.b16 %v2455, %v2451
    %v2524 = vpack.c.b16 %v2460, %v2456
    %v2525 = vpack.c.b16 %v2461, %v2457
    %v2526 = vpack.c.b16 %v2462, %v2458
    %v2527 = vpack.c.b16 %v2463, %v2459
    %v2593 = vperm.slane %v2271, 0
    %v2594 = vperm.slane %v2271, 1
    %v2595 = vperm.slane %v2271, 2
    %v2596 = vperm.slane %v2271, 3
    %2601 = vmatpush.bf16.msra.mxu0 %v2492
    %2602 = vmatpush.bf16.msra.mxu0 %v2488
    %2603 = vmatpush.bf16.msra.mxu0 %v2484
    %2604 = vmatpush.bf16.msra.mxu0 %v2480
    %2605 = vmatpush.bf16.msra.mxu0 %v2476
    %2606 = vmatpush.bf16.msra.mxu0 %v2472
    %2607 = vmatpush.bf16.msra.mxu0 %v2468
    %2608 = vmatpush.bf16.msra.mxu0 %v2464
    %2609 = vmatmul.bf16.gmra.mxu0 %v2205
    %v2610 = vpop.f32.mrf.mxu0
    %v2611 = vadd.f32 %v2593, %v2610
    %v2612 = vpop.f32.mrf.mxu0
    %2613 = vdwg.mxu0
    %2614 = vmatpush.bf16.msra.mxu0 %v2524
    %2615 = vmatpush.bf16.msra.mxu0 %v2520
    %2616 = vmatpush.bf16.msra.mxu0 %v2516
    %2617 = vmatpush.bf16.msra.mxu0 %v2512
    %2618 = vmatpush.bf16.msra.mxu0 %v2508
    %2619 = vmatpush.bf16.msra.mxu0 %v2504
    %2620 = vmatpush.bf16.msra.mxu0 %v2500
    %2621 = vmatpush.bf16.msra.mxu0 %v2496
    %2622 = vmatmul.bf16.gmra.mxu0 %v2206
    %v2623 = vpop.f32.mrf.mxu0
    %v2624 = vadd.f32 %v2611, %v2623
    %v2625 = vpop.f32.mrf.mxu0
    %2626 = vdwg.mxu0
    %2627 = vmatpush.bf16.msra.mxu0 %v2493
    %2628 = vmatpush.bf16.msra.mxu0 %v2489
    %2629 = vmatpush.bf16.msra.mxu0 %v2485
    %2630 = vmatpush.bf16.msra.mxu0 %v2481
    %2631 = vmatpush.bf16.msra.mxu0 %v2477
    %2632 = vmatpush.bf16.msra.mxu0 %v2473
    %2633 = vmatpush.bf16.msra.mxu0 %v2469
    %2634 = vmatpush.bf16.msra.mxu0 %v2465
    %2635 = vmatmul.bf16.gmra.mxu0 %v2205
    %v2636 = vpop.f32.mrf.mxu0
    %v2637 = vadd.f32 %v2594, %v2636
    %v2638 = vpop.f32.mrf.mxu0
    %2639 = vdwg.mxu0
    %2640 = vmatpush.bf16.msra.mxu0 %v2525
    %2641 = vmatpush.bf16.msra.mxu0 %v2521
    %2642 = vmatpush.bf16.msra.mxu0 %v2517
    %2643 = vmatpush.bf16.msra.mxu0 %v2513
    %2644 = vmatpush.bf16.msra.mxu0 %v2509
    %2645 = vmatpush.bf16.msra.mxu0 %v2505
    %2646 = vmatpush.bf16.msra.mxu0 %v2501
    %2647 = vmatpush.bf16.msra.mxu0 %v2497
    %2648 = vmatmul.bf16.gmra.mxu0 %v2206
    %v2649 = vpop.f32.mrf.mxu0
    %v2650 = vadd.f32 %v2637, %v2649
    %v2651 = vpop.f32.mrf.mxu0
    %2652 = vdwg.mxu0
    %2653 = vmatpush.bf16.msra.mxu0 %v2494
    %2654 = vmatpush.bf16.msra.mxu0 %v2490
    %2655 = vmatpush.bf16.msra.mxu0 %v2486
    %2656 = vmatpush.bf16.msra.mxu0 %v2482
    %2657 = vmatpush.bf16.msra.mxu0 %v2478
    %2658 = vmatpush.bf16.msra.mxu0 %v2474
    %2659 = vmatpush.bf16.msra.mxu0 %v2470
    %2660 = vmatpush.bf16.msra.mxu0 %v2466
    %2661 = vmatmul.bf16.gmra.mxu0 %v2205
    %v2662 = vpop.f32.mrf.mxu0
    %v2663 = vadd.f32 %v2595, %v2662
    %v2664 = vpop.f32.mrf.mxu0
    %2665 = vdwg.mxu0
    %2666 = vmatpush.bf16.msra.mxu0 %v2526
    %2667 = vmatpush.bf16.msra.mxu0 %v2522
    %2668 = vmatpush.bf16.msra.mxu0 %v2518
    %2669 = vmatpush.bf16.msra.mxu0 %v2514
    %2670 = vmatpush.bf16.msra.mxu0 %v2510
    %2671 = vmatpush.bf16.msra.mxu0 %v2506
    %2672 = vmatpush.bf16.msra.mxu0 %v2502
    %2673 = vmatpush.bf16.msra.mxu0 %v2498
    %2674 = vmatmul.bf16.gmra.mxu0 %v2206
    %v2675 = vpop.f32.mrf.mxu0
    %v2676 = vadd.f32 %v2663, %v2675
    %v2677 = vpop.f32.mrf.mxu0
    %2678 = vdwg.mxu0
    %2679 = vmatpush.bf16.msra.mxu0 %v2495
    %2680 = vmatpush.bf16.msra.mxu0 %v2491
    %2681 = vmatpush.bf16.msra.mxu0 %v2487
    %2682 = vmatpush.bf16.msra.mxu0 %v2483
    %2683 = vmatpush.bf16.msra.mxu0 %v2479
    %2684 = vmatpush.bf16.msra.mxu0 %v2475
    %2685 = vmatpush.bf16.msra.mxu0 %v2471
    %2686 = vmatpush.bf16.msra.mxu0 %v2467
    %2687 = vmatmul.bf16.gmra.mxu0 %v2205
    %v2688 = vpop.f32.mrf.mxu0
    %v2689 = vadd.f32 %v2596, %v2688
    %v2690 = vpop.f32.mrf.mxu0
    %2691 = vdwg.mxu0
    %2692 = vmatpush.bf16.msra.mxu0 %v2527
    %2693 = vmatpush.bf16.msra.mxu0 %v2523
    %2694 = vmatpush.bf16.msra.mxu0 %v2519
    %2695 = vmatpush.bf16.msra.mxu0 %v2515
    %2696 = vmatpush.bf16.msra.mxu0 %v2511
    %2697 = vmatpush.bf16.msra.mxu0 %v2507
    %2698 = vmatpush.bf16.msra.mxu0 %v2503
    %2699 = vmatpush.bf16.msra.mxu0 %v2499
    %2700 = vmatmul.bf16.gmra.mxu0 %v2206
    %v2701 = vpop.f32.mrf.mxu0
    %v2702 = vadd.f32 %v2689, %v2701
    %v2703 = vpop.f32.mrf.mxu0
    %2704 = vdwg.mxu0
    %v2705 = vxor.u32 %v2624, 2147483648
    %v2706 = vmul.f32 %v2705, 1.442695
    %v2707 = vpow.pop %v2706
    %v2708 = vadd.f32 %v2707, 1.0
    %v2709 = vrcp.pop %v2708
    %v2710 = vmul.f32 %v2708, %v2709
    %v2711 = vsub.f32 1.0, %v2710
    %v2712 = vmul.f32 %v2709, %v2711
    %v2713 = vadd.f32 %v2709, %v2712
    %vm2714 = vweird.f32 %v2708
    %vm2715 = vweird.f32 %v2709
    %vm2716 = vmor %vm2714, %vm2715
    %v2717 = vsel %vm2716, %v2709, %v2713
    %v2718 = vand.u32 2147483647, %v2708
    %vm2719 = vcmp.eq.f32.partialorder %v2718, 8.507059e+37
    %v2720 = vand.u32 %v2708, 2147483648
    %v2721 = vor.u32 1.1754944e-38, %v2720
    %v2722 = vsel %vm2719, %v2721, %v2717
    %v2723 = vmul.f32 1.0, %v2722
    %v2724 = vxor.u32 %v2650, 2147483648
    %v2725 = vmul.f32 %v2724, 1.442695
    %v2726 = vpow.pop %v2725
    %v2727 = vadd.f32 %v2726, 1.0
    %v2728 = vrcp.pop %v2727
    %v2729 = vmul.f32 %v2727, %v2728
    %v2730 = vsub.f32 1.0, %v2729
    %v2731 = vmul.f32 %v2728, %v2730
    %v2732 = vadd.f32 %v2728, %v2731
    %vm2733 = vweird.f32 %v2727
    %vm2734 = vweird.f32 %v2728
    %vm2735 = vmor %vm2733, %vm2734
    %v2736 = vsel %vm2735, %v2728, %v2732
    %v2737 = vand.u32 2147483647, %v2727
    %vm2738 = vcmp.eq.f32.partialorder %v2737, 8.507059e+37
    %v2739 = vand.u32 %v2727, 2147483648
    %v2740 = vor.u32 1.1754944e-38, %v2739
    %v2741 = vsel %vm2738, %v2740, %v2736
    %v2742 = vmul.f32 1.0, %v2741
    %v2743 = vtanh.pop %v2676
    %v2744 = vxor.u32 %v2702, 2147483648
    %v2745 = vmul.f32 %v2744, 1.442695
    %v2746 = vpow.pop %v2745
    %v2747 = vadd.f32 %v2746, 1.0
    %v2748 = vrcp.pop %v2747
    %v2749 = vmul.f32 %v2747, %v2748
    %v2750 = vsub.f32 1.0, %v2749
    %v2751 = vmul.f32 %v2748, %v2750
    %v2752 = vadd.f32 %v2748, %v2751
    %vm2753 = vweird.f32 %v2747
    %vm2754 = vweird.f32 %v2748
    %vm2755 = vmor %vm2753, %vm2754
    %v2756 = vsel %vm2755, %v2748, %v2752
    %v2757 = vand.u32 2147483647, %v2747
    %vm2758 = vcmp.eq.f32.partialorder %v2757, 8.507059e+37
    %v2759 = vand.u32 %v2747, 2147483648
    %v2760 = vor.u32 1.1754944e-38, %v2759
    %v2761 = vsel %vm2758, %v2760, %v2756
    %v2762 = vmul.f32 1.0, %v2761
    %v2763 = vmul.f32 %v2742, %v1869
    %v2764 = vmul.f32 %v2723, %v2743
    %v2765 = vadd.f32 %v2763, %v2764
    %v2766 = vtanh.pop %v2765
    %v2767 = vmul.f32 %v2762, %v2766
    %2768 = vst [vmem:[#allocation2 + $0x2] sm:$0x1] %v2767
    %s2769 = sld [smem:[#allocation3 + $0x3]]
    %v2770 = vld [vmem:[#allocation6] ss:$8 sm:$0xf]
    %v2771 = vstv %s2769
    %v2772 = vmul.f32 %v2771, %v2770
    %v2773 = vld [vmem:[#allocation7] sm:$0xff]
    %v2774 = vld [vmem:[#allocation7 + $0x8] sm:$0xff]
    %v2775 = vld [vmem:[#allocation7 + $0x10] sm:$0xff]
    %v2776 = vld [vmem:[#allocation7 + $0x18] sm:$0xff]
    %v2777 = vld [vmem:[#allocation7 + $0x20] sm:$0xff]
    %v2778 = vld [vmem:[#allocation7 + $0x28] sm:$0xff]
    %v2779 = vld [vmem:[#allocation7 + $0x30] sm:$0xff]
    %v2780 = vld [vmem:[#allocation7 + $0x38] sm:$0xff]
    %v2781 = vld [vmem:[#allocation7 + $0x40] sm:$0xff]
    %v2782 = vld [vmem:[#allocation7 + $0x48] sm:$0xff]
    %v2783 = vld [vmem:[#allocation7 + $0x50] sm:$0xff]
    %v2784 = vld [vmem:[#allocation7 + $0x58] sm:$0xff]
    %v2785 = vld [vmem:[#allocation7 + $0x60] sm:$0xff]
    %v2786 = vld [vmem:[#allocation7 + $0x68] sm:$0xff]
    %v2787 = vld [vmem:[#allocation7 + $0x70] sm:$0xff]
    %v2788 = vld [vmem:[#allocation7 + $0x78] sm:$0xff]
    %v2789 = vld [vmem:[#allocation7 + $0x80] sm:$0xff]
    %v2790 = vld [vmem:[#allocation7 + $0x88] sm:$0xff]
    %v2791 = vld [vmem:[#allocation7 + $0x90] sm:$0xff]
    %v2792 = vld [vmem:[#allocation7 + $0x98] sm:$0xff]
    %v2793 = vld [vmem:[#allocation7 + $0xa0] sm:$0xff]
    %v2794 = vld [vmem:[#allocation7 + $0xa8] sm:$0xff]
    %v2795 = vld [vmem:[#allocation7 + $0xb0] sm:$0xff]
    %v2796 = vld [vmem:[#allocation7 + $0xb8] sm:$0xff]
    %v2797 = vld [vmem:[#allocation7 + $0xc0] sm:$0xff]
    %v2798 = vld [vmem:[#allocation7 + $0xc8] sm:$0xff]
    %v2799 = vld [vmem:[#allocation7 + $0xd0] sm:$0xff]
    %v2800 = vld [vmem:[#allocation7 + $0xd8] sm:$0xff]
    %v2801 = vld [vmem:[#allocation7 + $0xe0] sm:$0xff]
    %v2802 = vld [vmem:[#allocation7 + $0xe8] sm:$0xff]
    %v2803 = vld [vmem:[#allocation7 + $0xf0] sm:$0xff]
    %v2804 = vld [vmem:[#allocation7 + $0xf8] sm:$0xff]
    %v2837 = vunpack.c.l.b16 %v2773
    %v2838 = vunpack.c.h.b16 %v2773
    %v2839 = vunpack.c.l.b16 %v2774
    %v2840 = vunpack.c.h.b16 %v2774
    %v2841 = vunpack.c.l.b16 %v2775
    %v2842 = vunpack.c.h.b16 %v2775
    %v2843 = vunpack.c.l.b16 %v2776
    %v2844 = vunpack.c.h.b16 %v2776
    %v2845 = vunpack.c.l.b16 %v2777
    %v2846 = vunpack.c.h.b16 %v2777
    %v2847 = vunpack.c.l.b16 %v2778
    %v2848 = vunpack.c.h.b16 %v2778
    %v2849 = vunpack.c.l.b16 %v2779
    %v2850 = vunpack.c.h.b16 %v2779
    %v2851 = vunpack.c.l.b16 %v2780
    %v2852 = vunpack.c.h.b16 %v2780
    %v2853 = vunpack.c.l.b16 %v2781
    %v2854 = vunpack.c.h.b16 %v2781
    %v2855 = vunpack.c.l.b16 %v2782
    %v2856 = vunpack.c.h.b16 %v2782
    %v2857 = vunpack.c.l.b16 %v2783
    %v2858 = vunpack.c.h.b16 %v2783
    %v2859 = vunpack.c.l.b16 %v2784
    %v2860 = vunpack.c.h.b16 %v2784
    %v2861 = vunpack.c.l.b16 %v2785
    %v2862 = vunpack.c.h.b16 %v2785
    %v2863 = vunpack.c.l.b16 %v2786
    %v2864 = vunpack.c.h.b16 %v2786
    %v2865 = vunpack.c.l.b16 %v2787
    %v2866 = vunpack.c.h.b16 %v2787
    %v2867 = vunpack.c.l.b16 %v2788
    %v2868 = vunpack.c.h.b16 %v2788
    %v2869 = vunpack.c.l.b16 %v2789
    %v2870 = vunpack.c.h.b16 %v2789
    %v2871 = vunpack.c.l.b16 %v2790
    %v2872 = vunpack.c.h.b16 %v2790
    %v2873 = vunpack.c.l.b16 %v2791
    %v2874 = vunpack.c.h.b16 %v2791
    %v2875 = vunpack.c.l.b16 %v2792
    %v2876 = vunpack.c.h.b16 %v2792
    %v2877 = vunpack.c.l.b16 %v2793
    %v2878 = vunpack.c.h.b16 %v2793
    %v2879 = vunpack.c.l.b16 %v2794
    %v2880 = vunpack.c.h.b16 %v2794
    %v2881 = vunpack.c.l.b16 %v2795
    %v2882 = vunpack.c.h.b16 %v2795
    %v2883 = vunpack.c.l.b16 %v2796
    %v2884 = vunpack.c.h.b16 %v2796
    %v2885 = vunpack.c.l.b16 %v2797
    %v2886 = vunpack.c.h.b16 %v2797
    %v2887 = vunpack.c.l.b16 %v2798
    %v2888 = vunpack.c.h.b16 %v2798
    %v2889 = vunpack.c.l.b16 %v2799
    %v2890 = vunpack.c.h.b16 %v2799
    %v2891 = vunpack.c.l.b16 %v2800
    %v2892 = vunpack.c.h.b16 %v2800
    %v2893 = vunpack.c.l.b16 %v2801
    %v2894 = vunpack.c.h.b16 %v2801
    %v2895 = vunpack.c.l.b16 %v2802
    %v2896 = vunpack.c.h.b16 %v2802
    %v2897 = vunpack.c.l.b16 %v2803
    %v2898 = vunpack.c.h.b16 %v2803
    %v2899 = vunpack.c.l.b16 %v2804
    %v2900 = vunpack.c.h.b16 %v2804
    %v2901 = vpack.c.b16 %v2841, %v2837
    %v2902 = vpack.c.b16 %v2842, %v2838
    %v2903 = vpack.c.b16 %v2843, %v2839
    %v2904 = vpack.c.b16 %v2844, %v2840
    %v2905 = vpack.c.b16 %v2849, %v2845
    %v2906 = vpack.c.b16 %v2850, %v2846
    %v2907 = vpack.c.b16 %v2851, %v2847
    %v2908 = vpack.c.b16 %v2852, %v2848
    %v2909 = vpack.c.b16 %v2857, %v2853
    %v2910 = vpack.c.b16 %v2858, %v2854
    %v2911 = vpack.c.b16 %v2859, %v2855
    %v2912 = vpack.c.b16 %v2860, %v2856
    %v2913 = vpack.c.b16 %v2865, %v2861
    %v2914 = vpack.c.b16 %v2866, %v2862
    %v2915 = vpack.c.b16 %v2867, %v2863
    %v2916 = vpack.c.b16 %v2868, %v2864
    %v2917 = vpack.c.b16 %v2873, %v2869
    %v2918 = vpack.c.b16 %v2874, %v2870
    %v2919 = vpack.c.b16 %v2875, %v2871
    %v2920 = vpack.c.b16 %v2876, %v2872
    %v2921 = vpack.c.b16 %v2881, %v2877
    %v2922 = vpack.c.b16 %v2882, %v2878
    %v2923 = vpack.c.b16 %v2883, %v2879
    %v2924 = vpack.c.b16 %v2884, %v2880
    %v2925 = vpack.c.b16 %v2889, %v2885
    %v2926 = vpack.c.b16 %v2890, %v2886
    %v2927 = vpack.c.b16 %v2891, %v2887
    %v2928 = vpack.c.b16 %v2892, %v2888
    %v2929 = vpack.c.b16 %v2897, %v2893
    %v2930 = vpack.c.b16 %v2898, %v2894
    %v2931 = vpack.c.b16 %v2899, %v2895
    %v2932 = vpack.c.b16 %v2900, %v2896
    %2965 = vmatpush.bf16.msra.mxu0 %v2929
    %2966 = vmatpush.bf16.msra.mxu0 %v2925
    %2967 = vmatpush.bf16.msra.mxu0 %v2921
    %2968 = vmatpush.bf16.msra.mxu0 %v2917
    %2969 = vmatpush.bf16.msra.mxu0 %v2913
    %2970 = vmatpush.bf16.msra.mxu0 %v2909
    %2971 = vmatpush.bf16.msra.mxu0 %v2905
    %2972 = vmatpush.bf16.msra.mxu0 %v2901
    %2973 = vmatmul.bf16.gmra.mxu0 %v2205
    %v2974 = vpop.f32.mrf.mxu0
    %v2975 = vadd.f32 0.0, %v2974
    %v2976 = vpop.f32.mrf.mxu0
    %2977 = vdwg.mxu0
    %2978 = vmatpush.bf16.msra.mxu0 %v2930
    %2979 = vmatpush.bf16.msra.mxu0 %v2926
    %2980 = vmatpush.bf16.msra.mxu0 %v2922
    %2981 = vmatpush.bf16.msra.mxu0 %v2918
    %2982 = vmatpush.bf16.msra.mxu0 %v2914
    %2983 = vmatpush.bf16.msra.mxu0 %v2910
    %2984 = vmatpush.bf16.msra.mxu0 %v2906
    %2985 = vmatpush.bf16.msra.mxu0 %v2902
    %2986 = vmatmul.bf16.gmra.mxu0 %v2205
    %v2987 = vpop.f32.mrf.mxu0
    %v2988 = vadd.f32 0.0, %v2987
    %v2989 = vpop.f32.mrf.mxu0
    %2990 = vdwg.mxu0
    %2991 = vmatpush.bf16.msra.mxu0 %v2931
    %2992 = vmatpush.bf16.msra.mxu0 %v2927
    %2993 = vmatpush.bf16.msra.mxu0 %v2923
    %2994 = vmatpush.bf16.msra.mxu0 %v2919
    %2995 = vmatpush.bf16.msra.mxu0 %v2915
    %2996 = vmatpush.bf16.msra.mxu0 %v2911
    %2997 = vmatpush.bf16.msra.mxu0 %v2907
    %2998 = vmatpush.bf16.msra.mxu0 %v2903
    %2999 = vmatmul.bf16.gmra.mxu0 %v2205
    %v3000 = vpop.f32.mrf.mxu0
    %v3001 = vadd.f32 0.0, %v3000
    %v3002 = vpop.f32.mrf.mxu0
    %3003 = vdwg.mxu0
    %3004 = vmatpush.bf16.msra.mxu0 %v2932
    %3005 = vmatpush.bf16.msra.mxu0 %v2928
    %3006 = vmatpush.bf16.msra.mxu0 %v2924
    %3007 = vmatpush.bf16.msra.mxu0 %v2920
    %3008 = vmatpush.bf16.msra.mxu0 %v2916
    %3009 = vmatpush.bf16.msra.mxu0 %v2912
    %3010 = vmatpush.bf16.msra.mxu0 %v2908
    %3011 = vmatpush.bf16.msra.mxu0 %v2904
    %3012 = vmatmul.bf16.gmra.mxu0 %v2205
    %v3013 = vpop.f32.mrf.mxu0
    %v3014 = vadd.f32 0.0, %v3013
    %v3015 = vpop.f32.mrf.mxu0
    %3016 = vdwg.mxu0
    %v3021 = vrot.slane %v2988, 7
    %v3022 = vrot.slane %v3001, 6
    %v3023 = vrot.slane %v3014, 5
    %v3024 = vsel %vm331, %v2975, %v3021
    %v3025 = vsel %vm333, %v3022, %v3023
    %v3026 = vsel %vm335, %v3024, %v3025
    %v3028 = vadd.f32 %v2772, %v3026
    %v3029 = vld [vmem:[%s339] ss:$8 sm:$0xf]
    %v3030 = vadd.f32 %v3028, %v3029
    %v3031 = vxor.u32 %v3030, 2147483648
    %v3032 = vmul.f32 %v3031, 1.442695
    %v3033 = vpow.pop %v3032
    %v3034 = vadd.f32 %v3033, 1.0
    %v3035 = vrcp.pop %v3034
    %v3036 = vmul.f32 %v3034, %v3035
    %v3037 = vsub.f32 1.0, %v3036
    %v3038 = vmul.f32 %v3035, %v3037
    %v3039 = vadd.f32 %v3035, %v3038
    %vm3040 = vweird.f32 %v3034
    %vm3041 = vweird.f32 %v3035
    %vm3042 = vmor %vm3040, %vm3041
    %v3043 = vsel %vm3042, %v3035, %v3039
    %v3044 = vand.u32 2147483647, %v3034
    %vm3045 = vcmp.eq.f32.partialorder %v3044, 8.507059e+37
    %v3046 = vand.u32 %v3034, 2147483648
    %v3047 = vor.u32 1.1754944e-38, %v3046
    %v3048 = vsel %vm3045, %v3047, %v3043
    %v3049 = vmul.f32 1.0, %v3048
    %v3051 = vrot.slane %v3030, 1
    %v3053 = vxor.u32 %v3051, 2147483648
    %v3054 = vmul.f32 %v3053, 1.442695
    %v3055 = vpow.pop %v3054
    %v3056 = vadd.f32 %v3055, 1.0
    %v3057 = vrcp.pop %v3056
    %v3058 = vmul.f32 %v3056, %v3057
    %v3059 = vsub.f32 1.0, %v3058
    %v3060 = vmul.f32 %v3057, %v3059
    %v3061 = vadd.f32 %v3057, %v3060
    %vm3062 = vweird.f32 %v3056
    %vm3063 = vweird.f32 %v3057
    %vm3064 = vmor %vm3062, %vm3063
    %v3065 = vsel %vm3064, %v3057, %v3061
    %v3066 = vand.u32 2147483647, %v3056
    %vm3067 = vcmp.eq.f32.partialorder %v3066, 8.507059e+37
    %v3068 = vand.u32 %v3056, 2147483648
    %v3069 = vor.u32 1.1754944e-38, %v3068
    %v3070 = vsel %vm3067, %v3069, %v3065
    %v3071 = vmul.f32 1.0, %v3070
    %v3072 = vrot.slane %v3030, 2
    %v3074 = vtanh.pop %v3072
    %v3075 = vrot.slane %v3030, 3
    %v3077 = vxor.u32 %v3075, 2147483648
    %v3078 = vmul.f32 %v3077, 1.442695
    %v3079 = vpow.pop %v3078
    %v3080 = vadd.f32 %v3079, 1.0
    %v3081 = vrcp.pop %v3080
    %v3082 = vmul.f32 %v3080, %v3081
    %v3083 = vsub.f32 1.0, %v3082
    %v3084 = vmul.f32 %v3081, %v3083
    %v3085 = vadd.f32 %v3081, %v3084
    %vm3086 = vweird.f32 %v3080
    %vm3087 = vweird.f32 %v3081
    %vm3088 = vmor %vm3086, %vm3087
    %v3089 = vsel %vm3088, %v3081, %v3085
    %v3090 = vand.u32 2147483647, %v3080
    %vm3091 = vcmp.eq.f32.partialorder %v3090, 8.507059e+37
    %v3092 = vand.u32 %v3080, 2147483648
    %v3093 = vor.u32 1.1754944e-38, %v3092
    %v3094 = vsel %vm3091, %v3093, %v3089
    %v3095 = vmul.f32 1.0, %v3094
    %v3096 = vmul.f32 %v3071, %v2202
    %v3097 = vmul.f32 %v3049, %v3074
    %v3098 = vadd.f32 %v3096, %v3097
    %v3099 = vtanh.pop %v3098
    %v3100 = vmul.f32 %v3095, %v3099
    %v3101 = vpack.c.bf16 %v3100, %v3100
    %v3102 = vpack.c.bf16 %v2767, %v2767
    %v3103 = vld [vmem:[#allocation9] sm:$0xff]
    %v3104 = vld [vmem:[#allocation9 + $0x8] sm:$0xff]
    %v3105 = vld [vmem:[#allocation9 + $0x10] sm:$0xff]
    %v3106 = vld [vmem:[#allocation9 + $0x18] sm:$0xff]
    %v3107 = vld [vmem:[#allocation9 + $0x20] sm:$0xff]
    %v3108 = vld [vmem:[#allocation9 + $0x28] sm:$0xff]
    %v3109 = vld [vmem:[#allocation9 + $0x30] sm:$0xff]
    %v3110 = vld [vmem:[#allocation9 + $0x38] sm:$0xff]
    %v3111 = vld [vmem:[#allocation9 + $0x40] sm:$0xff]
    %v3112 = vld [vmem:[#allocation9 + $0x48] sm:$0xff]
    %v3113 = vld [vmem:[#allocation9 + $0x50] sm:$0xff]
    %v3114 = vld [vmem:[#allocation9 + $0x58] sm:$0xff]
    %v3115 = vld [vmem:[#allocation9 + $0x60] sm:$0xff]
    %v3116 = vld [vmem:[#allocation9 + $0x68] sm:$0xff]
    %v3117 = vld [vmem:[#allocation9 + $0x70] sm:$0xff]
    %v3118 = vld [vmem:[#allocation9 + $0x78] sm:$0xff]
    %v3119 = vld [vmem:[#allocation9 + $0x80] sm:$0xff]
    %v3120 = vld [vmem:[#allocation9 + $0x88] sm:$0xff]
    %v3121 = vld [vmem:[#allocation9 + $0x90] sm:$0xff]
    %v3122 = vld [vmem:[#allocation9 + $0x98] sm:$0xff]
    %v3123 = vld [vmem:[#allocation9 + $0xa0] sm:$0xff]
    %v3124 = vld [vmem:[#allocation9 + $0xa8] sm:$0xff]
    %v3125 = vld [vmem:[#allocation9 + $0xb0] sm:$0xff]
    %v3126 = vld [vmem:[#allocation9 + $0xb8] sm:$0xff]
    %v3127 = vld [vmem:[#allocation9 + $0xc0] sm:$0xff]
    %v3128 = vld [vmem:[#allocation9 + $0xc8] sm:$0xff]
    %v3129 = vld [vmem:[#allocation9 + $0xd0] sm:$0xff]
    %v3130 = vld [vmem:[#allocation9 + $0xd8] sm:$0xff]
    %v3131 = vld [vmem:[#allocation9 + $0xe0] sm:$0xff]
    %v3132 = vld [vmem:[#allocation9 + $0xe8] sm:$0xff]
    %v3133 = vld [vmem:[#allocation9 + $0xf0] sm:$0xff]
    %v3134 = vld [vmem:[#allocation9 + $0xf8] sm:$0xff]
    %v3135 = vld [vmem:[#allocation9 + $0x100] sm:$0xff]
    %v3136 = vld [vmem:[#allocation9 + $0x108] sm:$0xff]
    %v3137 = vld [vmem:[#allocation9 + $0x110] sm:$0xff]
    %v3138 = vld [vmem:[#allocation9 + $0x118] sm:$0xff]
    %v3139 = vld [vmem:[#allocation9 + $0x120] sm:$0xff]
    %v3140 = vld [vmem:[#allocation9 + $0x128] sm:$0xff]
    %v3141 = vld [vmem:[#allocation9 + $0x130] sm:$0xff]
    %v3142 = vld [vmem:[#allocation9 + $0x138] sm:$0xff]
    %v3143 = vld [vmem:[#allocation9 + $0x140] sm:$0xff]
    %v3144 = vld [vmem:[#allocation9 + $0x148] sm:$0xff]
    %v3145 = vld [vmem:[#allocation9 + $0x150] sm:$0xff]
    %v3146 = vld [vmem:[#allocation9 + $0x158] sm:$0xff]
    %v3147 = vld [vmem:[#allocation9 + $0x160] sm:$0xff]
    %v3148 = vld [vmem:[#allocation9 + $0x168] sm:$0xff]
    %v3149 = vld [vmem:[#allocation9 + $0x170] sm:$0xff]
    %v3150 = vld [vmem:[#allocation9 + $0x178] sm:$0xff]
    %v3151 = vld [vmem:[#allocation9 + $0x180] sm:$0xff]
    %v3152 = vld [vmem:[#allocation9 + $0x188] sm:$0xff]
    %v3153 = vld [vmem:[#allocation9 + $0x190] sm:$0xff]
    %v3154 = vld [vmem:[#allocation9 + $0x198] sm:$0xff]
    %v3155 = vld [vmem:[#allocation9 + $0x1a0] sm:$0xff]
    %v3156 = vld [vmem:[#allocation9 + $0x1a8] sm:$0xff]
    %v3157 = vld [vmem:[#allocation9 + $0x1b0] sm:$0xff]
    %v3158 = vld [vmem:[#allocation9 + $0x1b8] sm:$0xff]
    %v3159 = vld [vmem:[#allocation9 + $0x1c0] sm:$0xff]
    %v3160 = vld [vmem:[#allocation9 + $0x1c8] sm:$0xff]
    %v3161 = vld [vmem:[#allocation9 + $0x1d0] sm:$0xff]
    %v3162 = vld [vmem:[#allocation9 + $0x1d8] sm:$0xff]
    %v3163 = vld [vmem:[#allocation9 + $0x1e0] sm:$0xff]
    %v3164 = vld [vmem:[#allocation9 + $0x1e8] sm:$0xff]
    %v3165 = vld [vmem:[#allocation9 + $0x1f0] sm:$0xff]
    %v3166 = vld [vmem:[#allocation9 + $0x1f8] sm:$0xff]
    %v3167 = vld [vmem:[%s478] ss:$8 sm:$0xf]
    %v3232 = vunpack.c.l.b16 %v3103
    %v3233 = vunpack.c.h.b16 %v3103
    %v3234 = vunpack.c.l.b16 %v3104
    %v3235 = vunpack.c.h.b16 %v3104
    %v3236 = vunpack.c.l.b16 %v3105
    %v3237 = vunpack.c.h.b16 %v3105
    %v3238 = vunpack.c.l.b16 %v3106
    %v3239 = vunpack.c.h.b16 %v3106
    %v3240 = vunpack.c.l.b16 %v3107
    %v3241 = vunpack.c.h.b16 %v3107
    %v3242 = vunpack.c.l.b16 %v3108
    %v3243 = vunpack.c.h.b16 %v3108
    %v3244 = vunpack.c.l.b16 %v3109
    %v3245 = vunpack.c.h.b16 %v3109
    %v3246 = vunpack.c.l.b16 %v3110
    %v3247 = vunpack.c.h.b16 %v3110
    %v3248 = vunpack.c.l.b16 %v3111
    %v3249 = vunpack.c.h.b16 %v3111
    %v3250 = vunpack.c.l.b16 %v3112
    %v3251 = vunpack.c.h.b16 %v3112
    %v3252 = vunpack.c.l.b16 %v3113
    %v3253 = vunpack.c.h.b16 %v3113
    %v3254 = vunpack.c.l.b16 %v3114
    %v3255 = vunpack.c.h.b16 %v3114
    %v3256 = vunpack.c.l.b16 %v3115
    %v3257 = vunpack.c.h.b16 %v3115
    %v3258 = vunpack.c.l.b16 %v3116
    %v3259 = vunpack.c.h.b16 %v3116
    %v3260 = vunpack.c.l.b16 %v3117
    %v3261 = vunpack.c.h.b16 %v3117
    %v3262 = vunpack.c.l.b16 %v3118
    %v3263 = vunpack.c.h.b16 %v3118
    %v3264 = vunpack.c.l.b16 %v3119
    %v3265 = vunpack.c.h.b16 %v3119
    %v3266 = vunpack.c.l.b16 %v3120
    %v3267 = vunpack.c.h.b16 %v3120
    %v3268 = vunpack.c.l.b16 %v3121
    %v3269 = vunpack.c.h.b16 %v3121
    %v3270 = vunpack.c.l.b16 %v3122
    %v3271 = vunpack.c.h.b16 %v3122
    %v3272 = vunpack.c.l.b16 %v3123
    %v3273 = vunpack.c.h.b16 %v3123
    %v3274 = vunpack.c.l.b16 %v3124
    %v3275 = vunpack.c.h.b16 %v3124
    %v3276 = vunpack.c.l.b16 %v3125
    %v3277 = vunpack.c.h.b16 %v3125
    %v3278 = vunpack.c.l.b16 %v3126
    %v3279 = vunpack.c.h.b16 %v3126
    %v3280 = vunpack.c.l.b16 %v3127
    %v3281 = vunpack.c.h.b16 %v3127
    %v3282 = vunpack.c.l.b16 %v3128
    %v3283 = vunpack.c.h.b16 %v3128
    %v3284 = vunpack.c.l.b16 %v3129
    %v3285 = vunpack.c.h.b16 %v3129
    %v3286 = vunpack.c.l.b16 %v3130
    %v3287 = vunpack.c.h.b16 %v3130
    %v3288 = vunpack.c.l.b16 %v3131
    %v3289 = vunpack.c.h.b16 %v3131
    %v3290 = vunpack.c.l.b16 %v3132
    %v3291 = vunpack.c.h.b16 %v3132
    %v3292 = vunpack.c.l.b16 %v3133
    %v3293 = vunpack.c.h.b16 %v3133
    %v3294 = vunpack.c.l.b16 %v3134
    %v3295 = vunpack.c.h.b16 %v3134
    %v3296 = vunpack.c.l.b16 %v3135
    %v3297 = vunpack.c.h.b16 %v3135
    %v3298 = vunpack.c.l.b16 %v3136
    %v3299 = vunpack.c.h.b16 %v3136
    %v3300 = vunpack.c.l.b16 %v3137
    %v3301 = vunpack.c.h.b16 %v3137
    %v3302 = vunpack.c.l.b16 %v3138
    %v3303 = vunpack.c.h.b16 %v3138
    %v3304 = vunpack.c.l.b16 %v3139
    %v3305 = vunpack.c.h.b16 %v3139
    %v3306 = vunpack.c.l.b16 %v3140
    %v3307 = vunpack.c.h.b16 %v3140
    %v3308 = vunpack.c.l.b16 %v3141
    %v3309 = vunpack.c.h.b16 %v3141
    %v3310 = vunpack.c.l.b16 %v3142
    %v3311 = vunpack.c.h.b16 %v3142
    %v3312 = vunpack.c.l.b16 %v3143
    %v3313 = vunpack.c.h.b16 %v3143
    %v3314 = vunpack.c.l.b16 %v3144
    %v3315 = vunpack.c.h.b16 %v3144
    %v3316 = vunpack.c.l.b16 %v3145
    %v3317 = vunpack.c.h.b16 %v3145
    %v3318 = vunpack.c.l.b16 %v3146
    %v3319 = vunpack.c.h.b16 %v3146
    %v3320 = vunpack.c.l.b16 %v3147
    %v3321 = vunpack.c.h.b16 %v3147
    %v3322 = vunpack.c.l.b16 %v3148
    %v3323 = vunpack.c.h.b16 %v3148
    %v3324 = vunpack.c.l.b16 %v3149
    %v3325 = vunpack.c.h.b16 %v3149
    %v3326 = vunpack.c.l.b16 %v3150
    %v3327 = vunpack.c.h.b16 %v3150
    %v3328 = vunpack.c.l.b16 %v3151
    %v3329 = vunpack.c.h.b16 %v3151
    %v3330 = vunpack.c.l.b16 %v3152
    %v3331 = vunpack.c.h.b16 %v3152
    %v3332 = vunpack.c.l.b16 %v3153
    %v3333 = vunpack.c.h.b16 %v3153
    %v3334 = vunpack.c.l.b16 %v3154
    %v3335 = vunpack.c.h.b16 %v3154
    %v3336 = vunpack.c.l.b16 %v3155
    %v3337 = vunpack.c.h.b16 %v3155
    %v3338 = vunpack.c.l.b16 %v3156
    %v3339 = vunpack.c.h.b16 %v3156
    %v3340 = vunpack.c.l.b16 %v3157
    %v3341 = vunpack.c.h.b16 %v3157
    %v3342 = vunpack.c.l.b16 %v3158
    %v3343 = vunpack.c.h.b16 %v3158
    %v3344 = vunpack.c.l.b16 %v3159
    %v3345 = vunpack.c.h.b16 %v3159
    %v3346 = vunpack.c.l.b16 %v3160
    %v3347 = vunpack.c.h.b16 %v3160
    %v3348 = vunpack.c.l.b16 %v3161
    %v3349 = vunpack.c.h.b16 %v3161
    %v3350 = vunpack.c.l.b16 %v3162
    %v3351 = vunpack.c.h.b16 %v3162
    %v3352 = vunpack.c.l.b16 %v3163
    %v3353 = vunpack.c.h.b16 %v3163
    %v3354 = vunpack.c.l.b16 %v3164
    %v3355 = vunpack.c.h.b16 %v3164
    %v3356 = vunpack.c.l.b16 %v3165
    %v3357 = vunpack.c.h.b16 %v3165
    %v3358 = vunpack.c.l.b16 %v3166
    %v3359 = vunpack.c.h.b16 %v3166
    %v3360 = vpack.c.b16 %v3236, %v3232
    %v3361 = vpack.c.b16 %v3237, %v3233
    %v3362 = vpack.c.b16 %v3238, %v3234
    %v3363 = vpack.c.b16 %v3239, %v3235
    %v3364 = vpack.c.b16 %v3244, %v3240
    %v3365 = vpack.c.b16 %v3245, %v3241
    %v3366 = vpack.c.b16 %v3246, %v3242
    %v3367 = vpack.c.b16 %v3247, %v3243
    %v3368 = vpack.c.b16 %v3252, %v3248
    %v3369 = vpack.c.b16 %v3253, %v3249
    %v3370 = vpack.c.b16 %v3254, %v3250
    %v3371 = vpack.c.b16 %v3255, %v3251
    %v3372 = vpack.c.b16 %v3260, %v3256
    %v3373 = vpack.c.b16 %v3261, %v3257
    %v3374 = vpack.c.b16 %v3262, %v3258
    %v3375 = vpack.c.b16 %v3263, %v3259
    %v3376 = vpack.c.b16 %v3268, %v3264
    %v3377 = vpack.c.b16 %v3269, %v3265
    %v3378 = vpack.c.b16 %v3270, %v3266
    %v3379 = vpack.c.b16 %v3271, %v3267
    %v3380 = vpack.c.b16 %v3276, %v3272
    %v3381 = vpack.c.b16 %v3277, %v3273
    %v3382 = vpack.c.b16 %v3278, %v3274
    %v3383 = vpack.c.b16 %v3279, %v3275
    %v3384 = vpack.c.b16 %v3284, %v3280
    %v3385 = vpack.c.b16 %v3285, %v3281
    %v3386 = vpack.c.b16 %v3286, %v3282
    %v3387 = vpack.c.b16 %v3287, %v3283
    %v3388 = vpack.c.b16 %v3292, %v3288
    %v3389 = vpack.c.b16 %v3293, %v3289
    %v3390 = vpack.c.b16 %v3294, %v3290
    %v3391 = vpack.c.b16 %v3295, %v3291
    %v3392 = vpack.c.b16 %v3300, %v3296
    %v3393 = vpack.c.b16 %v3301, %v3297
    %v3394 = vpack.c.b16 %v3302, %v3298
    %v3395 = vpack.c.b16 %v3303, %v3299
    %v3396 = vpack.c.b16 %v3308, %v3304
    %v3397 = vpack.c.b16 %v3309, %v3305
    %v3398 = vpack.c.b16 %v3310, %v3306
    %v3399 = vpack.c.b16 %v3311, %v3307
    %v3400 = vpack.c.b16 %v3316, %v3312
    %v3401 = vpack.c.b16 %v3317, %v3313
    %v3402 = vpack.c.b16 %v3318, %v3314
    %v3403 = vpack.c.b16 %v3319, %v3315
    %v3404 = vpack.c.b16 %v3324, %v3320
    %v3405 = vpack.c.b16 %v3325, %v3321
    %v3406 = vpack.c.b16 %v3326, %v3322
    %v3407 = vpack.c.b16 %v3327, %v3323
    %v3408 = vpack.c.b16 %v3332, %v3328
    %v3409 = vpack.c.b16 %v3333, %v3329
    %v3410 = vpack.c.b16 %v3334, %v3330
    %v3411 = vpack.c.b16 %v3335, %v3331
    %v3412 = vpack.c.b16 %v3340, %v3336
    %v3413 = vpack.c.b16 %v3341, %v3337
    %v3414 = vpack.c.b16 %v3342, %v3338
    %v3415 = vpack.c.b16 %v3343, %v3339
    %v3416 = vpack.c.b16 %v3348, %v3344
    %v3417 = vpack.c.b16 %v3349, %v3345
    %v3418 = vpack.c.b16 %v3350, %v3346
    %v3419 = vpack.c.b16 %v3351, %v3347
    %v3420 = vpack.c.b16 %v3356, %v3352
    %v3421 = vpack.c.b16 %v3357, %v3353
    %v3422 = vpack.c.b16 %v3358, %v3354
    %v3423 = vpack.c.b16 %v3359, %v3355
    %v3489 = vperm.slane %v3167, 0
    %v3490 = vperm.slane %v3167, 1
    %v3491 = vperm.slane %v3167, 2
    %v3492 = vperm.slane %v3167, 3
    %3497 = vmatpush.bf16.msra.mxu0 %v3388
    %3498 = vmatpush.bf16.msra.mxu0 %v3384
    %3499 = vmatpush.bf16.msra.mxu0 %v3380
    %3500 = vmatpush.bf16.msra.mxu0 %v3376
    %3501 = vmatpush.bf16.msra.mxu0 %v3372
    %3502 = vmatpush.bf16.msra.mxu0 %v3368
    %3503 = vmatpush.bf16.msra.mxu0 %v3364
    %3504 = vmatpush.bf16.msra.mxu0 %v3360
    %3505 = vmatmul.bf16.gmra.mxu0 %v3101
    %v3506 = vpop.f32.mrf.mxu0
    %v3507 = vadd.f32 %v3489, %v3506
    %v3508 = vpop.f32.mrf.mxu0
    %3509 = vdwg.mxu0
    %3510 = vmatpush.bf16.msra.mxu0 %v3420
    %3511 = vmatpush.bf16.msra.mxu0 %v3416
    %3512 = vmatpush.bf16.msra.mxu0 %v3412
    %3513 = vmatpush.bf16.msra.mxu0 %v3408
    %3514 = vmatpush.bf16.msra.mxu0 %v3404
    %3515 = vmatpush.bf16.msra.mxu0 %v3400
    %3516 = vmatpush.bf16.msra.mxu0 %v3396
    %3517 = vmatpush.bf16.msra.mxu0 %v3392
    %3518 = vmatmul.bf16.gmra.mxu0 %v3102
    %v3519 = vpop.f32.mrf.mxu0
    %v3520 = vadd.f32 %v3507, %v3519
    %v3521 = vpop.f32.mrf.mxu0
    %3522 = vdwg.mxu0
    %3523 = vmatpush.bf16.msra.mxu0 %v3389
    %3524 = vmatpush.bf16.msra.mxu0 %v3385
    %3525 = vmatpush.bf16.msra.mxu0 %v3381
    %3526 = vmatpush.bf16.msra.mxu0 %v3377
    %3527 = vmatpush.bf16.msra.mxu0 %v3373
    %3528 = vmatpush.bf16.msra.mxu0 %v3369
    %3529 = vmatpush.bf16.msra.mxu0 %v3365
    %3530 = vmatpush.bf16.msra.mxu0 %v3361
    %3531 = vmatmul.bf16.gmra.mxu0 %v3101
    %v3532 = vpop.f32.mrf.mxu0
    %v3533 = vadd.f32 %v3490, %v3532
    %v3534 = vpop.f32.mrf.mxu0
    %3535 = vdwg.mxu0
    %3536 = vmatpush.bf16.msra.mxu0 %v3421
    %3537 = vmatpush.bf16.msra.mxu0 %v3417
    %3538 = vmatpush.bf16.msra.mxu0 %v3413
    %3539 = vmatpush.bf16.msra.mxu0 %v3409
    %3540 = vmatpush.bf16.msra.mxu0 %v3405
    %3541 = vmatpush.bf16.msra.mxu0 %v3401
    %3542 = vmatpush.bf16.msra.mxu0 %v3397
    %3543 = vmatpush.bf16.msra.mxu0 %v3393
    %3544 = vmatmul.bf16.gmra.mxu0 %v3102
    %v3545 = vpop.f32.mrf.mxu0
    %v3546 = vadd.f32 %v3533, %v3545
    %v3547 = vpop.f32.mrf.mxu0
    %3548 = vdwg.mxu0
    %3549 = vmatpush.bf16.msra.mxu0 %v3390
    %3550 = vmatpush.bf16.msra.mxu0 %v3386
    %3551 = vmatpush.bf16.msra.mxu0 %v3382
    %3552 = vmatpush.bf16.msra.mxu0 %v3378
    %3553 = vmatpush.bf16.msra.mxu0 %v3374
    %3554 = vmatpush.bf16.msra.mxu0 %v3370
    %3555 = vmatpush.bf16.msra.mxu0 %v3366
    %3556 = vmatpush.bf16.msra.mxu0 %v3362
    %3557 = vmatmul.bf16.gmra.mxu0 %v3101
    %v3558 = vpop.f32.mrf.mxu0
    %v3559 = vadd.f32 %v3491, %v3558
    %v3560 = vpop.f32.mrf.mxu0
    %3561 = vdwg.mxu0
    %3562 = vmatpush.bf16.msra.mxu0 %v3422
    %3563 = vmatpush.bf16.msra.mxu0 %v3418
    %3564 = vmatpush.bf16.msra.mxu0 %v3414
    %3565 = vmatpush.bf16.msra.mxu0 %v3410
    %3566 = vmatpush.bf16.msra.mxu0 %v3406
    %3567 = vmatpush.bf16.msra.mxu0 %v3402
    %3568 = vmatpush.bf16.msra.mxu0 %v3398
    %3569 = vmatpush.bf16.msra.mxu0 %v3394
    %3570 = vmatmul.bf16.gmra.mxu0 %v3102
    %v3571 = vpop.f32.mrf.mxu0
    %v3572 = vadd.f32 %v3559, %v3571
    %v3573 = vpop.f32.mrf.mxu0
    %3574 = vdwg.mxu0
    %3575 = vmatpush.bf16.msra.mxu0 %v3391
    %3576 = vmatpush.bf16.msra.mxu0 %v3387
    %3577 = vmatpush.bf16.msra.mxu0 %v3383
    %3578 = vmatpush.bf16.msra.mxu0 %v3379
    %3579 = vmatpush.bf16.msra.mxu0 %v3375
    %3580 = vmatpush.bf16.msra.mxu0 %v3371
    %3581 = vmatpush.bf16.msra.mxu0 %v3367
    %3582 = vmatpush.bf16.msra.mxu0 %v3363
    %3583 = vmatmul.bf16.gmra.mxu0 %v3101
    %v3584 = vpop.f32.mrf.mxu0
    %v3585 = vadd.f32 %v3492, %v3584
    %v3586 = vpop.f32.mrf.mxu0
    %3587 = vdwg.mxu0
    %3588 = vmatpush.bf16.msra.mxu0 %v3423
    %3589 = vmatpush.bf16.msra.mxu0 %v3419
    %3590 = vmatpush.bf16.msra.mxu0 %v3415
    %3591 = vmatpush.bf16.msra.mxu0 %v3411
    %3592 = vmatpush.bf16.msra.mxu0 %v3407
    %3593 = vmatpush.bf16.msra.mxu0 %v3403
    %3594 = vmatpush.bf16.msra.mxu0 %v3399
    %3595 = vmatpush.bf16.msra.mxu0 %v3395
    %3596 = vmatmul.bf16.gmra.mxu0 %v3102
    %v3597 = vpop.f32.mrf.mxu0
    %v3598 = vadd.f32 %v3585, %v3597
    %v3599 = vpop.f32.mrf.mxu0
    %3600 = vdwg.mxu0
    %v3601 = vxor.u32 %v3520, 2147483648
    %v3602 = vmul.f32 %v3601, 1.442695
    %v3603 = vpow.pop %v3602
    %v3604 = vadd.f32 %v3603, 1.0
    %v3605 = vrcp.pop %v3604
    %v3606 = vmul.f32 %v3604, %v3605
    %v3607 = vsub.f32 1.0, %v3606
    %v3608 = vmul.f32 %v3605, %v3607
    %v3609 = vadd.f32 %v3605, %v3608
    %vm3610 = vweird.f32 %v3604
    %vm3611 = vweird.f32 %v3605
    %vm3612 = vmor %vm3610, %vm3611
    %v3613 = vsel %vm3612, %v3605, %v3609
    %v3614 = vand.u32 2147483647, %v3604
    %vm3615 = vcmp.eq.f32.partialorder %v3614, 8.507059e+37
    %v3616 = vand.u32 %v3604, 2147483648
    %v3617 = vor.u32 1.1754944e-38, %v3616
    %v3618 = vsel %vm3615, %v3617, %v3613
    %v3619 = vmul.f32 1.0, %v3618
    %v3620 = vxor.u32 %v3546, 2147483648
    %v3621 = vmul.f32 %v3620, 1.442695
    %v3622 = vpow.pop %v3621
    %v3623 = vadd.f32 %v3622, 1.0
    %v3624 = vrcp.pop %v3623
    %v3625 = vmul.f32 %v3623, %v3624
    %v3626 = vsub.f32 1.0, %v3625
    %v3627 = vmul.f32 %v3624, %v3626
    %v3628 = vadd.f32 %v3624, %v3627
    %vm3629 = vweird.f32 %v3623
    %vm3630 = vweird.f32 %v3624
    %vm3631 = vmor %vm3629, %vm3630
    %v3632 = vsel %vm3631, %v3624, %v3628
    %v3633 = vand.u32 2147483647, %v3623
    %vm3634 = vcmp.eq.f32.partialorder %v3633, 8.507059e+37
    %v3635 = vand.u32 %v3623, 2147483648
    %v3636 = vor.u32 1.1754944e-38, %v3635
    %v3637 = vsel %vm3634, %v3636, %v3632
    %v3638 = vmul.f32 1.0, %v3637
    %v3639 = vtanh.pop %v3572
    %v3640 = vxor.u32 %v3598, 2147483648
    %v3641 = vmul.f32 %v3640, 1.442695
    %v3642 = vpow.pop %v3641
    %v3643 = vadd.f32 %v3642, 1.0
    %v3644 = vrcp.pop %v3643
    %v3645 = vmul.f32 %v3643, %v3644
    %v3646 = vsub.f32 1.0, %v3645
    %v3647 = vmul.f32 %v3644, %v3646
    %v3648 = vadd.f32 %v3644, %v3647
    %vm3649 = vweird.f32 %v3643
    %vm3650 = vweird.f32 %v3644
    %vm3651 = vmor %vm3649, %vm3650
    %v3652 = vsel %vm3651, %v3644, %v3648
    %v3653 = vand.u32 2147483647, %v3643
    %vm3654 = vcmp.eq.f32.partialorder %v3653, 8.507059e+37
    %v3655 = vand.u32 %v3643, 2147483648
    %v3656 = vor.u32 1.1754944e-38, %v3655
    %v3657 = vsel %vm3654, %v3656, %v3652
    %v3658 = vmul.f32 1.0, %v3657
    %v3659 = vmul.f32 %v3638, %v2765
    %v3660 = vmul.f32 %v3619, %v3639
    %v3661 = vadd.f32 %v3659, %v3660
    %v3662 = vtanh.pop %v3661
    %v3663 = vmul.f32 %v3658, %v3662
    %3664 = vst [vmem:[#allocation2 + $0x3] sm:$0x1] %v3663
    %s3665 = sld [smem:[#allocation3 + $0x4]]
    %v3666 = vld [vmem:[#allocation6] ss:$8 sm:$0xf]
    %v3667 = vstv %s3665
    %v3668 = vmul.f32 %v3667, %v3666
    %v3669 = vld [vmem:[#allocation7] sm:$0xff]
    %v3670 = vld [vmem:[#allocation7 + $0x8] sm:$0xff]
    %v3671 = vld [vmem:[#allocation7 + $0x10] sm:$0xff]
    %v3672 = vld [vmem:[#allocation7 + $0x18] sm:$0xff]
    %v3673 = vld [vmem:[#allocation7 + $0x20] sm:$0xff]
    %v3674 = vld [vmem:[#allocation7 + $0x28] sm:$0xff]
    %v3675 = vld [vmem:[#allocation7 + $0x30] sm:$0xff]
    %v3676 = vld [vmem:[#allocation7 + $0x38] sm:$0xff]
    %v3677 = vld [vmem:[#allocation7 + $0x40] sm:$0xff]
    %v3678 = vld [vmem:[#allocation7 + $0x48] sm:$0xff]
    %v3679 = vld [vmem:[#allocation7 + $0x50] sm:$0xff]
    %v3680 = vld [vmem:[#allocation7 + $0x58] sm:$0xff]
    %v3681 = vld [vmem:[#allocation7 + $0x60] sm:$0xff]
    %v3682 = vld [vmem:[#allocation7 + $0x68] sm:$0xff]
    %v3683 = vld [vmem:[#allocation7 + $0x70] sm:$0xff]
    %v3684 = vld [vmem:[#allocation7 + $0x78] sm:$0xff]
    %v3685 = vld [vmem:[#allocation7 + $0x80] sm:$0xff]
    %v3686 = vld [vmem:[#allocation7 + $0x88] sm:$0xff]
    %v3687 = vld [vmem:[#allocation7 + $0x90] sm:$0xff]
    %v3688 = vld [vmem:[#allocation7 + $0x98] sm:$0xff]
    %v3689 = vld [vmem:[#allocation7 + $0xa0] sm:$0xff]
    %v3690 = vld [vmem:[#allocation7 + $0xa8] sm:$0xff]
    %v3691 = vld [vmem:[#allocation7 + $0xb0] sm:$0xff]
    %v3692 = vld [vmem:[#allocation7 + $0xb8] sm:$0xff]
    %v3693 = vld [vmem:[#allocation7 + $0xc0] sm:$0xff]
    %v3694 = vld [vmem:[#allocation7 + $0xc8] sm:$0xff]
    %v3695 = vld [vmem:[#allocation7 + $0xd0] sm:$0xff]
    %v3696 = vld [vmem:[#allocation7 + $0xd8] sm:$0xff]
    %v3697 = vld [vmem:[#allocation7 + $0xe0] sm:$0xff]
    %v3698 = vld [vmem:[#allocation7 + $0xe8] sm:$0xff]
    %v3699 = vld [vmem:[#allocation7 + $0xf0] sm:$0xff]
    %v3700 = vld [vmem:[#allocation7 + $0xf8] sm:$0xff]
    %v3733 = vunpack.c.l.b16 %v3669
    %v3734 = vunpack.c.h.b16 %v3669
    %v3735 = vunpack.c.l.b16 %v3670
    %v3736 = vunpack.c.h.b16 %v3670
    %v3737 = vunpack.c.l.b16 %v3671
    %v3738 = vunpack.c.h.b16 %v3671
    %v3739 = vunpack.c.l.b16 %v3672
    %v3740 = vunpack.c.h.b16 %v3672
    %v3741 = vunpack.c.l.b16 %v3673
    %v3742 = vunpack.c.h.b16 %v3673
    %v3743 = vunpack.c.l.b16 %v3674
    %v3744 = vunpack.c.h.b16 %v3674
    %v3745 = vunpack.c.l.b16 %v3675
    %v3746 = vunpack.c.h.b16 %v3675
    %v3747 = vunpack.c.l.b16 %v3676
    %v3748 = vunpack.c.h.b16 %v3676
    %v3749 = vunpack.c.l.b16 %v3677
    %v3750 = vunpack.c.h.b16 %v3677
    %v3751 = vunpack.c.l.b16 %v3678
    %v3752 = vunpack.c.h.b16 %v3678
    %v3753 = vunpack.c.l.b16 %v3679
    %v3754 = vunpack.c.h.b16 %v3679
    %v3755 = vunpack.c.l.b16 %v3680
    %v3756 = vunpack.c.h.b16 %v3680
    %v3757 = vunpack.c.l.b16 %v3681
    %v3758 = vunpack.c.h.b16 %v3681
    %v3759 = vunpack.c.l.b16 %v3682
    %v3760 = vunpack.c.h.b16 %v3682
    %v3761 = vunpack.c.l.b16 %v3683
    %v3762 = vunpack.c.h.b16 %v3683
    %v3763 = vunpack.c.l.b16 %v3684
    %v3764 = vunpack.c.h.b16 %v3684
    %v3765 = vunpack.c.l.b16 %v3685
    %v3766 = vunpack.c.h.b16 %v3685
    %v3767 = vunpack.c.l.b16 %v3686
    %v3768 = vunpack.c.h.b16 %v3686
    %v3769 = vunpack.c.l.b16 %v3687
    %v3770 = vunpack.c.h.b16 %v3687
    %v3771 = vunpack.c.l.b16 %v3688
    %v3772 = vunpack.c.h.b16 %v3688
    %v3773 = vunpack.c.l.b16 %v3689
    %v3774 = vunpack.c.h.b16 %v3689
    %v3775 = vunpack.c.l.b16 %v3690
    %v3776 = vunpack.c.h.b16 %v3690
    %v3777 = vunpack.c.l.b16 %v3691
    %v3778 = vunpack.c.h.b16 %v3691
    %v3779 = vunpack.c.l.b16 %v3692
    %v3780 = vunpack.c.h.b16 %v3692
    %v3781 = vunpack.c.l.b16 %v3693
    %v3782 = vunpack.c.h.b16 %v3693
    %v3783 = vunpack.c.l.b16 %v3694
    %v3784 = vunpack.c.h.b16 %v3694
    %v3785 = vunpack.c.l.b16 %v3695
    %v3786 = vunpack.c.h.b16 %v3695
    %v3787 = vunpack.c.l.b16 %v3696
    %v3788 = vunpack.c.h.b16 %v3696
    %v3789 = vunpack.c.l.b16 %v3697
    %v3790 = vunpack.c.h.b16 %v3697
    %v3791 = vunpack.c.l.b16 %v3698
    %v3792 = vunpack.c.h.b16 %v3698
    %v3793 = vunpack.c.l.b16 %v3699
    %v3794 = vunpack.c.h.b16 %v3699
    %v3795 = vunpack.c.l.b16 %v3700
    %v3796 = vunpack.c.h.b16 %v3700
    %v3797 = vpack.c.b16 %v3737, %v3733
    %v3798 = vpack.c.b16 %v3738, %v3734
    %v3799 = vpack.c.b16 %v3739, %v3735
    %v3800 = vpack.c.b16 %v3740, %v3736
    %v3801 = vpack.c.b16 %v3745, %v3741
    %v3802 = vpack.c.b16 %v3746, %v3742
    %v3803 = vpack.c.b16 %v3747, %v3743
    %v3804 = vpack.c.b16 %v3748, %v3744
    %v3805 = vpack.c.b16 %v3753, %v3749
    %v3806 = vpack.c.b16 %v3754, %v3750
    %v3807 = vpack.c.b16 %v3755, %v3751
    %v3808 = vpack.c.b16 %v3756, %v3752
    %v3809 = vpack.c.b16 %v3761, %v3757
    %v3810 = vpack.c.b16 %v3762, %v3758
    %v3811 = vpack.c.b16 %v3763, %v3759
    %v3812 = vpack.c.b16 %v3764, %v3760
    %v3813 = vpack.c.b16 %v3769, %v3765
    %v3814 = vpack.c.b16 %v3770, %v3766
    %v3815 = vpack.c.b16 %v3771, %v3767
    %v3816 = vpack.c.b16 %v3772, %v3768
    %v3817 = vpack.c.b16 %v3777, %v3773
    %v3818 = vpack.c.b16 %v3778, %v3774
    %v3819 = vpack.c.b16 %v3779, %v3775
    %v3820 = vpack.c.b16 %v3780, %v3776
    %v3821 = vpack.c.b16 %v3785, %v3781
    %v3822 = vpack.c.b16 %v3786, %v3782
    %v3823 = vpack.c.b16 %v3787, %v3783
    %v3824 = vpack.c.b16 %v3788, %v3784
    %v3825 = vpack.c.b16 %v3793, %v3789
    %v3826 = vpack.c.b16 %v3794, %v3790
    %v3827 = vpack.c.b16 %v3795, %v3791
    %v3828 = vpack.c.b16 %v3796, %v3792
    %3861 = vmatpush.bf16.msra.mxu0 %v3825
    %3862 = vmatpush.bf16.msra.mxu0 %v3821
    %3863 = vmatpush.bf16.msra.mxu0 %v3817
    %3864 = vmatpush.bf16.msra.mxu0 %v3813
    %3865 = vmatpush.bf16.msra.mxu0 %v3809
    %3866 = vmatpush.bf16.msra.mxu0 %v3805
    %3867 = vmatpush.bf16.msra.mxu0 %v3801
    %3868 = vmatpush.bf16.msra.mxu0 %v3797
    %3869 = vmatmul.bf16.gmra.mxu0 %v3101
    %v3870 = vpop.f32.mrf.mxu0
    %v3871 = vadd.f32 0.0, %v3870
    %v3872 = vpop.f32.mrf.mxu0
    %3873 = vdwg.mxu0
    %3874 = vmatpush.bf16.msra.mxu0 %v3826
    %3875 = vmatpush.bf16.msra.mxu0 %v3822
    %3876 = vmatpush.bf16.msra.mxu0 %v3818
    %3877 = vmatpush.bf16.msra.mxu0 %v3814
    %3878 = vmatpush.bf16.msra.mxu0 %v3810
    %3879 = vmatpush.bf16.msra.mxu0 %v3806
    %3880 = vmatpush.bf16.msra.mxu0 %v3802
    %3881 = vmatpush.bf16.msra.mxu0 %v3798
    %3882 = vmatmul.bf16.gmra.mxu0 %v3101
    %v3883 = vpop.f32.mrf.mxu0
    %v3884 = vadd.f32 0.0, %v3883
    %v3885 = vpop.f32.mrf.mxu0
    %3886 = vdwg.mxu0
    %3887 = vmatpush.bf16.msra.mxu0 %v3827
    %3888 = vmatpush.bf16.msra.mxu0 %v3823
    %3889 = vmatpush.bf16.msra.mxu0 %v3819
    %3890 = vmatpush.bf16.msra.mxu0 %v3815
    %3891 = vmatpush.bf16.msra.mxu0 %v3811
    %3892 = vmatpush.bf16.msra.mxu0 %v3807
    %3893 = vmatpush.bf16.msra.mxu0 %v3803
    %3894 = vmatpush.bf16.msra.mxu0 %v3799
    %3895 = vmatmul.bf16.gmra.mxu0 %v3101
    %v3896 = vpop.f32.mrf.mxu0
    %v3897 = vadd.f32 0.0, %v3896
    %v3898 = vpop.f32.mrf.mxu0
    %3899 = vdwg.mxu0
    %3900 = vmatpush.bf16.msra.mxu0 %v3828
    %3901 = vmatpush.bf16.msra.mxu0 %v3824
    %3902 = vmatpush.bf16.msra.mxu0 %v3820
    %3903 = vmatpush.bf16.msra.mxu0 %v3816
    %3904 = vmatpush.bf16.msra.mxu0 %v3812
    %3905 = vmatpush.bf16.msra.mxu0 %v3808
    %3906 = vmatpush.bf16.msra.mxu0 %v3804
    %3907 = vmatpush.bf16.msra.mxu0 %v3800
    %3908 = vmatmul.bf16.gmra.mxu0 %v3101
    %v3909 = vpop.f32.mrf.mxu0
    %v3910 = vadd.f32 0.0, %v3909
    %v3911 = vpop.f32.mrf.mxu0
    %3912 = vdwg.mxu0
    %v3917 = vrot.slane %v3884, 7
    %v3918 = vrot.slane %v3897, 6
    %v3919 = vrot.slane %v3910, 5
    %v3920 = vsel %vm331, %v3871, %v3917
    %v3921 = vsel %vm333, %v3918, %v3919
    %v3922 = vsel %vm335, %v3920, %v3921
    %v3924 = vadd.f32 %v3668, %v3922
    %v3925 = vld [vmem:[%s339] ss:$8 sm:$0xf]
    %v3926 = vadd.f32 %v3924, %v3925
    %v3927 = vxor.u32 %v3926, 2147483648
    %v3928 = vmul.f32 %v3927, 1.442695
    %v3929 = vpow.pop %v3928
    %v3930 = vadd.f32 %v3929, 1.0
    %v3931 = vrcp.pop %v3930
    %v3932 = vmul.f32 %v3930, %v3931
    %v3933 = vsub.f32 1.0, %v3932
    %v3934 = vmul.f32 %v3931, %v3933
    %v3935 = vadd.f32 %v3931, %v3934
    %vm3936 = vweird.f32 %v3930
    %vm3937 = vweird.f32 %v3931
    %vm3938 = vmor %vm3936, %vm3937
    %v3939 = vsel %vm3938, %v3931, %v3935
    %v3940 = vand.u32 2147483647, %v3930
    %vm3941 = vcmp.eq.f32.partialorder %v3940, 8.507059e+37
    %v3942 = vand.u32 %v3930, 2147483648
    %v3943 = vor.u32 1.1754944e-38, %v3942
    %v3944 = vsel %vm3941, %v3943, %v3939
    %v3945 = vmul.f32 1.0, %v3944
    %v3947 = vrot.slane %v3926, 1
    %v3949 = vxor.u32 %v3947, 2147483648
    %v3950 = vmul.f32 %v3949, 1.442695
    %v3951 = vpow.pop %v3950
    %v3952 = vadd.f32 %v3951, 1.0
    %v3953 = vrcp.pop %v3952
    %v3954 = vmul.f32 %v3952, %v3953
    %v3955 = vsub.f32 1.0, %v3954
    %v3956 = vmul.f32 %v3953, %v3955
    %v3957 = vadd.f32 %v3953, %v3956
    %vm3958 = vweird.f32 %v3952
    %vm3959 = vweird.f32 %v3953
    %vm3960 = vmor %vm3958, %vm3959
    %v3961 = vsel %vm3960, %v3953, %v3957
    %v3962 = vand.u32 2147483647, %v3952
    %vm3963 = vcmp.eq.f32.partialorder %v3962, 8.507059e+37
    %v3964 = vand.u32 %v3952, 2147483648
    %v3965 = vor.u32 1.1754944e-38, %v3964
    %v3966 = vsel %vm3963, %v3965, %v3961
    %v3967 = vmul.f32 1.0, %v3966
    %v3968 = vrot.slane %v3926, 2
    %v3970 = vtanh.pop %v3968
    %v3971 = vrot.slane %v3926, 3
    %v3973 = vxor.u32 %v3971, 2147483648
    %v3974 = vmul.f32 %v3973, 1.442695
    %v3975 = vpow.pop %v3974
    %v3976 = vadd.f32 %v3975, 1.0
    %v3977 = vrcp.pop %v3976
    %v3978 = vmul.f32 %v3976, %v3977
    %v3979 = vsub.f32 1.0, %v3978
    %v3980 = vmul.f32 %v3977, %v3979
    %v3981 = vadd.f32 %v3977, %v3980
    %vm3982 = vweird.f32 %v3976
    %vm3983 = vweird.f32 %v3977
    %vm3984 = vmor %vm3982, %vm3983
    %v3985 = vsel %vm3984, %v3977, %v3981
    %v3986 = vand.u32 2147483647, %v3976
    %vm3987 = vcmp.eq.f32.partialorder %v3986, 8.507059e+37
    %v3988 = vand.u32 %v3976, 2147483648
    %v3989 = vor.u32 1.1754944e-38, %v3988
    %v3990 = vsel %vm3987, %v3989, %v3985
    %v3991 = vmul.f32 1.0, %v3990
    %v3992 = vmul.f32 %v3967, %v3098
    %v3993 = vmul.f32 %v3945, %v3970
    %v3994 = vadd.f32 %v3992, %v3993
    %v3995 = vtanh.pop %v3994
    %v3996 = vmul.f32 %v3991, %v3995
    %v3997 = vpack.c.bf16 %v3996, %v3996
    %v3998 = vpack.c.bf16 %v3663, %v3663
    %v3999 = vld [vmem:[#allocation9] sm:$0xff]
    %v4000 = vld [vmem:[#allocation9 + $0x8] sm:$0xff]
    %v4001 = vld [vmem:[#allocation9 + $0x10] sm:$0xff]
    %v4002 = vld [vmem:[#allocation9 + $0x18] sm:$0xff]
    %v4003 = vld [vmem:[#allocation9 + $0x20] sm:$0xff]
    %v4004 = vld [vmem:[#allocation9 + $0x28] sm:$0xff]
    %v4005 = vld [vmem:[#allocation9 + $0x30] sm:$0xff]
    %v4006 = vld [vmem:[#allocation9 + $0x38] sm:$0xff]
    %v4007 = vld [vmem:[#allocation9 + $0x40] sm:$0xff]
    %v4008 = vld [vmem:[#allocation9 + $0x48] sm:$0xff]
    %v4009 = vld [vmem:[#allocation9 + $0x50] sm:$0xff]
    %v4010 = vld [vmem:[#allocation9 + $0x58] sm:$0xff]
    %v4011 = vld [vmem:[#allocation9 + $0x60] sm:$0xff]
    %v4012 = vld [vmem:[#allocation9 + $0x68] sm:$0xff]
    %v4013 = vld [vmem:[#allocation9 + $0x70] sm:$0xff]
    %v4014 = vld [vmem:[#allocation9 + $0x78] sm:$0xff]
    %v4015 = vld [vmem:[#allocation9 + $0x80] sm:$0xff]
    %v4016 = vld [vmem:[#allocation9 + $0x88] sm:$0xff]
    %v4017 = vld [vmem:[#allocation9 + $0x90] sm:$0xff]
    %v4018 = vld [vmem:[#allocation9 + $0x98] sm:$0xff]
    %v4019 = vld [vmem:[#allocation9 + $0xa0] sm:$0xff]
    %v4020 = vld [vmem:[#allocation9 + $0xa8] sm:$0xff]
    %v4021 = vld [vmem:[#allocation9 + $0xb0] sm:$0xff]
    %v4022 = vld [vmem:[#allocation9 + $0xb8] sm:$0xff]
    %v4023 = vld [vmem:[#allocation9 + $0xc0] sm:$0xff]
    %v4024 = vld [vmem:[#allocation9 + $0xc8] sm:$0xff]
    %v4025 = vld [vmem:[#allocation9 + $0xd0] sm:$0xff]
    %v4026 = vld [vmem:[#allocation9 + $0xd8] sm:$0xff]
    %v4027 = vld [vmem:[#allocation9 + $0xe0] sm:$0xff]
    %v4028 = vld [vmem:[#allocation9 + $0xe8] sm:$0xff]
    %v4029 = vld [vmem:[#allocation9 + $0xf0] sm:$0xff]
    %v4030 = vld [vmem:[#allocation9 + $0xf8] sm:$0xff]
    %v4031 = vld [vmem:[#allocation9 + $0x100] sm:$0xff]
    %v4032 = vld [vmem:[#allocation9 + $0x108] sm:$0xff]
    %v4033 = vld [vmem:[#allocation9 + $0x110] sm:$0xff]
    %v4034 = vld [vmem:[#allocation9 + $0x118] sm:$0xff]
    %v4035 = vld [vmem:[#allocation9 + $0x120] sm:$0xff]
    %v4036 = vld [vmem:[#allocation9 + $0x128] sm:$0xff]
    %v4037 = vld [vmem:[#allocation9 + $0x130] sm:$0xff]
    %v4038 = vld [vmem:[#allocation9 + $0x138] sm:$0xff]
    %v4039 = vld [vmem:[#allocation9 + $0x140] sm:$0xff]
    %v4040 = vld [vmem:[#allocation9 + $0x148] sm:$0xff]
    %v4041 = vld [vmem:[#allocation9 + $0x150] sm:$0xff]
    %v4042 = vld [vmem:[#allocation9 + $0x158] sm:$0xff]
    %v4043 = vld [vmem:[#allocation9 + $0x160] sm:$0xff]
    %v4044 = vld [vmem:[#allocation9 + $0x168] sm:$0xff]
    %v4045 = vld [vmem:[#allocation9 + $0x170] sm:$0xff]
    %v4046 = vld [vmem:[#allocation9 + $0x178] sm:$0xff]
    %v4047 = vld [vmem:[#allocation9 + $0x180] sm:$0xff]
    %v4048 = vld [vmem:[#allocation9 + $0x188] sm:$0xff]
    %v4049 = vld [vmem:[#allocation9 + $0x190] sm:$0xff]
    %v4050 = vld [vmem:[#allocation9 + $0x198] sm:$0xff]
    %v4051 = vld [vmem:[#allocation9 + $0x1a0] sm:$0xff]
    %v4052 = vld [vmem:[#allocation9 + $0x1a8] sm:$0xff]
    %v4053 = vld [vmem:[#allocation9 + $0x1b0] sm:$0xff]
    %v4054 = vld [vmem:[#allocation9 + $0x1b8] sm:$0xff]
    %v4055 = vld [vmem:[#allocation9 + $0x1c0] sm:$0xff]
    %v4056 = vld [vmem:[#allocation9 + $0x1c8] sm:$0xff]
    %v4057 = vld [vmem:[#allocation9 + $0x1d0] sm:$0xff]
    %v4058 = vld [vmem:[#allocation9 + $0x1d8] sm:$0xff]
    %v4059 = vld [vmem:[#allocation9 + $0x1e0] sm:$0xff]
    %v4060 = vld [vmem:[#allocation9 + $0x1e8] sm:$0xff]
    %v4061 = vld [vmem:[#allocation9 + $0x1f0] sm:$0xff]
    %v4062 = vld [vmem:[#allocation9 + $0x1f8] sm:$0xff]
    %v4063 = vld [vmem:[%s478] ss:$8 sm:$0xf]
    %v4128 = vunpack.c.l.b16 %v3999
    %v4129 = vunpack.c.h.b16 %v3999
    %v4130 = vunpack.c.l.b16 %v4000
    %v4131 = vunpack.c.h.b16 %v4000
    %v4132 = vunpack.c.l.b16 %v4001
    %v4133 = vunpack.c.h.b16 %v4001
    %v4134 = vunpack.c.l.b16 %v4002
    %v4135 = vunpack.c.h.b16 %v4002
    %v4136 = vunpack.c.l.b16 %v4003
    %v4137 = vunpack.c.h.b16 %v4003
    %v4138 = vunpack.c.l.b16 %v4004
    %v4139 = vunpack.c.h.b16 %v4004
    %v4140 = vunpack.c.l.b16 %v4005
    %v4141 = vunpack.c.h.b16 %v4005
    %v4142 = vunpack.c.l.b16 %v4006
    %v4143 = vunpack.c.h.b16 %v4006
    %v4144 = vunpack.c.l.b16 %v4007
    %v4145 = vunpack.c.h.b16 %v4007
    %v4146 = vunpack.c.l.b16 %v4008
    %v4147 = vunpack.c.h.b16 %v4008
    %v4148 = vunpack.c.l.b16 %v4009
    %v4149 = vunpack.c.h.b16 %v4009
    %v4150 = vunpack.c.l.b16 %v4010
    %v4151 = vunpack.c.h.b16 %v4010
    %v4152 = vunpack.c.l.b16 %v4011
    %v4153 = vunpack.c.h.b16 %v4011
    %v4154 = vunpack.c.l.b16 %v4012
    %v4155 = vunpack.c.h.b16 %v4012
    %v4156 = vunpack.c.l.b16 %v4013
    %v4157 = vunpack.c.h.b16 %v4013
    %v4158 = vunpack.c.l.b16 %v4014
    %v4159 = vunpack.c.h.b16 %v4014
    %v4160 = vunpack.c.l.b16 %v4015
    %v4161 = vunpack.c.h.b16 %v4015
    %v4162 = vunpack.c.l.b16 %v4016
    %v4163 = vunpack.c.h.b16 %v4016
    %v4164 = vunpack.c.l.b16 %v4017
    %v4165 = vunpack.c.h.b16 %v4017
    %v4166 = vunpack.c.l.b16 %v4018
    %v4167 = vunpack.c.h.b16 %v4018
    %v4168 = vunpack.c.l.b16 %v4019
    %v4169 = vunpack.c.h.b16 %v4019
    %v4170 = vunpack.c.l.b16 %v4020
    %v4171 = vunpack.c.h.b16 %v4020
    %v4172 = vunpack.c.l.b16 %v4021
    %v4173 = vunpack.c.h.b16 %v4021
    %v4174 = vunpack.c.l.b16 %v4022
    %v4175 = vunpack.c.h.b16 %v4022
    %v4176 = vunpack.c.l.b16 %v4023
    %v4177 = vunpack.c.h.b16 %v4023
    %v4178 = vunpack.c.l.b16 %v4024
    %v4179 = vunpack.c.h.b16 %v4024
    %v4180 = vunpack.c.l.b16 %v4025
    %v4181 = vunpack.c.h.b16 %v4025
    %v4182 = vunpack.c.l.b16 %v4026
    %v4183 = vunpack.c.h.b16 %v4026
    %v4184 = vunpack.c.l.b16 %v4027
    %v4185 = vunpack.c.h.b16 %v4027
    %v4186 = vunpack.c.l.b16 %v4028
    %v4187 = vunpack.c.h.b16 %v4028
    %v4188 = vunpack.c.l.b16 %v4029
    %v4189 = vunpack.c.h.b16 %v4029
    %v4190 = vunpack.c.l.b16 %v4030
    %v4191 = vunpack.c.h.b16 %v4030
    %v4192 = vunpack.c.l.b16 %v4031
    %v4193 = vunpack.c.h.b16 %v4031
    %v4194 = vunpack.c.l.b16 %v4032
    %v4195 = vunpack.c.h.b16 %v4032
    %v4196 = vunpack.c.l.b16 %v4033
    %v4197 = vunpack.c.h.b16 %v4033
    %v4198 = vunpack.c.l.b16 %v4034
    %v4199 = vunpack.c.h.b16 %v4034
    %v4200 = vunpack.c.l.b16 %v4035
    %v4201 = vunpack.c.h.b16 %v4035
    %v4202 = vunpack.c.l.b16 %v4036
    %v4203 = vunpack.c.h.b16 %v4036
    %v4204 = vunpack.c.l.b16 %v4037
    %v4205 = vunpack.c.h.b16 %v4037
    %v4206 = vunpack.c.l.b16 %v4038
    %v4207 = vunpack.c.h.b16 %v4038
    %v4208 = vunpack.c.l.b16 %v4039
    %v4209 = vunpack.c.h.b16 %v4039
    %v4210 = vunpack.c.l.b16 %v4040
    %v4211 = vunpack.c.h.b16 %v4040
    %v4212 = vunpack.c.l.b16 %v4041
    %v4213 = vunpack.c.h.b16 %v4041
    %v4214 = vunpack.c.l.b16 %v4042
    %v4215 = vunpack.c.h.b16 %v4042
    %v4216 = vunpack.c.l.b16 %v4043
    %v4217 = vunpack.c.h.b16 %v4043
    %v4218 = vunpack.c.l.b16 %v4044
    %v4219 = vunpack.c.h.b16 %v4044
    %v4220 = vunpack.c.l.b16 %v4045
    %v4221 = vunpack.c.h.b16 %v4045
    %v4222 = vunpack.c.l.b16 %v4046
    %v4223 = vunpack.c.h.b16 %v4046
    %v4224 = vunpack.c.l.b16 %v4047
    %v4225 = vunpack.c.h.b16 %v4047
    %v4226 = vunpack.c.l.b16 %v4048
    %v4227 = vunpack.c.h.b16 %v4048
    %v4228 = vunpack.c.l.b16 %v4049
    %v4229 = vunpack.c.h.b16 %v4049
    %v4230 = vunpack.c.l.b16 %v4050
    %v4231 = vunpack.c.h.b16 %v4050
    %v4232 = vunpack.c.l.b16 %v4051
    %v4233 = vunpack.c.h.b16 %v4051
    %v4234 = vunpack.c.l.b16 %v4052
    %v4235 = vunpack.c.h.b16 %v4052
    %v4236 = vunpack.c.l.b16 %v4053
    %v4237 = vunpack.c.h.b16 %v4053
    %v4238 = vunpack.c.l.b16 %v4054
    %v4239 = vunpack.c.h.b16 %v4054
    %v4240 = vunpack.c.l.b16 %v4055
    %v4241 = vunpack.c.h.b16 %v4055
    %v4242 = vunpack.c.l.b16 %v4056
    %v4243 = vunpack.c.h.b16 %v4056
    %v4244 = vunpack.c.l.b16 %v4057
    %v4245 = vunpack.c.h.b16 %v4057
    %v4246 = vunpack.c.l.b16 %v4058
    %v4247 = vunpack.c.h.b16 %v4058
    %v4248 = vunpack.c.l.b16 %v4059
    %v4249 = vunpack.c.h.b16 %v4059
    %v4250 = vunpack.c.l.b16 %v4060
    %v4251 = vunpack.c.h.b16 %v4060
    %v4252 = vunpack.c.l.b16 %v4061
    %v4253 = vunpack.c.h.b16 %v4061
    %v4254 = vunpack.c.l.b16 %v4062
    %v4255 = vunpack.c.h.b16 %v4062
    %v4256 = vpack.c.b16 %v4132, %v4128
    %v4257 = vpack.c.b16 %v4133, %v4129
    %v4258 = vpack.c.b16 %v4134, %v4130
    %v4259 = vpack.c.b16 %v4135, %v4131
    %v4260 = vpack.c.b16 %v4140, %v4136
    %v4261 = vpack.c.b16 %v4141, %v4137
    %v4262 = vpack.c.b16 %v4142, %v4138
    %v4263 = vpack.c.b16 %v4143, %v4139
    %v4264 = vpack.c.b16 %v4148, %v4144
    %v4265 = vpack.c.b16 %v4149, %v4145
    %v4266 = vpack.c.b16 %v4150, %v4146
    %v4267 = vpack.c.b16 %v4151, %v4147
    %v4268 = vpack.c.b16 %v4156, %v4152
    %v4269 = vpack.c.b16 %v4157, %v4153
    %v4270 = vpack.c.b16 %v4158, %v4154
    %v4271 = vpack.c.b16 %v4159, %v4155
    %v4272 = vpack.c.b16 %v4164, %v4160
    %v4273 = vpack.c.b16 %v4165, %v4161
    %v4274 = vpack.c.b16 %v4166, %v4162
    %v4275 = vpack.c.b16 %v4167, %v4163
    %v4276 = vpack.c.b16 %v4172, %v4168
    %v4277 = vpack.c.b16 %v4173, %v4169
    %v4278 = vpack.c.b16 %v4174, %v4170
    %v4279 = vpack.c.b16 %v4175, %v4171
    %v4280 = vpack.c.b16 %v4180, %v4176
    %v4281 = vpack.c.b16 %v4181, %v4177
    %v4282 = vpack.c.b16 %v4182, %v4178
    %v4283 = vpack.c.b16 %v4183, %v4179
    %v4284 = vpack.c.b16 %v4188, %v4184
    %v4285 = vpack.c.b16 %v4189, %v4185
    %v4286 = vpack.c.b16 %v4190, %v4186
    %v4287 = vpack.c.b16 %v4191, %v4187
    %v4288 = vpack.c.b16 %v4196, %v4192
    %v4289 = vpack.c.b16 %v4197, %v4193
    %v4290 = vpack.c.b16 %v4198, %v4194
    %v4291 = vpack.c.b16 %v4199, %v4195
    %v4292 = vpack.c.b16 %v4204, %v4200
    %v4293 = vpack.c.b16 %v4205, %v4201
    %v4294 = vpack.c.b16 %v4206, %v4202
    %v4295 = vpack.c.b16 %v4207, %v4203
    %v4296 = vpack.c.b16 %v4212, %v4208
    %v4297 = vpack.c.b16 %v4213, %v4209
    %v4298 = vpack.c.b16 %v4214, %v4210
    %v4299 = vpack.c.b16 %v4215, %v4211
    %v4300 = vpack.c.b16 %v4220, %v4216
    %v4301 = vpack.c.b16 %v4221, %v4217
    %v4302 = vpack.c.b16 %v4222, %v4218
    %v4303 = vpack.c.b16 %v4223, %v4219
    %v4304 = vpack.c.b16 %v4228, %v4224
    %v4305 = vpack.c.b16 %v4229, %v4225
    %v4306 = vpack.c.b16 %v4230, %v4226
    %v4307 = vpack.c.b16 %v4231, %v4227
    %v4308 = vpack.c.b16 %v4236, %v4232
    %v4309 = vpack.c.b16 %v4237, %v4233
    %v4310 = vpack.c.b16 %v4238, %v4234
    %v4311 = vpack.c.b16 %v4239, %v4235
    %v4312 = vpack.c.b16 %v4244, %v4240
    %v4313 = vpack.c.b16 %v4245, %v4241
    %v4314 = vpack.c.b16 %v4246, %v4242
    %v4315 = vpack.c.b16 %v4247, %v4243
    %v4316 = vpack.c.b16 %v4252, %v4248
    %v4317 = vpack.c.b16 %v4253, %v4249
    %v4318 = vpack.c.b16 %v4254, %v4250
    %v4319 = vpack.c.b16 %v4255, %v4251
    %v4385 = vperm.slane %v4063, 0
    %v4386 = vperm.slane %v4063, 1
    %v4387 = vperm.slane %v4063, 2
    %v4388 = vperm.slane %v4063, 3
    %4393 = vmatpush.bf16.msra.mxu0 %v4284
    %4394 = vmatpush.bf16.msra.mxu0 %v4280
    %4395 = vmatpush.bf16.msra.mxu0 %v4276
    %4396 = vmatpush.bf16.msra.mxu0 %v4272
    %4397 = vmatpush.bf16.msra.mxu0 %v4268
    %4398 = vmatpush.bf16.msra.mxu0 %v4264
    %4399 = vmatpush.bf16.msra.mxu0 %v4260
    %4400 = vmatpush.bf16.msra.mxu0 %v4256
    %4401 = vmatmul.bf16.gmra.mxu0 %v3997
    %v4402 = vpop.f32.mrf.mxu0
    %v4403 = vadd.f32 %v4385, %v4402
    %v4404 = vpop.f32.mrf.mxu0
    %4405 = vdwg.mxu0
    %4406 = vmatpush.bf16.msra.mxu0 %v4316
    %4407 = vmatpush.bf16.msra.mxu0 %v4312
    %4408 = vmatpush.bf16.msra.mxu0 %v4308
    %4409 = vmatpush.bf16.msra.mxu0 %v4304
    %4410 = vmatpush.bf16.msra.mxu0 %v4300
    %4411 = vmatpush.bf16.msra.mxu0 %v4296
    %4412 = vmatpush.bf16.msra.mxu0 %v4292
    %4413 = vmatpush.bf16.msra.mxu0 %v4288
    %4414 = vmatmul.bf16.gmra.mxu0 %v3998
    %v4415 = vpop.f32.mrf.mxu0
    %v4416 = vadd.f32 %v4403, %v4415
    %v4417 = vpop.f32.mrf.mxu0
    %4418 = vdwg.mxu0
    %4419 = vmatpush.bf16.msra.mxu0 %v4285
    %4420 = vmatpush.bf16.msra.mxu0 %v4281
    %4421 = vmatpush.bf16.msra.mxu0 %v4277
    %4422 = vmatpush.bf16.msra.mxu0 %v4273
    %4423 = vmatpush.bf16.msra.mxu0 %v4269
    %4424 = vmatpush.bf16.msra.mxu0 %v4265
    %4425 = vmatpush.bf16.msra.mxu0 %v4261
    %4426 = vmatpush.bf16.msra.mxu0 %v4257
    %4427 = vmatmul.bf16.gmra.mxu0 %v3997
    %v4428 = vpop.f32.mrf.mxu0
    %v4429 = vadd.f32 %v4386, %v4428
    %v4430 = vpop.f32.mrf.mxu0
    %4431 = vdwg.mxu0
    %4432 = vmatpush.bf16.msra.mxu0 %v4317
    %4433 = vmatpush.bf16.msra.mxu0 %v4313
    %4434 = vmatpush.bf16.msra.mxu0 %v4309
    %4435 = vmatpush.bf16.msra.mxu0 %v4305
    %4436 = vmatpush.bf16.msra.mxu0 %v4301
    %4437 = vmatpush.bf16.msra.mxu0 %v4297
    %4438 = vmatpush.bf16.msra.mxu0 %v4293
    %4439 = vmatpush.bf16.msra.mxu0 %v4289
    %4440 = vmatmul.bf16.gmra.mxu0 %v3998
    %v4441 = vpop.f32.mrf.mxu0
    %v4442 = vadd.f32 %v4429, %v4441
    %v4443 = vpop.f32.mrf.mxu0
    %4444 = vdwg.mxu0
    %4445 = vmatpush.bf16.msra.mxu0 %v4286
    %4446 = vmatpush.bf16.msra.mxu0 %v4282
    %4447 = vmatpush.bf16.msra.mxu0 %v4278
    %4448 = vmatpush.bf16.msra.mxu0 %v4274
    %4449 = vmatpush.bf16.msra.mxu0 %v4270
    %4450 = vmatpush.bf16.msra.mxu0 %v4266
    %4451 = vmatpush.bf16.msra.mxu0 %v4262
    %4452 = vmatpush.bf16.msra.mxu0 %v4258
    %4453 = vmatmul.bf16.gmra.mxu0 %v3997
    %v4454 = vpop.f32.mrf.mxu0
    %v4455 = vadd.f32 %v4387, %v4454
    %v4456 = vpop.f32.mrf.mxu0
    %4457 = vdwg.mxu0
    %4458 = vmatpush.bf16.msra.mxu0 %v4318
    %4459 = vmatpush.bf16.msra.mxu0 %v4314
    %4460 = vmatpush.bf16.msra.mxu0 %v4310
    %4461 = vmatpush.bf16.msra.mxu0 %v4306
    %4462 = vmatpush.bf16.msra.mxu0 %v4302
    %4463 = vmatpush.bf16.msra.mxu0 %v4298
    %4464 = vmatpush.bf16.msra.mxu0 %v4294
    %4465 = vmatpush.bf16.msra.mxu0 %v4290
    %4466 = vmatmul.bf16.gmra.mxu0 %v3998
    %v4467 = vpop.f32.mrf.mxu0
    %v4468 = vadd.f32 %v4455, %v4467
    %v4469 = vpop.f32.mrf.mxu0
    %4470 = vdwg.mxu0
    %4471 = vmatpush.bf16.msra.mxu0 %v4287
    %4472 = vmatpush.bf16.msra.mxu0 %v4283
    %4473 = vmatpush.bf16.msra.mxu0 %v4279
    %4474 = vmatpush.bf16.msra.mxu0 %v4275
    %4475 = vmatpush.bf16.msra.mxu0 %v4271
    %4476 = vmatpush.bf16.msra.mxu0 %v4267
    %4477 = vmatpush.bf16.msra.mxu0 %v4263
    %4478 = vmatpush.bf16.msra.mxu0 %v4259
    %4479 = vmatmul.bf16.gmra.mxu0 %v3997
    %v4480 = vpop.f32.mrf.mxu0
    %v4481 = vadd.f32 %v4388, %v4480
    %v4482 = vpop.f32.mrf.mxu0
    %4483 = vdwg.mxu0
    %4484 = vmatpush.bf16.msra.mxu0 %v4319
    %4485 = vmatpush.bf16.msra.mxu0 %v4315
    %4486 = vmatpush.bf16.msra.mxu0 %v4311
    %4487 = vmatpush.bf16.msra.mxu0 %v4307
    %4488 = vmatpush.bf16.msra.mxu0 %v4303
    %4489 = vmatpush.bf16.msra.mxu0 %v4299
    %4490 = vmatpush.bf16.msra.mxu0 %v4295
    %4491 = vmatpush.bf16.msra.mxu0 %v4291
    %4492 = vmatmul.bf16.gmra.mxu0 %v3998
    %v4493 = vpop.f32.mrf.mxu0
    %v4494 = vadd.f32 %v4481, %v4493
    %v4495 = vpop.f32.mrf.mxu0
    %4496 = vdwg.mxu0
    %v4497 = vxor.u32 %v4416, 2147483648
    %v4498 = vmul.f32 %v4497, 1.442695
    %v4499 = vpow.pop %v4498
    %v4500 = vadd.f32 %v4499, 1.0
    %v4501 = vrcp.pop %v4500
    %v4502 = vmul.f32 %v4500, %v4501
    %v4503 = vsub.f32 1.0, %v4502
    %v4504 = vmul.f32 %v4501, %v4503
    %v4505 = vadd.f32 %v4501, %v4504
    %vm4506 = vweird.f32 %v4500
    %vm4507 = vweird.f32 %v4501
    %vm4508 = vmor %vm4506, %vm4507
    %v4509 = vsel %vm4508, %v4501, %v4505
    %v4510 = vand.u32 2147483647, %v4500
    %vm4511 = vcmp.eq.f32.partialorder %v4510, 8.507059e+37
    %v4512 = vand.u32 %v4500, 2147483648
    %v4513 = vor.u32 1.1754944e-38, %v4512
    %v4514 = vsel %vm4511, %v4513, %v4509
    %v4515 = vmul.f32 1.0, %v4514
    %v4516 = vxor.u32 %v4442, 2147483648
    %v4517 = vmul.f32 %v4516, 1.442695
    %v4518 = vpow.pop %v4517
    %v4519 = vadd.f32 %v4518, 1.0
    %v4520 = vrcp.pop %v4519
    %v4521 = vmul.f32 %v4519, %v4520
    %v4522 = vsub.f32 1.0, %v4521
    %v4523 = vmul.f32 %v4520, %v4522
    %v4524 = vadd.f32 %v4520, %v4523
    %vm4525 = vweird.f32 %v4519
    %vm4526 = vweird.f32 %v4520
    %vm4527 = vmor %vm4525, %vm4526
    %v4528 = vsel %vm4527, %v4520, %v4524
    %v4529 = vand.u32 2147483647, %v4519
    %vm4530 = vcmp.eq.f32.partialorder %v4529, 8.507059e+37
    %v4531 = vand.u32 %v4519, 2147483648
    %v4532 = vor.u32 1.1754944e-38, %v4531
    %v4533 = vsel %vm4530, %v4532, %v4528
    %v4534 = vmul.f32 1.0, %v4533
    %v4535 = vtanh.pop %v4468
    %v4536 = vxor.u32 %v4494, 2147483648
    %v4537 = vmul.f32 %v4536, 1.442695
    %v4538 = vpow.pop %v4537
    %v4539 = vadd.f32 %v4538, 1.0
    %v4540 = vrcp.pop %v4539
    %v4541 = vmul.f32 %v4539, %v4540
    %v4542 = vsub.f32 1.0, %v4541
    %v4543 = vmul.f32 %v4540, %v4542
    %v4544 = vadd.f32 %v4540, %v4543
    %vm4545 = vweird.f32 %v4539
    %vm4546 = vweird.f32 %v4540
    %vm4547 = vmor %vm4545, %vm4546
    %v4548 = vsel %vm4547, %v4540, %v4544
    %v4549 = vand.u32 2147483647, %v4539
    %vm4550 = vcmp.eq.f32.partialorder %v4549, 8.507059e+37
    %v4551 = vand.u32 %v4539, 2147483648
    %v4552 = vor.u32 1.1754944e-38, %v4551
    %v4553 = vsel %vm4550, %v4552, %v4548
    %v4554 = vmul.f32 1.0, %v4553
    %v4555 = vmul.f32 %v4534, %v3661
    %v4556 = vmul.f32 %v4515, %v4535
    %v4557 = vadd.f32 %v4555, %v4556
    %v4558 = vtanh.pop %v4557
    %v4559 = vmul.f32 %v4554, %v4558
    %4560 = vst [vmem:[#allocation2 + $0x4] sm:$0x1] %v4559
    %s4561 = sld [smem:[#allocation3 + $0x5]]
    %v4562 = vld [vmem:[#allocation6] ss:$8 sm:$0xf]
    %v4563 = vstv %s4561
    %v4564 = vmul.f32 %v4563, %v4562
    %v4565 = vld [vmem:[#allocation7] sm:$0xff]
    %v4566 = vld [vmem:[#allocation7 + $0x8] sm:$0xff]
    %v4567 = vld [vmem:[#allocation7 + $0x10] sm:$0xff]
    %v4568 = vld [vmem:[#allocation7 + $0x18] sm:$0xff]
    %v4569 = vld [vmem:[#allocation7 + $0x20] sm:$0xff]
    %v4570 = vld [vmem:[#allocation7 + $0x28] sm:$0xff]
    %v4571 = vld [vmem:[#allocation7 + $0x30] sm:$0xff]
    %v4572 = vld [vmem:[#allocation7 + $0x38] sm:$0xff]
    %v4573 = vld [vmem:[#allocation7 + $0x40] sm:$0xff]
    %v4574 = vld [vmem:[#allocation7 + $0x48] sm:$0xff]
    %v4575 = vld [vmem:[#allocation7 + $0x50] sm:$0xff]
    %v4576 = vld [vmem:[#allocation7 + $0x58] sm:$0xff]
    %v4577 = vld [vmem:[#allocation7 + $0x60] sm:$0xff]
    %v4578 = vld [vmem:[#allocation7 + $0x68] sm:$0xff]
    %v4579 = vld [vmem:[#allocation7 + $0x70] sm:$0xff]
    %v4580 = vld [vmem:[#allocation7 + $0x78] sm:$0xff]
    %v4581 = vld [vmem:[#allocation7 + $0x80] sm:$0xff]
    %v4582 = vld [vmem:[#allocation7 + $0x88] sm:$0xff]
    %v4583 = vld [vmem:[#allocation7 + $0x90] sm:$0xff]
    %v4584 = vld [vmem:[#allocation7 + $0x98] sm:$0xff]
    %v4585 = vld [vmem:[#allocation7 + $0xa0] sm:$0xff]
    %v4586 = vld [vmem:[#allocation7 + $0xa8] sm:$0xff]
    %v4587 = vld [vmem:[#allocation7 + $0xb0] sm:$0xff]
    %v4588 = vld [vmem:[#allocation7 + $0xb8] sm:$0xff]
    %v4589 = vld [vmem:[#allocation7 + $0xc0] sm:$0xff]
    %v4590 = vld [vmem:[#allocation7 + $0xc8] sm:$0xff]
    %v4591 = vld [vmem:[#allocation7 + $0xd0] sm:$0xff]
    %v4592 = vld [vmem:[#allocation7 + $0xd8] sm:$0xff]
    %v4593 = vld [vmem:[#allocation7 + $0xe0] sm:$0xff]
    %v4594 = vld [vmem:[#allocation7 + $0xe8] sm:$0xff]
    %v4595 = vld [vmem:[#allocation7 + $0xf0] sm:$0xff]
    %v4596 = vld [vmem:[#allocation7 + $0xf8] sm:$0xff]
    %v4629 = vunpack.c.l.b16 %v4565
    %v4630 = vunpack.c.h.b16 %v4565
    %v4631 = vunpack.c.l.b16 %v4566
    %v4632 = vunpack.c.h.b16 %v4566
    %v4633 = vunpack.c.l.b16 %v4567
    %v4634 = vunpack.c.h.b16 %v4567
    %v4635 = vunpack.c.l.b16 %v4568
    %v4636 = vunpack.c.h.b16 %v4568
    %v4637 = vunpack.c.l.b16 %v4569
    %v4638 = vunpack.c.h.b16 %v4569
    %v4639 = vunpack.c.l.b16 %v4570
    %v4640 = vunpack.c.h.b16 %v4570
    %v4641 = vunpack.c.l.b16 %v4571
    %v4642 = vunpack.c.h.b16 %v4571
    %v4643 = vunpack.c.l.b16 %v4572
    %v4644 = vunpack.c.h.b16 %v4572
    %v4645 = vunpack.c.l.b16 %v4573
    %v4646 = vunpack.c.h.b16 %v4573
    %v4647 = vunpack.c.l.b16 %v4574
    %v4648 = vunpack.c.h.b16 %v4574
    %v4649 = vunpack.c.l.b16 %v4575
    %v4650 = vunpack.c.h.b16 %v4575
    %v4651 = vunpack.c.l.b16 %v4576
    %v4652 = vunpack.c.h.b16 %v4576
    %v4653 = vunpack.c.l.b16 %v4577
    %v4654 = vunpack.c.h.b16 %v4577
    %v4655 = vunpack.c.l.b16 %v4578
    %v4656 = vunpack.c.h.b16 %v4578
    %v4657 = vunpack.c.l.b16 %v4579
    %v4658 = vunpack.c.h.b16 %v4579
    %v4659 = vunpack.c.l.b16 %v4580
    %v4660 = vunpack.c.h.b16 %v4580
    %v4661 = vunpack.c.l.b16 %v4581
    %v4662 = vunpack.c.h.b16 %v4581
    %v4663 = vunpack.c.l.b16 %v4582
    %v4664 = vunpack.c.h.b16 %v4582
    %v4665 = vunpack.c.l.b16 %v4583
    %v4666 = vunpack.c.h.b16 %v4583
    %v4667 = vunpack.c.l.b16 %v4584
    %v4668 = vunpack.c.h.b16 %v4584
    %v4669 = vunpack.c.l.b16 %v4585
    %v4670 = vunpack.c.h.b16 %v4585
    %v4671 = vunpack.c.l.b16 %v4586
    %v4672 = vunpack.c.h.b16 %v4586
    %v4673 = vunpack.c.l.b16 %v4587
    %v4674 = vunpack.c.h.b16 %v4587
    %v4675 = vunpack.c.l.b16 %v4588
    %v4676 = vunpack.c.h.b16 %v4588
    %v4677 = vunpack.c.l.b16 %v4589
    %v4678 = vunpack.c.h.b16 %v4589
    %v4679 = vunpack.c.l.b16 %v4590
    %v4680 = vunpack.c.h.b16 %v4590
    %v4681 = vunpack.c.l.b16 %v4591
    %v4682 = vunpack.c.h.b16 %v4591
    %v4683 = vunpack.c.l.b16 %v4592
    %v4684 = vunpack.c.h.b16 %v4592
    %v4685 = vunpack.c.l.b16 %v4593
    %v4686 = vunpack.c.h.b16 %v4593
    %v4687 = vunpack.c.l.b16 %v4594
    %v4688 = vunpack.c.h.b16 %v4594
    %v4689 = vunpack.c.l.b16 %v4595
    %v4690 = vunpack.c.h.b16 %v4595
    %v4691 = vunpack.c.l.b16 %v4596
    %v4692 = vunpack.c.h.b16 %v4596
    %v4693 = vpack.c.b16 %v4633, %v4629
    %v4694 = vpack.c.b16 %v4634, %v4630
    %v4695 = vpack.c.b16 %v4635, %v4631
    %v4696 = vpack.c.b16 %v4636, %v4632
    %v4697 = vpack.c.b16 %v4641, %v4637
    %v4698 = vpack.c.b16 %v4642, %v4638
    %v4699 = vpack.c.b16 %v4643, %v4639
    %v4700 = vpack.c.b16 %v4644, %v4640
    %v4701 = vpack.c.b16 %v4649, %v4645
    %v4702 = vpack.c.b16 %v4650, %v4646
    %v4703 = vpack.c.b16 %v4651, %v4647
    %v4704 = vpack.c.b16 %v4652, %v4648
    %v4705 = vpack.c.b16 %v4657, %v4653
    %v4706 = vpack.c.b16 %v4658, %v4654
    %v4707 = vpack.c.b16 %v4659, %v4655
    %v4708 = vpack.c.b16 %v4660, %v4656
    %v4709 = vpack.c.b16 %v4665, %v4661
    %v4710 = vpack.c.b16 %v4666, %v4662
    %v4711 = vpack.c.b16 %v4667, %v4663
    %v4712 = vpack.c.b16 %v4668, %v4664
    %v4713 = vpack.c.b16 %v4673, %v4669
    %v4714 = vpack.c.b16 %v4674, %v4670
    %v4715 = vpack.c.b16 %v4675, %v4671
    %v4716 = vpack.c.b16 %v4676, %v4672
    %v4717 = vpack.c.b16 %v4681, %v4677
    %v4718 = vpack.c.b16 %v4682, %v4678
    %v4719 = vpack.c.b16 %v4683, %v4679
    %v4720 = vpack.c.b16 %v4684, %v4680
    %v4721 = vpack.c.b16 %v4689, %v4685
    %v4722 = vpack.c.b16 %v4690, %v4686
    %v4723 = vpack.c.b16 %v4691, %v4687
    %v4724 = vpack.c.b16 %v4692, %v4688
    %4757 = vmatpush.bf16.msra.mxu0 %v4721
    %4758 = vmatpush.bf16.msra.mxu0 %v4717
    %4759 = vmatpush.bf16.msra.mxu0 %v4713
    %4760 = vmatpush.bf16.msra.mxu0 %v4709
    %4761 = vmatpush.bf16.msra.mxu0 %v4705
    %4762 = vmatpush.bf16.msra.mxu0 %v4701
    %4763 = vmatpush.bf16.msra.mxu0 %v4697
    %4764 = vmatpush.bf16.msra.mxu0 %v4693
    %4765 = vmatmul.bf16.gmra.mxu0 %v3997
    %v4766 = vpop.f32.mrf.mxu0
    %v4767 = vadd.f32 0.0, %v4766
    %v4768 = vpop.f32.mrf.mxu0
    %4769 = vdwg.mxu0
    %4770 = vmatpush.bf16.msra.mxu0 %v4722
    %4771 = vmatpush.bf16.msra.mxu0 %v4718
    %4772 = vmatpush.bf16.msra.mxu0 %v4714
    %4773 = vmatpush.bf16.msra.mxu0 %v4710
    %4774 = vmatpush.bf16.msra.mxu0 %v4706
    %4775 = vmatpush.bf16.msra.mxu0 %v4702
    %4776 = vmatpush.bf16.msra.mxu0 %v4698
    %4777 = vmatpush.bf16.msra.mxu0 %v4694
    %4778 = vmatmul.bf16.gmra.mxu0 %v3997
    %v4779 = vpop.f32.mrf.mxu0
    %v4780 = vadd.f32 0.0, %v4779
    %v4781 = vpop.f32.mrf.mxu0
    %4782 = vdwg.mxu0
    %4783 = vmatpush.bf16.msra.mxu0 %v4723
    %4784 = vmatpush.bf16.msra.mxu0 %v4719
    %4785 = vmatpush.bf16.msra.mxu0 %v4715
    %4786 = vmatpush.bf16.msra.mxu0 %v4711
    %4787 = vmatpush.bf16.msra.mxu0 %v4707
    %4788 = vmatpush.bf16.msra.mxu0 %v4703
    %4789 = vmatpush.bf16.msra.mxu0 %v4699
    %4790 = vmatpush.bf16.msra.mxu0 %v4695
    %4791 = vmatmul.bf16.gmra.mxu0 %v3997
    %v4792 = vpop.f32.mrf.mxu0
    %v4793 = vadd.f32 0.0, %v4792
    %v4794 = vpop.f32.mrf.mxu0
    %4795 = vdwg.mxu0
    %4796 = vmatpush.bf16.msra.mxu0 %v4724
    %4797 = vmatpush.bf16.msra.mxu0 %v4720
    %4798 = vmatpush.bf16.msra.mxu0 %v4716
    %4799 = vmatpush.bf16.msra.mxu0 %v4712
    %4800 = vmatpush.bf16.msra.mxu0 %v4708
    %4801 = vmatpush.bf16.msra.mxu0 %v4704
    %4802 = vmatpush.bf16.msra.mxu0 %v4700
    %4803 = vmatpush.bf16.msra.mxu0 %v4696
    %4804 = vmatmul.bf16.gmra.mxu0 %v3997
    %v4805 = vpop.f32.mrf.mxu0
    %v4806 = vadd.f32 0.0, %v4805
    %v4807 = vpop.f32.mrf.mxu0
    %4808 = vdwg.mxu0
    %v4813 = vrot.slane %v4780, 7
    %v4814 = vrot.slane %v4793, 6
    %v4815 = vrot.slane %v4806, 5
    %v4816 = vsel %vm331, %v4767, %v4813
    %v4817 = vsel %vm333, %v4814, %v4815
    %v4818 = vsel %vm335, %v4816, %v4817
    %v4820 = vadd.f32 %v4564, %v4818
    %v4821 = vld [vmem:[%s339] ss:$8 sm:$0xf]
    %v4822 = vadd.f32 %v4820, %v4821
    %v4823 = vxor.u32 %v4822, 2147483648
    %v4824 = vmul.f32 %v4823, 1.442695
    %v4825 = vpow.pop %v4824
    %v4826 = vadd.f32 %v4825, 1.0
    %v4827 = vrcp.pop %v4826
    %v4828 = vmul.f32 %v4826, %v4827
    %v4829 = vsub.f32 1.0, %v4828
    %v4830 = vmul.f32 %v4827, %v4829
    %v4831 = vadd.f32 %v4827, %v4830
    %vm4832 = vweird.f32 %v4826
    %vm4833 = vweird.f32 %v4827
    %vm4834 = vmor %vm4832, %vm4833
    %v4835 = vsel %vm4834, %v4827, %v4831
    %v4836 = vand.u32 2147483647, %v4826
    %vm4837 = vcmp.eq.f32.partialorder %v4836, 8.507059e+37
    %v4838 = vand.u32 %v4826, 2147483648
    %v4839 = vor.u32 1.1754944e-38, %v4838
    %v4840 = vsel %vm4837, %v4839, %v4835
    %v4841 = vmul.f32 1.0, %v4840
    %v4843 = vrot.slane %v4822, 1
    %v4845 = vxor.u32 %v4843, 2147483648
    %v4846 = vmul.f32 %v4845, 1.442695
    %v4847 = vpow.pop %v4846
    %v4848 = vadd.f32 %v4847, 1.0
    %v4849 = vrcp.pop %v4848
    %v4850 = vmul.f32 %v4848, %v4849
    %v4851 = vsub.f32 1.0, %v4850
    %v4852 = vmul.f32 %v4849, %v4851
    %v4853 = vadd.f32 %v4849, %v4852
    %vm4854 = vweird.f32 %v4848
    %vm4855 = vweird.f32 %v4849
    %vm4856 = vmor %vm4854, %vm4855
    %v4857 = vsel %vm4856, %v4849, %v4853
    %v4858 = vand.u32 2147483647, %v4848
    %vm4859 = vcmp.eq.f32.partialorder %v4858, 8.507059e+37
    %v4860 = vand.u32 %v4848, 2147483648
    %v4861 = vor.u32 1.1754944e-38, %v4860
    %v4862 = vsel %vm4859, %v4861, %v4857
    %v4863 = vmul.f32 1.0, %v4862
    %v4864 = vrot.slane %v4822, 2
    %v4866 = vtanh.pop %v4864
    %v4867 = vrot.slane %v4822, 3
    %v4869 = vxor.u32 %v4867, 2147483648
    %v4870 = vmul.f32 %v4869, 1.442695
    %v4871 = vpow.pop %v4870
    %v4872 = vadd.f32 %v4871, 1.0
    %v4873 = vrcp.pop %v4872
    %v4874 = vmul.f32 %v4872, %v4873
    %v4875 = vsub.f32 1.0, %v4874
    %v4876 = vmul.f32 %v4873, %v4875
    %v4877 = vadd.f32 %v4873, %v4876
    %vm4878 = vweird.f32 %v4872
    %vm4879 = vweird.f32 %v4873
    %vm4880 = vmor %vm4878, %vm4879
    %v4881 = vsel %vm4880, %v4873, %v4877
    %v4882 = vand.u32 2147483647, %v4872
    %vm4883 = vcmp.eq.f32.partialorder %v4882, 8.507059e+37
    %v4884 = vand.u32 %v4872, 2147483648
    %v4885 = vor.u32 1.1754944e-38, %v4884
    %v4886 = vsel %vm4883, %v4885, %v4881
    %v4887 = vmul.f32 1.0, %v4886
    %v4888 = vmul.f32 %v4863, %v3994
    %v4889 = vmul.f32 %v4841, %v4866
    %v4890 = vadd.f32 %v4888, %v4889
    %v4891 = vtanh.pop %v4890
    %v4892 = vmul.f32 %v4887, %v4891
    %v4893 = vpack.c.bf16 %v4892, %v4892
    %v4894 = vpack.c.bf16 %v4559, %v4559
    %v4895 = vld [vmem:[#allocation9] sm:$0xff]
    %v4896 = vld [vmem:[#allocation9 + $0x8] sm:$0xff]
    %v4897 = vld [vmem:[#allocation9 + $0x10] sm:$0xff]
    %v4898 = vld [vmem:[#allocation9 + $0x18] sm:$0xff]
    %v4899 = vld [vmem:[#allocation9 + $0x20] sm:$0xff]
    %v4900 = vld [vmem:[#allocation9 + $0x28] sm:$0xff]
    %v4901 = vld [vmem:[#allocation9 + $0x30] sm:$0xff]
    %v4902 = vld [vmem:[#allocation9 + $0x38] sm:$0xff]
    %v4903 = vld [vmem:[#allocation9 + $0x40] sm:$0xff]
    %v4904 = vld [vmem:[#allocation9 + $0x48] sm:$0xff]
    %v4905 = vld [vmem:[#allocation9 + $0x50] sm:$0xff]
    %v4906 = vld [vmem:[#allocation9 + $0x58] sm:$0xff]
    %v4907 = vld [vmem:[#allocation9 + $0x60] sm:$0xff]
    %v4908 = vld [vmem:[#allocation9 + $0x68] sm:$0xff]
    %v4909 = vld [vmem:[#allocation9 + $0x70] sm:$0xff]
    %v4910 = vld [vmem:[#allocation9 + $0x78] sm:$0xff]
    %v4911 = vld [vmem:[#allocation9 + $0x80] sm:$0xff]
    %v4912 = vld [vmem:[#allocation9 + $0x88] sm:$0xff]
    %v4913 = vld [vmem:[#allocation9 + $0x90] sm:$0xff]
    %v4914 = vld [vmem:[#allocation9 + $0x98] sm:$0xff]
    %v4915 = vld [vmem:[#allocation9 + $0xa0] sm:$0xff]
    %v4916 = vld [vmem:[#allocation9 + $0xa8] sm:$0xff]
    %v4917 = vld [vmem:[#allocation9 + $0xb0] sm:$0xff]
    %v4918 = vld [vmem:[#allocation9 + $0xb8] sm:$0xff]
    %v4919 = vld [vmem:[#allocation9 + $0xc0] sm:$0xff]
    %v4920 = vld [vmem:[#allocation9 + $0xc8] sm:$0xff]
    %v4921 = vld [vmem:[#allocation9 + $0xd0] sm:$0xff]
    %v4922 = vld [vmem:[#allocation9 + $0xd8] sm:$0xff]
    %v4923 = vld [vmem:[#allocation9 + $0xe0] sm:$0xff]
    %v4924 = vld [vmem:[#allocation9 + $0xe8] sm:$0xff]
    %v4925 = vld [vmem:[#allocation9 + $0xf0] sm:$0xff]
    %v4926 = vld [vmem:[#allocation9 + $0xf8] sm:$0xff]
    %v4927 = vld [vmem:[#allocation9 + $0x100] sm:$0xff]
    %v4928 = vld [vmem:[#allocation9 + $0x108] sm:$0xff]
    %v4929 = vld [vmem:[#allocation9 + $0x110] sm:$0xff]
    %v4930 = vld [vmem:[#allocation9 + $0x118] sm:$0xff]
    %v4931 = vld [vmem:[#allocation9 + $0x120] sm:$0xff]
    %v4932 = vld [vmem:[#allocation9 + $0x128] sm:$0xff]
    %v4933 = vld [vmem:[#allocation9 + $0x130] sm:$0xff]
    %v4934 = vld [vmem:[#allocation9 + $0x138] sm:$0xff]
    %v4935 = vld [vmem:[#allocation9 + $0x140] sm:$0xff]
    %v4936 = vld [vmem:[#allocation9 + $0x148] sm:$0xff]
    %v4937 = vld [vmem:[#allocation9 + $0x150] sm:$0xff]
    %v4938 = vld [vmem:[#allocation9 + $0x158] sm:$0xff]
    %v4939 = vld [vmem:[#allocation9 + $0x160] sm:$0xff]
    %v4940 = vld [vmem:[#allocation9 + $0x168] sm:$0xff]
    %v4941 = vld [vmem:[#allocation9 + $0x170] sm:$0xff]
    %v4942 = vld [vmem:[#allocation9 + $0x178] sm:$0xff]
    %v4943 = vld [vmem:[#allocation9 + $0x180] sm:$0xff]
    %v4944 = vld [vmem:[#allocation9 + $0x188] sm:$0xff]
    %v4945 = vld [vmem:[#allocation9 + $0x190] sm:$0xff]
    %v4946 = vld [vmem:[#allocation9 + $0x198] sm:$0xff]
    %v4947 = vld [vmem:[#allocation9 + $0x1a0] sm:$0xff]
    %v4948 = vld [vmem:[#allocation9 + $0x1a8] sm:$0xff]
    %v4949 = vld [vmem:[#allocation9 + $0x1b0] sm:$0xff]
    %v4950 = vld [vmem:[#allocation9 + $0x1b8] sm:$0xff]
    %v4951 = vld [vmem:[#allocation9 + $0x1c0] sm:$0xff]
    %v4952 = vld [vmem:[#allocation9 + $0x1c8] sm:$0xff]
    %v4953 = vld [vmem:[#allocation9 + $0x1d0] sm:$0xff]
    %v4954 = vld [vmem:[#allocation9 + $0x1d8] sm:$0xff]
    %v4955 = vld [vmem:[#allocation9 + $0x1e0] sm:$0xff]
    %v4956 = vld [vmem:[#allocation9 + $0x1e8] sm:$0xff]
    %v4957 = vld [vmem:[#allocation9 + $0x1f0] sm:$0xff]
    %v4958 = vld [vmem:[#allocation9 + $0x1f8] sm:$0xff]
    %v4959 = vld [vmem:[%s478] ss:$8 sm:$0xf]
    %v5024 = vunpack.c.l.b16 %v4895
    %v5025 = vunpack.c.h.b16 %v4895
    %v5026 = vunpack.c.l.b16 %v4896
    %v5027 = vunpack.c.h.b16 %v4896
    %v5028 = vunpack.c.l.b16 %v4897
    %v5029 = vunpack.c.h.b16 %v4897
    %v5030 = vunpack.c.l.b16 %v4898
    %v5031 = vunpack.c.h.b16 %v4898
    %v5032 = vunpack.c.l.b16 %v4899
    %v5033 = vunpack.c.h.b16 %v4899
    %v5034 = vunpack.c.l.b16 %v4900
    %v5035 = vunpack.c.h.b16 %v4900
    %v5036 = vunpack.c.l.b16 %v4901
    %v5037 = vunpack.c.h.b16 %v4901
    %v5038 = vunpack.c.l.b16 %v4902
    %v5039 = vunpack.c.h.b16 %v4902
    %v5040 = vunpack.c.l.b16 %v4903
    %v5041 = vunpack.c.h.b16 %v4903
    %v5042 = vunpack.c.l.b16 %v4904
    %v5043 = vunpack.c.h.b16 %v4904
    %v5044 = vunpack.c.l.b16 %v4905
    %v5045 = vunpack.c.h.b16 %v4905
    %v5046 = vunpack.c.l.b16 %v4906
    %v5047 = vunpack.c.h.b16 %v4906
    %v5048 = vunpack.c.l.b16 %v4907
    %v5049 = vunpack.c.h.b16 %v4907
    %v5050 = vunpack.c.l.b16 %v4908
    %v5051 = vunpack.c.h.b16 %v4908
    %v5052 = vunpack.c.l.b16 %v4909
    %v5053 = vunpack.c.h.b16 %v4909
    %v5054 = vunpack.c.l.b16 %v4910
    %v5055 = vunpack.c.h.b16 %v4910
    %v5056 = vunpack.c.l.b16 %v4911
    %v5057 = vunpack.c.h.b16 %v4911
    %v5058 = vunpack.c.l.b16 %v4912
    %v5059 = vunpack.c.h.b16 %v4912
    %v5060 = vunpack.c.l.b16 %v4913
    %v5061 = vunpack.c.h.b16 %v4913
    %v5062 = vunpack.c.l.b16 %v4914
    %v5063 = vunpack.c.h.b16 %v4914
    %v5064 = vunpack.c.l.b16 %v4915
    %v5065 = vunpack.c.h.b16 %v4915
    %v5066 = vunpack.c.l.b16 %v4916
    %v5067 = vunpack.c.h.b16 %v4916
    %v5068 = vunpack.c.l.b16 %v4917
    %v5069 = vunpack.c.h.b16 %v4917
    %v5070 = vunpack.c.l.b16 %v4918
    %v5071 = vunpack.c.h.b16 %v4918
    %v5072 = vunpack.c.l.b16 %v4919
    %v5073 = vunpack.c.h.b16 %v4919
    %v5074 = vunpack.c.l.b16 %v4920
    %v5075 = vunpack.c.h.b16 %v4920
    %v5076 = vunpack.c.l.b16 %v4921
    %v5077 = vunpack.c.h.b16 %v4921
    %v5078 = vunpack.c.l.b16 %v4922
    %v5079 = vunpack.c.h.b16 %v4922
    %v5080 = vunpack.c.l.b16 %v4923
    %v5081 = vunpack.c.h.b16 %v4923
    %v5082 = vunpack.c.l.b16 %v4924
    %v5083 = vunpack.c.h.b16 %v4924
    %v5084 = vunpack.c.l.b16 %v4925
    %v5085 = vunpack.c.h.b16 %v4925
    %v5086 = vunpack.c.l.b16 %v4926
    %v5087 = vunpack.c.h.b16 %v4926
    %v5088 = vunpack.c.l.b16 %v4927
    %v5089 = vunpack.c.h.b16 %v4927
    %v5090 = vunpack.c.l.b16 %v4928
    %v5091 = vunpack.c.h.b16 %v4928
    %v5092 = vunpack.c.l.b16 %v4929
    %v5093 = vunpack.c.h.b16 %v4929
    %v5094 = vunpack.c.l.b16 %v4930
    %v5095 = vunpack.c.h.b16 %v4930
    %v5096 = vunpack.c.l.b16 %v4931
    %v5097 = vunpack.c.h.b16 %v4931
    %v5098 = vunpack.c.l.b16 %v4932
    %v5099 = vunpack.c.h.b16 %v4932
    %v5100 = vunpack.c.l.b16 %v4933
    %v5101 = vunpack.c.h.b16 %v4933
    %v5102 = vunpack.c.l.b16 %v4934
    %v5103 = vunpack.c.h.b16 %v4934
    %v5104 = vunpack.c.l.b16 %v4935
    %v5105 = vunpack.c.h.b16 %v4935
    %v5106 = vunpack.c.l.b16 %v4936
    %v5107 = vunpack.c.h.b16 %v4936
    %v5108 = vunpack.c.l.b16 %v4937
    %v5109 = vunpack.c.h.b16 %v4937
    %v5110 = vunpack.c.l.b16 %v4938
    %v5111 = vunpack.c.h.b16 %v4938
    %v5112 = vunpack.c.l.b16 %v4939
    %v5113 = vunpack.c.h.b16 %v4939
    %v5114 = vunpack.c.l.b16 %v4940
    %v5115 = vunpack.c.h.b16 %v4940
    %v5116 = vunpack.c.l.b16 %v4941
    %v5117 = vunpack.c.h.b16 %v4941
    %v5118 = vunpack.c.l.b16 %v4942
    %v5119 = vunpack.c.h.b16 %v4942
    %v5120 = vunpack.c.l.b16 %v4943
    %v5121 = vunpack.c.h.b16 %v4943
    %v5122 = vunpack.c.l.b16 %v4944
    %v5123 = vunpack.c.h.b16 %v4944
    %v5124 = vunpack.c.l.b16 %v4945
    %v5125 = vunpack.c.h.b16 %v4945
    %v5126 = vunpack.c.l.b16 %v4946
    %v5127 = vunpack.c.h.b16 %v4946
    %v5128 = vunpack.c.l.b16 %v4947
    %v5129 = vunpack.c.h.b16 %v4947
    %v5130 = vunpack.c.l.b16 %v4948
    %v5131 = vunpack.c.h.b16 %v4948
    %v5132 = vunpack.c.l.b16 %v4949
    %v5133 = vunpack.c.h.b16 %v4949
    %v5134 = vunpack.c.l.b16 %v4950
    %v5135 = vunpack.c.h.b16 %v4950
    %v5136 = vunpack.c.l.b16 %v4951
    %v5137 = vunpack.c.h.b16 %v4951
    %v5138 = vunpack.c.l.b16 %v4952
    %v5139 = vunpack.c.h.b16 %v4952
    %v5140 = vunpack.c.l.b16 %v4953
    %v5141 = vunpack.c.h.b16 %v4953
    %v5142 = vunpack.c.l.b16 %v4954
    %v5143 = vunpack.c.h.b16 %v4954
    %v5144 = vunpack.c.l.b16 %v4955
    %v5145 = vunpack.c.h.b16 %v4955
    %v5146 = vunpack.c.l.b16 %v4956
    %v5147 = vunpack.c.h.b16 %v4956
    %v5148 = vunpack.c.l.b16 %v4957
    %v5149 = vunpack.c.h.b16 %v4957
    %v5150 = vunpack.c.l.b16 %v4958
    %v5151 = vunpack.c.h.b16 %v4958
    %v5152 = vpack.c.b16 %v5028, %v5024
    %v5153 = vpack.c.b16 %v5029, %v5025
    %v5154 = vpack.c.b16 %v5030, %v5026
    %v5155 = vpack.c.b16 %v5031, %v5027
    %v5156 = vpack.c.b16 %v5036, %v5032
    %v5157 = vpack.c.b16 %v5037, %v5033
    %v5158 = vpack.c.b16 %v5038, %v5034
    %v5159 = vpack.c.b16 %v5039, %v5035
    %v5160 = vpack.c.b16 %v5044, %v5040
    %v5161 = vpack.c.b16 %v5045, %v5041
    %v5162 = vpack.c.b16 %v5046, %v5042
    %v5163 = vpack.c.b16 %v5047, %v5043
    %v5164 = vpack.c.b16 %v5052, %v5048
    %v5165 = vpack.c.b16 %v5053, %v5049
    %v5166 = vpack.c.b16 %v5054, %v5050
    %v5167 = vpack.c.b16 %v5055, %v5051
    %v5168 = vpack.c.b16 %v5060, %v5056
    %v5169 = vpack.c.b16 %v5061, %v5057
    %v5170 = vpack.c.b16 %v5062, %v5058
    %v5171 = vpack.c.b16 %v5063, %v5059
    %v5172 = vpack.c.b16 %v5068, %v5064
    %v5173 = vpack.c.b16 %v5069, %v5065
    %v5174 = vpack.c.b16 %v5070, %v5066
    %v5175 = vpack.c.b16 %v5071, %v5067
    %v5176 = vpack.c.b16 %v5076, %v5072
    %v5177 = vpack.c.b16 %v5077, %v5073
    %v5178 = vpack.c.b16 %v5078, %v5074
    %v5179 = vpack.c.b16 %v5079, %v5075
    %v5180 = vpack.c.b16 %v5084, %v5080
    %v5181 = vpack.c.b16 %v5085, %v5081
    %v5182 = vpack.c.b16 %v5086, %v5082
    %v5183 = vpack.c.b16 %v5087, %v5083
    %v5184 = vpack.c.b16 %v5092, %v5088
    %v5185 = vpack.c.b16 %v5093, %v5089
    %v5186 = vpack.c.b16 %v5094, %v5090
    %v5187 = vpack.c.b16 %v5095, %v5091
    %v5188 = vpack.c.b16 %v5100, %v5096
    %v5189 = vpack.c.b16 %v5101, %v5097
    %v5190 = vpack.c.b16 %v5102, %v5098
    %v5191 = vpack.c.b16 %v5103, %v5099
    %v5192 = vpack.c.b16 %v5108, %v5104
    %v5193 = vpack.c.b16 %v5109, %v5105
    %v5194 = vpack.c.b16 %v5110, %v5106
    %v5195 = vpack.c.b16 %v5111, %v5107
    %v5196 = vpack.c.b16 %v5116, %v5112
    %v5197 = vpack.c.b16 %v5117, %v5113
    %v5198 = vpack.c.b16 %v5118, %v5114
    %v5199 = vpack.c.b16 %v5119, %v5115
    %v5200 = vpack.c.b16 %v5124, %v5120
    %v5201 = vpack.c.b16 %v5125, %v5121
    %v5202 = vpack.c.b16 %v5126, %v5122
    %v5203 = vpack.c.b16 %v5127, %v5123
    %v5204 = vpack.c.b16 %v5132, %v5128
    %v5205 = vpack.c.b16 %v5133, %v5129
    %v5206 = vpack.c.b16 %v5134, %v5130
    %v5207 = vpack.c.b16 %v5135, %v5131
    %v5208 = vpack.c.b16 %v5140, %v5136
    %v5209 = vpack.c.b16 %v5141, %v5137
    %v5210 = vpack.c.b16 %v5142, %v5138
    %v5211 = vpack.c.b16 %v5143, %v5139
    %v5212 = vpack.c.b16 %v5148, %v5144
    %v5213 = vpack.c.b16 %v5149, %v5145
    %v5214 = vpack.c.b16 %v5150, %v5146
    %v5215 = vpack.c.b16 %v5151, %v5147
    %v5281 = vperm.slane %v4959, 0
    %v5282 = vperm.slane %v4959, 1
    %v5283 = vperm.slane %v4959, 2
    %v5284 = vperm.slane %v4959, 3
    %5289 = vmatpush.bf16.msra.mxu0 %v5180
    %5290 = vmatpush.bf16.msra.mxu0 %v5176
    %5291 = vmatpush.bf16.msra.mxu0 %v5172
    %5292 = vmatpush.bf16.msra.mxu0 %v5168
    %5293 = vmatpush.bf16.msra.mxu0 %v5164
    %5294 = vmatpush.bf16.msra.mxu0 %v5160
    %5295 = vmatpush.bf16.msra.mxu0 %v5156
    %5296 = vmatpush.bf16.msra.mxu0 %v5152
    %5297 = vmatmul.bf16.gmra.mxu0 %v4893
    %v5298 = vpop.f32.mrf.mxu0
    %v5299 = vadd.f32 %v5281, %v5298
    %v5300 = vpop.f32.mrf.mxu0
    %5301 = vdwg.mxu0
    %5302 = vmatpush.bf16.msra.mxu0 %v5212
    %5303 = vmatpush.bf16.msra.mxu0 %v5208
    %5304 = vmatpush.bf16.msra.mxu0 %v5204
    %5305 = vmatpush.bf16.msra.mxu0 %v5200
    %5306 = vmatpush.bf16.msra.mxu0 %v5196
    %5307 = vmatpush.bf16.msra.mxu0 %v5192
    %5308 = vmatpush.bf16.msra.mxu0 %v5188
    %5309 = vmatpush.bf16.msra.mxu0 %v5184
    %5310 = vmatmul.bf16.gmra.mxu0 %v4894
    %v5311 = vpop.f32.mrf.mxu0
    %v5312 = vadd.f32 %v5299, %v5311
    %v5313 = vpop.f32.mrf.mxu0
    %5314 = vdwg.mxu0
    %5315 = vmatpush.bf16.msra.mxu0 %v5181
    %5316 = vmatpush.bf16.msra.mxu0 %v5177
    %5317 = vmatpush.bf16.msra.mxu0 %v5173
    %5318 = vmatpush.bf16.msra.mxu0 %v5169
    %5319 = vmatpush.bf16.msra.mxu0 %v5165
    %5320 = vmatpush.bf16.msra.mxu0 %v5161
    %5321 = vmatpush.bf16.msra.mxu0 %v5157
    %5322 = vmatpush.bf16.msra.mxu0 %v5153
    %5323 = vmatmul.bf16.gmra.mxu0 %v4893
    %v5324 = vpop.f32.mrf.mxu0
    %v5325 = vadd.f32 %v5282, %v5324
    %v5326 = vpop.f32.mrf.mxu0
    %5327 = vdwg.mxu0
    %5328 = vmatpush.bf16.msra.mxu0 %v5213
    %5329 = vmatpush.bf16.msra.mxu0 %v5209
    %5330 = vmatpush.bf16.msra.mxu0 %v5205
    %5331 = vmatpush.bf16.msra.mxu0 %v5201
    %5332 = vmatpush.bf16.msra.mxu0 %v5197
    %5333 = vmatpush.bf16.msra.mxu0 %v5193
    %5334 = vmatpush.bf16.msra.mxu0 %v5189
    %5335 = vmatpush.bf16.msra.mxu0 %v5185
    %5336 = vmatmul.bf16.gmra.mxu0 %v4894
    %v5337 = vpop.f32.mrf.mxu0
    %v5338 = vadd.f32 %v5325, %v5337
    %v5339 = vpop.f32.mrf.mxu0
    %5340 = vdwg.mxu0
    %5341 = vmatpush.bf16.msra.mxu0 %v5182
    %5342 = vmatpush.bf16.msra.mxu0 %v5178
    %5343 = vmatpush.bf16.msra.mxu0 %v5174
    %5344 = vmatpush.bf16.msra.mxu0 %v5170
    %5345 = vmatpush.bf16.msra.mxu0 %v5166
    %5346 = vmatpush.bf16.msra.mxu0 %v5162
    %5347 = vmatpush.bf16.msra.mxu0 %v5158
    %5348 = vmatpush.bf16.msra.mxu0 %v5154
    %5349 = vmatmul.bf16.gmra.mxu0 %v4893
    %v5350 = vpop.f32.mrf.mxu0
    %v5351 = vadd.f32 %v5283, %v5350
    %v5352 = vpop.f32.mrf.mxu0
    %5353 = vdwg.mxu0
    %5354 = vmatpush.bf16.msra.mxu0 %v5214
    %5355 = vmatpush.bf16.msra.mxu0 %v5210
    %5356 = vmatpush.bf16.msra.mxu0 %v5206
    %5357 = vmatpush.bf16.msra.mxu0 %v5202
    %5358 = vmatpush.bf16.msra.mxu0 %v5198
    %5359 = vmatpush.bf16.msra.mxu0 %v5194
    %5360 = vmatpush.bf16.msra.mxu0 %v5190
    %5361 = vmatpush.bf16.msra.mxu0 %v5186
    %5362 = vmatmul.bf16.gmra.mxu0 %v4894
    %v5363 = vpop.f32.mrf.mxu0
    %v5364 = vadd.f32 %v5351, %v5363
    %v5365 = vpop.f32.mrf.mxu0
    %5366 = vdwg.mxu0
    %5367 = vmatpush.bf16.msra.mxu0 %v5183
    %5368 = vmatpush.bf16.msra.mxu0 %v5179
    %5369 = vmatpush.bf16.msra.mxu0 %v5175
    %5370 = vmatpush.bf16.msra.mxu0 %v5171
    %5371 = vmatpush.bf16.msra.mxu0 %v5167
    %5372 = vmatpush.bf16.msra.mxu0 %v5163
    %5373 = vmatpush.bf16.msra.mxu0 %v5159
    %5374 = vmatpush.bf16.msra.mxu0 %v5155
    %5375 = vmatmul.bf16.gmra.mxu0 %v4893
    %v5376 = vpop.f32.mrf.mxu0
    %v5377 = vadd.f32 %v5284, %v5376
    %v5378 = vpop.f32.mrf.mxu0
    %5379 = vdwg.mxu0
    %5380 = vmatpush.bf16.msra.mxu0 %v5215
    %5381 = vmatpush.bf16.msra.mxu0 %v5211
    %5382 = vmatpush.bf16.msra.mxu0 %v5207
    %5383 = vmatpush.bf16.msra.mxu0 %v5203
    %5384 = vmatpush.bf16.msra.mxu0 %v5199
    %5385 = vmatpush.bf16.msra.mxu0 %v5195
    %5386 = vmatpush.bf16.msra.mxu0 %v5191
    %5387 = vmatpush.bf16.msra.mxu0 %v5187
    %5388 = vmatmul.bf16.gmra.mxu0 %v4894
    %v5389 = vpop.f32.mrf.mxu0
    %v5390 = vadd.f32 %v5377, %v5389
    %v5391 = vpop.f32.mrf.mxu0
    %5392 = vdwg.mxu0
    %v5393 = vxor.u32 %v5312, 2147483648
    %v5394 = vmul.f32 %v5393, 1.442695
    %v5395 = vpow.pop %v5394
    %v5396 = vadd.f32 %v5395, 1.0
    %v5397 = vrcp.pop %v5396
    %v5398 = vmul.f32 %v5396, %v5397
    %v5399 = vsub.f32 1.0, %v5398
    %v5400 = vmul.f32 %v5397, %v5399
    %v5401 = vadd.f32 %v5397, %v5400
    %vm5402 = vweird.f32 %v5396
    %vm5403 = vweird.f32 %v5397
    %vm5404 = vmor %vm5402, %vm5403
    %v5405 = vsel %vm5404, %v5397, %v5401
    %v5406 = vand.u32 2147483647, %v5396
    %vm5407 = vcmp.eq.f32.partialorder %v5406, 8.507059e+37
    %v5408 = vand.u32 %v5396, 2147483648
    %v5409 = vor.u32 1.1754944e-38, %v5408
    %v5410 = vsel %vm5407, %v5409, %v5405
    %v5411 = vmul.f32 1.0, %v5410
    %v5412 = vxor.u32 %v5338, 2147483648
    %v5413 = vmul.f32 %v5412, 1.442695
    %v5414 = vpow.pop %v5413
    %v5415 = vadd.f32 %v5414, 1.0
    %v5416 = vrcp.pop %v5415
    %v5417 = vmul.f32 %v5415, %v5416
    %v5418 = vsub.f32 1.0, %v5417
    %v5419 = vmul.f32 %v5416, %v5418
    %v5420 = vadd.f32 %v5416, %v5419
    %vm5421 = vweird.f32 %v5415
    %vm5422 = vweird.f32 %v5416
    %vm5423 = vmor %vm5421, %vm5422
    %v5424 = vsel %vm5423, %v5416, %v5420
    %v5425 = vand.u32 2147483647, %v5415
    %vm5426 = vcmp.eq.f32.partialorder %v5425, 8.507059e+37
    %v5427 = vand.u32 %v5415, 2147483648
    %v5428 = vor.u32 1.1754944e-38, %v5427
    %v5429 = vsel %vm5426, %v5428, %v5424
    %v5430 = vmul.f32 1.0, %v5429
    %v5431 = vtanh.pop %v5364
    %v5432 = vxor.u32 %v5390, 2147483648
    %v5433 = vmul.f32 %v5432, 1.442695
    %v5434 = vpow.pop %v5433
    %v5435 = vadd.f32 %v5434, 1.0
    %v5436 = vrcp.pop %v5435
    %v5437 = vmul.f32 %v5435, %v5436
    %v5438 = vsub.f32 1.0, %v5437
    %v5439 = vmul.f32 %v5436, %v5438
    %v5440 = vadd.f32 %v5436, %v5439
    %vm5441 = vweird.f32 %v5435
    %vm5442 = vweird.f32 %v5436
    %vm5443 = vmor %vm5441, %vm5442
    %v5444 = vsel %vm5443, %v5436, %v5440
    %v5445 = vand.u32 2147483647, %v5435
    %vm5446 = vcmp.eq.f32.partialorder %v5445, 8.507059e+37
    %v5447 = vand.u32 %v5435, 2147483648
    %v5448 = vor.u32 1.1754944e-38, %v5447
    %v5449 = vsel %vm5446, %v5448, %v5444
    %v5450 = vmul.f32 1.0, %v5449
    %v5451 = vmul.f32 %v5430, %v4557
    %v5452 = vmul.f32 %v5411, %v5431
    %v5453 = vadd.f32 %v5451, %v5452
    %v5454 = vtanh.pop %v5453
    %v5455 = vmul.f32 %v5450, %v5454
    %5456 = vst [vmem:[#allocation2 + $0x5] sm:$0x1] %v5455
    %s5457 = sld [smem:[#allocation3 + $0x6]]
    %v5458 = vld [vmem:[#allocation6] ss:$8 sm:$0xf]
    %v5459 = vstv %s5457
    %v5460 = vmul.f32 %v5459, %v5458
    %v5461 = vld [vmem:[#allocation7] sm:$0xff]
    %v5462 = vld [vmem:[#allocation7 + $0x8] sm:$0xff]
    %v5463 = vld [vmem:[#allocation7 + $0x10] sm:$0xff]
    %v5464 = vld [vmem:[#allocation7 + $0x18] sm:$0xff]
    %v5465 = vld [vmem:[#allocation7 + $0x20] sm:$0xff]
    %v5466 = vld [vmem:[#allocation7 + $0x28] sm:$0xff]
    %v5467 = vld [vmem:[#allocation7 + $0x30] sm:$0xff]
    %v5468 = vld [vmem:[#allocation7 + $0x38] sm:$0xff]
    %v5469 = vld [vmem:[#allocation7 + $0x40] sm:$0xff]
    %v5470 = vld [vmem:[#allocation7 + $0x48] sm:$0xff]
    %v5471 = vld [vmem:[#allocation7 + $0x50] sm:$0xff]
    %v5472 = vld [vmem:[#allocation7 + $0x58] sm:$0xff]
    %v5473 = vld [vmem:[#allocation7 + $0x60] sm:$0xff]
    %v5474 = vld [vmem:[#allocation7 + $0x68] sm:$0xff]
    %v5475 = vld [vmem:[#allocation7 + $0x70] sm:$0xff]
    %v5476 = vld [vmem:[#allocation7 + $0x78] sm:$0xff]
    %v5477 = vld [vmem:[#allocation7 + $0x80] sm:$0xff]
    %v5478 = vld [vmem:[#allocation7 + $0x88] sm:$0xff]
    %v5479 = vld [vmem:[#allocation7 + $0x90] sm:$0xff]
    %v5480 = vld [vmem:[#allocation7 + $0x98] sm:$0xff]
    %v5481 = vld [vmem:[#allocation7 + $0xa0] sm:$0xff]
    %v5482 = vld [vmem:[#allocation7 + $0xa8] sm:$0xff]
    %v5483 = vld [vmem:[#allocation7 + $0xb0] sm:$0xff]
    %v5484 = vld [vmem:[#allocation7 + $0xb8] sm:$0xff]
    %v5485 = vld [vmem:[#allocation7 + $0xc0] sm:$0xff]
    %v5486 = vld [vmem:[#allocation7 + $0xc8] sm:$0xff]
    %v5487 = vld [vmem:[#allocation7 + $0xd0] sm:$0xff]
    %v5488 = vld [vmem:[#allocation7 + $0xd8] sm:$0xff]
    %v5489 = vld [vmem:[#allocation7 + $0xe0] sm:$0xff]
    %v5490 = vld [vmem:[#allocation7 + $0xe8] sm:$0xff]
    %v5491 = vld [vmem:[#allocation7 + $0xf0] sm:$0xff]
    %v5492 = vld [vmem:[#allocation7 + $0xf8] sm:$0xff]
    %v5525 = vunpack.c.l.b16 %v5461
    %v5526 = vunpack.c.h.b16 %v5461
    %v5527 = vunpack.c.l.b16 %v5462
    %v5528 = vunpack.c.h.b16 %v5462
    %v5529 = vunpack.c.l.b16 %v5463
    %v5530 = vunpack.c.h.b16 %v5463
    %v5531 = vunpack.c.l.b16 %v5464
    %v5532 = vunpack.c.h.b16 %v5464
    %v5533 = vunpack.c.l.b16 %v5465
    %v5534 = vunpack.c.h.b16 %v5465
    %v5535 = vunpack.c.l.b16 %v5466
    %v5536 = vunpack.c.h.b16 %v5466
    %v5537 = vunpack.c.l.b16 %v5467
    %v5538 = vunpack.c.h.b16 %v5467
    %v5539 = vunpack.c.l.b16 %v5468
    %v5540 = vunpack.c.h.b16 %v5468
    %v5541 = vunpack.c.l.b16 %v5469
    %v5542 = vunpack.c.h.b16 %v5469
    %v5543 = vunpack.c.l.b16 %v5470
    %v5544 = vunpack.c.h.b16 %v5470
    %v5545 = vunpack.c.l.b16 %v5471
    %v5546 = vunpack.c.h.b16 %v5471
    %v5547 = vunpack.c.l.b16 %v5472
    %v5548 = vunpack.c.h.b16 %v5472
    %v5549 = vunpack.c.l.b16 %v5473
    %v5550 = vunpack.c.h.b16 %v5473
    %v5551 = vunpack.c.l.b16 %v5474
    %v5552 = vunpack.c.h.b16 %v5474
    %v5553 = vunpack.c.l.b16 %v5475
    %v5554 = vunpack.c.h.b16 %v5475
    %v5555 = vunpack.c.l.b16 %v5476
    %v5556 = vunpack.c.h.b16 %v5476
    %v5557 = vunpack.c.l.b16 %v5477
    %v5558 = vunpack.c.h.b16 %v5477
    %v5559 = vunpack.c.l.b16 %v5478
    %v5560 = vunpack.c.h.b16 %v5478
    %v5561 = vunpack.c.l.b16 %v5479
    %v5562 = vunpack.c.h.b16 %v5479
    %v5563 = vunpack.c.l.b16 %v5480
    %v5564 = vunpack.c.h.b16 %v5480
    %v5565 = vunpack.c.l.b16 %v5481
    %v5566 = vunpack.c.h.b16 %v5481
    %v5567 = vunpack.c.l.b16 %v5482
    %v5568 = vunpack.c.h.b16 %v5482
    %v5569 = vunpack.c.l.b16 %v5483
    %v5570 = vunpack.c.h.b16 %v5483
    %v5571 = vunpack.c.l.b16 %v5484
    %v5572 = vunpack.c.h.b16 %v5484
    %v5573 = vunpack.c.l.b16 %v5485
    %v5574 = vunpack.c.h.b16 %v5485
    %v5575 = vunpack.c.l.b16 %v5486
    %v5576 = vunpack.c.h.b16 %v5486
    %v5577 = vunpack.c.l.b16 %v5487
    %v5578 = vunpack.c.h.b16 %v5487
    %v5579 = vunpack.c.l.b16 %v5488
    %v5580 = vunpack.c.h.b16 %v5488
    %v5581 = vunpack.c.l.b16 %v5489
    %v5582 = vunpack.c.h.b16 %v5489
    %v5583 = vunpack.c.l.b16 %v5490
    %v5584 = vunpack.c.h.b16 %v5490
    %v5585 = vunpack.c.l.b16 %v5491
    %v5586 = vunpack.c.h.b16 %v5491
    %v5587 = vunpack.c.l.b16 %v5492
    %v5588 = vunpack.c.h.b16 %v5492
    %v5589 = vpack.c.b16 %v5529, %v5525
    %v5590 = vpack.c.b16 %v5530, %v5526
    %v5591 = vpack.c.b16 %v5531, %v5527
    %v5592 = vpack.c.b16 %v5532, %v5528
    %v5593 = vpack.c.b16 %v5537, %v5533
    %v5594 = vpack.c.b16 %v5538, %v5534
    %v5595 = vpack.c.b16 %v5539, %v5535
    %v5596 = vpack.c.b16 %v5540, %v5536
    %v5597 = vpack.c.b16 %v5545, %v5541
    %v5598 = vpack.c.b16 %v5546, %v5542
    %v5599 = vpack.c.b16 %v5547, %v5543
    %v5600 = vpack.c.b16 %v5548, %v5544
    %v5601 = vpack.c.b16 %v5553, %v5549
    %v5602 = vpack.c.b16 %v5554, %v5550
    %v5603 = vpack.c.b16 %v5555, %v5551
    %v5604 = vpack.c.b16 %v5556, %v5552
    %v5605 = vpack.c.b16 %v5561, %v5557
    %v5606 = vpack.c.b16 %v5562, %v5558
    %v5607 = vpack.c.b16 %v5563, %v5559
    %v5608 = vpack.c.b16 %v5564, %v5560
    %v5609 = vpack.c.b16 %v5569, %v5565
    %v5610 = vpack.c.b16 %v5570, %v5566
    %v5611 = vpack.c.b16 %v5571, %v5567
    %v5612 = vpack.c.b16 %v5572, %v5568
    %v5613 = vpack.c.b16 %v5577, %v5573
    %v5614 = vpack.c.b16 %v5578, %v5574
    %v5615 = vpack.c.b16 %v5579, %v5575
    %v5616 = vpack.c.b16 %v5580, %v5576
    %v5617 = vpack.c.b16 %v5585, %v5581
    %v5618 = vpack.c.b16 %v5586, %v5582
    %v5619 = vpack.c.b16 %v5587, %v5583
    %v5620 = vpack.c.b16 %v5588, %v5584
    %5653 = vmatpush.bf16.msra.mxu0 %v5617
    %5654 = vmatpush.bf16.msra.mxu0 %v5613
    %5655 = vmatpush.bf16.msra.mxu0 %v5609
    %5656 = vmatpush.bf16.msra.mxu0 %v5605
    %5657 = vmatpush.bf16.msra.mxu0 %v5601
    %5658 = vmatpush.bf16.msra.mxu0 %v5597
    %5659 = vmatpush.bf16.msra.mxu0 %v5593
    %5660 = vmatpush.bf16.msra.mxu0 %v5589
    %5661 = vmatmul.bf16.gmra.mxu0 %v4893
    %v5662 = vpop.f32.mrf.mxu0
    %v5663 = vadd.f32 0.0, %v5662
    %v5664 = vpop.f32.mrf.mxu0
    %5665 = vdwg.mxu0
    %5666 = vmatpush.bf16.msra.mxu0 %v5618
    %5667 = vmatpush.bf16.msra.mxu0 %v5614
    %5668 = vmatpush.bf16.msra.mxu0 %v5610
    %5669 = vmatpush.bf16.msra.mxu0 %v5606
    %5670 = vmatpush.bf16.msra.mxu0 %v5602
    %5671 = vmatpush.bf16.msra.mxu0 %v5598
    %5672 = vmatpush.bf16.msra.mxu0 %v5594
    %5673 = vmatpush.bf16.msra.mxu0 %v5590
    %5674 = vmatmul.bf16.gmra.mxu0 %v4893
    %v5675 = vpop.f32.mrf.mxu0
    %v5676 = vadd.f32 0.0, %v5675
    %v5677 = vpop.f32.mrf.mxu0
    %5678 = vdwg.mxu0
    %5679 = vmatpush.bf16.msra.mxu0 %v5619
    %5680 = vmatpush.bf16.msra.mxu0 %v5615
    %5681 = vmatpush.bf16.msra.mxu0 %v5611
    %5682 = vmatpush.bf16.msra.mxu0 %v5607
    %5683 = vmatpush.bf16.msra.mxu0 %v5603
    %5684 = vmatpush.bf16.msra.mxu0 %v5599
    %5685 = vmatpush.bf16.msra.mxu0 %v5595
    %5686 = vmatpush.bf16.msra.mxu0 %v5591
    %5687 = vmatmul.bf16.gmra.mxu0 %v4893
    %v5688 = vpop.f32.mrf.mxu0
    %v5689 = vadd.f32 0.0, %v5688
    %v5690 = vpop.f32.mrf.mxu0
    %5691 = vdwg.mxu0
    %5692 = vmatpush.bf16.msra.mxu0 %v5620
    %5693 = vmatpush.bf16.msra.mxu0 %v5616
    %5694 = vmatpush.bf16.msra.mxu0 %v5612
    %5695 = vmatpush.bf16.msra.mxu0 %v5608
    %5696 = vmatpush.bf16.msra.mxu0 %v5604
    %5697 = vmatpush.bf16.msra.mxu0 %v5600
    %5698 = vmatpush.bf16.msra.mxu0 %v5596
    %5699 = vmatpush.bf16.msra.mxu0 %v5592
    %5700 = vmatmul.bf16.gmra.mxu0 %v4893
    %v5701 = vpop.f32.mrf.mxu0
    %v5702 = vadd.f32 0.0, %v5701
    %v5703 = vpop.f32.mrf.mxu0
    %5704 = vdwg.mxu0
    %v5709 = vrot.slane %v5676, 7
    %v5710 = vrot.slane %v5689, 6
    %v5711 = vrot.slane %v5702, 5
    %v5712 = vsel %vm331, %v5663, %v5709
    %v5713 = vsel %vm333, %v5710, %v5711
    %v5714 = vsel %vm335, %v5712, %v5713
    %v5716 = vadd.f32 %v5460, %v5714
    %v5717 = vld [vmem:[%s339] ss:$8 sm:$0xf]
    %v5718 = vadd.f32 %v5716, %v5717
    %v5719 = vxor.u32 %v5718, 2147483648
    %v5720 = vmul.f32 %v5719, 1.442695
    %v5721 = vpow.pop %v5720
    %v5722 = vadd.f32 %v5721, 1.0
    %v5723 = vrcp.pop %v5722
    %v5724 = vmul.f32 %v5722, %v5723
    %v5725 = vsub.f32 1.0, %v5724
    %v5726 = vmul.f32 %v5723, %v5725
    %v5727 = vadd.f32 %v5723, %v5726
    %vm5728 = vweird.f32 %v5722
    %vm5729 = vweird.f32 %v5723
    %vm5730 = vmor %vm5728, %vm5729
    %v5731 = vsel %vm5730, %v5723, %v5727
    %v5732 = vand.u32 2147483647, %v5722
    %vm5733 = vcmp.eq.f32.partialorder %v5732, 8.507059e+37
    %v5734 = vand.u32 %v5722, 2147483648
    %v5735 = vor.u32 1.1754944e-38, %v5734
    %v5736 = vsel %vm5733, %v5735, %v5731
    %v5737 = vmul.f32 1.0, %v5736
    %v5739 = vrot.slane %v5718, 1
    %v5741 = vxor.u32 %v5739, 2147483648
    %v5742 = vmul.f32 %v5741, 1.442695
    %v5743 = vpow.pop %v5742
    %v5744 = vadd.f32 %v5743, 1.0
    %v5745 = vrcp.pop %v5744
    %v5746 = vmul.f32 %v5744, %v5745
    %v5747 = vsub.f32 1.0, %v5746
    %v5748 = vmul.f32 %v5745, %v5747
    %v5749 = vadd.f32 %v5745, %v5748
    %vm5750 = vweird.f32 %v5744
    %vm5751 = vweird.f32 %v5745
    %vm5752 = vmor %vm5750, %vm5751
    %v5753 = vsel %vm5752, %v5745, %v5749
    %v5754 = vand.u32 2147483647, %v5744
    %vm5755 = vcmp.eq.f32.partialorder %v5754, 8.507059e+37
    %v5756 = vand.u32 %v5744, 2147483648
    %v5757 = vor.u32 1.1754944e-38, %v5756
    %v5758 = vsel %vm5755, %v5757, %v5753
    %v5759 = vmul.f32 1.0, %v5758
    %v5760 = vrot.slane %v5718, 2
    %v5762 = vtanh.pop %v5760
    %v5763 = vrot.slane %v5718, 3
    %v5765 = vxor.u32 %v5763, 2147483648
    %v5766 = vmul.f32 %v5765, 1.442695
    %v5767 = vpow.pop %v5766
    %v5768 = vadd.f32 %v5767, 1.0
    %v5769 = vrcp.pop %v5768
    %v5770 = vmul.f32 %v5768, %v5769
    %v5771 = vsub.f32 1.0, %v5770
    %v5772 = vmul.f32 %v5769, %v5771
    %v5773 = vadd.f32 %v5769, %v5772
    %vm5774 = vweird.f32 %v5768
    %vm5775 = vweird.f32 %v5769
    %vm5776 = vmor %vm5774, %vm5775
    %v5777 = vsel %vm5776, %v5769, %v5773
    %v5778 = vand.u32 2147483647, %v5768
    %vm5779 = vcmp.eq.f32.partialorder %v5778, 8.507059e+37
    %v5780 = vand.u32 %v5768, 2147483648
    %v5781 = vor.u32 1.1754944e-38, %v5780
    %v5782 = vsel %vm5779, %v5781, %v5777
    %v5783 = vmul.f32 1.0, %v5782
    %v5784 = vmul.f32 %v5759, %v4890
    %v5785 = vmul.f32 %v5737, %v5762
    %v5786 = vadd.f32 %v5784, %v5785
    %v5787 = vtanh.pop %v5786
    %v5788 = vmul.f32 %v5783, %v5787
    %v5789 = vpack.c.bf16 %v5788, %v5788
    %v5790 = vpack.c.bf16 %v5455, %v5455
    %v5791 = vld [vmem:[#allocation9] sm:$0xff]
    %v5792 = vld [vmem:[#allocation9 + $0x8] sm:$0xff]
    %v5793 = vld [vmem:[#allocation9 + $0x10] sm:$0xff]
    %v5794 = vld [vmem:[#allocation9 + $0x18] sm:$0xff]
    %v5795 = vld [vmem:[#allocation9 + $0x20] sm:$0xff]
    %v5796 = vld [vmem:[#allocation9 + $0x28] sm:$0xff]
    %v5797 = vld [vmem:[#allocation9 + $0x30] sm:$0xff]
    %v5798 = vld [vmem:[#allocation9 + $0x38] sm:$0xff]
    %v5799 = vld [vmem:[#allocation9 + $0x40] sm:$0xff]
    %v5800 = vld [vmem:[#allocation9 + $0x48] sm:$0xff]
    %v5801 = vld [vmem:[#allocation9 + $0x50] sm:$0xff]
    %v5802 = vld [vmem:[#allocation9 + $0x58] sm:$0xff]
    %v5803 = vld [vmem:[#allocation9 + $0x60] sm:$0xff]
    %v5804 = vld [vmem:[#allocation9 + $0x68] sm:$0xff]
    %v5805 = vld [vmem:[#allocation9 + $0x70] sm:$0xff]
    %v5806 = vld [vmem:[#allocation9 + $0x78] sm:$0xff]
    %v5807 = vld [vmem:[#allocation9 + $0x80] sm:$0xff]
    %v5808 = vld [vmem:[#allocation9 + $0x88] sm:$0xff]
    %v5809 = vld [vmem:[#allocation9 + $0x90] sm:$0xff]
    %v5810 = vld [vmem:[#allocation9 + $0x98] sm:$0xff]
    %v5811 = vld [vmem:[#allocation9 + $0xa0] sm:$0xff]
    %v5812 = vld [vmem:[#allocation9 + $0xa8] sm:$0xff]
    %v5813 = vld [vmem:[#allocation9 + $0xb0] sm:$0xff]
    %v5814 = vld [vmem:[#allocation9 + $0xb8] sm:$0xff]
    %v5815 = vld [vmem:[#allocation9 + $0xc0] sm:$0xff]
    %v5816 = vld [vmem:[#allocation9 + $0xc8] sm:$0xff]
    %v5817 = vld [vmem:[#allocation9 + $0xd0] sm:$0xff]
    %v5818 = vld [vmem:[#allocation9 + $0xd8] sm:$0xff]
    %v5819 = vld [vmem:[#allocation9 + $0xe0] sm:$0xff]
    %v5820 = vld [vmem:[#allocation9 + $0xe8] sm:$0xff]
    %v5821 = vld [vmem:[#allocation9 + $0xf0] sm:$0xff]
    %v5822 = vld [vmem:[#allocation9 + $0xf8] sm:$0xff]
    %v5823 = vld [vmem:[#allocation9 + $0x100] sm:$0xff]
    %v5824 = vld [vmem:[#allocation9 + $0x108] sm:$0xff]
    %v5825 = vld [vmem:[#allocation9 + $0x110] sm:$0xff]
    %v5826 = vld [vmem:[#allocation9 + $0x118] sm:$0xff]
    %v5827 = vld [vmem:[#allocation9 + $0x120] sm:$0xff]
    %v5828 = vld [vmem:[#allocation9 + $0x128] sm:$0xff]
    %v5829 = vld [vmem:[#allocation9 + $0x130] sm:$0xff]
    %v5830 = vld [vmem:[#allocation9 + $0x138] sm:$0xff]
    %v5831 = vld [vmem:[#allocation9 + $0x140] sm:$0xff]
    %v5832 = vld [vmem:[#allocation9 + $0x148] sm:$0xff]
    %v5833 = vld [vmem:[#allocation9 + $0x150] sm:$0xff]
    %v5834 = vld [vmem:[#allocation9 + $0x158] sm:$0xff]
    %v5835 = vld [vmem:[#allocation9 + $0x160] sm:$0xff]
    %v5836 = vld [vmem:[#allocation9 + $0x168] sm:$0xff]
    %v5837 = vld [vmem:[#allocation9 + $0x170] sm:$0xff]
    %v5838 = vld [vmem:[#allocation9 + $0x178] sm:$0xff]
    %v5839 = vld [vmem:[#allocation9 + $0x180] sm:$0xff]
    %v5840 = vld [vmem:[#allocation9 + $0x188] sm:$0xff]
    %v5841 = vld [vmem:[#allocation9 + $0x190] sm:$0xff]
    %v5842 = vld [vmem:[#allocation9 + $0x198] sm:$0xff]
    %v5843 = vld [vmem:[#allocation9 + $0x1a0] sm:$0xff]
    %v5844 = vld [vmem:[#allocation9 + $0x1a8] sm:$0xff]
    %v5845 = vld [vmem:[#allocation9 + $0x1b0] sm:$0xff]
    %v5846 = vld [vmem:[#allocation9 + $0x1b8] sm:$0xff]
    %v5847 = vld [vmem:[#allocation9 + $0x1c0] sm:$0xff]
    %v5848 = vld [vmem:[#allocation9 + $0x1c8] sm:$0xff]
    %v5849 = vld [vmem:[#allocation9 + $0x1d0] sm:$0xff]
    %v5850 = vld [vmem:[#allocation9 + $0x1d8] sm:$0xff]
    %v5851 = vld [vmem:[#allocation9 + $0x1e0] sm:$0xff]
    %v5852 = vld [vmem:[#allocation9 + $0x1e8] sm:$0xff]
    %v5853 = vld [vmem:[#allocation9 + $0x1f0] sm:$0xff]
    %v5854 = vld [vmem:[#allocation9 + $0x1f8] sm:$0xff]
    %v5855 = vld [vmem:[%s478] ss:$8 sm:$0xf]
    %v5920 = vunpack.c.l.b16 %v5791
    %v5921 = vunpack.c.h.b16 %v5791
    %v5922 = vunpack.c.l.b16 %v5792
    %v5923 = vunpack.c.h.b16 %v5792
    %v5924 = vunpack.c.l.b16 %v5793
    %v5925 = vunpack.c.h.b16 %v5793
    %v5926 = vunpack.c.l.b16 %v5794
    %v5927 = vunpack.c.h.b16 %v5794
    %v5928 = vunpack.c.l.b16 %v5795
    %v5929 = vunpack.c.h.b16 %v5795
    %v5930 = vunpack.c.l.b16 %v5796
    %v5931 = vunpack.c.h.b16 %v5796
    %v5932 = vunpack.c.l.b16 %v5797
    %v5933 = vunpack.c.h.b16 %v5797
    %v5934 = vunpack.c.l.b16 %v5798
    %v5935 = vunpack.c.h.b16 %v5798
    %v5936 = vunpack.c.l.b16 %v5799
    %v5937 = vunpack.c.h.b16 %v5799
    %v5938 = vunpack.c.l.b16 %v5800
    %v5939 = vunpack.c.h.b16 %v5800
    %v5940 = vunpack.c.l.b16 %v5801
    %v5941 = vunpack.c.h.b16 %v5801
    %v5942 = vunpack.c.l.b16 %v5802
    %v5943 = vunpack.c.h.b16 %v5802
    %v5944 = vunpack.c.l.b16 %v5803
    %v5945 = vunpack.c.h.b16 %v5803
    %v5946 = vunpack.c.l.b16 %v5804
    %v5947 = vunpack.c.h.b16 %v5804
    %v5948 = vunpack.c.l.b16 %v5805
    %v5949 = vunpack.c.h.b16 %v5805
    %v5950 = vunpack.c.l.b16 %v5806
    %v5951 = vunpack.c.h.b16 %v5806
    %v5952 = vunpack.c.l.b16 %v5807
    %v5953 = vunpack.c.h.b16 %v5807
    %v5954 = vunpack.c.l.b16 %v5808
    %v5955 = vunpack.c.h.b16 %v5808
    %v5956 = vunpack.c.l.b16 %v5809
    %v5957 = vunpack.c.h.b16 %v5809
    %v5958 = vunpack.c.l.b16 %v5810
    %v5959 = vunpack.c.h.b16 %v5810
    %v5960 = vunpack.c.l.b16 %v5811
    %v5961 = vunpack.c.h.b16 %v5811
    %v5962 = vunpack.c.l.b16 %v5812
    %v5963 = vunpack.c.h.b16 %v5812
    %v5964 = vunpack.c.l.b16 %v5813
    %v5965 = vunpack.c.h.b16 %v5813
    %v5966 = vunpack.c.l.b16 %v5814
    %v5967 = vunpack.c.h.b16 %v5814
    %v5968 = vunpack.c.l.b16 %v5815
    %v5969 = vunpack.c.h.b16 %v5815
    %v5970 = vunpack.c.l.b16 %v5816
    %v5971 = vunpack.c.h.b16 %v5816
    %v5972 = vunpack.c.l.b16 %v5817
    %v5973 = vunpack.c.h.b16 %v5817
    %v5974 = vunpack.c.l.b16 %v5818
    %v5975 = vunpack.c.h.b16 %v5818
    %v5976 = vunpack.c.l.b16 %v5819
    %v5977 = vunpack.c.h.b16 %v5819
    %v5978 = vunpack.c.l.b16 %v5820
    %v5979 = vunpack.c.h.b16 %v5820
    %v5980 = vunpack.c.l.b16 %v5821
    %v5981 = vunpack.c.h.b16 %v5821
    %v5982 = vunpack.c.l.b16 %v5822
    %v5983 = vunpack.c.h.b16 %v5822
    %v5984 = vunpack.c.l.b16 %v5823
    %v5985 = vunpack.c.h.b16 %v5823
    %v5986 = vunpack.c.l.b16 %v5824
    %v5987 = vunpack.c.h.b16 %v5824
    %v5988 = vunpack.c.l.b16 %v5825
    %v5989 = vunpack.c.h.b16 %v5825
    %v5990 = vunpack.c.l.b16 %v5826
    %v5991 = vunpack.c.h.b16 %v5826
    %v5992 = vunpack.c.l.b16 %v5827
    %v5993 = vunpack.c.h.b16 %v5827
    %v5994 = vunpack.c.l.b16 %v5828
    %v5995 = vunpack.c.h.b16 %v5828
    %v5996 = vunpack.c.l.b16 %v5829
    %v5997 = vunpack.c.h.b16 %v5829
    %v5998 = vunpack.c.l.b16 %v5830
    %v5999 = vunpack.c.h.b16 %v5830
    %v6000 = vunpack.c.l.b16 %v5831
    %v6001 = vunpack.c.h.b16 %v5831
    %v6002 = vunpack.c.l.b16 %v5832
    %v6003 = vunpack.c.h.b16 %v5832
    %v6004 = vunpack.c.l.b16 %v5833
    %v6005 = vunpack.c.h.b16 %v5833
    %v6006 = vunpack.c.l.b16 %v5834
    %v6007 = vunpack.c.h.b16 %v5834
    %v6008 = vunpack.c.l.b16 %v5835
    %v6009 = vunpack.c.h.b16 %v5835
    %v6010 = vunpack.c.l.b16 %v5836
    %v6011 = vunpack.c.h.b16 %v5836
    %v6012 = vunpack.c.l.b16 %v5837
    %v6013 = vunpack.c.h.b16 %v5837
    %v6014 = vunpack.c.l.b16 %v5838
    %v6015 = vunpack.c.h.b16 %v5838
    %v6016 = vunpack.c.l.b16 %v5839
    %v6017 = vunpack.c.h.b16 %v5839
    %v6018 = vunpack.c.l.b16 %v5840
    %v6019 = vunpack.c.h.b16 %v5840
    %v6020 = vunpack.c.l.b16 %v5841
    %v6021 = vunpack.c.h.b16 %v5841
    %v6022 = vunpack.c.l.b16 %v5842
    %v6023 = vunpack.c.h.b16 %v5842
    %v6024 = vunpack.c.l.b16 %v5843
    %v6025 = vunpack.c.h.b16 %v5843
    %v6026 = vunpack.c.l.b16 %v5844
    %v6027 = vunpack.c.h.b16 %v5844
    %v6028 = vunpack.c.l.b16 %v5845
    %v6029 = vunpack.c.h.b16 %v5845
    %v6030 = vunpack.c.l.b16 %v5846
    %v6031 = vunpack.c.h.b16 %v5846
    %v6032 = vunpack.c.l.b16 %v5847
    %v6033 = vunpack.c.h.b16 %v5847
    %v6034 = vunpack.c.l.b16 %v5848
    %v6035 = vunpack.c.h.b16 %v5848
    %v6036 = vunpack.c.l.b16 %v5849
    %v6037 = vunpack.c.h.b16 %v5849
    %v6038 = vunpack.c.l.b16 %v5850
    %v6039 = vunpack.c.h.b16 %v5850
    %v6040 = vunpack.c.l.b16 %v5851
    %v6041 = vunpack.c.h.b16 %v5851
    %v6042 = vunpack.c.l.b16 %v5852
    %v6043 = vunpack.c.h.b16 %v5852
    %v6044 = vunpack.c.l.b16 %v5853
    %v6045 = vunpack.c.h.b16 %v5853
    %v6046 = vunpack.c.l.b16 %v5854
    %v6047 = vunpack.c.h.b16 %v5854
    %v6048 = vpack.c.b16 %v5924, %v5920
    %v6049 = vpack.c.b16 %v5925, %v5921
    %v6050 = vpack.c.b16 %v5926, %v5922
    %v6051 = vpack.c.b16 %v5927, %v5923
    %v6052 = vpack.c.b16 %v5932, %v5928
    %v6053 = vpack.c.b16 %v5933, %v5929
    %v6054 = vpack.c.b16 %v5934, %v5930
    %v6055 = vpack.c.b16 %v5935, %v5931
    %v6056 = vpack.c.b16 %v5940, %v5936
    %v6057 = vpack.c.b16 %v5941, %v5937
    %v6058 = vpack.c.b16 %v5942, %v5938
    %v6059 = vpack.c.b16 %v5943, %v5939
    %v6060 = vpack.c.b16 %v5948, %v5944
    %v6061 = vpack.c.b16 %v5949, %v5945
    %v6062 = vpack.c.b16 %v5950, %v5946
    %v6063 = vpack.c.b16 %v5951, %v5947
    %v6064 = vpack.c.b16 %v5956, %v5952
    %v6065 = vpack.c.b16 %v5957, %v5953
    %v6066 = vpack.c.b16 %v5958, %v5954
    %v6067 = vpack.c.b16 %v5959, %v5955
    %v6068 = vpack.c.b16 %v5964, %v5960
    %v6069 = vpack.c.b16 %v5965, %v5961
    %v6070 = vpack.c.b16 %v5966, %v5962
    %v6071 = vpack.c.b16 %v5967, %v5963
    %v6072 = vpack.c.b16 %v5972, %v5968
    %v6073 = vpack.c.b16 %v5973, %v5969
    %v6074 = vpack.c.b16 %v5974, %v5970
    %v6075 = vpack.c.b16 %v5975, %v5971
    %v6076 = vpack.c.b16 %v5980, %v5976
    %v6077 = vpack.c.b16 %v5981, %v5977
    %v6078 = vpack.c.b16 %v5982, %v5978
    %v6079 = vpack.c.b16 %v5983, %v5979
    %v6080 = vpack.c.b16 %v5988, %v5984
    %v6081 = vpack.c.b16 %v5989, %v5985
    %v6082 = vpack.c.b16 %v5990, %v5986
    %v6083 = vpack.c.b16 %v5991, %v5987
    %v6084 = vpack.c.b16 %v5996, %v5992
    %v6085 = vpack.c.b16 %v5997, %v5993
    %v6086 = vpack.c.b16 %v5998, %v5994
    %v6087 = vpack.c.b16 %v5999, %v5995
    %v6088 = vpack.c.b16 %v6004, %v6000
    %v6089 = vpack.c.b16 %v6005, %v6001
    %v6090 = vpack.c.b16 %v6006, %v6002
    %v6091 = vpack.c.b16 %v6007, %v6003
    %v6092 = vpack.c.b16 %v6012, %v6008
    %v6093 = vpack.c.b16 %v6013, %v6009
    %v6094 = vpack.c.b16 %v6014, %v6010
    %v6095 = vpack.c.b16 %v6015, %v6011
    %v6096 = vpack.c.b16 %v6020, %v6016
    %v6097 = vpack.c.b16 %v6021, %v6017
    %v6098 = vpack.c.b16 %v6022, %v6018
    %v6099 = vpack.c.b16 %v6023, %v6019
    %v6100 = vpack.c.b16 %v6028, %v6024
    %v6101 = vpack.c.b16 %v6029, %v6025
    %v6102 = vpack.c.b16 %v6030, %v6026
    %v6103 = vpack.c.b16 %v6031, %v6027
    %v6104 = vpack.c.b16 %v6036, %v6032
    %v6105 = vpack.c.b16 %v6037, %v6033
    %v6106 = vpack.c.b16 %v6038, %v6034
    %v6107 = vpack.c.b16 %v6039, %v6035
    %v6108 = vpack.c.b16 %v6044, %v6040
    %v6109 = vpack.c.b16 %v6045, %v6041
    %v6110 = vpack.c.b16 %v6046, %v6042
    %v6111 = vpack.c.b16 %v6047, %v6043
    %v6177 = vperm.slane %v5855, 0
    %v6178 = vperm.slane %v5855, 1
    %v6179 = vperm.slane %v5855, 2
    %v6180 = vperm.slane %v5855, 3
    %6185 = vmatpush.bf16.msra.mxu0 %v6076
    %6186 = vmatpush.bf16.msra.mxu0 %v6072
    %6187 = vmatpush.bf16.msra.mxu0 %v6068
    %6188 = vmatpush.bf16.msra.mxu0 %v6064
    %6189 = vmatpush.bf16.msra.mxu0 %v6060
    %6190 = vmatpush.bf16.msra.mxu0 %v6056
    %6191 = vmatpush.bf16.msra.mxu0 %v6052
    %6192 = vmatpush.bf16.msra.mxu0 %v6048
    %6193 = vmatmul.bf16.gmra.mxu0 %v5789
    %v6194 = vpop.f32.mrf.mxu0
    %v6195 = vadd.f32 %v6177, %v6194
    %v6196 = vpop.f32.mrf.mxu0
    %6197 = vdwg.mxu0
    %6198 = vmatpush.bf16.msra.mxu0 %v6108
    %6199 = vmatpush.bf16.msra.mxu0 %v6104
    %6200 = vmatpush.bf16.msra.mxu0 %v6100
    %6201 = vmatpush.bf16.msra.mxu0 %v6096
    %6202 = vmatpush.bf16.msra.mxu0 %v6092
    %6203 = vmatpush.bf16.msra.mxu0 %v6088
    %6204 = vmatpush.bf16.msra.mxu0 %v6084
    %6205 = vmatpush.bf16.msra.mxu0 %v6080
    %6206 = vmatmul.bf16.gmra.mxu0 %v5790
    %v6207 = vpop.f32.mrf.mxu0
    %v6208 = vadd.f32 %v6195, %v6207
    %v6209 = vpop.f32.mrf.mxu0
    %6210 = vdwg.mxu0
    %6211 = vmatpush.bf16.msra.mxu0 %v6077
    %6212 = vmatpush.bf16.msra.mxu0 %v6073
    %6213 = vmatpush.bf16.msra.mxu0 %v6069
    %6214 = vmatpush.bf16.msra.mxu0 %v6065
    %6215 = vmatpush.bf16.msra.mxu0 %v6061
    %6216 = vmatpush.bf16.msra.mxu0 %v6057
    %6217 = vmatpush.bf16.msra.mxu0 %v6053
    %6218 = vmatpush.bf16.msra.mxu0 %v6049
    %6219 = vmatmul.bf16.gmra.mxu0 %v5789
    %v6220 = vpop.f32.mrf.mxu0
    %v6221 = vadd.f32 %v6178, %v6220
    %v6222 = vpop.f32.mrf.mxu0
    %6223 = vdwg.mxu0
    %6224 = vmatpush.bf16.msra.mxu0 %v6109
    %6225 = vmatpush.bf16.msra.mxu0 %v6105
    %6226 = vmatpush.bf16.msra.mxu0 %v6101
    %6227 = vmatpush.bf16.msra.mxu0 %v6097
    %6228 = vmatpush.bf16.msra.mxu0 %v6093
    %6229 = vmatpush.bf16.msra.mxu0 %v6089
    %6230 = vmatpush.bf16.msra.mxu0 %v6085
    %6231 = vmatpush.bf16.msra.mxu0 %v6081
    %6232 = vmatmul.bf16.gmra.mxu0 %v5790
    %v6233 = vpop.f32.mrf.mxu0
    %v6234 = vadd.f32 %v6221, %v6233
    %v6235 = vpop.f32.mrf.mxu0
    %6236 = vdwg.mxu0
    %6237 = vmatpush.bf16.msra.mxu0 %v6078
    %6238 = vmatpush.bf16.msra.mxu0 %v6074
    %6239 = vmatpush.bf16.msra.mxu0 %v6070
    %6240 = vmatpush.bf16.msra.mxu0 %v6066
    %6241 = vmatpush.bf16.msra.mxu0 %v6062
    %6242 = vmatpush.bf16.msra.mxu0 %v6058
    %6243 = vmatpush.bf16.msra.mxu0 %v6054
    %6244 = vmatpush.bf16.msra.mxu0 %v6050
    %6245 = vmatmul.bf16.gmra.mxu0 %v5789
    %v6246 = vpop.f32.mrf.mxu0
    %v6247 = vadd.f32 %v6179, %v6246
    %v6248 = vpop.f32.mrf.mxu0
    %6249 = vdwg.mxu0
    %6250 = vmatpush.bf16.msra.mxu0 %v6110
    %6251 = vmatpush.bf16.msra.mxu0 %v6106
    %6252 = vmatpush.bf16.msra.mxu0 %v6102
    %6253 = vmatpush.bf16.msra.mxu0 %v6098
    %6254 = vmatpush.bf16.msra.mxu0 %v6094
    %6255 = vmatpush.bf16.msra.mxu0 %v6090
    %6256 = vmatpush.bf16.msra.mxu0 %v6086
    %6257 = vmatpush.bf16.msra.mxu0 %v6082
    %6258 = vmatmul.bf16.gmra.mxu0 %v5790
    %v6259 = vpop.f32.mrf.mxu0
    %v6260 = vadd.f32 %v6247, %v6259
    %v6261 = vpop.f32.mrf.mxu0
    %6262 = vdwg.mxu0
    %6263 = vmatpush.bf16.msra.mxu0 %v6079
    %6264 = vmatpush.bf16.msra.mxu0 %v6075
    %6265 = vmatpush.bf16.msra.mxu0 %v6071
    %6266 = vmatpush.bf16.msra.mxu0 %v6067
    %6267 = vmatpush.bf16.msra.mxu0 %v6063
    %6268 = vmatpush.bf16.msra.mxu0 %v6059
    %6269 = vmatpush.bf16.msra.mxu0 %v6055
    %6270 = vmatpush.bf16.msra.mxu0 %v6051
    %6271 = vmatmul.bf16.gmra.mxu0 %v5789
    %v6272 = vpop.f32.mrf.mxu0
    %v6273 = vadd.f32 %v6180, %v6272
    %v6274 = vpop.f32.mrf.mxu0
    %6275 = vdwg.mxu0
    %6276 = vmatpush.bf16.msra.mxu0 %v6111
    %6277 = vmatpush.bf16.msra.mxu0 %v6107
    %6278 = vmatpush.bf16.msra.mxu0 %v6103
    %6279 = vmatpush.bf16.msra.mxu0 %v6099
    %6280 = vmatpush.bf16.msra.mxu0 %v6095
    %6281 = vmatpush.bf16.msra.mxu0 %v6091
    %6282 = vmatpush.bf16.msra.mxu0 %v6087
    %6283 = vmatpush.bf16.msra.mxu0 %v6083
    %6284 = vmatmul.bf16.gmra.mxu0 %v5790
    %v6285 = vpop.f32.mrf.mxu0
    %v6286 = vadd.f32 %v6273, %v6285
    %v6287 = vpop.f32.mrf.mxu0
    %6288 = vdwg.mxu0
    %v6289 = vxor.u32 %v6208, 2147483648
    %v6290 = vmul.f32 %v6289, 1.442695
    %v6291 = vpow.pop %v6290
    %v6292 = vadd.f32 %v6291, 1.0
    %v6293 = vrcp.pop %v6292
    %v6294 = vmul.f32 %v6292, %v6293
    %v6295 = vsub.f32 1.0, %v6294
    %v6296 = vmul.f32 %v6293, %v6295
    %v6297 = vadd.f32 %v6293, %v6296
    %vm6298 = vweird.f32 %v6292
    %vm6299 = vweird.f32 %v6293
    %vm6300 = vmor %vm6298, %vm6299
    %v6301 = vsel %vm6300, %v6293, %v6297
    %v6302 = vand.u32 2147483647, %v6292
    %vm6303 = vcmp.eq.f32.partialorder %v6302, 8.507059e+37
    %v6304 = vand.u32 %v6292, 2147483648
    %v6305 = vor.u32 1.1754944e-38, %v6304
    %v6306 = vsel %vm6303, %v6305, %v6301
    %v6307 = vmul.f32 1.0, %v6306
    %v6308 = vxor.u32 %v6234, 2147483648
    %v6309 = vmul.f32 %v6308, 1.442695
    %v6310 = vpow.pop %v6309
    %v6311 = vadd.f32 %v6310, 1.0
    %v6312 = vrcp.pop %v6311
    %v6313 = vmul.f32 %v6311, %v6312
    %v6314 = vsub.f32 1.0, %v6313
    %v6315 = vmul.f32 %v6312, %v6314
    %v6316 = vadd.f32 %v6312, %v6315
    %vm6317 = vweird.f32 %v6311
    %vm6318 = vweird.f32 %v6312
    %vm6319 = vmor %vm6317, %vm6318
    %v6320 = vsel %vm6319, %v6312, %v6316
    %v6321 = vand.u32 2147483647, %v6311
    %vm6322 = vcmp.eq.f32.partialorder %v6321, 8.507059e+37
    %v6323 = vand.u32 %v6311, 2147483648
    %v6324 = vor.u32 1.1754944e-38, %v6323
    %v6325 = vsel %vm6322, %v6324, %v6320
    %v6326 = vmul.f32 1.0, %v6325
    %v6327 = vtanh.pop %v6260
    %v6328 = vxor.u32 %v6286, 2147483648
    %v6329 = vmul.f32 %v6328, 1.442695
    %v6330 = vpow.pop %v6329
    %v6331 = vadd.f32 %v6330, 1.0
    %v6332 = vrcp.pop %v6331
    %v6333 = vmul.f32 %v6331, %v6332
    %v6334 = vsub.f32 1.0, %v6333
    %v6335 = vmul.f32 %v6332, %v6334
    %v6336 = vadd.f32 %v6332, %v6335
    %vm6337 = vweird.f32 %v6331
    %vm6338 = vweird.f32 %v6332
    %vm6339 = vmor %vm6337, %vm6338
    %v6340 = vsel %vm6339, %v6332, %v6336
    %v6341 = vand.u32 2147483647, %v6331
    %vm6342 = vcmp.eq.f32.partialorder %v6341, 8.507059e+37
    %v6343 = vand.u32 %v6331, 2147483648
    %v6344 = vor.u32 1.1754944e-38, %v6343
    %v6345 = vsel %vm6342, %v6344, %v6340
    %v6346 = vmul.f32 1.0, %v6345
    %v6347 = vmul.f32 %v6326, %v5453
    %v6348 = vmul.f32 %v6307, %v6327
    %v6349 = vadd.f32 %v6347, %v6348
    %v6350 = vtanh.pop %v6349
    %v6351 = vmul.f32 %v6346, %v6350
    %6352 = vst [vmem:[#allocation2 + $0x6] sm:$0x1] %v6351
    %s6353 = sld [smem:[#allocation3 + $0x7]]
    %v6354 = vld [vmem:[#allocation6] ss:$8 sm:$0xf]
    %v6355 = vstv %s6353
    %v6356 = vmul.f32 %v6355, %v6354
    %v6357 = vld [vmem:[#allocation7] sm:$0xff]
    %v6358 = vld [vmem:[#allocation7 + $0x8] sm:$0xff]
    %v6359 = vld [vmem:[#allocation7 + $0x10] sm:$0xff]
    %v6360 = vld [vmem:[#allocation7 + $0x18] sm:$0xff]
    %v6361 = vld [vmem:[#allocation7 + $0x20] sm:$0xff]
    %v6362 = vld [vmem:[#allocation7 + $0x28] sm:$0xff]
    %v6363 = vld [vmem:[#allocation7 + $0x30] sm:$0xff]
    %v6364 = vld [vmem:[#allocation7 + $0x38] sm:$0xff]
    %v6365 = vld [vmem:[#allocation7 + $0x40] sm:$0xff]
    %v6366 = vld [vmem:[#allocation7 + $0x48] sm:$0xff]
    %v6367 = vld [vmem:[#allocation7 + $0x50] sm:$0xff]
    %v6368 = vld [vmem:[#allocation7 + $0x58] sm:$0xff]
    %v6369 = vld [vmem:[#allocation7 + $0x60] sm:$0xff]
    %v6370 = vld [vmem:[#allocation7 + $0x68] sm:$0xff]
    %v6371 = vld [vmem:[#allocation7 + $0x70] sm:$0xff]
    %v6372 = vld [vmem:[#allocation7 + $0x78] sm:$0xff]
    %v6373 = vld [vmem:[#allocation7 + $0x80] sm:$0xff]
    %v6374 = vld [vmem:[#allocation7 + $0x88] sm:$0xff]
    %v6375 = vld [vmem:[#allocation7 + $0x90] sm:$0xff]
    %v6376 = vld [vmem:[#allocation7 + $0x98] sm:$0xff]
    %v6377 = vld [vmem:[#allocation7 + $0xa0] sm:$0xff]
    %v6378 = vld [vmem:[#allocation7 + $0xa8] sm:$0xff]
    %v6379 = vld [vmem:[#allocation7 + $0xb0] sm:$0xff]
    %v6380 = vld [vmem:[#allocation7 + $0xb8] sm:$0xff]
    %v6381 = vld [vmem:[#allocation7 + $0xc0] sm:$0xff]
    %v6382 = vld [vmem:[#allocation7 + $0xc8] sm:$0xff]
    %v6383 = vld [vmem:[#allocation7 + $0xd0] sm:$0xff]
    %v6384 = vld [vmem:[#allocation7 + $0xd8] sm:$0xff]
    %v6385 = vld [vmem:[#allocation7 + $0xe0] sm:$0xff]
    %v6386 = vld [vmem:[#allocation7 + $0xe8] sm:$0xff]
    %v6387 = vld [vmem:[#allocation7 + $0xf0] sm:$0xff]
    %v6388 = vld [vmem:[#allocation7 + $0xf8] sm:$0xff]
    %v6421 = vunpack.c.l.b16 %v6357
    %v6422 = vunpack.c.h.b16 %v6357
    %v6423 = vunpack.c.l.b16 %v6358
    %v6424 = vunpack.c.h.b16 %v6358
    %v6425 = vunpack.c.l.b16 %v6359
    %v6426 = vunpack.c.h.b16 %v6359
    %v6427 = vunpack.c.l.b16 %v6360
    %v6428 = vunpack.c.h.b16 %v6360
    %v6429 = vunpack.c.l.b16 %v6361
    %v6430 = vunpack.c.h.b16 %v6361
    %v6431 = vunpack.c.l.b16 %v6362
    %v6432 = vunpack.c.h.b16 %v6362
    %v6433 = vunpack.c.l.b16 %v6363
    %v6434 = vunpack.c.h.b16 %v6363
    %v6435 = vunpack.c.l.b16 %v6364
    %v6436 = vunpack.c.h.b16 %v6364
    %v6437 = vunpack.c.l.b16 %v6365
    %v6438 = vunpack.c.h.b16 %v6365
    %v6439 = vunpack.c.l.b16 %v6366
    %v6440 = vunpack.c.h.b16 %v6366
    %v6441 = vunpack.c.l.b16 %v6367
    %v6442 = vunpack.c.h.b16 %v6367
    %v6443 = vunpack.c.l.b16 %v6368
    %v6444 = vunpack.c.h.b16 %v6368
    %v6445 = vunpack.c.l.b16 %v6369
    %v6446 = vunpack.c.h.b16 %v6369
    %v6447 = vunpack.c.l.b16 %v6370
    %v6448 = vunpack.c.h.b16 %v6370
    %v6449 = vunpack.c.l.b16 %v6371
    %v6450 = vunpack.c.h.b16 %v6371
    %v6451 = vunpack.c.l.b16 %v6372
    %v6452 = vunpack.c.h.b16 %v6372
    %v6453 = vunpack.c.l.b16 %v6373
    %v6454 = vunpack.c.h.b16 %v6373
    %v6455 = vunpack.c.l.b16 %v6374
    %v6456 = vunpack.c.h.b16 %v6374
    %v6457 = vunpack.c.l.b16 %v6375
    %v6458 = vunpack.c.h.b16 %v6375
    %v6459 = vunpack.c.l.b16 %v6376
    %v6460 = vunpack.c.h.b16 %v6376
    %v6461 = vunpack.c.l.b16 %v6377
    %v6462 = vunpack.c.h.b16 %v6377
    %v6463 = vunpack.c.l.b16 %v6378
    %v6464 = vunpack.c.h.b16 %v6378
    %v6465 = vunpack.c.l.b16 %v6379
    %v6466 = vunpack.c.h.b16 %v6379
    %v6467 = vunpack.c.l.b16 %v6380
    %v6468 = vunpack.c.h.b16 %v6380
    %v6469 = vunpack.c.l.b16 %v6381
    %v6470 = vunpack.c.h.b16 %v6381
    %v6471 = vunpack.c.l.b16 %v6382
    %v6472 = vunpack.c.h.b16 %v6382
    %v6473 = vunpack.c.l.b16 %v6383
    %v6474 = vunpack.c.h.b16 %v6383
    %v6475 = vunpack.c.l.b16 %v6384
    %v6476 = vunpack.c.h.b16 %v6384
    %v6477 = vunpack.c.l.b16 %v6385
    %v6478 = vunpack.c.h.b16 %v6385
    %v6479 = vunpack.c.l.b16 %v6386
    %v6480 = vunpack.c.h.b16 %v6386
    %v6481 = vunpack.c.l.b16 %v6387
    %v6482 = vunpack.c.h.b16 %v6387
    %v6483 = vunpack.c.l.b16 %v6388
    %v6484 = vunpack.c.h.b16 %v6388
    %v6485 = vpack.c.b16 %v6425, %v6421
    %v6486 = vpack.c.b16 %v6426, %v6422
    %v6487 = vpack.c.b16 %v6427, %v6423
    %v6488 = vpack.c.b16 %v6428, %v6424
    %v6489 = vpack.c.b16 %v6433, %v6429
    %v6490 = vpack.c.b16 %v6434, %v6430
    %v6491 = vpack.c.b16 %v6435, %v6431
    %v6492 = vpack.c.b16 %v6436, %v6432
    %v6493 = vpack.c.b16 %v6441, %v6437
    %v6494 = vpack.c.b16 %v6442, %v6438
    %v6495 = vpack.c.b16 %v6443, %v6439
    %v6496 = vpack.c.b16 %v6444, %v6440
    %v6497 = vpack.c.b16 %v6449, %v6445
    %v6498 = vpack.c.b16 %v6450, %v6446
    %v6499 = vpack.c.b16 %v6451, %v6447
    %v6500 = vpack.c.b16 %v6452, %v6448
    %v6501 = vpack.c.b16 %v6457, %v6453
    %v6502 = vpack.c.b16 %v6458, %v6454
    %v6503 = vpack.c.b16 %v6459, %v6455
    %v6504 = vpack.c.b16 %v6460, %v6456
    %v6505 = vpack.c.b16 %v6465, %v6461
    %v6506 = vpack.c.b16 %v6466, %v6462
    %v6507 = vpack.c.b16 %v6467, %v6463
    %v6508 = vpack.c.b16 %v6468, %v6464
    %v6509 = vpack.c.b16 %v6473, %v6469
    %v6510 = vpack.c.b16 %v6474, %v6470
    %v6511 = vpack.c.b16 %v6475, %v6471
    %v6512 = vpack.c.b16 %v6476, %v6472
    %v6513 = vpack.c.b16 %v6481, %v6477
    %v6514 = vpack.c.b16 %v6482, %v6478
    %v6515 = vpack.c.b16 %v6483, %v6479
    %v6516 = vpack.c.b16 %v6484, %v6480
    %6549 = vmatpush.bf16.msra.mxu0 %v6513
    %6550 = vmatpush.bf16.msra.mxu0 %v6509
    %6551 = vmatpush.bf16.msra.mxu0 %v6505
    %6552 = vmatpush.bf16.msra.mxu0 %v6501
    %6553 = vmatpush.bf16.msra.mxu0 %v6497
    %6554 = vmatpush.bf16.msra.mxu0 %v6493
    %6555 = vmatpush.bf16.msra.mxu0 %v6489
    %6556 = vmatpush.bf16.msra.mxu0 %v6485
    %6557 = vmatmul.bf16.gmra.mxu0 %v5789
    %v6558 = vpop.f32.mrf.mxu0
    %v6559 = vadd.f32 0.0, %v6558
    %v6560 = vpop.f32.mrf.mxu0
    %6561 = vdwg.mxu0
    %6562 = vmatpush.bf16.msra.mxu0 %v6514
    %6563 = vmatpush.bf16.msra.mxu0 %v6510
    %6564 = vmatpush.bf16.msra.mxu0 %v6506
    %6565 = vmatpush.bf16.msra.mxu0 %v6502
    %6566 = vmatpush.bf16.msra.mxu0 %v6498
    %6567 = vmatpush.bf16.msra.mxu0 %v6494
    %6568 = vmatpush.bf16.msra.mxu0 %v6490
    %6569 = vmatpush.bf16.msra.mxu0 %v6486
    %6570 = vmatmul.bf16.gmra.mxu0 %v5789
    %v6571 = vpop.f32.mrf.mxu0
    %v6572 = vadd.f32 0.0, %v6571
    %v6573 = vpop.f32.mrf.mxu0
    %6574 = vdwg.mxu0
    %6575 = vmatpush.bf16.msra.mxu0 %v6515
    %6576 = vmatpush.bf16.msra.mxu0 %v6511
    %6577 = vmatpush.bf16.msra.mxu0 %v6507
    %6578 = vmatpush.bf16.msra.mxu0 %v6503
    %6579 = vmatpush.bf16.msra.mxu0 %v6499
    %6580 = vmatpush.bf16.msra.mxu0 %v6495
    %6581 = vmatpush.bf16.msra.mxu0 %v6491
    %6582 = vmatpush.bf16.msra.mxu0 %v6487
    %6583 = vmatmul.bf16.gmra.mxu0 %v5789
    %v6584 = vpop.f32.mrf.mxu0
    %v6585 = vadd.f32 0.0, %v6584
    %v6586 = vpop.f32.mrf.mxu0
    %6587 = vdwg.mxu0
    %6588 = vmatpush.bf16.msra.mxu0 %v6516
    %6589 = vmatpush.bf16.msra.mxu0 %v6512
    %6590 = vmatpush.bf16.msra.mxu0 %v6508
    %6591 = vmatpush.bf16.msra.mxu0 %v6504
    %6592 = vmatpush.bf16.msra.mxu0 %v6500
    %6593 = vmatpush.bf16.msra.mxu0 %v6496
    %6594 = vmatpush.bf16.msra.mxu0 %v6492
    %6595 = vmatpush.bf16.msra.mxu0 %v6488
    %6596 = vmatmul.bf16.gmra.mxu0 %v5789
    %v6597 = vpop.f32.mrf.mxu0
    %v6598 = vadd.f32 0.0, %v6597
    %v6599 = vpop.f32.mrf.mxu0
    %6600 = vdwg.mxu0
    %v6605 = vrot.slane %v6572, 7
    %v6606 = vrot.slane %v6585, 6
    %v6607 = vrot.slane %v6598, 5
    %v6608 = vsel %vm331, %v6559, %v6605
    %v6609 = vsel %vm333, %v6606, %v6607
    %v6610 = vsel %vm335, %v6608, %v6609
    %v6612 = vadd.f32 %v6356, %v6610
    %v6613 = vld [vmem:[%s339] ss:$8 sm:$0xf]
    %v6614 = vadd.f32 %v6612, %v6613
    %v6615 = vxor.u32 %v6614, 2147483648
    %v6616 = vmul.f32 %v6615, 1.442695
    %v6617 = vpow.pop %v6616
    %v6618 = vadd.f32 %v6617, 1.0
    %v6619 = vrcp.pop %v6618
    %v6620 = vmul.f32 %v6618, %v6619
    %v6621 = vsub.f32 1.0, %v6620
    %v6622 = vmul.f32 %v6619, %v6621
    %v6623 = vadd.f32 %v6619, %v6622
    %vm6624 = vweird.f32 %v6618
    %vm6625 = vweird.f32 %v6619
    %vm6626 = vmor %vm6624, %vm6625
    %v6627 = vsel %vm6626, %v6619, %v6623
    %v6628 = vand.u32 2147483647, %v6618
    %vm6629 = vcmp.eq.f32.partialorder %v6628, 8.507059e+37
    %v6630 = vand.u32 %v6618, 2147483648
    %v6631 = vor.u32 1.1754944e-38, %v6630
    %v6632 = vsel %vm6629, %v6631, %v6627
    %v6633 = vmul.f32 1.0, %v6632
    %v6635 = vrot.slane %v6614, 1
    %v6637 = vxor.u32 %v6635, 2147483648
    %v6638 = vmul.f32 %v6637, 1.442695
    %v6639 = vpow.pop %v6638
    %v6640 = vadd.f32 %v6639, 1.0
    %v6641 = vrcp.pop %v6640
    %v6642 = vmul.f32 %v6640, %v6641
    %v6643 = vsub.f32 1.0, %v6642
    %v6644 = vmul.f32 %v6641, %v6643
    %v6645 = vadd.f32 %v6641, %v6644
    %vm6646 = vweird.f32 %v6640
    %vm6647 = vweird.f32 %v6641
    %vm6648 = vmor %vm6646, %vm6647
    %v6649 = vsel %vm6648, %v6641, %v6645
    %v6650 = vand.u32 2147483647, %v6640
    %vm6651 = vcmp.eq.f32.partialorder %v6650, 8.507059e+37
    %v6652 = vand.u32 %v6640, 2147483648
    %v6653 = vor.u32 1.1754944e-38, %v6652
    %v6654 = vsel %vm6651, %v6653, %v6649
    %v6655 = vmul.f32 1.0, %v6654
    %v6656 = vrot.slane %v6614, 2
    %v6658 = vtanh.pop %v6656
    %v6659 = vrot.slane %v6614, 3
    %v6661 = vxor.u32 %v6659, 2147483648
    %v6662 = vmul.f32 %v6661, 1.442695
    %v6663 = vpow.pop %v6662
    %v6664 = vadd.f32 %v6663, 1.0
    %v6665 = vrcp.pop %v6664
    %v6666 = vmul.f32 %v6664, %v6665
    %v6667 = vsub.f32 1.0, %v6666
    %v6668 = vmul.f32 %v6665, %v6667
    %v6669 = vadd.f32 %v6665, %v6668
    %vm6670 = vweird.f32 %v6664
    %vm6671 = vweird.f32 %v6665
    %vm6672 = vmor %vm6670, %vm6671
    %v6673 = vsel %vm6672, %v6665, %v6669
    %v6674 = vand.u32 2147483647, %v6664
    %vm6675 = vcmp.eq.f32.partialorder %v6674, 8.507059e+37
    %v6676 = vand.u32 %v6664, 2147483648
    %v6677 = vor.u32 1.1754944e-38, %v6676
    %v6678 = vsel %vm6675, %v6677, %v6673
    %v6679 = vmul.f32 1.0, %v6678
    %v6680 = vmul.f32 %v6655, %v5786
    %v6681 = vmul.f32 %v6633, %v6658
    %v6682 = vadd.f32 %v6680, %v6681
    %v6683 = vtanh.pop %v6682
    %v6684 = vmul.f32 %v6679, %v6683
    %v6685 = vpack.c.bf16 %v6684, %v6684
    %v6686 = vpack.c.bf16 %v6351, %v6351
    %v6687 = vld [vmem:[#allocation9] sm:$0xff]
    %v6688 = vld [vmem:[#allocation9 + $0x8] sm:$0xff]
    %v6689 = vld [vmem:[#allocation9 + $0x10] sm:$0xff]
    %v6690 = vld [vmem:[#allocation9 + $0x18] sm:$0xff]
    %v6691 = vld [vmem:[#allocation9 + $0x20] sm:$0xff]
    %v6692 = vld [vmem:[#allocation9 + $0x28] sm:$0xff]
    %v6693 = vld [vmem:[#allocation9 + $0x30] sm:$0xff]
    %v6694 = vld [vmem:[#allocation9 + $0x38] sm:$0xff]
    %v6695 = vld [vmem:[#allocation9 + $0x40] sm:$0xff]
    %v6696 = vld [vmem:[#allocation9 + $0x48] sm:$0xff]
    %v6697 = vld [vmem:[#allocation9 + $0x50] sm:$0xff]
    %v6698 = vld [vmem:[#allocation9 + $0x58] sm:$0xff]
    %v6699 = vld [vmem:[#allocation9 + $0x60] sm:$0xff]
    %v6700 = vld [vmem:[#allocation9 + $0x68] sm:$0xff]
    %v6701 = vld [vmem:[#allocation9 + $0x70] sm:$0xff]
    %v6702 = vld [vmem:[#allocation9 + $0x78] sm:$0xff]
    %v6703 = vld [vmem:[#allocation9 + $0x80] sm:$0xff]
    %v6704 = vld [vmem:[#allocation9 + $0x88] sm:$0xff]
    %v6705 = vld [vmem:[#allocation9 + $0x90] sm:$0xff]
    %v6706 = vld [vmem:[#allocation9 + $0x98] sm:$0xff]
    %v6707 = vld [vmem:[#allocation9 + $0xa0] sm:$0xff]
    %v6708 = vld [vmem:[#allocation9 + $0xa8] sm:$0xff]
    %v6709 = vld [vmem:[#allocation9 + $0xb0] sm:$0xff]
    %v6710 = vld [vmem:[#allocation9 + $0xb8] sm:$0xff]
    %v6711 = vld [vmem:[#allocation9 + $0xc0] sm:$0xff]
    %v6712 = vld [vmem:[#allocation9 + $0xc8] sm:$0xff]
    %v6713 = vld [vmem:[#allocation9 + $0xd0] sm:$0xff]
    %v6714 = vld [vmem:[#allocation9 + $0xd8] sm:$0xff]
    %v6715 = vld [vmem:[#allocation9 + $0xe0] sm:$0xff]
    %v6716 = vld [vmem:[#allocation9 + $0xe8] sm:$0xff]
    %v6717 = vld [vmem:[#allocation9 + $0xf0] sm:$0xff]
    %v6718 = vld [vmem:[#allocation9 + $0xf8] sm:$0xff]
    %v6719 = vld [vmem:[#allocation9 + $0x100] sm:$0xff]
    %v6720 = vld [vmem:[#allocation9 + $0x108] sm:$0xff]
    %v6721 = vld [vmem:[#allocation9 + $0x110] sm:$0xff]
    %v6722 = vld [vmem:[#allocation9 + $0x118] sm:$0xff]
    %v6723 = vld [vmem:[#allocation9 + $0x120] sm:$0xff]
    %v6724 = vld [vmem:[#allocation9 + $0x128] sm:$0xff]
    %v6725 = vld [vmem:[#allocation9 + $0x130] sm:$0xff]
    %v6726 = vld [vmem:[#allocation9 + $0x138] sm:$0xff]
    %v6727 = vld [vmem:[#allocation9 + $0x140] sm:$0xff]
    %v6728 = vld [vmem:[#allocation9 + $0x148] sm:$0xff]
    %v6729 = vld [vmem:[#allocation9 + $0x150] sm:$0xff]
    %v6730 = vld [vmem:[#allocation9 + $0x158] sm:$0xff]
    %v6731 = vld [vmem:[#allocation9 + $0x160] sm:$0xff]
    %v6732 = vld [vmem:[#allocation9 + $0x168] sm:$0xff]
    %v6733 = vld [vmem:[#allocation9 + $0x170] sm:$0xff]
    %v6734 = vld [vmem:[#allocation9 + $0x178] sm:$0xff]
    %v6735 = vld [vmem:[#allocation9 + $0x180] sm:$0xff]
    %v6736 = vld [vmem:[#allocation9 + $0x188] sm:$0xff]
    %v6737 = vld [vmem:[#allocation9 + $0x190] sm:$0xff]
    %v6738 = vld [vmem:[#allocation9 + $0x198] sm:$0xff]
    %v6739 = vld [vmem:[#allocation9 + $0x1a0] sm:$0xff]
    %v6740 = vld [vmem:[#allocation9 + $0x1a8] sm:$0xff]
    %v6741 = vld [vmem:[#allocation9 + $0x1b0] sm:$0xff]
    %v6742 = vld [vmem:[#allocation9 + $0x1b8] sm:$0xff]
    %v6743 = vld [vmem:[#allocation9 + $0x1c0] sm:$0xff]
    %v6744 = vld [vmem:[#allocation9 + $0x1c8] sm:$0xff]
    %v6745 = vld [vmem:[#allocation9 + $0x1d0] sm:$0xff]
    %v6746 = vld [vmem:[#allocation9 + $0x1d8] sm:$0xff]
    %v6747 = vld [vmem:[#allocation9 + $0x1e0] sm:$0xff]
    %v6748 = vld [vmem:[#allocation9 + $0x1e8] sm:$0xff]
    %v6749 = vld [vmem:[#allocation9 + $0x1f0] sm:$0xff]
    %v6750 = vld [vmem:[#allocation9 + $0x1f8] sm:$0xff]
    %v6751 = vld [vmem:[%s478] ss:$8 sm:$0xf]
    %v6816 = vunpack.c.l.b16 %v6687
    %v6817 = vunpack.c.h.b16 %v6687
    %v6818 = vunpack.c.l.b16 %v6688
    %v6819 = vunpack.c.h.b16 %v6688
    %v6820 = vunpack.c.l.b16 %v6689
    %v6821 = vunpack.c.h.b16 %v6689
    %v6822 = vunpack.c.l.b16 %v6690
    %v6823 = vunpack.c.h.b16 %v6690
    %v6824 = vunpack.c.l.b16 %v6691
    %v6825 = vunpack.c.h.b16 %v6691
    %v6826 = vunpack.c.l.b16 %v6692
    %v6827 = vunpack.c.h.b16 %v6692
    %v6828 = vunpack.c.l.b16 %v6693
    %v6829 = vunpack.c.h.b16 %v6693
    %v6830 = vunpack.c.l.b16 %v6694
    %v6831 = vunpack.c.h.b16 %v6694
    %v6832 = vunpack.c.l.b16 %v6695
    %v6833 = vunpack.c.h.b16 %v6695
    %v6834 = vunpack.c.l.b16 %v6696
    %v6835 = vunpack.c.h.b16 %v6696
    %v6836 = vunpack.c.l.b16 %v6697
    %v6837 = vunpack.c.h.b16 %v6697
    %v6838 = vunpack.c.l.b16 %v6698
    %v6839 = vunpack.c.h.b16 %v6698
    %v6840 = vunpack.c.l.b16 %v6699
    %v6841 = vunpack.c.h.b16 %v6699
    %v6842 = vunpack.c.l.b16 %v6700
    %v6843 = vunpack.c.h.b16 %v6700
    %v6844 = vunpack.c.l.b16 %v6701
    %v6845 = vunpack.c.h.b16 %v6701
    %v6846 = vunpack.c.l.b16 %v6702
    %v6847 = vunpack.c.h.b16 %v6702
    %v6848 = vunpack.c.l.b16 %v6703
    %v6849 = vunpack.c.h.b16 %v6703
    %v6850 = vunpack.c.l.b16 %v6704
    %v6851 = vunpack.c.h.b16 %v6704
    %v6852 = vunpack.c.l.b16 %v6705
    %v6853 = vunpack.c.h.b16 %v6705
    %v6854 = vunpack.c.l.b16 %v6706
    %v6855 = vunpack.c.h.b16 %v6706
    %v6856 = vunpack.c.l.b16 %v6707
    %v6857 = vunpack.c.h.b16 %v6707
    %v6858 = vunpack.c.l.b16 %v6708
    %v6859 = vunpack.c.h.b16 %v6708
    %v6860 = vunpack.c.l.b16 %v6709
    %v6861 = vunpack.c.h.b16 %v6709
    %v6862 = vunpack.c.l.b16 %v6710
    %v6863 = vunpack.c.h.b16 %v6710
    %v6864 = vunpack.c.l.b16 %v6711
    %v6865 = vunpack.c.h.b16 %v6711
    %v6866 = vunpack.c.l.b16 %v6712
    %v6867 = vunpack.c.h.b16 %v6712
    %v6868 = vunpack.c.l.b16 %v6713
    %v6869 = vunpack.c.h.b16 %v6713
    %v6870 = vunpack.c.l.b16 %v6714
    %v6871 = vunpack.c.h.b16 %v6714
    %v6872 = vunpack.c.l.b16 %v6715
    %v6873 = vunpack.c.h.b16 %v6715
    %v6874 = vunpack.c.l.b16 %v6716
    %v6875 = vunpack.c.h.b16 %v6716
    %v6876 = vunpack.c.l.b16 %v6717
    %v6877 = vunpack.c.h.b16 %v6717
    %v6878 = vunpack.c.l.b16 %v6718
    %v6879 = vunpack.c.h.b16 %v6718
    %v6880 = vunpack.c.l.b16 %v6719
    %v6881 = vunpack.c.h.b16 %v6719
    %v6882 = vunpack.c.l.b16 %v6720
    %v6883 = vunpack.c.h.b16 %v6720
    %v6884 = vunpack.c.l.b16 %v6721
    %v6885 = vunpack.c.h.b16 %v6721
    %v6886 = vunpack.c.l.b16 %v6722
    %v6887 = vunpack.c.h.b16 %v6722
    %v6888 = vunpack.c.l.b16 %v6723
    %v6889 = vunpack.c.h.b16 %v6723
    %v6890 = vunpack.c.l.b16 %v6724
    %v6891 = vunpack.c.h.b16 %v6724
    %v6892 = vunpack.c.l.b16 %v6725
    %v6893 = vunpack.c.h.b16 %v6725
    %v6894 = vunpack.c.l.b16 %v6726
    %v6895 = vunpack.c.h.b16 %v6726
    %v6896 = vunpack.c.l.b16 %v6727
    %v6897 = vunpack.c.h.b16 %v6727
    %v6898 = vunpack.c.l.b16 %v6728
    %v6899 = vunpack.c.h.b16 %v6728
    %v6900 = vunpack.c.l.b16 %v6729
    %v6901 = vunpack.c.h.b16 %v6729
    %v6902 = vunpack.c.l.b16 %v6730
    %v6903 = vunpack.c.h.b16 %v6730
    %v6904 = vunpack.c.l.b16 %v6731
    %v6905 = vunpack.c.h.b16 %v6731
    %v6906 = vunpack.c.l.b16 %v6732
    %v6907 = vunpack.c.h.b16 %v6732
    %v6908 = vunpack.c.l.b16 %v6733
    %v6909 = vunpack.c.h.b16 %v6733
    %v6910 = vunpack.c.l.b16 %v6734
    %v6911 = vunpack.c.h.b16 %v6734
    %v6912 = vunpack.c.l.b16 %v6735
    %v6913 = vunpack.c.h.b16 %v6735
    %v6914 = vunpack.c.l.b16 %v6736
    %v6915 = vunpack.c.h.b16 %v6736
    %v6916 = vunpack.c.l.b16 %v6737
    %v6917 = vunpack.c.h.b16 %v6737
    %v6918 = vunpack.c.l.b16 %v6738
    %v6919 = vunpack.c.h.b16 %v6738
    %v6920 = vunpack.c.l.b16 %v6739
    %v6921 = vunpack.c.h.b16 %v6739
    %v6922 = vunpack.c.l.b16 %v6740
    %v6923 = vunpack.c.h.b16 %v6740
    %v6924 = vunpack.c.l.b16 %v6741
    %v6925 = vunpack.c.h.b16 %v6741
    %v6926 = vunpack.c.l.b16 %v6742
    %v6927 = vunpack.c.h.b16 %v6742
    %v6928 = vunpack.c.l.b16 %v6743
    %v6929 = vunpack.c.h.b16 %v6743
    %v6930 = vunpack.c.l.b16 %v6744
    %v6931 = vunpack.c.h.b16 %v6744
    %v6932 = vunpack.c.l.b16 %v6745
    %v6933 = vunpack.c.h.b16 %v6745
    %v6934 = vunpack.c.l.b16 %v6746
    %v6935 = vunpack.c.h.b16 %v6746
    %v6936 = vunpack.c.l.b16 %v6747
    %v6937 = vunpack.c.h.b16 %v6747
    %v6938 = vunpack.c.l.b16 %v6748
    %v6939 = vunpack.c.h.b16 %v6748
    %v6940 = vunpack.c.l.b16 %v6749
    %v6941 = vunpack.c.h.b16 %v6749
    %v6942 = vunpack.c.l.b16 %v6750
    %v6943 = vunpack.c.h.b16 %v6750
    %v6944 = vpack.c.b16 %v6820, %v6816
    %v6945 = vpack.c.b16 %v6821, %v6817
    %v6946 = vpack.c.b16 %v6822, %v6818
    %v6947 = vpack.c.b16 %v6823, %v6819
    %v6948 = vpack.c.b16 %v6828, %v6824
    %v6949 = vpack.c.b16 %v6829, %v6825
    %v6950 = vpack.c.b16 %v6830, %v6826
    %v6951 = vpack.c.b16 %v6831, %v6827
    %v6952 = vpack.c.b16 %v6836, %v6832
    %v6953 = vpack.c.b16 %v6837, %v6833
    %v6954 = vpack.c.b16 %v6838, %v6834
    %v6955 = vpack.c.b16 %v6839, %v6835
    %v6956 = vpack.c.b16 %v6844, %v6840
    %v6957 = vpack.c.b16 %v6845, %v6841
    %v6958 = vpack.c.b16 %v6846, %v6842
    %v6959 = vpack.c.b16 %v6847, %v6843
    %v6960 = vpack.c.b16 %v6852, %v6848
    %v6961 = vpack.c.b16 %v6853, %v6849
    %v6962 = vpack.c.b16 %v6854, %v6850
    %v6963 = vpack.c.b16 %v6855, %v6851
    %v6964 = vpack.c.b16 %v6860, %v6856
    %v6965 = vpack.c.b16 %v6861, %v6857
    %v6966 = vpack.c.b16 %v6862, %v6858
    %v6967 = vpack.c.b16 %v6863, %v6859
    %v6968 = vpack.c.b16 %v6868, %v6864
    %v6969 = vpack.c.b16 %v6869, %v6865
    %v6970 = vpack.c.b16 %v6870, %v6866
    %v6971 = vpack.c.b16 %v6871, %v6867
    %v6972 = vpack.c.b16 %v6876, %v6872
    %v6973 = vpack.c.b16 %v6877, %v6873
    %v6974 = vpack.c.b16 %v6878, %v6874
    %v6975 = vpack.c.b16 %v6879, %v6875
    %v6976 = vpack.c.b16 %v6884, %v6880
    %v6977 = vpack.c.b16 %v6885, %v6881
    %v6978 = vpack.c.b16 %v6886, %v6882
    %v6979 = vpack.c.b16 %v6887, %v6883
    %v6980 = vpack.c.b16 %v6892, %v6888
    %v6981 = vpack.c.b16 %v6893, %v6889
    %v6982 = vpack.c.b16 %v6894, %v6890
    %v6983 = vpack.c.b16 %v6895, %v6891
    %v6984 = vpack.c.b16 %v6900, %v6896
    %v6985 = vpack.c.b16 %v6901, %v6897
    %v6986 = vpack.c.b16 %v6902, %v6898
    %v6987 = vpack.c.b16 %v6903, %v6899
    %v6988 = vpack.c.b16 %v6908, %v6904
    %v6989 = vpack.c.b16 %v6909, %v6905
    %v6990 = vpack.c.b16 %v6910, %v6906
    %v6991 = vpack.c.b16 %v6911, %v6907
    %v6992 = vpack.c.b16 %v6916, %v6912
    %v6993 = vpack.c.b16 %v6917, %v6913
    %v6994 = vpack.c.b16 %v6918, %v6914
    %v6995 = vpack.c.b16 %v6919, %v6915
    %v6996 = vpack.c.b16 %v6924, %v6920
    %v6997 = vpack.c.b16 %v6925, %v6921
    %v6998 = vpack.c.b16 %v6926, %v6922
    %v6999 = vpack.c.b16 %v6927, %v6923
    %v7000 = vpack.c.b16 %v6932, %v6928
    %v7001 = vpack.c.b16 %v6933, %v6929
    %v7002 = vpack.c.b16 %v6934, %v6930
    %v7003 = vpack.c.b16 %v6935, %v6931
    %v7004 = vpack.c.b16 %v6940, %v6936
    %v7005 = vpack.c.b16 %v6941, %v6937
    %v7006 = vpack.c.b16 %v6942, %v6938
    %v7007 = vpack.c.b16 %v6943, %v6939
    %v7073 = vperm.slane %v6751, 0
    %v7074 = vperm.slane %v6751, 1
    %v7075 = vperm.slane %v6751, 2
    %v7076 = vperm.slane %v6751, 3
    %7081 = vmatpush.bf16.msra.mxu0 %v6972
    %7082 = vmatpush.bf16.msra.mxu0 %v6968
    %7083 = vmatpush.bf16.msra.mxu0 %v6964
    %7084 = vmatpush.bf16.msra.mxu0 %v6960
    %7085 = vmatpush.bf16.msra.mxu0 %v6956
    %7086 = vmatpush.bf16.msra.mxu0 %v6952
    %7087 = vmatpush.bf16.msra.mxu0 %v6948
    %7088 = vmatpush.bf16.msra.mxu0 %v6944
    %7089 = vmatmul.bf16.gmra.mxu0 %v6685
    %v7090 = vpop.f32.mrf.mxu0
    %v7091 = vadd.f32 %v7073, %v7090
    %v7092 = vpop.f32.mrf.mxu0
    %7093 = vdwg.mxu0
    %7094 = vmatpush.bf16.msra.mxu0 %v7004
    %7095 = vmatpush.bf16.msra.mxu0 %v7000
    %7096 = vmatpush.bf16.msra.mxu0 %v6996
    %7097 = vmatpush.bf16.msra.mxu0 %v6992
    %7098 = vmatpush.bf16.msra.mxu0 %v6988
    %7099 = vmatpush.bf16.msra.mxu0 %v6984
    %7100 = vmatpush.bf16.msra.mxu0 %v6980
    %7101 = vmatpush.bf16.msra.mxu0 %v6976
    %7102 = vmatmul.bf16.gmra.mxu0 %v6686
    %v7103 = vpop.f32.mrf.mxu0
    %v7104 = vadd.f32 %v7091, %v7103
    %v7105 = vpop.f32.mrf.mxu0
    %7106 = vdwg.mxu0
    %7107 = vmatpush.bf16.msra.mxu0 %v6973
    %7108 = vmatpush.bf16.msra.mxu0 %v6969
    %7109 = vmatpush.bf16.msra.mxu0 %v6965
    %7110 = vmatpush.bf16.msra.mxu0 %v6961
    %7111 = vmatpush.bf16.msra.mxu0 %v6957
    %7112 = vmatpush.bf16.msra.mxu0 %v6953
    %7113 = vmatpush.bf16.msra.mxu0 %v6949
    %7114 = vmatpush.bf16.msra.mxu0 %v6945
    %7115 = vmatmul.bf16.gmra.mxu0 %v6685
    %v7116 = vpop.f32.mrf.mxu0
    %v7117 = vadd.f32 %v7074, %v7116
    %v7118 = vpop.f32.mrf.mxu0
    %7119 = vdwg.mxu0
    %7120 = vmatpush.bf16.msra.mxu0 %v7005
    %7121 = vmatpush.bf16.msra.mxu0 %v7001
    %7122 = vmatpush.bf16.msra.mxu0 %v6997
    %7123 = vmatpush.bf16.msra.mxu0 %v6993
    %7124 = vmatpush.bf16.msra.mxu0 %v6989
    %7125 = vmatpush.bf16.msra.mxu0 %v6985
    %7126 = vmatpush.bf16.msra.mxu0 %v6981
    %7127 = vmatpush.bf16.msra.mxu0 %v6977
    %7128 = vmatmul.bf16.gmra.mxu0 %v6686
    %v7129 = vpop.f32.mrf.mxu0
    %v7130 = vadd.f32 %v7117, %v7129
    %v7131 = vpop.f32.mrf.mxu0
    %7132 = vdwg.mxu0
    %7133 = vmatpush.bf16.msra.mxu0 %v6974
    %7134 = vmatpush.bf16.msra.mxu0 %v6970
    %7135 = vmatpush.bf16.msra.mxu0 %v6966
    %7136 = vmatpush.bf16.msra.mxu0 %v6962
    %7137 = vmatpush.bf16.msra.mxu0 %v6958
    %7138 = vmatpush.bf16.msra.mxu0 %v6954
    %7139 = vmatpush.bf16.msra.mxu0 %v6950
    %7140 = vmatpush.bf16.msra.mxu0 %v6946
    %7141 = vmatmul.bf16.gmra.mxu0 %v6685
    %v7142 = vpop.f32.mrf.mxu0
    %v7143 = vadd.f32 %v7075, %v7142
    %v7144 = vpop.f32.mrf.mxu0
    %7145 = vdwg.mxu0
    %7146 = vmatpush.bf16.msra.mxu0 %v7006
    %7147 = vmatpush.bf16.msra.mxu0 %v7002
    %7148 = vmatpush.bf16.msra.mxu0 %v6998
    %7149 = vmatpush.bf16.msra.mxu0 %v6994
    %7150 = vmatpush.bf16.msra.mxu0 %v6990
    %7151 = vmatpush.bf16.msra.mxu0 %v6986
    %7152 = vmatpush.bf16.msra.mxu0 %v6982
    %7153 = vmatpush.bf16.msra.mxu0 %v6978
    %7154 = vmatmul.bf16.gmra.mxu0 %v6686
    %v7155 = vpop.f32.mrf.mxu0
    %v7156 = vadd.f32 %v7143, %v7155
    %v7157 = vpop.f32.mrf.mxu0
    %7158 = vdwg.mxu0
    %7159 = vmatpush.bf16.msra.mxu0 %v6975
    %7160 = vmatpush.bf16.msra.mxu0 %v6971
    %7161 = vmatpush.bf16.msra.mxu0 %v6967
    %7162 = vmatpush.bf16.msra.mxu0 %v6963
    %7163 = vmatpush.bf16.msra.mxu0 %v6959
    %7164 = vmatpush.bf16.msra.mxu0 %v6955
    %7165 = vmatpush.bf16.msra.mxu0 %v6951
    %7166 = vmatpush.bf16.msra.mxu0 %v6947
    %7167 = vmatmul.bf16.gmra.mxu0 %v6685
    %v7168 = vpop.f32.mrf.mxu0
    %v7169 = vadd.f32 %v7076, %v7168
    %v7170 = vpop.f32.mrf.mxu0
    %7171 = vdwg.mxu0
    %7172 = vmatpush.bf16.msra.mxu0 %v7007
    %7173 = vmatpush.bf16.msra.mxu0 %v7003
    %7174 = vmatpush.bf16.msra.mxu0 %v6999
    %7175 = vmatpush.bf16.msra.mxu0 %v6995
    %7176 = vmatpush.bf16.msra.mxu0 %v6991
    %7177 = vmatpush.bf16.msra.mxu0 %v6987
    %7178 = vmatpush.bf16.msra.mxu0 %v6983
    %7179 = vmatpush.bf16.msra.mxu0 %v6979
    %7180 = vmatmul.bf16.gmra.mxu0 %v6686
    %v7181 = vpop.f32.mrf.mxu0
    %v7182 = vadd.f32 %v7169, %v7181
    %v7183 = vpop.f32.mrf.mxu0
    %7184 = vdwg.mxu0
    %v7185 = vxor.u32 %v7104, 2147483648
    %v7186 = vmul.f32 %v7185, 1.442695
    %v7187 = vpow.pop %v7186
    %v7188 = vadd.f32 %v7187, 1.0
    %v7189 = vrcp.pop %v7188
    %v7190 = vmul.f32 %v7188, %v7189
    %v7191 = vsub.f32 1.0, %v7190
    %v7192 = vmul.f32 %v7189, %v7191
    %v7193 = vadd.f32 %v7189, %v7192
    %vm7194 = vweird.f32 %v7188
    %vm7195 = vweird.f32 %v7189
    %vm7196 = vmor %vm7194, %vm7195
    %v7197 = vsel %vm7196, %v7189, %v7193
    %v7198 = vand.u32 2147483647, %v7188
    %vm7199 = vcmp.eq.f32.partialorder %v7198, 8.507059e+37
    %v7200 = vand.u32 %v7188, 2147483648
    %v7201 = vor.u32 1.1754944e-38, %v7200
    %v7202 = vsel %vm7199, %v7201, %v7197
    %v7203 = vmul.f32 1.0, %v7202
    %v7204 = vxor.u32 %v7130, 2147483648
    %v7205 = vmul.f32 %v7204, 1.442695
    %v7206 = vpow.pop %v7205
    %v7207 = vadd.f32 %v7206, 1.0
    %v7208 = vrcp.pop %v7207
    %v7209 = vmul.f32 %v7207, %v7208
    %v7210 = vsub.f32 1.0, %v7209
    %v7211 = vmul.f32 %v7208, %v7210
    %v7212 = vadd.f32 %v7208, %v7211
    %vm7213 = vweird.f32 %v7207
    %vm7214 = vweird.f32 %v7208
    %vm7215 = vmor %vm7213, %vm7214
    %v7216 = vsel %vm7215, %v7208, %v7212
    %v7217 = vand.u32 2147483647, %v7207
    %vm7218 = vcmp.eq.f32.partialorder %v7217, 8.507059e+37
    %v7219 = vand.u32 %v7207, 2147483648
    %v7220 = vor.u32 1.1754944e-38, %v7219
    %v7221 = vsel %vm7218, %v7220, %v7216
    %v7222 = vmul.f32 1.0, %v7221
    %v7223 = vtanh.pop %v7156
    %v7224 = vxor.u32 %v7182, 2147483648
    %v7225 = vmul.f32 %v7224, 1.442695
    %v7226 = vpow.pop %v7225
    %v7227 = vadd.f32 %v7226, 1.0
    %v7228 = vrcp.pop %v7227
    %v7229 = vmul.f32 %v7227, %v7228
    %v7230 = vsub.f32 1.0, %v7229
    %v7231 = vmul.f32 %v7228, %v7230
    %v7232 = vadd.f32 %v7228, %v7231
    %vm7233 = vweird.f32 %v7227
    %vm7234 = vweird.f32 %v7228
    %vm7235 = vmor %vm7233, %vm7234
    %v7236 = vsel %vm7235, %v7228, %v7232
    %v7237 = vand.u32 2147483647, %v7227
    %vm7238 = vcmp.eq.f32.partialorder %v7237, 8.507059e+37
    %v7239 = vand.u32 %v7227, 2147483648
    %v7240 = vor.u32 1.1754944e-38, %v7239
    %v7241 = vsel %vm7238, %v7240, %v7236
    %v7242 = vmul.f32 1.0, %v7241
    %v7243 = vmul.f32 %v7222, %v6349
    %v7244 = vmul.f32 %v7203, %v7223
    %v7245 = vadd.f32 %v7243, %v7244
    %v7246 = vtanh.pop %v7245
    %v7247 = vmul.f32 %v7242, %v7246
    %7248 = vst [vmem:[#allocation2 + $0x7] sm:$0x1] %v7247
    %v7249 = vld [vmem:[#allocation6 + $0x3] ss:$0 sm:$0xff]
    %s7250 = sld [smem:[#allocation3 + $0x8]]
    %v7251 = vld [vmem:[#allocation2] sm:$0xff]
    %v7252 = vmul.f32 %v7251, %v7249
    %7253 = vadd.xlane.f32.xlu0 %v7252
    %v7254 = vpop.xlane.xlu0 %7253
    %v7255 = vstv %s7250
    %v7256 = vadd.f32 %v7254, %v7255
    %vm7257 = vcmask 7168
    %7258 = vst.msk [vmem:[%s4] sm:$0xff] %vm7257, %v7256
    // Predicated region
    $region34: #{tpu_custom_call.1} parent=1 // pred_check
      _
    $region35: #{tpu_custom_call.1} parent=1 // pred_check_branch
      %7260 = sbr.rel (0) target = $region37
    $region36: #{tpu_custom_call.1} parent=1 // pred_region
      _
    $region37: #{tpu_custom_call.1} parent=1 // pred_fallthru
      _
    // Predicated region
    $region38: #{tpu_custom_call.1} parent=1 // pred_check
      _
    $region39: #{tpu_custom_call.1} parent=1 // pred_check_branch
      %7262 = sbr.rel (0) target = $region41
    $region40: #{tpu_custom_call.1} parent=1 // pred_region
      _
    $region41: #{tpu_custom_call.1} parent=1 // pred_fallthru
      _
    %7263 = vsyncpa [#allocation4], 1
    %7264 = vsyncpa [#allocation8], 1
    %7265 = vsyncpa [#allocation5], 1

</llo_original>
